<compile_context>
chip_gen: v5e
topology: v5e:2x2
jax: 0.10.0
libtpu: 0.0.40
codegen_flags: <defaults>
</compile_context>

<pallas_src>
import functools
import math

import jax
import jax.numpy as jnp
from jax.experimental import pallas as pl
from jax.experimental.pallas import tpu as pltpu


# ----------------------------------------------------------------------------
# Glue: F.interpolate(mode='linear', align_corners=False) on (B, C, L)
# ----------------------------------------------------------------------------
def _interp_linear(x, out_len):
    l_in = x.shape[-1]
    if out_len == l_in:
        return x
    scale = l_in / out_len
    pos = (jnp.arange(out_len, dtype=jnp.float32) + 0.5) * scale - 0.5
    pos = jnp.clip(pos, 0.0, float(l_in - 1))
    idx0 = jnp.floor(pos).astype(jnp.int32)
    idx1 = jnp.minimum(idx0 + 1, l_in - 1)
    frac = pos - idx0.astype(jnp.float32)
    x0 = jnp.take(x, idx0, axis=-1)
    x1 = jnp.take(x, idx1, axis=-1)
    return x0 * (1.0 - frac) + x1 * frac


# ----------------------------------------------------------------------------
# Pallas kernel: fused harmonic-sine synthesis + uv mask + noise + Linear + tanh
# ----------------------------------------------------------------------------
def _source_kernel(phase_ref, f0_ref, z_ref, w_ref, scal_ref, merge_ref, *,
                   sine_amp, noise_std, voiced_threshold):
    phase = phase_ref[0]                                  # (dim, tile_l)
    f0 = f0_ref[0]                                        # (1, tile_l)
    z = z_ref[0]                                          # (1, tile_l) ~ N(0,1)
    w_col = w_ref[...]                                    # (dim, 1) linear weights
    bias = scal_ref[0]                                    # linear bias
    w_norm = scal_ref[1]                                  # ||w||_2

    voiced = f0 > voiced_threshold                        # (1, tile_l) bool
    uv = voiced.astype(jnp.float32)
    noise_amp = jnp.where(voiced, noise_std, sine_amp / 3.0)

    # Linear(dim -> 1) over the harmonic sines: one lane-broadcast multiply plus a
    # cross-sublane reduce (XLU slot), no (dim, tile_l) temporaries besides sin().
    s = jnp.sum(w_col * jnp.sin(phase), axis=0, keepdims=True)    # (1, tile_l)

    # Per-harmonic noise collapsed: sum_h w_h * randn_h  ==  ||w||_2 * z  (in dist.)
    merged = sine_amp * uv * s + noise_amp * w_norm * z + bias
    merge_ref[0] = jnp.tanh(merged)


# ----------------------------------------------------------------------------
# Forward pass (matches SourceModuleHnNSF.forward semantics)
# ----------------------------------------------------------------------------
@functools.partial(jax.jit, static_argnames=(
    "sampling_rate", "upsample_scale", "harmonic_num", "sine_amp",
    "add_noise_std", "voiced_threshold", "tile_l"))
def source_module_hn_nsf(f0, w, b, rand_key, *, sampling_rate, upsample_scale,
                         harmonic_num, sine_amp, add_noise_std,
                         voiced_threshold, tile_l=4096):
    """f0: (B, L, 1) sample-rate F0 contour.  Returns (sine_merge, noise, uv),
    each (B, L, 1) float32."""
    B, L, _ = f0.shape
    dim = harmonic_num + 1
    assert L % upsample_scale == 0

    k_ini, k_z, k_out = jax.random.split(rand_key, 3)

    # ---- SineGen phase preparation (XLA glue, kept in (B, dim, L) layout) ----
    f0_l = jnp.transpose(f0, (0, 2, 1)).astype(jnp.float32)        # (B, 1, L)
    harmonics = jnp.arange(1, dim + 1, dtype=jnp.float32)
    fn = f0_l * harmonics[None, :, None]                           # (B, dim, L)
    rad = jnp.mod(fn / float(sampling_rate), 1.0)

    rand_ini = jax.random.uniform(k_ini, (B, dim), jnp.float32)
    rand_ini = rand_ini.at[:, 0].set(0.0)
    rad = rad.at[:, :, 0].add(rand_ini)

    l_down = int(L // upsample_scale)
    rad_down = _interp_linear(rad, l_down)                         # downsample
    phase_down = jnp.cumsum(rad_down, axis=-1) * (2.0 * math.pi)   # integrate phase
    phase = _interp_linear(phase_down * float(upsample_scale), L)  # upsample back
    # wrap mod 2*pi: keeps f32 sin() accurate for long utterances (pure improvement)
    phase = jnp.mod(phase, 2.0 * math.pi)

    # uv and the module's independent output noise need no kernel at all
    uv_blc = (f0.astype(jnp.float32) > voiced_threshold).astype(jnp.float32)
    noise_blc = jax.random.normal(k_out, (B, L, 1), jnp.float32) * (sine_amp / 3.0)

    # single N(0,1) row feeding the (collapsed) per-harmonic noise of the merge path
    z = jax.random.normal(k_z, (B, 1, L), jnp.float32)

    # linear weights / scalars
    w_col = w.reshape(-1, 1).astype(jnp.float32)                   # (dim, 1)
    w_norm = jnp.sqrt(jnp.sum(w_col * w_col))
    scal = jnp.stack([b.reshape(()).astype(jnp.float32), w_norm])  # [bias, ||w||]

    # ---- fused Pallas kernel over lane-dense (batch, L-tile) grid ----
    if L % tile_l != 0 or tile_l > L:
        tile_l = next((c for c in (8192, 4096, 2048, 1024, 512, 256, 128)
                       if c <= L and L % c == 0), L)
    grid = (B, L // tile_l)   # keep B parallel so v7x's 2 TCs both get work

    kernel = functools.partial(
        _source_kernel, sine_amp=float(sine_amp),
        noise_std=float(add_noise_std),
        voiced_threshold=float(voiced_threshold))

    blk = lambda bi, ti: (bi, 0, ti)
    out3 = jax.ShapeDtypeStruct((B, 1, L), jnp.float32)

    sine_merge = pl.pallas_call(
        kernel,
        out_shape=out3,
        grid_spec=pltpu.PrefetchScalarGridSpec(
            num_scalar_prefetch=0,
            grid=grid,
            in_specs=[
                pl.BlockSpec((1, dim, tile_l), blk),               # phase
                pl.BlockSpec((1, 1, tile_l), blk),                 # f0 (for uv mask)
                pl.BlockSpec((1, 1, tile_l), blk),                 # z (merge-path noise)
                pl.BlockSpec((dim, 1), lambda bi, ti: (0, 0)),     # linear weights (VMEM)
                pl.BlockSpec(memory_space=pltpu.MemorySpace.SMEM), # [bias, ||w||] scalars
            ],
            out_specs=pl.BlockSpec((1, 1, tile_l), blk),           # sine_merge
        ),
        compiler_params=pltpu.CompilerParams(
            dimension_semantics=("parallel", "parallel"),
        ),
    )(phase, f0_l, z, w_col, scal)

    sine_merge = jnp.transpose(sine_merge, (0, 2, 1))              # back to (B, L, 1)
    return sine_merge, noise_blc, uv_blc


# ----------------------------------------------------------------------------
if __name__ == "__main__":
    # small deterministic config / inputs
    B, L = 2, 4096
    sampling_rate = 24000
    upsample_scale = 8          # small demo value (product of generator upsample rates)
    harmonic_num = 8            # -> dim = 9
    sine_amp = 0.1
    add_noise_std = 0.003
    voiced_threshold = 0.0

    key = jax.random.PRNGKey(0)
    k_w, k_b, k_v, k_rng = jax.random.split(key, 4)

    dim = harmonic_num + 1
    bound = 1.0 / math.sqrt(dim)                 # nn.Linear(dim, 1) default init
    w = jax.random.uniform(k_w, (dim,), jnp.float32, -bound, bound)
    b = jax.random.uniform(k_b, (1,), jnp.float32, -bound, bound)

    # F0 contour at sample rate: slowly varying pitch with some unvoiced samples
    tgrid = jnp.arange(L, dtype=jnp.float32) / sampling_rate
    f0_base = 150.0 + 50.0 * jnp.sin(2.0 * math.pi * 2.0 * tgrid)
    voiced = (jax.random.uniform(k_v, (B, L)) > 0.2).astype(jnp.float32)
    f0 = (f0_base[None, :] * voiced)[..., None]  # (B, L, 1)

    sine_merge, noise, uv = source_module_hn_nsf(
        f0, w, b, k_rng,
        sampling_rate=sampling_rate, upsample_scale=upsample_scale,
        harmonic_num=harmonic_num, sine_amp=sine_amp,
        add_noise_std=add_noise_std, voiced_threshold=voiced_threshold)

    jax.block_until_ready((sine_merge, noise, uv))

    assert sine_merge.shape == (B, L, 1)
    assert noise.shape == (B, L, 1)
    assert uv.shape == (B, L, 1)
    assert bool(jnp.isfinite(sine_merge).all())
    assert bool(jnp.isfinite(noise).all())
    assert bool(jnp.isfinite(uv).all())
    assert bool((jnp.abs(sine_merge) <= 1.0).all())        # tanh range
    assert bool(jnp.all((uv == 0.0) | (uv == 1.0)))

    print("KERNEL_OK")
</pallas_src>

<mosaic_0001>
module attributes {stable_mosaic.version = 11 : i64} {
  func.func @_source_kernel(%arg0: i32, %arg1: i32, %arg2: memref<1x9x4096xf32, #tpu.memory_space<vmem>>, %arg3: memref<1x1x4096xf32, #tpu.memory_space<vmem>>, %arg4: memref<1x1x4096xf32, #tpu.memory_space<vmem>>, %arg5: memref<9x1xf32, #tpu.memory_space<vmem>>, %arg6: memref<2xf32, #tpu.memory_space<smem>>, %arg7: memref<1x1x4096xf32, #tpu.memory_space<vmem>>) attributes {dimension_semantics = [#tpu.dimension_semantics<parallel>, #tpu.dimension_semantics<parallel>], iteration_bounds = array<i64: 2, 1>, scalar_prefetch = 0 : i64, scratch_operands = 0 : i64, tpu.core_type = #tpu.core_type<tc>, window_params = [{transform_indices = @transform_0, window_bounds = array<i64: 1, 9, 4096>}, {transform_indices = @transform_1, window_bounds = array<i64: 1, 1, 4096>}, {transform_indices = @transform_2, window_bounds = array<i64: 1, 1, 4096>}, {pipeline_mode = #tpu.pipeline_mode<synchronous>, transform_indices = @transform_3, window_bounds = array<i64: 9, 1>}, {transform_indices = @transform_4, window_bounds = array<i64: 2>}, {transform_indices = @transform_5, window_bounds = array<i64: 1, 1, 4096>}]} {
    %c0 = arith.constant 0 : index
    %c0_0 = arith.constant 0 : index
    %c0_1 = arith.constant 0 : index
    %0 = vector.load %arg2[%c0, %c0_0, %c0_1] : memref<1x9x4096xf32, #tpu.memory_space<vmem>>, vector<1x9x4096xf32>
    %1 = vector.shape_cast %0 : vector<1x9x4096xf32> to vector<9x4096xf32>
    %c0_2 = arith.constant 0 : index
    %c0_3 = arith.constant 0 : index
    %c0_4 = arith.constant 0 : index
    %2 = vector.load %arg3[%c0_2, %c0_3, %c0_4] : memref<1x1x4096xf32, #tpu.memory_space<vmem>>, vector<1x1x4096xf32>
    %3 = vector.shape_cast %2 : vector<1x1x4096xf32> to vector<1x4096xf32>
    %c0_5 = arith.constant 0 : index
    %c0_6 = arith.constant 0 : index
    %c0_7 = arith.constant 0 : index
    %4 = vector.load %arg4[%c0_5, %c0_6, %c0_7] : memref<1x1x4096xf32, #tpu.memory_space<vmem>>, vector<1x1x4096xf32>
    %5 = vector.shape_cast %4 : vector<1x1x4096xf32> to vector<1x4096xf32>
    %c0_8 = arith.constant 0 : index
    %c0_9 = arith.constant 0 : index
    %6 = vector.load %arg5[%c0_8, %c0_9] : memref<9x1xf32, #tpu.memory_space<vmem>>, vector<9x1xf32>
    %c0_10 = arith.constant 0 : index
    %7 = memref.load %arg6[%c0_10] : memref<2xf32, #tpu.memory_space<smem>>
    %c1 = arith.constant 1 : index
    %8 = memref.load %arg6[%c1] : memref<2xf32, #tpu.memory_space<smem>>
    %cst = arith.constant 0.000000e+00 : f32
    %9 = vector.broadcast %cst : f32 to vector<1x4096xf32>
    %10 = arith.cmpf ogt, %3, %9 : vector<1x4096xf32>
    %11 = arith.extui %10 : vector<1x4096xi1> to vector<1x4096xi32>
    %12 = arith.sitofp %11 : vector<1x4096xi32> to vector<1x4096xf32>
    %cst_11 = arith.constant 3.000000e-03 : f32
    %cst_12 = arith.constant 0.0333333351 : f32
    %13 = vector.broadcast %cst_11 : f32 to vector<1x4096xf32>
    %14 = vector.broadcast %cst_12 : f32 to vector<1x4096xf32>
    %15 = arith.select %10, %13, %14 : vector<1x4096xi1>, vector<1x4096xf32>
    %16 = math.sin %1 : vector<9x4096xf32>
    %17 = vector.broadcast %6 : vector<9x1xf32> to vector<9x4096xf32>
    %18 = arith.mulf %17, %16 : vector<9x4096xf32>
    %cst_13 = arith.constant dense<0.000000e+00> : vector<4096xf32>
    %19 = vector.multi_reduction <add>, %18, %cst_13 [0] : vector<9x4096xf32> to vector<4096xf32>
    %20 = vector.shape_cast %19 : vector<4096xf32> to vector<1x4096xf32>
    %cst_14 = arith.constant 1.000000e-01 : f32
    %21 = vector.broadcast %cst_14 : f32 to vector<1x4096xf32>
    %22 = arith.mulf %21, %12 : vector<1x4096xf32>
    %23 = arith.mulf %22, %20 : vector<1x4096xf32>
    %24 = vector.broadcast %8 : f32 to vector<1x4096xf32>
    %25 = arith.mulf %15, %24 : vector<1x4096xf32>
    %26 = arith.mulf %25, %5 : vector<1x4096xf32>
    %27 = arith.addf %23, %26 : vector<1x4096xf32>
    %28 = vector.broadcast %7 : f32 to vector<1x4096xf32>
    %29 = arith.addf %27, %28 : vector<1x4096xf32>
    %30 = math.tanh %29 : vector<1x4096xf32>
    %c0_15 = arith.constant 0 : index
    %c0_16 = arith.constant 0 : index
    %c0_17 = arith.constant 0 : index
    %31 = vector.load %arg7[%c0_15, %c0_16, %c0_17] : memref<1x1x4096xf32, #tpu.memory_space<vmem>>, vector<1x1x4096xf32>
    %32 = vector.shape_cast %31 : vector<1x1x4096xf32> to vector<1x4096xf32>
    %33 = vector.shape_cast %30 : vector<1x4096xf32> to vector<1x1x4096xf32>
    tpu.vector_store %arg7[%c0_15, %c0_16, %c0_17], %33 {strides = array<i32>} : memref<1x1x4096xf32, #tpu.memory_space<vmem>>, vector<1x1x4096xf32>,
    return
  }
  func.func @transform_0(%arg0: i32, %arg1: i32) -> (i32, i32, i32) {
    %c0_i32 = arith.constant 0 : i32
    %c0_i32_0 = arith.constant 0 : i32
    return %arg0, %c0_i32, %arg1 : i32, i32, i32
  }
  func.func @transform_1(%arg0: i32, %arg1: i32) -> (i32, i32, i32) {
    %c0_i32 = arith.constant 0 : i32
    %c0_i32_0 = arith.constant 0 : i32
    return %arg0, %c0_i32, %arg1 : i32, i32, i32
  }
  func.func @transform_2(%arg0: i32, %arg1: i32) -> (i32, i32, i32) {
    %c0_i32 = arith.constant 0 : i32
    %c0_i32_0 = arith.constant 0 : i32
    return %arg0, %c0_i32, %arg1 : i32, i32, i32
  }
  func.func @transform_3(%arg0: i32, %arg1: i32) -> (i32, i32) {
    %c0_i32 = arith.constant 0 : i32
    %c0_i32_0 = arith.constant 0 : i32
    %c0_i32_1 = arith.constant 0 : i32
    return %c0_i32, %c0_i32_0 : i32, i32
  }
  func.func @transform_4(%arg0: i32, %arg1: i32) -> i32 {
    %c0_i32 = arith.constant 0 : i32
    %c0_i32_0 = arith.constant 0 : i32
    return %c0_i32 : i32
  }
  func.func @transform_5(%arg0: i32, %arg1: i32) -> (i32, i32, i32) {
    %c0_i32 = arith.constant 0 : i32
    %c0_i32_0 = arith.constant 0 : i32
    return %arg0, %c0_i32, %arg1 : i32, i32, i32
  }
}

</mosaic_0001>

<llo_original>
// kernel: source_module_hn_nsf.3
$region0: #{source_module_hn_nsf.3}
  #allocation0 [shape = 'u32[]', space=smem, size = 0x4, offset = 0x4, fixed_abs, tag = 'smem constant byte address 0x4 - core index']
  #allocation1 [shape = 'u32[72,128]{1,0:T(1,128)}', space=vmem, size = 0x9000, scoped, tag = 'internal scratch']
  %s0 = inlined_call_operand.vmem [shape: f32[2,9,4096], index: 0, kind: input, shape index: {}]
  %s1 = inlined_call_operand.vmem [shape: f32[2,1,4096], index: 1, kind: input, shape index: {}]
  %s2 = inlined_call_operand.vmem [shape: f32[2,1,4096], index: 2, kind: input, shape index: {}]
  %s3 = inlined_call_operand.vmem [shape: f32[9,1], index: 3, kind: input, shape index: {}]
  %s4 = inlined_call_operand.vmem [shape: f32[2], index: 4, kind: input, shape index: {}]
  %s5 = inlined_call_operand.hbm [shape: f32[2,1,4096], index: 5, kind: output, shape index: {}]
  %s6 = sld [smem:[#allocation0]]
  $region57: #{source_module_hn_nsf.3} parent=0
    _
  %s8 = ssub.s32 1, %s6
  %s9 = scalar_select 0, %s8, %s6
  $region1: #{source_module_hn_nsf.3} parent=0
    #allocation2 [shape = 'u8[512]{0}', space=smem, size = 0x200, scoped, tag = 'input window, operand 4, single buffered']
    #allocation3 [shape = 's32[2]{0}', space=sflag, size = 0x8, scoped, tag = 'scoped memory for source_module_hn_nsf.3']
    #allocation4 [shape = 's32[2]{0}', space=sflag, size = 0x8, scoped, tag = 'scoped memory for source_module_hn_nsf.3']
    #allocation5 [shape = 'u8[32768]{0}', space=vmem, size = 0x8000, scoped, tag = 'output window, operand 0']
    %10 = vsyncpa [#allocation4], 0
    %11 = vsyncpa [#allocation3], 0
    %s12 = scalar_lea.sflag [#allocation3], 1
    %13 = vsyncpa %s12, 0
    loop: start=0, step=1, limit=4
    $region2: #{source_module_hn_nsf.3} parent=1 // loop_pre_header
      _
    $region3: #{source_module_hn_nsf.3} parent=1 // loop_header
      %s15 = sphi 0, %s19
      %p16 = scmp.ge.s32.totalorder %s15, 4
      %s22 = sphi 0, %s34
      %s23 = sphi 0, %s30
      %s24 = sphi 0, %s22
      %s25 = sphi 0, %s23
      %s26 = sphi 0, %s24
      %s27 = sphi 0, %s25
      %s39 = sphi 0, %s41
      %s42 = sphi 0, %s39
      %s43 = sphi 0, %s42
      %s59 = sphi 0, %s43
      %s67 = sphi 0, %s69
      %s70 = sphi 0, %s67
      %s71 = sphi 0, %s70
      %s87 = sphi 0, %s71
      %s95 = sphi 0, %s97
      %s98 = sphi 0, %s95
      %s99 = sphi 0, %s98
      %s115 = sphi 0, %s99
      %s119 = sphi 0, %s119
      %s121 = sphi 0, %s119
      %s122 = sphi 0, %s121
      %s136 = sphi 0, %s122
      %s140 = sphi 0, %s140
      %s142 = sphi 0, %s140
      %s143 = sphi 0, %s142
      %s157 = sphi 0, %s143
      %s165 = sphi 0, %s167
      %s168 = sphi 0, %s165
      %s169 = sphi 0, %s168
      %s185 = sphi 0, %s169
    $region4: #{source_module_hn_nsf.3} parent=1 // loop_header_branch
      %18 = sbr.rel (%p16) target = $region8
    $region5: #{source_module_hn_nsf.3} parent=1 // loop_body
      %s20 = ssub.s32 %s15, 1
      %s21 = ssub.s32 %s15, 2
      %s28 = sadd.s32 1, %s23
      %p29 = scmp.ge.s32.totalorder %s28, 1
      %s30 = scalar_select %p29, 0, %s28
      %s31 = sadd.s32 1, %s22
      %s32 = scalar_select %p29, %s31, %s22
      %p33 = scmp.ge.s32.totalorder %s32, 2
      %s34 = scalar_select %p33, 0, %s32
      %s35 = ssub.s32 %s22, %s34
      %s36 = ssub.s32 %s23, %s30
      %s37 = sor.u32 %s35, %s36
      %p38 = scmp.eq.s32.totalorder %s37, 0
      %s40 = sadd.s32 %s39, 1
      %s41 = scalar_select %p38, %s39, %s40
      %p44 = pneg %p38
      %p45 = scmp.eq.s32.totalorder %s15, 1
      %p46 = por %p44, %p45
      %p47 = scmp.ne.s32.totalorder %s39, %s42
      %p48 = scmp.eq.s32.totalorder %s15, 0
      %p49 = por %p47, %p48
      %p50 = scmp.ne.s32.totalorder %s39, %s42
      %p51 = scmp.eq.s32.totalorder %s20, 1
      %p52 = por %p50, %p51
      %p53 = scmp.ne.s32.totalorder %s42, %s43
      %p54 = scmp.eq.s32.totalorder %s20, 0
      %p55 = por %p53, %p54
      %p56 = scmp.ne.s32.totalorder %s42, %s43
      %p57 = scmp.eq.s32.totalorder %s21, 1
      %p58 = por %p56, %p57
      %p60 = scmp.ne.s32.totalorder %s43, %s59
      %p61 = scmp.eq.s32.totalorder %s21, 0
      %p62 = por %p60, %p61
      %s63 = ssub.s32 %s22, %s34
      %s64 = ssub.s32 %s23, %s30
      %s65 = sor.u32 %s63, %s64
      %p66 = scmp.eq.s32.totalorder %s65, 0
      %s68 = sadd.s32 %s67, 1
      %s69 = scalar_select %p66, %s67, %s68
      %p72 = pneg %p66
      %p73 = scmp.eq.s32.totalorder %s15, 1
      %p74 = por %p72, %p73
      %p75 = scmp.ne.s32.totalorder %s67, %s70
      %p76 = scmp.eq.s32.totalorder %s15, 0
      %p77 = por %p75, %p76
      %p78 = scmp.ne.s32.totalorder %s67, %s70
      %p79 = scmp.eq.s32.totalorder %s20, 1
      %p80 = por %p78, %p79
      %p81 = scmp.ne.s32.totalorder %s70, %s71
      %p82 = scmp.eq.s32.totalorder %s20, 0
      %p83 = por %p81, %p82
      %p84 = scmp.ne.s32.totalorder %s70, %s71
      %p85 = scmp.eq.s32.totalorder %s21, 1
      %p86 = por %p84, %p85
      %p88 = scmp.ne.s32.totalorder %s71, %s87
      %p89 = scmp.eq.s32.totalorder %s21, 0
      %p90 = por %p88, %p89
      %s91 = ssub.s32 %s22, %s34
      %s92 = ssub.s32 %s23, %s30
      %s93 = sor.u32 %s91, %s92
      %p94 = scmp.eq.s32.totalorder %s93, 0
      %s96 = sadd.s32 %s95, 1
      %s97 = scalar_select %p94, %s95, %s96
      %p100 = pneg %p94
      %p101 = scmp.eq.s32.totalorder %s15, 1
      %p102 = por %p100, %p101
      %p103 = scmp.ne.s32.totalorder %s95, %s98
      %p104 = scmp.eq.s32.totalorder %s15, 0
      %p105 = por %p103, %p104
      %p106 = scmp.ne.s32.totalorder %s95, %s98
      %p107 = scmp.eq.s32.totalorder %s20, 1
      %p108 = por %p106, %p107
      %p109 = scmp.ne.s32.totalorder %s98, %s99
      %p110 = scmp.eq.s32.totalorder %s20, 0
      %p111 = por %p109, %p110
      %p112 = scmp.ne.s32.totalorder %s98, %s99
      %p113 = scmp.eq.s32.totalorder %s21, 1
      %p114 = por %p112, %p113
      %p116 = scmp.ne.s32.totalorder %s99, %s115
      %p117 = scmp.eq.s32.totalorder %s21, 0
      %p118 = por %p116, %p117
      %s120 = sadd.s32 %s119, 1
      %p123 = scmp.eq.s32.totalorder %s15, 1
      %p124 = scmp.ne.s32.totalorder %s119, %s121
      %p125 = scmp.eq.s32.totalorder %s15, 0
      %p126 = por %p124, %p125
      %p127 = scmp.ne.s32.totalorder %s119, %s121
      %p128 = scmp.eq.s32.totalorder %s20, 1
      %p129 = por %p127, %p128
      %p130 = scmp.ne.s32.totalorder %s121, %s122
      %p131 = scmp.eq.s32.totalorder %s20, 0
      %p132 = por %p130, %p131
      %p133 = scmp.ne.s32.totalorder %s121, %s122
      %p134 = scmp.eq.s32.totalorder %s21, 1
      %p135 = por %p133, %p134
      %p137 = scmp.ne.s32.totalorder %s122, %s136
      %p138 = scmp.eq.s32.totalorder %s21, 0
      %p139 = por %p137, %p138
      %s141 = sadd.s32 %s140, 1
      %p144 = scmp.eq.s32.totalorder %s15, 1
      %p145 = scmp.ne.s32.totalorder %s140, %s142
      %p146 = scmp.eq.s32.totalorder %s15, 0
      %p147 = por %p145, %p146
      %p148 = scmp.ne.s32.totalorder %s140, %s142
      %p149 = scmp.eq.s32.totalorder %s20, 1
      %p150 = por %p148, %p149
      %p151 = scmp.ne.s32.totalorder %s142, %s143
      %p152 = scmp.eq.s32.totalorder %s20, 0
      %p153 = por %p151, %p152
      %p154 = scmp.ne.s32.totalorder %s142, %s143
      %p155 = scmp.eq.s32.totalorder %s21, 1
      %p156 = por %p154, %p155
      %p158 = scmp.ne.s32.totalorder %s143, %s157
      %p159 = scmp.eq.s32.totalorder %s21, 0
      %p160 = por %p158, %p159
      %s161 = ssub.s32 %s22, %s34
      %s162 = ssub.s32 %s23, %s30
      %s163 = sor.u32 %s161, %s162
      %p164 = scmp.eq.s32.totalorder %s163, 0
      %s166 = sadd.s32 %s165, 1
      %s167 = scalar_select %p164, %s165, %s166
      %p170 = pneg %p164
      %p171 = scmp.eq.s32.totalorder %s15, 1
      %p172 = por %p170, %p171
      %p173 = scmp.ne.s32.totalorder %s165, %s168
      %p174 = scmp.eq.s32.totalorder %s15, 0
      %p175 = por %p173, %p174
      %p176 = scmp.ne.s32.totalorder %s165, %s168
      %p177 = scmp.eq.s32.totalorder %s20, 1
      %p178 = por %p176, %p177
      %p179 = scmp.ne.s32.totalorder %s168, %s169
      %p180 = scmp.eq.s32.totalorder %s20, 0
      %p181 = por %p179, %p180
      %p182 = scmp.ne.s32.totalorder %s168, %s169
      %p183 = scmp.eq.s32.totalorder %s21, 1
      %p184 = por %p182, %p183
      %p186 = scmp.ne.s32.totalorder %s169, %s185
      %p187 = scmp.eq.s32.totalorder %s21, 0
      %p188 = por %p186, %p187
      %p189 = scmp.le.s32.totalorder 1, %s15
      %p190 = scmp.lt.s32.totalorder %s15, 3
      %p191 = pnand %p189, %p190
      %p192 = pneg %p191
      // Predicated region
      $region9: #{source_module_hn_nsf.3} parent=5 // pred_check
        _
      $region10: #{source_module_hn_nsf.3} parent=5 // pred_check_branch
        %194 = sbr.rel (%p191) target = $region12
      $region11: #{source_module_hn_nsf.3} parent=5 // pred_region
        %s195 = ssub.s32 %s15, 1
        // Predicated region
        $region13: #{source_module_hn_nsf.3} parent=11 // pred_check
          %p196 = pneg %p132
        $region14: #{source_module_hn_nsf.3} parent=11 // pred_check_branch
          %198 = sbr.rel (%p196) target = $region16
        $region15: #{source_module_hn_nsf.3} parent=11 // pred_region
          _
        $region16: #{source_module_hn_nsf.3} parent=11 // pred_fallthru
          _
        // Predicated region
        $region17: #{source_module_hn_nsf.3} parent=11 // pred_check
          %p199 = pneg %p153
        $region18: #{source_module_hn_nsf.3} parent=11 // pred_check_branch
          %201 = sbr.rel (%p199) target = $region20
        $region19: #{source_module_hn_nsf.3} parent=11 // pred_region
          %203 = vsyncadd [#allocation4], 0
          %s205 = sshll.u32 %s4, 4
          %s206 = int_to_ptr.vmem [resolvable:$true] %s205
          %208 = dma.vmem_to_smem %s206, 16, [#allocation2], [#allocation4]
        $region20: #{source_module_hn_nsf.3} parent=11 // pred_fallthru
          _
      $region12: #{source_module_hn_nsf.3} parent=5 // pred_fallthru
        _
      %p209 = scmp.lt.s32.totalorder %s15, 2
      // Predicated region
      $region21: #{source_module_hn_nsf.3} parent=5 // pred_check
        %p210 = pneg %p209
      $region22: #{source_module_hn_nsf.3} parent=5 // pred_check_branch
        %212 = sbr.rel (%p210) target = $region24
      $region23: #{source_module_hn_nsf.3} parent=5 // pred_region
        // Predicated region
        $region25: #{source_module_hn_nsf.3} parent=23 // pred_check
          %p213 = pneg %p49
        $region26: #{source_module_hn_nsf.3} parent=23 // pred_check_branch
          %215 = sbr.rel (%p213) target = $region28
        $region27: #{source_module_hn_nsf.3} parent=23 // pred_region
          %s216 = smul.u32 32, %s23
          %p217 = scmp.lt.s32.totalorder %s22, 1
          %s218 = scalar_select %p217, %s22, 1
          %p219 = scmp.lt.s32.totalorder %s216, 31
          %s220 = scalar_select %p219, %s216, 31
          %s221 = smul.addr %s218, 64
          %s222 = sadd.s32 %s220, %s221
          %s223 = smul.addr %s222, 8
          %s224 = scalar_lea.vmem %s0, %s223
          %s225 = smul.u32 32, %s23
        $region28: #{source_module_hn_nsf.3} parent=23 // pred_fallthru
          _
        // Predicated region
        $region29: #{source_module_hn_nsf.3} parent=23 // pred_check
          %p226 = pneg %p77
        $region30: #{source_module_hn_nsf.3} parent=23 // pred_check_branch
          %228 = sbr.rel (%p226) target = $region32
        $region31: #{source_module_hn_nsf.3} parent=23 // pred_region
          %s229 = smul.u32 32, %s23
          %p230 = scmp.lt.s32.totalorder %s22, 1
          %s231 = scalar_select %p230, %s22, 1
          %p232 = scmp.lt.s32.totalorder %s229, 31
          %s233 = scalar_select %p232, %s229, 31
          %s234 = smul.addr %s231, 32
          %s235 = sadd.s32 %s233, %s234
          %s236 = scalar_lea.vmem %s1, %s235
          %s237 = smul.u32 32, %s23
        $region32: #{source_module_hn_nsf.3} parent=23 // pred_fallthru
          _
        // Predicated region
        $region33: #{source_module_hn_nsf.3} parent=23 // pred_check
          %p238 = pneg %p105
        $region34: #{source_module_hn_nsf.3} parent=23 // pred_check_branch
          %240 = sbr.rel (%p238) target = $region36
        $region35: #{source_module_hn_nsf.3} parent=23 // pred_region
          %s241 = smul.u32 32, %s23
          %p242 = scmp.lt.s32.totalorder %s22, 1
          %s243 = scalar_select %p242, %s22, 1
          %p244 = scmp.lt.s32.totalorder %s241, 31
          %s245 = scalar_select %p244, %s241, 31
          %s246 = smul.addr %s243, 32
          %s247 = sadd.s32 %s245, %s246
          %s248 = scalar_lea.vmem %s2, %s247
          %s249 = smul.u32 32, %s23
        $region36: #{source_module_hn_nsf.3} parent=23 // pred_fallthru
          _
      $region24: #{source_module_hn_nsf.3} parent=5 // pred_fallthru
        _
      %p250 = scmp.le.s32.totalorder 1, %s15
      %p251 = scmp.lt.s32.totalorder %s15, 3
      %p252 = pnand %p250, %p251
      %p253 = pneg %p252
      // Predicated region
      $region37: #{source_module_hn_nsf.3} parent=5 // pred_check
        _
      $region38: #{source_module_hn_nsf.3} parent=5 // pred_check_branch
        %255 = sbr.rel (%p252) target = $region40
      $region39: #{source_module_hn_nsf.3} parent=5 // pred_region
        %s256 = ssub.s32 %s15, 1
        // Predicated region
        $region41: #{source_module_hn_nsf.3} parent=39 // pred_check
          %p257 = pneg %p153
        $region42: #{source_module_hn_nsf.3} parent=39 // pred_check_branch
          %259 = sbr.rel (%p257) target = $region44
        $region43: #{source_module_hn_nsf.3} parent=39 // pred_region
          %261 = dma.done [#allocation4], 16
        $region44: #{source_module_hn_nsf.3} parent=39 // pred_fallthru
          _
        %262 = sfence
        %s263 = smul.u32 32, %s25
        %p264 = scmp.lt.s32.totalorder %s24, 1
        %s265 = scalar_select %p264, %s24, 1
        %p266 = scmp.lt.s32.totalorder %s263, 31
        %s267 = scalar_select %p266, %s263, 31
        %s268 = smul.addr %s265, 64
        %s269 = sadd.s32 %s267, %s268
        %s270 = smul.addr %s269, 8
        %s271 = scalar_lea.vmem %s0, %s270
        %p272 = pneg %p55
        %p273 = pneg %p52
        %s274 = smul.u32 32, %s25
        %p275 = scmp.lt.s32.totalorder %s24, 1
        %s276 = scalar_select %p275, %s24, 1
        %p277 = scmp.lt.s32.totalorder %s274, 31
        %s278 = scalar_select %p277, %s274, 31
        %s279 = smul.addr %s276, 32
        %s280 = sadd.s32 %s278, %s279
        %s281 = scalar_lea.vmem %s1, %s280
        %p282 = pneg %p83
        %p283 = pneg %p80
        %s284 = smul.u32 32, %s25
        %p285 = scmp.lt.s32.totalorder %s24, 1
        %s286 = scalar_select %p285, %s24, 1
        %p287 = scmp.lt.s32.totalorder %s284, 31
        %s288 = scalar_select %p287, %s284, 31
        %s289 = smul.addr %s286, 32
        %s290 = sadd.s32 %s288, %s289
        %s291 = scalar_lea.vmem %s2, %s290
        %p292 = pneg %p111
        %p293 = pneg %p108
        %p294 = pneg %p132
        %p295 = pneg %p129
        %p296 = pneg %p153
        %p297 = pneg %p150
        %p298 = pneg %p181
        %p299 = pneg %p178
        %s300 = sand.u32 %s168, 1
        %s301 = scalar_lea.sflag [#allocation3], %s300
        %s302 = sand.u32 %s168, 1
        %s303 = smul.addr %s302, 32
        %s304 = scalar_lea.vmem [#allocation5], %s303
        %s305 = smul.u32 32, %s25
        %p306 = scmp.lt.s32.totalorder %s24, 1
        %s307 = scalar_select %p306, %s24, 1
        %p308 = scmp.lt.s32.totalorder %s305, 31
        %s309 = scalar_select %p308, %s305, 31
        %s310 = smul.addr %s307, 64
        %s311 = sadd.s32 %s309, %s310
        %s312 = smul.addr %s311, 8
        %s313 = scalar_lea.vmem %s0, %s312
        %s314 = smul.u32 32, %s25
        %s315 = smul.u32 32, %s25
        %p316 = scmp.lt.s32.totalorder %s24, 1
        %s317 = scalar_select %p316, %s24, 1
        %p318 = scmp.lt.s32.totalorder %s315, 31
        %s319 = scalar_select %p318, %s315, 31
        %s320 = smul.addr %s317, 32
        %s321 = sadd.s32 %s319, %s320
        %s322 = scalar_lea.vmem %s1, %s321
        %s323 = smul.u32 32, %s25
        %s324 = smul.u32 32, %s25
        %p325 = scmp.lt.s32.totalorder %s24, 1
        %s326 = scalar_select %p325, %s24, 1
        %p327 = scmp.lt.s32.totalorder %s324, 31
        %s328 = scalar_select %p327, %s324, 31
        %s329 = smul.addr %s326, 32
        %s330 = sadd.s32 %s328, %s329
        %s331 = scalar_lea.vmem %s2, %s330
        %s332 = smul.u32 32, %s25
        %s333 = smul.u32 32, %s25
        %v334 = vld [vmem:[%s313] sm:$0xff]
        %v335 = vld [vmem:[%s313 + $0x8] sm:$0xff]
        %v336 = vld [vmem:[%s313 + $0x10] sm:$0xff]
        %v337 = vld [vmem:[%s313 + $0x18] sm:$0xff]
        %v338 = vld [vmem:[%s313 + $0x20] sm:$0xff]
        %v339 = vld [vmem:[%s313 + $0x28] sm:$0xff]
        %v340 = vld [vmem:[%s313 + $0x30] sm:$0xff]
        %v341 = vld [vmem:[%s313 + $0x38] sm:$0xff]
        %v342 = vld [vmem:[%s313 + $0x40] sm:$0xff]
        %v343 = vld [vmem:[%s313 + $0x48] sm:$0xff]
        %v344 = vld [vmem:[%s313 + $0x50] sm:$0xff]
        %v345 = vld [vmem:[%s313 + $0x58] sm:$0xff]
        %v346 = vld [vmem:[%s313 + $0x60] sm:$0xff]
        %v347 = vld [vmem:[%s313 + $0x68] sm:$0xff]
        %v348 = vld [vmem:[%s313 + $0x70] sm:$0xff]
        %v349 = vld [vmem:[%s313 + $0x78] sm:$0xff]
        %v350 = vld [vmem:[%s313 + $0x80] sm:$0xff]
        %v351 = vld [vmem:[%s313 + $0x88] sm:$0xff]
        %v352 = vld [vmem:[%s313 + $0x90] sm:$0xff]
        %v353 = vld [vmem:[%s313 + $0x98] sm:$0xff]
        %v354 = vld [vmem:[%s313 + $0xa0] sm:$0xff]
        %v355 = vld [vmem:[%s313 + $0xa8] sm:$0xff]
        %v356 = vld [vmem:[%s313 + $0xb0] sm:$0xff]
        %v357 = vld [vmem:[%s313 + $0xb8] sm:$0xff]
        %v358 = vld [vmem:[%s313 + $0xc0] sm:$0xff]
        %v359 = vld [vmem:[%s313 + $0xc8] sm:$0xff]
        %v360 = vld [vmem:[%s313 + $0xd0] sm:$0xff]
        %v361 = vld [vmem:[%s313 + $0xd8] sm:$0xff]
        %v362 = vld [vmem:[%s313 + $0xe0] sm:$0xff]
        %v363 = vld [vmem:[%s313 + $0xe8] sm:$0xff]
        %v364 = vld [vmem:[%s313 + $0xf0] sm:$0xff]
        %v365 = vld [vmem:[%s313 + $0xf8] sm:$0xff]
        %v366 = vld [vmem:[%s313 + $0x100] sm:$0x1]
        %v367 = vld [vmem:[%s313 + $0x108] sm:$0x1]
        %v368 = vld [vmem:[%s313 + $0x110] sm:$0x1]
        %v369 = vld [vmem:[%s313 + $0x118] sm:$0x1]
        %v370 = vld [vmem:[%s313 + $0x120] sm:$0x1]
        %v371 = vld [vmem:[%s313 + $0x128] sm:$0x1]
        %v372 = vld [vmem:[%s313 + $0x130] sm:$0x1]
        %v373 = vld [vmem:[%s313 + $0x138] sm:$0x1]
        %v374 = vld [vmem:[%s313 + $0x140] sm:$0x1]
        %v375 = vld [vmem:[%s313 + $0x148] sm:$0x1]
        %v376 = vld [vmem:[%s313 + $0x150] sm:$0x1]
        %v377 = vld [vmem:[%s313 + $0x158] sm:$0x1]
        %v378 = vld [vmem:[%s313 + $0x160] sm:$0x1]
        %v379 = vld [vmem:[%s313 + $0x168] sm:$0x1]
        %v380 = vld [vmem:[%s313 + $0x170] sm:$0x1]
        %v381 = vld [vmem:[%s313 + $0x178] sm:$0x1]
        %v382 = vld [vmem:[%s313 + $0x180] sm:$0x1]
        %v383 = vld [vmem:[%s313 + $0x188] sm:$0x1]
        %v384 = vld [vmem:[%s313 + $0x190] sm:$0x1]
        %v385 = vld [vmem:[%s313 + $0x198] sm:$0x1]
        %v386 = vld [vmem:[%s313 + $0x1a0] sm:$0x1]
        %v387 = vld [vmem:[%s313 + $0x1a8] sm:$0x1]
        %v388 = vld [vmem:[%s313 + $0x1b0] sm:$0x1]
        %v389 = vld [vmem:[%s313 + $0x1b8] sm:$0x1]
        %v390 = vld [vmem:[%s313 + $0x1c0] sm:$0x1]
        %v391 = vld [vmem:[%s313 + $0x1c8] sm:$0x1]
        %v392 = vld [vmem:[%s313 + $0x1d0] sm:$0x1]
        %v393 = vld [vmem:[%s313 + $0x1d8] sm:$0x1]
        %v394 = vld [vmem:[%s313 + $0x1e0] sm:$0x1]
        %v395 = vld [vmem:[%s313 + $0x1e8] sm:$0x1]
        %v396 = vld [vmem:[%s313 + $0x1f0] sm:$0x1]
        %v397 = vld [vmem:[%s313 + $0x1f8] sm:$0x1]
        %v398 = vld [vmem:[%s322] sm:$0xff]
        %v399 = vld [vmem:[%s322 + $0x8] sm:$0xff]
        %v400 = vld [vmem:[%s322 + $0x10] sm:$0xff]
        %v401 = vld [vmem:[%s322 + $0x18] sm:$0xff]
        %v402 = vld [vmem:[%s331] sm:$0xff]
        %v403 = vld [vmem:[%s331 + $0x8] sm:$0xff]
        %v404 = vld [vmem:[%s331 + $0x10] sm:$0xff]
        %v405 = vld [vmem:[%s331 + $0x18] sm:$0xff]
        %v406 = vld [vmem:[%s3] sm:$0xff]
        %v407 = vld [vmem:[%s3 + $0x8] sm:$0x1]
        %s408 = sld [smem:[#allocation2]]
        %s409 = sld [smem:[#allocation2 + $0x1]]
        %vm410 = vcmp.gt.f32.partialorder %v398, 0.0
        %vm411 = vcmp.gt.f32.partialorder %v399, 0.0
        %vm412 = vcmp.gt.f32.partialorder %v400, 0.0
        %vm413 = vcmp.gt.f32.partialorder %v401, 0.0
        %v414 = vsel %vm410, 1, 0
        %v415 = vsel %vm411, 1, 0
        %v416 = vsel %vm412, 1, 0
        %v417 = vsel %vm413, 1, 0
        %v418 = vcvt.s32.f32 %v414
        %v419 = vcvt.s32.f32 %v415
        %v420 = vcvt.s32.f32 %v416
        %v421 = vcvt.s32.f32 %v417
        %v422 = vsel %vm410, 0.003, 0.033333335
        %v423 = vsel %vm411, 0.003, 0.033333335
        %v424 = vsel %vm412, 0.003, 0.033333335
        %v425 = vsel %vm413, 0.003, 0.033333335
        %v426 = vand.u32 2147483647, %v334
        %vm427 = vcmp.le.f32.partialorder %v426, 0.7853982
        %vm428 = vcmp.lt.s32.totalorder %v334, 0
        %v429 = vand.u32 %v334, 2139095040
        %v430 = vshrl.u32 %v429, 23
        %v431 = vsub.s32 %v430, 127
        %v432 = vand.u32 2147483647, %v334
        %v433 = vand.u32 %v432, 8388607
        %v434 = vor.u32 %v433, 8388608
        %v435 = vsub.s32 0, %v434
        %v436 = vadd.s32 %v431, 1
        %vm437 = vcmp.gt.s32.totalorder %v436, 0
        %v438 = vsel %vm437, %v436, 0
        %v439 = vshrl.u32 %v438, 5
        %v440 = vand.u32 %v438, 31
        %v441 = vsub.s32 32, %v440
        %v442 = vshrl.u32 683565275, %v441
        %v443 = vshll.u32 683565275, %v440
        %v444 = vshrl.u32 2475754826, %v441
        %v445 = vor.u32 %v443, %v444
        %v446 = vshll.u32 2475754826, %v440
        %v447 = vshrl.u32 2131351028, %v441
        %v448 = vor.u32 %v446, %v447
        %v449 = vshll.u32 2131351028, %v440
        %v450 = vshrl.u32 2102212464, %v441
        %v451 = vor.u32 %v449, %v450
        %v452 = vshll.u32 2102212464, %v440
        %v453 = vshrl.u32 920167782, %v441
        %v454 = vor.u32 %v452, %v453
        %v455 = vshll.u32 920167782, %v440
        %v456 = vshrl.u32 1326507024, %v441
        %v457 = vor.u32 %v455, %v456
        %vm458 = vcmp.lt.s32.totalorder %v439, 1
        %vm459 = vcmp.lt.s32.totalorder %v439, 2
        %vm460 = vcmp.lt.s32.totalorder %v439, 3
        %vm461 = vcmp.lt.s32.totalorder %v439, 4
        %v462 = vsel %vm458, %v442, %v445
        %v463 = vsel %vm461, %v451, 2102212464
        %v464 = vsel %vm460, %v448, %v463
        %v465 = vsel %vm459, %v462, %v464
        %v466 = vsel %vm458, %v445, %v448
        %v467 = vsel %vm461, %v454, 920167782
        %v468 = vsel %vm460, %v451, %v467
        %v469 = vsel %vm459, %v466, %v468
        %v470 = vsel %vm458, %v448, %v451
        %v471 = vsel %vm461, %v457, 1326507024
        %v472 = vsel %vm460, %v454, %v471
        %v473 = vsel %vm459, %v470, %v472
        %v474 = vshll.u32 %v434, 8
        %v475 = vand.u32 %v474, 65535
        %v476 = vshrl.u32 %v474, 16
        %v477 = vand.u32 %v473, 65535
        %v478 = vshrl.u32 %v473, 16
        %v479 = vmul.u32 %v475, %v477
        %v480 = vmul.u32 %v475, %v478
        %v481 = vmul.u32 %v476, %v477
        %v482 = vmul.u32 %v476, %v478
        %v483 = vshll.u32 %v480, 16
        %v484 = vshrl.u32 %v480, 16
        %v485 = vshll.u32 %v481, 16
        %v486 = vshrl.u32 %v481, 16
        %vm487 = vc.u32 %v479, %v483
        %v488 = vsel %vm487, 1, 0
        %v489 = vadd.s32 %v479, %v483
        %v490 = vadd.s32 %v482, %v488
        %vm491 = vc.u32 %v489, %v485
        %v492 = vsel %vm491, 1, 0
        %v493 = vadd.s32 %v489, %v485
        %v494 = vadd.s32 %v490, %v492
        %v495 = vadd.s32 %v494, %v484
        %v496 = vadd.s32 %v495, %v486
        %v497 = vand.u32 %v474, 65535
        %v498 = vshrl.u32 %v474, 16
        %v499 = vand.u32 %v469, 65535
        %v500 = vshrl.u32 %v469, 16
        %v501 = vmul.u32 %v497, %v499
        %v502 = vmul.u32 %v497, %v500
        %v503 = vmul.u32 %v498, %v499
        %v504 = vmul.u32 %v498, %v500
        %v505 = vshll.u32 %v502, 16
        %v506 = vshrl.u32 %v502, 16
        %v507 = vshll.u32 %v503, 16
        %v508 = vshrl.u32 %v503, 16
        %vm509 = vc.u32 %v501, %v505
        %v510 = vsel %vm509, 1, 0
        %v511 = vadd.s32 %v501, %v505
        %v512 = vadd.s32 %v504, %v510
        %vm513 = vc.u32 %v511, %v507
        %v514 = vsel %vm513, 1, 0
        %v515 = vadd.s32 %v511, %v507
        %v516 = vadd.s32 %v512, %v514
        %v517 = vadd.s32 %v516, %v506
        %v518 = vadd.s32 %v517, %v508
        %v519 = vmul.u32 %v474, %v465
        %v520 = vadd.s32 %v496, %v515
        %vm521 = vc.u32 %v496, %v515
        %v522 = vadd.s32 %v518, 1
        %v523 = vsel %vm521, %v522, %v518
        %v524 = vadd.s32 %v519, %v523
        %v525 = vadd.s32 %v524, 536870912
        %v526 = vshrl.u32 %v525, 30
        %v527 = vshll.u32 %v526, 30
        %v528 = vsub.s32 %v524, %v527
        %vm529 = vcmp.lt.s32.totalorder %v528, 0
        %v530 = vsub.s32 0, %v528
        %v531 = vsel %vm529, %v530, %v528
        %v532 = vclz %v531
        %v533 = vsub.s32 %v532, 2
        %vm534 = vcmp.gt.s32.totalorder 0, %v533
        %v535 = vsel %vm534, 0, %v533
        %v536 = vsub.s32 32, %v535
        %v537 = vshll.u32 %v528, %v535
        %v538 = vshrl.u32 %v520, %v536
        %v539 = vor.u32 %v537, %v538
        %v540 = vsub.s32 4294967266, %v535
        %v541 = vadd.s32 %v540, 127
        %v542 = vshll.u32 %v541, 23
        %v543 = vor.u32 4788187, %v542
        %v544 = vand.u32 2147483647, %v543
        %v546 = vcvt.s32.f32 %v539
        %v547 = vmul.f32 %v546, %v544
        %v548 = vxor.u32 %v547, 2147483648
        %v549 = vsel %vm428, %v548, %v547
        %v550 = vsub.s32 4, %v526
        %v551 = vsel %vm428, %v550, %v526
        %v552 = vsel %vm427, %v334, %v549
        %v553 = vsel %vm427, 0, %v551
        %v554 = vmul.f32 %v552, %v552
        %v555 = vmul.f32 %v554, -0.001358992
        %v556 = vadd.f32 %v555, 0.041655596
        %v557 = vmul.f32 %v554, %v556
        %v558 = vadd.f32 %v557, -0.4999988
        %v559 = vmul.f32 %v554, %v558
        %v560 = vadd.f32 1.0, %v559
        %v561 = vmul.f32 %v552, %v552
        %v562 = vmul.f32 %v561, -0.00019511016
        %v563 = vadd.f32 %v562, 0.008332121
        %v564 = vmul.f32 %v561, %v563
        %v565 = vadd.f32 %v564, -0.16666654
        %v566 = vmul.f32 %v561, %v565
        %v567 = vadd.f32 %v566, 1.0
        %v568 = vmul.f32 %v567, %v552
        %vm569 = vweird.f32 %v334
        %v570 = vadd.s32 %v553, 3
        %v571 = vand.u32 %v570, 3
        %vm572 = vcmp.lt.s32.totalorder %v571, 2
        %vm573 = vcmp.eq.s32.totalorder %v571, 0
        %v574 = vxor.u32 %v568, 2147483648
        %v575 = vsel %vm573, %v560, %v574
        %vm576 = vcmp.eq.s32.totalorder %v571, 2
        %v577 = vxor.u32 %v560, 2147483648
        %v578 = vsel %vm576, %v577, %v568
        %v579 = vsel %vm572, %v575, %v578
        %v580 = vsel %vm569, nan, %v579
        %v581 = vand.u32 2147483647, %v335
        %vm582 = vcmp.le.f32.partialorder %v581, 0.7853982
        %vm583 = vcmp.lt.s32.totalorder %v335, 0
        %v584 = vand.u32 %v335, 2139095040
        %v585 = vshrl.u32 %v584, 23
        %v586 = vsub.s32 %v585, 127
        %v587 = vand.u32 2147483647, %v335
        %v588 = vand.u32 %v587, 8388607
        %v589 = vor.u32 %v588, 8388608
        %v590 = vsub.s32 0, %v589
        %v591 = vadd.s32 %v586, 1
        %vm592 = vcmp.gt.s32.totalorder %v591, 0
        %v593 = vsel %vm592, %v591, 0
        %v594 = vshrl.u32 %v593, 5
        %v595 = vand.u32 %v593, 31
        %v596 = vsub.s32 32, %v595
        %v597 = vshrl.u32 683565275, %v596
        %v598 = vshll.u32 683565275, %v595
        %v599 = vshrl.u32 2475754826, %v596
        %v600 = vor.u32 %v598, %v599
        %v601 = vshll.u32 2475754826, %v595
        %v602 = vshrl.u32 2131351028, %v596
        %v603 = vor.u32 %v601, %v602
        %v604 = vshll.u32 2131351028, %v595
        %v605 = vshrl.u32 2102212464, %v596
        %v606 = vor.u32 %v604, %v605
        %v607 = vshll.u32 2102212464, %v595
        %v608 = vshrl.u32 920167782, %v596
        %v609 = vor.u32 %v607, %v608
        %v610 = vshll.u32 920167782, %v595
        %v611 = vshrl.u32 1326507024, %v596
        %v612 = vor.u32 %v610, %v611
        %vm613 = vcmp.lt.s32.totalorder %v594, 1
        %vm614 = vcmp.lt.s32.totalorder %v594, 2
        %vm615 = vcmp.lt.s32.totalorder %v594, 3
        %vm616 = vcmp.lt.s32.totalorder %v594, 4
        %v617 = vsel %vm613, %v597, %v600
        %v618 = vsel %vm616, %v606, 2102212464
        %v619 = vsel %vm615, %v603, %v618
        %v620 = vsel %vm614, %v617, %v619
        %v621 = vsel %vm613, %v600, %v603
        %v622 = vsel %vm616, %v609, 920167782
        %v623 = vsel %vm615, %v606, %v622
        %v624 = vsel %vm614, %v621, %v623
        %v625 = vsel %vm613, %v603, %v606
        %v626 = vsel %vm616, %v612, 1326507024
        %v627 = vsel %vm615, %v609, %v626
        %v628 = vsel %vm614, %v625, %v627
        %v629 = vshll.u32 %v589, 8
        %v630 = vand.u32 %v629, 65535
        %v631 = vshrl.u32 %v629, 16
        %v632 = vand.u32 %v628, 65535
        %v633 = vshrl.u32 %v628, 16
        %v634 = vmul.u32 %v630, %v632
        %v635 = vmul.u32 %v630, %v633
        %v636 = vmul.u32 %v631, %v632
        %v637 = vmul.u32 %v631, %v633
        %v638 = vshll.u32 %v635, 16
        %v639 = vshrl.u32 %v635, 16
        %v640 = vshll.u32 %v636, 16
        %v641 = vshrl.u32 %v636, 16
        %vm642 = vc.u32 %v634, %v638
        %v643 = vsel %vm642, 1, 0
        %v644 = vadd.s32 %v634, %v638
        %v645 = vadd.s32 %v637, %v643
        %vm646 = vc.u32 %v644, %v640
        %v647 = vsel %vm646, 1, 0
        %v648 = vadd.s32 %v644, %v640
        %v649 = vadd.s32 %v645, %v647
        %v650 = vadd.s32 %v649, %v639
        %v651 = vadd.s32 %v650, %v641
        %v652 = vand.u32 %v629, 65535
        %v653 = vshrl.u32 %v629, 16
        %v654 = vand.u32 %v624, 65535
        %v655 = vshrl.u32 %v624, 16
        %v656 = vmul.u32 %v652, %v654
        %v657 = vmul.u32 %v652, %v655
        %v658 = vmul.u32 %v653, %v654
        %v659 = vmul.u32 %v653, %v655
        %v660 = vshll.u32 %v657, 16
        %v661 = vshrl.u32 %v657, 16
        %v662 = vshll.u32 %v658, 16
        %v663 = vshrl.u32 %v658, 16
        %vm664 = vc.u32 %v656, %v660
        %v665 = vsel %vm664, 1, 0
        %v666 = vadd.s32 %v656, %v660
        %v667 = vadd.s32 %v659, %v665
        %vm668 = vc.u32 %v666, %v662
        %v669 = vsel %vm668, 1, 0
        %v670 = vadd.s32 %v666, %v662
        %v671 = vadd.s32 %v667, %v669
        %v672 = vadd.s32 %v671, %v661
        %v673 = vadd.s32 %v672, %v663
        %v674 = vmul.u32 %v629, %v620
        %v675 = vadd.s32 %v651, %v670
        %vm676 = vc.u32 %v651, %v670
        %v677 = vadd.s32 %v673, 1
        %v678 = vsel %vm676, %v677, %v673
        %v679 = vadd.s32 %v674, %v678
        %v680 = vadd.s32 %v679, 536870912
        %v681 = vshrl.u32 %v680, 30
        %v682 = vshll.u32 %v681, 30
        %v683 = vsub.s32 %v679, %v682
        %vm684 = vcmp.lt.s32.totalorder %v683, 0
        %v685 = vsub.s32 0, %v683
        %v686 = vsel %vm684, %v685, %v683
        %v687 = vclz %v686
        %v688 = vsub.s32 %v687, 2
        %vm689 = vcmp.gt.s32.totalorder 0, %v688
        %v690 = vsel %vm689, 0, %v688
        %v691 = vsub.s32 32, %v690
        %v692 = vshll.u32 %v683, %v690
        %v693 = vshrl.u32 %v675, %v691
        %v694 = vor.u32 %v692, %v693
        %v695 = vsub.s32 4294967266, %v690
        %v696 = vadd.s32 %v695, 127
        %v697 = vshll.u32 %v696, 23
        %v698 = vor.u32 4788187, %v697
        %v699 = vand.u32 2147483647, %v698
        %v701 = vcvt.s32.f32 %v694
        %v702 = vmul.f32 %v701, %v699
        %v703 = vxor.u32 %v702, 2147483648
        %v704 = vsel %vm583, %v703, %v702
        %v705 = vsub.s32 4, %v681
        %v706 = vsel %vm583, %v705, %v681
        %v707 = vsel %vm582, %v335, %v704
        %v708 = vsel %vm582, 0, %v706
        %v709 = vmul.f32 %v707, %v707
        %v710 = vmul.f32 %v709, -0.001358992
        %v711 = vadd.f32 %v710, 0.041655596
        %v712 = vmul.f32 %v709, %v711
        %v713 = vadd.f32 %v712, -0.4999988
        %v714 = vmul.f32 %v709, %v713
        %v715 = vadd.f32 1.0, %v714
        %v716 = vmul.f32 %v707, %v707
        %v717 = vmul.f32 %v716, -0.00019511016
        %v718 = vadd.f32 %v717, 0.008332121
        %v719 = vmul.f32 %v716, %v718
        %v720 = vadd.f32 %v719, -0.16666654
        %v721 = vmul.f32 %v716, %v720
        %v722 = vadd.f32 %v721, 1.0
        %v723 = vmul.f32 %v722, %v707
        %vm724 = vweird.f32 %v335
        %v725 = vadd.s32 %v708, 3
        %v726 = vand.u32 %v725, 3
        %vm727 = vcmp.lt.s32.totalorder %v726, 2
        %vm728 = vcmp.eq.s32.totalorder %v726, 0
        %v729 = vxor.u32 %v723, 2147483648
        %v730 = vsel %vm728, %v715, %v729
        %vm731 = vcmp.eq.s32.totalorder %v726, 2
        %v732 = vxor.u32 %v715, 2147483648
        %v733 = vsel %vm731, %v732, %v723
        %v734 = vsel %vm727, %v730, %v733
        %v735 = vsel %vm724, nan, %v734
        %v736 = vand.u32 2147483647, %v336
        %vm737 = vcmp.le.f32.partialorder %v736, 0.7853982
        %vm738 = vcmp.lt.s32.totalorder %v336, 0
        %v739 = vand.u32 %v336, 2139095040
        %v740 = vshrl.u32 %v739, 23
        %v741 = vsub.s32 %v740, 127
        %v742 = vand.u32 2147483647, %v336
        %v743 = vand.u32 %v742, 8388607
        %v744 = vor.u32 %v743, 8388608
        %v745 = vsub.s32 0, %v744
        %v746 = vadd.s32 %v741, 1
        %vm747 = vcmp.gt.s32.totalorder %v746, 0
        %v748 = vsel %vm747, %v746, 0
        %v749 = vshrl.u32 %v748, 5
        %v750 = vand.u32 %v748, 31
        %v751 = vsub.s32 32, %v750
        %v752 = vshrl.u32 683565275, %v751
        %v753 = vshll.u32 683565275, %v750
        %v754 = vshrl.u32 2475754826, %v751
        %v755 = vor.u32 %v753, %v754
        %v756 = vshll.u32 2475754826, %v750
        %v757 = vshrl.u32 2131351028, %v751
        %v758 = vor.u32 %v756, %v757
        %v759 = vshll.u32 2131351028, %v750
        %v760 = vshrl.u32 2102212464, %v751
        %v761 = vor.u32 %v759, %v760
        %v762 = vshll.u32 2102212464, %v750
        %v763 = vshrl.u32 920167782, %v751
        %v764 = vor.u32 %v762, %v763
        %v765 = vshll.u32 920167782, %v750
        %v766 = vshrl.u32 1326507024, %v751
        %v767 = vor.u32 %v765, %v766
        %vm768 = vcmp.lt.s32.totalorder %v749, 1
        %vm769 = vcmp.lt.s32.totalorder %v749, 2
        %vm770 = vcmp.lt.s32.totalorder %v749, 3
        %vm771 = vcmp.lt.s32.totalorder %v749, 4
        %v772 = vsel %vm768, %v752, %v755
        %v773 = vsel %vm771, %v761, 2102212464
        %v774 = vsel %vm770, %v758, %v773
        %v775 = vsel %vm769, %v772, %v774
        %v776 = vsel %vm768, %v755, %v758
        %v777 = vsel %vm771, %v764, 920167782
        %v778 = vsel %vm770, %v761, %v777
        %v779 = vsel %vm769, %v776, %v778
        %v780 = vsel %vm768, %v758, %v761
        %v781 = vsel %vm771, %v767, 1326507024
        %v782 = vsel %vm770, %v764, %v781
        %v783 = vsel %vm769, %v780, %v782
        %v784 = vshll.u32 %v744, 8
        %v785 = vand.u32 %v784, 65535
        %v786 = vshrl.u32 %v784, 16
        %v787 = vand.u32 %v783, 65535
        %v788 = vshrl.u32 %v783, 16
        %v789 = vmul.u32 %v785, %v787
        %v790 = vmul.u32 %v785, %v788
        %v791 = vmul.u32 %v786, %v787
        %v792 = vmul.u32 %v786, %v788
        %v793 = vshll.u32 %v790, 16
        %v794 = vshrl.u32 %v790, 16
        %v795 = vshll.u32 %v791, 16
        %v796 = vshrl.u32 %v791, 16
        %vm797 = vc.u32 %v789, %v793
        %v798 = vsel %vm797, 1, 0
        %v799 = vadd.s32 %v789, %v793
        %v800 = vadd.s32 %v792, %v798
        %vm801 = vc.u32 %v799, %v795
        %v802 = vsel %vm801, 1, 0
        %v803 = vadd.s32 %v799, %v795
        %v804 = vadd.s32 %v800, %v802
        %v805 = vadd.s32 %v804, %v794
        %v806 = vadd.s32 %v805, %v796
        %v807 = vand.u32 %v784, 65535
        %v808 = vshrl.u32 %v784, 16
        %v809 = vand.u32 %v779, 65535
        %v810 = vshrl.u32 %v779, 16
        %v811 = vmul.u32 %v807, %v809
        %v812 = vmul.u32 %v807, %v810
        %v813 = vmul.u32 %v808, %v809
        %v814 = vmul.u32 %v808, %v810
        %v815 = vshll.u32 %v812, 16
        %v816 = vshrl.u32 %v812, 16
        %v817 = vshll.u32 %v813, 16
        %v818 = vshrl.u32 %v813, 16
        %vm819 = vc.u32 %v811, %v815
        %v820 = vsel %vm819, 1, 0
        %v821 = vadd.s32 %v811, %v815
        %v822 = vadd.s32 %v814, %v820
        %vm823 = vc.u32 %v821, %v817
        %v824 = vsel %vm823, 1, 0
        %v825 = vadd.s32 %v821, %v817
        %v826 = vadd.s32 %v822, %v824
        %v827 = vadd.s32 %v826, %v816
        %v828 = vadd.s32 %v827, %v818
        %v829 = vmul.u32 %v784, %v775
        %v830 = vadd.s32 %v806, %v825
        %vm831 = vc.u32 %v806, %v825
        %v832 = vadd.s32 %v828, 1
        %v833 = vsel %vm831, %v832, %v828
        %v834 = vadd.s32 %v829, %v833
        %v835 = vadd.s32 %v834, 536870912
        %v836 = vshrl.u32 %v835, 30
        %v837 = vshll.u32 %v836, 30
        %v838 = vsub.s32 %v834, %v837
        %vm839 = vcmp.lt.s32.totalorder %v838, 0
        %v840 = vsub.s32 0, %v838
        %v841 = vsel %vm839, %v840, %v838
        %v842 = vclz %v841
        %v843 = vsub.s32 %v842, 2
        %vm844 = vcmp.gt.s32.totalorder 0, %v843
        %v845 = vsel %vm844, 0, %v843
        %v846 = vsub.s32 32, %v845
        %v847 = vshll.u32 %v838, %v845
        %v848 = vshrl.u32 %v830, %v846
        %v849 = vor.u32 %v847, %v848
        %v850 = vsub.s32 4294967266, %v845
        %v851 = vadd.s32 %v850, 127
        %v852 = vshll.u32 %v851, 23
        %v853 = vor.u32 4788187, %v852
        %v854 = vand.u32 2147483647, %v853
        %v856 = vcvt.s32.f32 %v849
        %v857 = vmul.f32 %v856, %v854
        %v858 = vxor.u32 %v857, 2147483648
        %v859 = vsel %vm738, %v858, %v857
        %v860 = vsub.s32 4, %v836
        %v861 = vsel %vm738, %v860, %v836
        %v862 = vsel %vm737, %v336, %v859
        %v863 = vsel %vm737, 0, %v861
        %v864 = vmul.f32 %v862, %v862
        %v865 = vmul.f32 %v864, -0.001358992
        %v866 = vadd.f32 %v865, 0.041655596
        %v867 = vmul.f32 %v864, %v866
        %v868 = vadd.f32 %v867, -0.4999988
        %v869 = vmul.f32 %v864, %v868
        %v870 = vadd.f32 1.0, %v869
        %v871 = vmul.f32 %v862, %v862
        %v872 = vmul.f32 %v871, -0.00019511016
        %v873 = vadd.f32 %v872, 0.008332121
        %v874 = vmul.f32 %v871, %v873
        %v875 = vadd.f32 %v874, -0.16666654
        %v876 = vmul.f32 %v871, %v875
        %v877 = vadd.f32 %v876, 1.0
        %v878 = vmul.f32 %v877, %v862
        %vm879 = vweird.f32 %v336
        %v880 = vadd.s32 %v863, 3
        %v881 = vand.u32 %v880, 3
        %vm882 = vcmp.lt.s32.totalorder %v881, 2
        %vm883 = vcmp.eq.s32.totalorder %v881, 0
        %v884 = vxor.u32 %v878, 2147483648
        %v885 = vsel %vm883, %v870, %v884
        %vm886 = vcmp.eq.s32.totalorder %v881, 2
        %v887 = vxor.u32 %v870, 2147483648
        %v888 = vsel %vm886, %v887, %v878
        %v889 = vsel %vm882, %v885, %v888
        %v890 = vsel %vm879, nan, %v889
        %v891 = vand.u32 2147483647, %v337
        %vm892 = vcmp.le.f32.partialorder %v891, 0.7853982
        %vm893 = vcmp.lt.s32.totalorder %v337, 0
        %v894 = vand.u32 %v337, 2139095040
        %v895 = vshrl.u32 %v894, 23
        %v896 = vsub.s32 %v895, 127
        %v897 = vand.u32 2147483647, %v337
        %v898 = vand.u32 %v897, 8388607
        %v899 = vor.u32 %v898, 8388608
        %v900 = vsub.s32 0, %v899
        %v901 = vadd.s32 %v896, 1
        %vm902 = vcmp.gt.s32.totalorder %v901, 0
        %v903 = vsel %vm902, %v901, 0
        %v904 = vshrl.u32 %v903, 5
        %v905 = vand.u32 %v903, 31
        %v906 = vsub.s32 32, %v905
        %v907 = vshrl.u32 683565275, %v906
        %v908 = vshll.u32 683565275, %v905
        %v909 = vshrl.u32 2475754826, %v906
        %v910 = vor.u32 %v908, %v909
        %v911 = vshll.u32 2475754826, %v905
        %v912 = vshrl.u32 2131351028, %v906
        %v913 = vor.u32 %v911, %v912
        %v914 = vshll.u32 2131351028, %v905
        %v915 = vshrl.u32 2102212464, %v906
        %v916 = vor.u32 %v914, %v915
        %v917 = vshll.u32 2102212464, %v905
        %v918 = vshrl.u32 920167782, %v906
        %v919 = vor.u32 %v917, %v918
        %v920 = vshll.u32 920167782, %v905
        %v921 = vshrl.u32 1326507024, %v906
        %v922 = vor.u32 %v920, %v921
        %vm923 = vcmp.lt.s32.totalorder %v904, 1
        %vm924 = vcmp.lt.s32.totalorder %v904, 2
        %vm925 = vcmp.lt.s32.totalorder %v904, 3
        %vm926 = vcmp.lt.s32.totalorder %v904, 4
        %v927 = vsel %vm923, %v907, %v910
        %v928 = vsel %vm926, %v916, 2102212464
        %v929 = vsel %vm925, %v913, %v928
        %v930 = vsel %vm924, %v927, %v929
        %v931 = vsel %vm923, %v910, %v913
        %v932 = vsel %vm926, %v919, 920167782
        %v933 = vsel %vm925, %v916, %v932
        %v934 = vsel %vm924, %v931, %v933
        %v935 = vsel %vm923, %v913, %v916
        %v936 = vsel %vm926, %v922, 1326507024
        %v937 = vsel %vm925, %v919, %v936
        %v938 = vsel %vm924, %v935, %v937
        %v939 = vshll.u32 %v899, 8
        %v940 = vand.u32 %v939, 65535
        %v941 = vshrl.u32 %v939, 16
        %v942 = vand.u32 %v938, 65535
        %v943 = vshrl.u32 %v938, 16
        %v944 = vmul.u32 %v940, %v942
        %v945 = vmul.u32 %v940, %v943
        %v946 = vmul.u32 %v941, %v942
        %v947 = vmul.u32 %v941, %v943
        %v948 = vshll.u32 %v945, 16
        %v949 = vshrl.u32 %v945, 16
        %v950 = vshll.u32 %v946, 16
        %v951 = vshrl.u32 %v946, 16
        %vm952 = vc.u32 %v944, %v948
        %v953 = vsel %vm952, 1, 0
        %v954 = vadd.s32 %v944, %v948
        %v955 = vadd.s32 %v947, %v953
        %vm956 = vc.u32 %v954, %v950
        %v957 = vsel %vm956, 1, 0
        %v958 = vadd.s32 %v954, %v950
        %v959 = vadd.s32 %v955, %v957
        %v960 = vadd.s32 %v959, %v949
        %v961 = vadd.s32 %v960, %v951
        %v962 = vand.u32 %v939, 65535
        %v963 = vshrl.u32 %v939, 16
        %v964 = vand.u32 %v934, 65535
        %v965 = vshrl.u32 %v934, 16
        %v966 = vmul.u32 %v962, %v964
        %v967 = vmul.u32 %v962, %v965
        %v968 = vmul.u32 %v963, %v964
        %v969 = vmul.u32 %v963, %v965
        %v970 = vshll.u32 %v967, 16
        %v971 = vshrl.u32 %v967, 16
        %v972 = vshll.u32 %v968, 16
        %v973 = vshrl.u32 %v968, 16
        %vm974 = vc.u32 %v966, %v970
        %v975 = vsel %vm974, 1, 0
        %v976 = vadd.s32 %v966, %v970
        %v977 = vadd.s32 %v969, %v975
        %vm978 = vc.u32 %v976, %v972
        %v979 = vsel %vm978, 1, 0
        %v980 = vadd.s32 %v976, %v972
        %v981 = vadd.s32 %v977, %v979
        %v982 = vadd.s32 %v981, %v971
        %v983 = vadd.s32 %v982, %v973
        %v984 = vmul.u32 %v939, %v930
        %v985 = vadd.s32 %v961, %v980
        %vm986 = vc.u32 %v961, %v980
        %v987 = vadd.s32 %v983, 1
        %v988 = vsel %vm986, %v987, %v983
        %v989 = vadd.s32 %v984, %v988
        %v990 = vadd.s32 %v989, 536870912
        %v991 = vshrl.u32 %v990, 30
        %v992 = vshll.u32 %v991, 30
        %v993 = vsub.s32 %v989, %v992
        %vm994 = vcmp.lt.s32.totalorder %v993, 0
        %v995 = vsub.s32 0, %v993
        %v996 = vsel %vm994, %v995, %v993
        %v997 = vclz %v996
        %v998 = vsub.s32 %v997, 2
        %vm999 = vcmp.gt.s32.totalorder 0, %v998
        %v1000 = vsel %vm999, 0, %v998
        %v1001 = vsub.s32 32, %v1000
        %v1002 = vshll.u32 %v993, %v1000
        %v1003 = vshrl.u32 %v985, %v1001
        %v1004 = vor.u32 %v1002, %v1003
        %v1005 = vsub.s32 4294967266, %v1000
        %v1006 = vadd.s32 %v1005, 127
        %v1007 = vshll.u32 %v1006, 23
        %v1008 = vor.u32 4788187, %v1007
        %v1009 = vand.u32 2147483647, %v1008
        %v1011 = vcvt.s32.f32 %v1004
        %v1012 = vmul.f32 %v1011, %v1009
        %v1013 = vxor.u32 %v1012, 2147483648
        %v1014 = vsel %vm893, %v1013, %v1012
        %v1015 = vsub.s32 4, %v991
        %v1016 = vsel %vm893, %v1015, %v991
        %v1017 = vsel %vm892, %v337, %v1014
        %v1018 = vsel %vm892, 0, %v1016
        %v1019 = vmul.f32 %v1017, %v1017
        %v1020 = vmul.f32 %v1019, -0.001358992
        %v1021 = vadd.f32 %v1020, 0.041655596
        %v1022 = vmul.f32 %v1019, %v1021
        %v1023 = vadd.f32 %v1022, -0.4999988
        %v1024 = vmul.f32 %v1019, %v1023
        %v1025 = vadd.f32 1.0, %v1024
        %v1026 = vmul.f32 %v1017, %v1017
        %v1027 = vmul.f32 %v1026, -0.00019511016
        %v1028 = vadd.f32 %v1027, 0.008332121
        %v1029 = vmul.f32 %v1026, %v1028
        %v1030 = vadd.f32 %v1029, -0.16666654
        %v1031 = vmul.f32 %v1026, %v1030
        %v1032 = vadd.f32 %v1031, 1.0
        %v1033 = vmul.f32 %v1032, %v1017
        %vm1034 = vweird.f32 %v337
        %v1035 = vadd.s32 %v1018, 3
        %v1036 = vand.u32 %v1035, 3
        %vm1037 = vcmp.lt.s32.totalorder %v1036, 2
        %vm1038 = vcmp.eq.s32.totalorder %v1036, 0
        %v1039 = vxor.u32 %v1033, 2147483648
        %v1040 = vsel %vm1038, %v1025, %v1039
        %vm1041 = vcmp.eq.s32.totalorder %v1036, 2
        %v1042 = vxor.u32 %v1025, 2147483648
        %v1043 = vsel %vm1041, %v1042, %v1033
        %v1044 = vsel %vm1037, %v1040, %v1043
        %v1045 = vsel %vm1034, nan, %v1044
        %v1046 = vand.u32 2147483647, %v338
        %vm1047 = vcmp.le.f32.partialorder %v1046, 0.7853982
        %vm1048 = vcmp.lt.s32.totalorder %v338, 0
        %v1049 = vand.u32 %v338, 2139095040
        %v1050 = vshrl.u32 %v1049, 23
        %v1051 = vsub.s32 %v1050, 127
        %v1052 = vand.u32 2147483647, %v338
        %v1053 = vand.u32 %v1052, 8388607
        %v1054 = vor.u32 %v1053, 8388608
        %v1055 = vsub.s32 0, %v1054
        %v1056 = vadd.s32 %v1051, 1
        %vm1057 = vcmp.gt.s32.totalorder %v1056, 0
        %v1058 = vsel %vm1057, %v1056, 0
        %v1059 = vshrl.u32 %v1058, 5
        %v1060 = vand.u32 %v1058, 31
        %v1061 = vsub.s32 32, %v1060
        %v1062 = vshrl.u32 683565275, %v1061
        %v1063 = vshll.u32 683565275, %v1060
        %v1064 = vshrl.u32 2475754826, %v1061
        %v1065 = vor.u32 %v1063, %v1064
        %v1066 = vshll.u32 2475754826, %v1060
        %v1067 = vshrl.u32 2131351028, %v1061
        %v1068 = vor.u32 %v1066, %v1067
        %v1069 = vshll.u32 2131351028, %v1060
        %v1070 = vshrl.u32 2102212464, %v1061
        %v1071 = vor.u32 %v1069, %v1070
        %v1072 = vshll.u32 2102212464, %v1060
        %v1073 = vshrl.u32 920167782, %v1061
        %v1074 = vor.u32 %v1072, %v1073
        %v1075 = vshll.u32 920167782, %v1060
        %v1076 = vshrl.u32 1326507024, %v1061
        %v1077 = vor.u32 %v1075, %v1076
        %vm1078 = vcmp.lt.s32.totalorder %v1059, 1
        %vm1079 = vcmp.lt.s32.totalorder %v1059, 2
        %vm1080 = vcmp.lt.s32.totalorder %v1059, 3
        %vm1081 = vcmp.lt.s32.totalorder %v1059, 4
        %v1082 = vsel %vm1078, %v1062, %v1065
        %v1083 = vsel %vm1081, %v1071, 2102212464
        %v1084 = vsel %vm1080, %v1068, %v1083
        %v1085 = vsel %vm1079, %v1082, %v1084
        %v1086 = vsel %vm1078, %v1065, %v1068
        %v1087 = vsel %vm1081, %v1074, 920167782
        %v1088 = vsel %vm1080, %v1071, %v1087
        %v1089 = vsel %vm1079, %v1086, %v1088
        %v1090 = vsel %vm1078, %v1068, %v1071
        %v1091 = vsel %vm1081, %v1077, 1326507024
        %v1092 = vsel %vm1080, %v1074, %v1091
        %v1093 = vsel %vm1079, %v1090, %v1092
        %v1094 = vshll.u32 %v1054, 8
        %v1095 = vand.u32 %v1094, 65535
        %v1096 = vshrl.u32 %v1094, 16
        %v1097 = vand.u32 %v1093, 65535
        %v1098 = vshrl.u32 %v1093, 16
        %v1099 = vmul.u32 %v1095, %v1097
        %v1100 = vmul.u32 %v1095, %v1098
        %v1101 = vmul.u32 %v1096, %v1097
        %v1102 = vmul.u32 %v1096, %v1098
        %v1103 = vshll.u32 %v1100, 16
        %v1104 = vshrl.u32 %v1100, 16
        %v1105 = vshll.u32 %v1101, 16
        %v1106 = vshrl.u32 %v1101, 16
        %vm1107 = vc.u32 %v1099, %v1103
        %v1108 = vsel %vm1107, 1, 0
        %v1109 = vadd.s32 %v1099, %v1103
        %v1110 = vadd.s32 %v1102, %v1108
        %vm1111 = vc.u32 %v1109, %v1105
        %v1112 = vsel %vm1111, 1, 0
        %v1113 = vadd.s32 %v1109, %v1105
        %v1114 = vadd.s32 %v1110, %v1112
        %v1115 = vadd.s32 %v1114, %v1104
        %v1116 = vadd.s32 %v1115, %v1106
        %v1117 = vand.u32 %v1094, 65535
        %v1118 = vshrl.u32 %v1094, 16
        %v1119 = vand.u32 %v1089, 65535
        %v1120 = vshrl.u32 %v1089, 16
        %v1121 = vmul.u32 %v1117, %v1119
        %v1122 = vmul.u32 %v1117, %v1120
        %v1123 = vmul.u32 %v1118, %v1119
        %v1124 = vmul.u32 %v1118, %v1120
        %v1125 = vshll.u32 %v1122, 16
        %v1126 = vshrl.u32 %v1122, 16
        %v1127 = vshll.u32 %v1123, 16
        %v1128 = vshrl.u32 %v1123, 16
        %vm1129 = vc.u32 %v1121, %v1125
        %v1130 = vsel %vm1129, 1, 0
        %v1131 = vadd.s32 %v1121, %v1125
        %v1132 = vadd.s32 %v1124, %v1130
        %vm1133 = vc.u32 %v1131, %v1127
        %v1134 = vsel %vm1133, 1, 0
        %v1135 = vadd.s32 %v1131, %v1127
        %v1136 = vadd.s32 %v1132, %v1134
        %v1137 = vadd.s32 %v1136, %v1126
        %v1138 = vadd.s32 %v1137, %v1128
        %v1139 = vmul.u32 %v1094, %v1085
        %v1140 = vadd.s32 %v1116, %v1135
        %vm1141 = vc.u32 %v1116, %v1135
        %v1142 = vadd.s32 %v1138, 1
        %v1143 = vsel %vm1141, %v1142, %v1138
        %v1144 = vadd.s32 %v1139, %v1143
        %v1145 = vadd.s32 %v1144, 536870912
        %v1146 = vshrl.u32 %v1145, 30
        %v1147 = vshll.u32 %v1146, 30
        %v1148 = vsub.s32 %v1144, %v1147
        %vm1149 = vcmp.lt.s32.totalorder %v1148, 0
        %v1150 = vsub.s32 0, %v1148
        %v1151 = vsel %vm1149, %v1150, %v1148
        %v1152 = vclz %v1151
        %v1153 = vsub.s32 %v1152, 2
        %vm1154 = vcmp.gt.s32.totalorder 0, %v1153
        %v1155 = vsel %vm1154, 0, %v1153
        %v1156 = vsub.s32 32, %v1155
        %v1157 = vshll.u32 %v1148, %v1155
        %v1158 = vshrl.u32 %v1140, %v1156
        %v1159 = vor.u32 %v1157, %v1158
        %v1160 = vsub.s32 4294967266, %v1155
        %v1161 = vadd.s32 %v1160, 127
        %v1162 = vshll.u32 %v1161, 23
        %v1163 = vor.u32 4788187, %v1162
        %v1164 = vand.u32 2147483647, %v1163
        %v1166 = vcvt.s32.f32 %v1159
        %v1167 = vmul.f32 %v1166, %v1164
        %v1168 = vxor.u32 %v1167, 2147483648
        %v1169 = vsel %vm1048, %v1168, %v1167
        %v1170 = vsub.s32 4, %v1146
        %v1171 = vsel %vm1048, %v1170, %v1146
        %v1172 = vsel %vm1047, %v338, %v1169
        %v1173 = vsel %vm1047, 0, %v1171
        %v1174 = vmul.f32 %v1172, %v1172
        %v1175 = vmul.f32 %v1174, -0.001358992
        %v1176 = vadd.f32 %v1175, 0.041655596
        %v1177 = vmul.f32 %v1174, %v1176
        %v1178 = vadd.f32 %v1177, -0.4999988
        %v1179 = vmul.f32 %v1174, %v1178
        %v1180 = vadd.f32 1.0, %v1179
        %v1181 = vmul.f32 %v1172, %v1172
        %v1182 = vmul.f32 %v1181, -0.00019511016
        %v1183 = vadd.f32 %v1182, 0.008332121
        %v1184 = vmul.f32 %v1181, %v1183
        %v1185 = vadd.f32 %v1184, -0.16666654
        %v1186 = vmul.f32 %v1181, %v1185
        %v1187 = vadd.f32 %v1186, 1.0
        %v1188 = vmul.f32 %v1187, %v1172
        %vm1189 = vweird.f32 %v338
        %v1190 = vadd.s32 %v1173, 3
        %v1191 = vand.u32 %v1190, 3
        %vm1192 = vcmp.lt.s32.totalorder %v1191, 2
        %vm1193 = vcmp.eq.s32.totalorder %v1191, 0
        %v1194 = vxor.u32 %v1188, 2147483648
        %v1195 = vsel %vm1193, %v1180, %v1194
        %vm1196 = vcmp.eq.s32.totalorder %v1191, 2
        %v1197 = vxor.u32 %v1180, 2147483648
        %v1198 = vsel %vm1196, %v1197, %v1188
        %v1199 = vsel %vm1192, %v1195, %v1198
        %v1200 = vsel %vm1189, nan, %v1199
        %v1201 = vand.u32 2147483647, %v339
        %vm1202 = vcmp.le.f32.partialorder %v1201, 0.7853982
        %vm1203 = vcmp.lt.s32.totalorder %v339, 0
        %v1204 = vand.u32 %v339, 2139095040
        %v1205 = vshrl.u32 %v1204, 23
        %v1206 = vsub.s32 %v1205, 127
        %v1207 = vand.u32 2147483647, %v339
        %v1208 = vand.u32 %v1207, 8388607
        %v1209 = vor.u32 %v1208, 8388608
        %v1210 = vsub.s32 0, %v1209
        %v1211 = vadd.s32 %v1206, 1
        %vm1212 = vcmp.gt.s32.totalorder %v1211, 0
        %v1213 = vsel %vm1212, %v1211, 0
        %v1214 = vshrl.u32 %v1213, 5
        %v1215 = vand.u32 %v1213, 31
        %v1216 = vsub.s32 32, %v1215
        %v1217 = vshrl.u32 683565275, %v1216
        %v1218 = vshll.u32 683565275, %v1215
        %v1219 = vshrl.u32 2475754826, %v1216
        %v1220 = vor.u32 %v1218, %v1219
        %v1221 = vshll.u32 2475754826, %v1215
        %v1222 = vshrl.u32 2131351028, %v1216
        %v1223 = vor.u32 %v1221, %v1222
        %v1224 = vshll.u32 2131351028, %v1215
        %v1225 = vshrl.u32 2102212464, %v1216
        %v1226 = vor.u32 %v1224, %v1225
        %v1227 = vshll.u32 2102212464, %v1215
        %v1228 = vshrl.u32 920167782, %v1216
        %v1229 = vor.u32 %v1227, %v1228
        %v1230 = vshll.u32 920167782, %v1215
        %v1231 = vshrl.u32 1326507024, %v1216
        %v1232 = vor.u32 %v1230, %v1231
        %vm1233 = vcmp.lt.s32.totalorder %v1214, 1
        %vm1234 = vcmp.lt.s32.totalorder %v1214, 2
        %vm1235 = vcmp.lt.s32.totalorder %v1214, 3
        %vm1236 = vcmp.lt.s32.totalorder %v1214, 4
        %v1237 = vsel %vm1233, %v1217, %v1220
        %v1238 = vsel %vm1236, %v1226, 2102212464
        %v1239 = vsel %vm1235, %v1223, %v1238
        %v1240 = vsel %vm1234, %v1237, %v1239
        %v1241 = vsel %vm1233, %v1220, %v1223
        %v1242 = vsel %vm1236, %v1229, 920167782
        %v1243 = vsel %vm1235, %v1226, %v1242
        %v1244 = vsel %vm1234, %v1241, %v1243
        %v1245 = vsel %vm1233, %v1223, %v1226
        %v1246 = vsel %vm1236, %v1232, 1326507024
        %v1247 = vsel %vm1235, %v1229, %v1246
        %v1248 = vsel %vm1234, %v1245, %v1247
        %v1249 = vshll.u32 %v1209, 8
        %v1250 = vand.u32 %v1249, 65535
        %v1251 = vshrl.u32 %v1249, 16
        %v1252 = vand.u32 %v1248, 65535
        %v1253 = vshrl.u32 %v1248, 16
        %v1254 = vmul.u32 %v1250, %v1252
        %v1255 = vmul.u32 %v1250, %v1253
        %v1256 = vmul.u32 %v1251, %v1252
        %v1257 = vmul.u32 %v1251, %v1253
        %v1258 = vshll.u32 %v1255, 16
        %v1259 = vshrl.u32 %v1255, 16
        %v1260 = vshll.u32 %v1256, 16
        %v1261 = vshrl.u32 %v1256, 16
        %vm1262 = vc.u32 %v1254, %v1258
        %v1263 = vsel %vm1262, 1, 0
        %v1264 = vadd.s32 %v1254, %v1258
        %v1265 = vadd.s32 %v1257, %v1263
        %vm1266 = vc.u32 %v1264, %v1260
        %v1267 = vsel %vm1266, 1, 0
        %v1268 = vadd.s32 %v1264, %v1260
        %v1269 = vadd.s32 %v1265, %v1267
        %v1270 = vadd.s32 %v1269, %v1259
        %v1271 = vadd.s32 %v1270, %v1261
        %v1272 = vand.u32 %v1249, 65535
        %v1273 = vshrl.u32 %v1249, 16
        %v1274 = vand.u32 %v1244, 65535
        %v1275 = vshrl.u32 %v1244, 16
        %v1276 = vmul.u32 %v1272, %v1274
        %v1277 = vmul.u32 %v1272, %v1275
        %v1278 = vmul.u32 %v1273, %v1274
        %v1279 = vmul.u32 %v1273, %v1275
        %v1280 = vshll.u32 %v1277, 16
        %v1281 = vshrl.u32 %v1277, 16
        %v1282 = vshll.u32 %v1278, 16
        %v1283 = vshrl.u32 %v1278, 16
        %vm1284 = vc.u32 %v1276, %v1280
        %v1285 = vsel %vm1284, 1, 0
        %v1286 = vadd.s32 %v1276, %v1280
        %v1287 = vadd.s32 %v1279, %v1285
        %vm1288 = vc.u32 %v1286, %v1282
        %v1289 = vsel %vm1288, 1, 0
        %v1290 = vadd.s32 %v1286, %v1282
        %v1291 = vadd.s32 %v1287, %v1289
        %v1292 = vadd.s32 %v1291, %v1281
        %v1293 = vadd.s32 %v1292, %v1283
        %v1294 = vmul.u32 %v1249, %v1240
        %v1295 = vadd.s32 %v1271, %v1290
        %vm1296 = vc.u32 %v1271, %v1290
        %v1297 = vadd.s32 %v1293, 1
        %v1298 = vsel %vm1296, %v1297, %v1293
        %v1299 = vadd.s32 %v1294, %v1298
        %v1300 = vadd.s32 %v1299, 536870912
        %v1301 = vshrl.u32 %v1300, 30
        %v1302 = vshll.u32 %v1301, 30
        %v1303 = vsub.s32 %v1299, %v1302
        %vm1304 = vcmp.lt.s32.totalorder %v1303, 0
        %v1305 = vsub.s32 0, %v1303
        %v1306 = vsel %vm1304, %v1305, %v1303
        %v1307 = vclz %v1306
        %v1308 = vsub.s32 %v1307, 2
        %vm1309 = vcmp.gt.s32.totalorder 0, %v1308
        %v1310 = vsel %vm1309, 0, %v1308
        %v1311 = vsub.s32 32, %v1310
        %v1312 = vshll.u32 %v1303, %v1310
        %v1313 = vshrl.u32 %v1295, %v1311
        %v1314 = vor.u32 %v1312, %v1313
        %v1315 = vsub.s32 4294967266, %v1310
        %v1316 = vadd.s32 %v1315, 127
        %v1317 = vshll.u32 %v1316, 23
        %v1318 = vor.u32 4788187, %v1317
        %v1319 = vand.u32 2147483647, %v1318
        %v1321 = vcvt.s32.f32 %v1314
        %v1322 = vmul.f32 %v1321, %v1319
        %v1323 = vxor.u32 %v1322, 2147483648
        %v1324 = vsel %vm1203, %v1323, %v1322
        %v1325 = vsub.s32 4, %v1301
        %v1326 = vsel %vm1203, %v1325, %v1301
        %v1327 = vsel %vm1202, %v339, %v1324
        %v1328 = vsel %vm1202, 0, %v1326
        %v1329 = vmul.f32 %v1327, %v1327
        %v1330 = vmul.f32 %v1329, -0.001358992
        %v1331 = vadd.f32 %v1330, 0.041655596
        %v1332 = vmul.f32 %v1329, %v1331
        %v1333 = vadd.f32 %v1332, -0.4999988
        %v1334 = vmul.f32 %v1329, %v1333
        %v1335 = vadd.f32 1.0, %v1334
        %v1336 = vmul.f32 %v1327, %v1327
        %v1337 = vmul.f32 %v1336, -0.00019511016
        %v1338 = vadd.f32 %v1337, 0.008332121
        %v1339 = vmul.f32 %v1336, %v1338
        %v1340 = vadd.f32 %v1339, -0.16666654
        %v1341 = vmul.f32 %v1336, %v1340
        %v1342 = vadd.f32 %v1341, 1.0
        %v1343 = vmul.f32 %v1342, %v1327
        %vm1344 = vweird.f32 %v339
        %v1345 = vadd.s32 %v1328, 3
        %v1346 = vand.u32 %v1345, 3
        %vm1347 = vcmp.lt.s32.totalorder %v1346, 2
        %vm1348 = vcmp.eq.s32.totalorder %v1346, 0
        %v1349 = vxor.u32 %v1343, 2147483648
        %v1350 = vsel %vm1348, %v1335, %v1349
        %vm1351 = vcmp.eq.s32.totalorder %v1346, 2
        %v1352 = vxor.u32 %v1335, 2147483648
        %v1353 = vsel %vm1351, %v1352, %v1343
        %v1354 = vsel %vm1347, %v1350, %v1353
        %v1355 = vsel %vm1344, nan, %v1354
        %v1356 = vand.u32 2147483647, %v340
        %vm1357 = vcmp.le.f32.partialorder %v1356, 0.7853982
        %vm1358 = vcmp.lt.s32.totalorder %v340, 0
        %v1359 = vand.u32 %v340, 2139095040
        %v1360 = vshrl.u32 %v1359, 23
        %v1361 = vsub.s32 %v1360, 127
        %v1362 = vand.u32 2147483647, %v340
        %v1363 = vand.u32 %v1362, 8388607
        %v1364 = vor.u32 %v1363, 8388608
        %v1365 = vsub.s32 0, %v1364
        %v1366 = vadd.s32 %v1361, 1
        %vm1367 = vcmp.gt.s32.totalorder %v1366, 0
        %v1368 = vsel %vm1367, %v1366, 0
        %v1369 = vshrl.u32 %v1368, 5
        %v1370 = vand.u32 %v1368, 31
        %v1371 = vsub.s32 32, %v1370
        %v1372 = vshrl.u32 683565275, %v1371
        %v1373 = vshll.u32 683565275, %v1370
        %v1374 = vshrl.u32 2475754826, %v1371
        %v1375 = vor.u32 %v1373, %v1374
        %v1376 = vshll.u32 2475754826, %v1370
        %v1377 = vshrl.u32 2131351028, %v1371
        %v1378 = vor.u32 %v1376, %v1377
        %v1379 = vshll.u32 2131351028, %v1370
        %v1380 = vshrl.u32 2102212464, %v1371
        %v1381 = vor.u32 %v1379, %v1380
        %v1382 = vshll.u32 2102212464, %v1370
        %v1383 = vshrl.u32 920167782, %v1371
        %v1384 = vor.u32 %v1382, %v1383
        %v1385 = vshll.u32 920167782, %v1370
        %v1386 = vshrl.u32 1326507024, %v1371
        %v1387 = vor.u32 %v1385, %v1386
        %vm1388 = vcmp.lt.s32.totalorder %v1369, 1
        %vm1389 = vcmp.lt.s32.totalorder %v1369, 2
        %vm1390 = vcmp.lt.s32.totalorder %v1369, 3
        %vm1391 = vcmp.lt.s32.totalorder %v1369, 4
        %v1392 = vsel %vm1388, %v1372, %v1375
        %v1393 = vsel %vm1391, %v1381, 2102212464
        %v1394 = vsel %vm1390, %v1378, %v1393
        %v1395 = vsel %vm1389, %v1392, %v1394
        %v1396 = vsel %vm1388, %v1375, %v1378
        %v1397 = vsel %vm1391, %v1384, 920167782
        %v1398 = vsel %vm1390, %v1381, %v1397
        %v1399 = vsel %vm1389, %v1396, %v1398
        %v1400 = vsel %vm1388, %v1378, %v1381
        %v1401 = vsel %vm1391, %v1387, 1326507024
        %v1402 = vsel %vm1390, %v1384, %v1401
        %v1403 = vsel %vm1389, %v1400, %v1402
        %v1404 = vshll.u32 %v1364, 8
        %v1405 = vand.u32 %v1404, 65535
        %v1406 = vshrl.u32 %v1404, 16
        %v1407 = vand.u32 %v1403, 65535
        %v1408 = vshrl.u32 %v1403, 16
        %v1409 = vmul.u32 %v1405, %v1407
        %v1410 = vmul.u32 %v1405, %v1408
        %v1411 = vmul.u32 %v1406, %v1407
        %v1412 = vmul.u32 %v1406, %v1408
        %v1413 = vshll.u32 %v1410, 16
        %v1414 = vshrl.u32 %v1410, 16
        %v1415 = vshll.u32 %v1411, 16
        %v1416 = vshrl.u32 %v1411, 16
        %vm1417 = vc.u32 %v1409, %v1413
        %v1418 = vsel %vm1417, 1, 0
        %v1419 = vadd.s32 %v1409, %v1413
        %v1420 = vadd.s32 %v1412, %v1418
        %vm1421 = vc.u32 %v1419, %v1415
        %v1422 = vsel %vm1421, 1, 0
        %v1423 = vadd.s32 %v1419, %v1415
        %v1424 = vadd.s32 %v1420, %v1422
        %v1425 = vadd.s32 %v1424, %v1414
        %v1426 = vadd.s32 %v1425, %v1416
        %v1427 = vand.u32 %v1404, 65535
        %v1428 = vshrl.u32 %v1404, 16
        %v1429 = vand.u32 %v1399, 65535
        %v1430 = vshrl.u32 %v1399, 16
        %v1431 = vmul.u32 %v1427, %v1429
        %v1432 = vmul.u32 %v1427, %v1430
        %v1433 = vmul.u32 %v1428, %v1429
        %v1434 = vmul.u32 %v1428, %v1430
        %v1435 = vshll.u32 %v1432, 16
        %v1436 = vshrl.u32 %v1432, 16
        %v1437 = vshll.u32 %v1433, 16
        %v1438 = vshrl.u32 %v1433, 16
        %vm1439 = vc.u32 %v1431, %v1435
        %v1440 = vsel %vm1439, 1, 0
        %v1441 = vadd.s32 %v1431, %v1435
        %v1442 = vadd.s32 %v1434, %v1440
        %vm1443 = vc.u32 %v1441, %v1437
        %v1444 = vsel %vm1443, 1, 0
        %v1445 = vadd.s32 %v1441, %v1437
        %v1446 = vadd.s32 %v1442, %v1444
        %v1447 = vadd.s32 %v1446, %v1436
        %v1448 = vadd.s32 %v1447, %v1438
        %v1449 = vmul.u32 %v1404, %v1395
        %v1450 = vadd.s32 %v1426, %v1445
        %vm1451 = vc.u32 %v1426, %v1445
        %v1452 = vadd.s32 %v1448, 1
        %v1453 = vsel %vm1451, %v1452, %v1448
        %v1454 = vadd.s32 %v1449, %v1453
        %v1455 = vadd.s32 %v1454, 536870912
        %v1456 = vshrl.u32 %v1455, 30
        %v1457 = vshll.u32 %v1456, 30
        %v1458 = vsub.s32 %v1454, %v1457
        %vm1459 = vcmp.lt.s32.totalorder %v1458, 0
        %v1460 = vsub.s32 0, %v1458
        %v1461 = vsel %vm1459, %v1460, %v1458
        %v1462 = vclz %v1461
        %v1463 = vsub.s32 %v1462, 2
        %vm1464 = vcmp.gt.s32.totalorder 0, %v1463
        %v1465 = vsel %vm1464, 0, %v1463
        %v1466 = vsub.s32 32, %v1465
        %v1467 = vshll.u32 %v1458, %v1465
        %v1468 = vshrl.u32 %v1450, %v1466
        %v1469 = vor.u32 %v1467, %v1468
        %v1470 = vsub.s32 4294967266, %v1465
        %v1471 = vadd.s32 %v1470, 127
        %v1472 = vshll.u32 %v1471, 23
        %v1473 = vor.u32 4788187, %v1472
        %v1474 = vand.u32 2147483647, %v1473
        %v1476 = vcvt.s32.f32 %v1469
        %v1477 = vmul.f32 %v1476, %v1474
        %v1478 = vxor.u32 %v1477, 2147483648
        %v1479 = vsel %vm1358, %v1478, %v1477
        %v1480 = vsub.s32 4, %v1456
        %v1481 = vsel %vm1358, %v1480, %v1456
        %v1482 = vsel %vm1357, %v340, %v1479
        %v1483 = vsel %vm1357, 0, %v1481
        %v1484 = vmul.f32 %v1482, %v1482
        %v1485 = vmul.f32 %v1484, -0.001358992
        %v1486 = vadd.f32 %v1485, 0.041655596
        %v1487 = vmul.f32 %v1484, %v1486
        %v1488 = vadd.f32 %v1487, -0.4999988
        %v1489 = vmul.f32 %v1484, %v1488
        %v1490 = vadd.f32 1.0, %v1489
        %v1491 = vmul.f32 %v1482, %v1482
        %v1492 = vmul.f32 %v1491, -0.00019511016
        %v1493 = vadd.f32 %v1492, 0.008332121
        %v1494 = vmul.f32 %v1491, %v1493
        %v1495 = vadd.f32 %v1494, -0.16666654
        %v1496 = vmul.f32 %v1491, %v1495
        %v1497 = vadd.f32 %v1496, 1.0
        %v1498 = vmul.f32 %v1497, %v1482
        %vm1499 = vweird.f32 %v340
        %v1500 = vadd.s32 %v1483, 3
        %v1501 = vand.u32 %v1500, 3
        %vm1502 = vcmp.lt.s32.totalorder %v1501, 2
        %vm1503 = vcmp.eq.s32.totalorder %v1501, 0
        %v1504 = vxor.u32 %v1498, 2147483648
        %v1505 = vsel %vm1503, %v1490, %v1504
        %vm1506 = vcmp.eq.s32.totalorder %v1501, 2
        %v1507 = vxor.u32 %v1490, 2147483648
        %v1508 = vsel %vm1506, %v1507, %v1498
        %v1509 = vsel %vm1502, %v1505, %v1508
        %v1510 = vsel %vm1499, nan, %v1509
        %v1511 = vand.u32 2147483647, %v341
        %vm1512 = vcmp.le.f32.partialorder %v1511, 0.7853982
        %vm1513 = vcmp.lt.s32.totalorder %v341, 0
        %v1514 = vand.u32 %v341, 2139095040
        %v1515 = vshrl.u32 %v1514, 23
        %v1516 = vsub.s32 %v1515, 127
        %v1517 = vand.u32 2147483647, %v341
        %v1518 = vand.u32 %v1517, 8388607
        %v1519 = vor.u32 %v1518, 8388608
        %v1520 = vsub.s32 0, %v1519
        %v1521 = vadd.s32 %v1516, 1
        %vm1522 = vcmp.gt.s32.totalorder %v1521, 0
        %v1523 = vsel %vm1522, %v1521, 0
        %v1524 = vshrl.u32 %v1523, 5
        %v1525 = vand.u32 %v1523, 31
        %v1526 = vsub.s32 32, %v1525
        %v1527 = vshrl.u32 683565275, %v1526
        %v1528 = vshll.u32 683565275, %v1525
        %v1529 = vshrl.u32 2475754826, %v1526
        %v1530 = vor.u32 %v1528, %v1529
        %v1531 = vshll.u32 2475754826, %v1525
        %v1532 = vshrl.u32 2131351028, %v1526
        %v1533 = vor.u32 %v1531, %v1532
        %v1534 = vshll.u32 2131351028, %v1525
        %v1535 = vshrl.u32 2102212464, %v1526
        %v1536 = vor.u32 %v1534, %v1535
        %v1537 = vshll.u32 2102212464, %v1525
        %v1538 = vshrl.u32 920167782, %v1526
        %v1539 = vor.u32 %v1537, %v1538
        %v1540 = vshll.u32 920167782, %v1525
        %v1541 = vshrl.u32 1326507024, %v1526
        %v1542 = vor.u32 %v1540, %v1541
        %vm1543 = vcmp.lt.s32.totalorder %v1524, 1
        %vm1544 = vcmp.lt.s32.totalorder %v1524, 2
        %vm1545 = vcmp.lt.s32.totalorder %v1524, 3
        %vm1546 = vcmp.lt.s32.totalorder %v1524, 4
        %v1547 = vsel %vm1543, %v1527, %v1530
        %v1548 = vsel %vm1546, %v1536, 2102212464
        %v1549 = vsel %vm1545, %v1533, %v1548
        %v1550 = vsel %vm1544, %v1547, %v1549
        %v1551 = vsel %vm1543, %v1530, %v1533
        %v1552 = vsel %vm1546, %v1539, 920167782
        %v1553 = vsel %vm1545, %v1536, %v1552
        %v1554 = vsel %vm1544, %v1551, %v1553
        %v1555 = vsel %vm1543, %v1533, %v1536
        %v1556 = vsel %vm1546, %v1542, 1326507024
        %v1557 = vsel %vm1545, %v1539, %v1556
        %v1558 = vsel %vm1544, %v1555, %v1557
        %v1559 = vshll.u32 %v1519, 8
        %v1560 = vand.u32 %v1559, 65535
        %v1561 = vshrl.u32 %v1559, 16
        %v1562 = vand.u32 %v1558, 65535
        %v1563 = vshrl.u32 %v1558, 16
        %v1564 = vmul.u32 %v1560, %v1562
        %v1565 = vmul.u32 %v1560, %v1563
        %v1566 = vmul.u32 %v1561, %v1562
        %v1567 = vmul.u32 %v1561, %v1563
        %v1568 = vshll.u32 %v1565, 16
        %v1569 = vshrl.u32 %v1565, 16
        %v1570 = vshll.u32 %v1566, 16
        %v1571 = vshrl.u32 %v1566, 16
        %vm1572 = vc.u32 %v1564, %v1568
        %v1573 = vsel %vm1572, 1, 0
        %v1574 = vadd.s32 %v1564, %v1568
        %v1575 = vadd.s32 %v1567, %v1573
        %vm1576 = vc.u32 %v1574, %v1570
        %v1577 = vsel %vm1576, 1, 0
        %v1578 = vadd.s32 %v1574, %v1570
        %v1579 = vadd.s32 %v1575, %v1577
        %v1580 = vadd.s32 %v1579, %v1569
        %v1581 = vadd.s32 %v1580, %v1571
        %v1582 = vand.u32 %v1559, 65535
        %v1583 = vshrl.u32 %v1559, 16
        %v1584 = vand.u32 %v1554, 65535
        %v1585 = vshrl.u32 %v1554, 16
        %v1586 = vmul.u32 %v1582, %v1584
        %v1587 = vmul.u32 %v1582, %v1585
        %v1588 = vmul.u32 %v1583, %v1584
        %v1589 = vmul.u32 %v1583, %v1585
        %v1590 = vshll.u32 %v1587, 16
        %v1591 = vshrl.u32 %v1587, 16
        %v1592 = vshll.u32 %v1588, 16
        %v1593 = vshrl.u32 %v1588, 16
        %vm1594 = vc.u32 %v1586, %v1590
        %v1595 = vsel %vm1594, 1, 0
        %v1596 = vadd.s32 %v1586, %v1590
        %v1597 = vadd.s32 %v1589, %v1595
        %vm1598 = vc.u32 %v1596, %v1592
        %v1599 = vsel %vm1598, 1, 0
        %v1600 = vadd.s32 %v1596, %v1592
        %v1601 = vadd.s32 %v1597, %v1599
        %v1602 = vadd.s32 %v1601, %v1591
        %v1603 = vadd.s32 %v1602, %v1593
        %v1604 = vmul.u32 %v1559, %v1550
        %v1605 = vadd.s32 %v1581, %v1600
        %vm1606 = vc.u32 %v1581, %v1600
        %v1607 = vadd.s32 %v1603, 1
        %v1608 = vsel %vm1606, %v1607, %v1603
        %v1609 = vadd.s32 %v1604, %v1608
        %v1610 = vadd.s32 %v1609, 536870912
        %v1611 = vshrl.u32 %v1610, 30
        %v1612 = vshll.u32 %v1611, 30
        %v1613 = vsub.s32 %v1609, %v1612
        %vm1614 = vcmp.lt.s32.totalorder %v1613, 0
        %v1615 = vsub.s32 0, %v1613
        %v1616 = vsel %vm1614, %v1615, %v1613
        %v1617 = vclz %v1616
        %v1618 = vsub.s32 %v1617, 2
        %vm1619 = vcmp.gt.s32.totalorder 0, %v1618
        %v1620 = vsel %vm1619, 0, %v1618
        %v1621 = vsub.s32 32, %v1620
        %v1622 = vshll.u32 %v1613, %v1620
        %v1623 = vshrl.u32 %v1605, %v1621
        %v1624 = vor.u32 %v1622, %v1623
        %v1625 = vsub.s32 4294967266, %v1620
        %v1626 = vadd.s32 %v1625, 127
        %v1627 = vshll.u32 %v1626, 23
        %v1628 = vor.u32 4788187, %v1627
        %v1629 = vand.u32 2147483647, %v1628
        %v1631 = vcvt.s32.f32 %v1624
        %v1632 = vmul.f32 %v1631, %v1629
        %v1633 = vxor.u32 %v1632, 2147483648
        %v1634 = vsel %vm1513, %v1633, %v1632
        %v1635 = vsub.s32 4, %v1611
        %v1636 = vsel %vm1513, %v1635, %v1611
        %v1637 = vsel %vm1512, %v341, %v1634
        %v1638 = vsel %vm1512, 0, %v1636
        %v1639 = vmul.f32 %v1637, %v1637
        %v1640 = vmul.f32 %v1639, -0.001358992
        %v1641 = vadd.f32 %v1640, 0.041655596
        %v1642 = vmul.f32 %v1639, %v1641
        %v1643 = vadd.f32 %v1642, -0.4999988
        %v1644 = vmul.f32 %v1639, %v1643
        %v1645 = vadd.f32 1.0, %v1644
        %v1646 = vmul.f32 %v1637, %v1637
        %v1647 = vmul.f32 %v1646, -0.00019511016
        %v1648 = vadd.f32 %v1647, 0.008332121
        %v1649 = vmul.f32 %v1646, %v1648
        %v1650 = vadd.f32 %v1649, -0.16666654
        %v1651 = vmul.f32 %v1646, %v1650
        %v1652 = vadd.f32 %v1651, 1.0
        %v1653 = vmul.f32 %v1652, %v1637
        %vm1654 = vweird.f32 %v341
        %v1655 = vadd.s32 %v1638, 3
        %v1656 = vand.u32 %v1655, 3
        %vm1657 = vcmp.lt.s32.totalorder %v1656, 2
        %vm1658 = vcmp.eq.s32.totalorder %v1656, 0
        %v1659 = vxor.u32 %v1653, 2147483648
        %v1660 = vsel %vm1658, %v1645, %v1659
        %vm1661 = vcmp.eq.s32.totalorder %v1656, 2
        %v1662 = vxor.u32 %v1645, 2147483648
        %v1663 = vsel %vm1661, %v1662, %v1653
        %v1664 = vsel %vm1657, %v1660, %v1663
        %v1665 = vsel %vm1654, nan, %v1664
        %v1666 = vand.u32 2147483647, %v342
        %vm1667 = vcmp.le.f32.partialorder %v1666, 0.7853982
        %vm1668 = vcmp.lt.s32.totalorder %v342, 0
        %v1669 = vand.u32 %v342, 2139095040
        %v1670 = vshrl.u32 %v1669, 23
        %v1671 = vsub.s32 %v1670, 127
        %v1672 = vand.u32 2147483647, %v342
        %v1673 = vand.u32 %v1672, 8388607
        %v1674 = vor.u32 %v1673, 8388608
        %v1675 = vsub.s32 0, %v1674
        %v1676 = vadd.s32 %v1671, 1
        %vm1677 = vcmp.gt.s32.totalorder %v1676, 0
        %v1678 = vsel %vm1677, %v1676, 0
        %v1679 = vshrl.u32 %v1678, 5
        %v1680 = vand.u32 %v1678, 31
        %v1681 = vsub.s32 32, %v1680
        %v1682 = vshrl.u32 683565275, %v1681
        %v1683 = vshll.u32 683565275, %v1680
        %v1684 = vshrl.u32 2475754826, %v1681
        %v1685 = vor.u32 %v1683, %v1684
        %v1686 = vshll.u32 2475754826, %v1680
        %v1687 = vshrl.u32 2131351028, %v1681
        %v1688 = vor.u32 %v1686, %v1687
        %v1689 = vshll.u32 2131351028, %v1680
        %v1690 = vshrl.u32 2102212464, %v1681
        %v1691 = vor.u32 %v1689, %v1690
        %v1692 = vshll.u32 2102212464, %v1680
        %v1693 = vshrl.u32 920167782, %v1681
        %v1694 = vor.u32 %v1692, %v1693
        %v1695 = vshll.u32 920167782, %v1680
        %v1696 = vshrl.u32 1326507024, %v1681
        %v1697 = vor.u32 %v1695, %v1696
        %vm1698 = vcmp.lt.s32.totalorder %v1679, 1
        %vm1699 = vcmp.lt.s32.totalorder %v1679, 2
        %vm1700 = vcmp.lt.s32.totalorder %v1679, 3
        %vm1701 = vcmp.lt.s32.totalorder %v1679, 4
        %v1702 = vsel %vm1698, %v1682, %v1685
        %v1703 = vsel %vm1701, %v1691, 2102212464
        %v1704 = vsel %vm1700, %v1688, %v1703
        %v1705 = vsel %vm1699, %v1702, %v1704
        %v1706 = vsel %vm1698, %v1685, %v1688
        %v1707 = vsel %vm1701, %v1694, 920167782
        %v1708 = vsel %vm1700, %v1691, %v1707
        %v1709 = vsel %vm1699, %v1706, %v1708
        %v1710 = vsel %vm1698, %v1688, %v1691
        %v1711 = vsel %vm1701, %v1697, 1326507024
        %v1712 = vsel %vm1700, %v1694, %v1711
        %v1713 = vsel %vm1699, %v1710, %v1712
        %v1714 = vshll.u32 %v1674, 8
        %v1715 = vand.u32 %v1714, 65535
        %v1716 = vshrl.u32 %v1714, 16
        %v1717 = vand.u32 %v1713, 65535
        %v1718 = vshrl.u32 %v1713, 16
        %v1719 = vmul.u32 %v1715, %v1717
        %v1720 = vmul.u32 %v1715, %v1718
        %v1721 = vmul.u32 %v1716, %v1717
        %v1722 = vmul.u32 %v1716, %v1718
        %v1723 = vshll.u32 %v1720, 16
        %v1724 = vshrl.u32 %v1720, 16
        %v1725 = vshll.u32 %v1721, 16
        %v1726 = vshrl.u32 %v1721, 16
        %vm1727 = vc.u32 %v1719, %v1723
        %v1728 = vsel %vm1727, 1, 0
        %v1729 = vadd.s32 %v1719, %v1723
        %v1730 = vadd.s32 %v1722, %v1728
        %vm1731 = vc.u32 %v1729, %v1725
        %v1732 = vsel %vm1731, 1, 0
        %v1733 = vadd.s32 %v1729, %v1725
        %v1734 = vadd.s32 %v1730, %v1732
        %v1735 = vadd.s32 %v1734, %v1724
        %v1736 = vadd.s32 %v1735, %v1726
        %v1737 = vand.u32 %v1714, 65535
        %v1738 = vshrl.u32 %v1714, 16
        %v1739 = vand.u32 %v1709, 65535
        %v1740 = vshrl.u32 %v1709, 16
        %v1741 = vmul.u32 %v1737, %v1739
        %v1742 = vmul.u32 %v1737, %v1740
        %v1743 = vmul.u32 %v1738, %v1739
        %v1744 = vmul.u32 %v1738, %v1740
        %v1745 = vshll.u32 %v1742, 16
        %v1746 = vshrl.u32 %v1742, 16
        %v1747 = vshll.u32 %v1743, 16
        %v1748 = vshrl.u32 %v1743, 16
        %vm1749 = vc.u32 %v1741, %v1745
        %v1750 = vsel %vm1749, 1, 0
        %v1751 = vadd.s32 %v1741, %v1745
        %v1752 = vadd.s32 %v1744, %v1750
        %vm1753 = vc.u32 %v1751, %v1747
        %v1754 = vsel %vm1753, 1, 0
        %v1755 = vadd.s32 %v1751, %v1747
        %v1756 = vadd.s32 %v1752, %v1754
        %v1757 = vadd.s32 %v1756, %v1746
        %v1758 = vadd.s32 %v1757, %v1748
        %v1759 = vmul.u32 %v1714, %v1705
        %v1760 = vadd.s32 %v1736, %v1755
        %vm1761 = vc.u32 %v1736, %v1755
        %v1762 = vadd.s32 %v1758, 1
        %v1763 = vsel %vm1761, %v1762, %v1758
        %v1764 = vadd.s32 %v1759, %v1763
        %v1765 = vadd.s32 %v1764, 536870912
        %v1766 = vshrl.u32 %v1765, 30
        %v1767 = vshll.u32 %v1766, 30
        %v1768 = vsub.s32 %v1764, %v1767
        %vm1769 = vcmp.lt.s32.totalorder %v1768, 0
        %v1770 = vsub.s32 0, %v1768
        %v1771 = vsel %vm1769, %v1770, %v1768
        %v1772 = vclz %v1771
        %v1773 = vsub.s32 %v1772, 2
        %vm1774 = vcmp.gt.s32.totalorder 0, %v1773
        %v1775 = vsel %vm1774, 0, %v1773
        %v1776 = vsub.s32 32, %v1775
        %v1777 = vshll.u32 %v1768, %v1775
        %v1778 = vshrl.u32 %v1760, %v1776
        %v1779 = vor.u32 %v1777, %v1778
        %v1780 = vsub.s32 4294967266, %v1775
        %v1781 = vadd.s32 %v1780, 127
        %v1782 = vshll.u32 %v1781, 23
        %v1783 = vor.u32 4788187, %v1782
        %v1784 = vand.u32 2147483647, %v1783
        %v1786 = vcvt.s32.f32 %v1779
        %v1787 = vmul.f32 %v1786, %v1784
        %v1788 = vxor.u32 %v1787, 2147483648
        %v1789 = vsel %vm1668, %v1788, %v1787
        %v1790 = vsub.s32 4, %v1766
        %v1791 = vsel %vm1668, %v1790, %v1766
        %v1792 = vsel %vm1667, %v342, %v1789
        %v1793 = vsel %vm1667, 0, %v1791
        %v1794 = vmul.f32 %v1792, %v1792
        %v1795 = vmul.f32 %v1794, -0.001358992
        %v1796 = vadd.f32 %v1795, 0.041655596
        %v1797 = vmul.f32 %v1794, %v1796
        %v1798 = vadd.f32 %v1797, -0.4999988
        %v1799 = vmul.f32 %v1794, %v1798
        %v1800 = vadd.f32 1.0, %v1799
        %v1801 = vmul.f32 %v1792, %v1792
        %v1802 = vmul.f32 %v1801, -0.00019511016
        %v1803 = vadd.f32 %v1802, 0.008332121
        %v1804 = vmul.f32 %v1801, %v1803
        %v1805 = vadd.f32 %v1804, -0.16666654
        %v1806 = vmul.f32 %v1801, %v1805
        %v1807 = vadd.f32 %v1806, 1.0
        %v1808 = vmul.f32 %v1807, %v1792
        %vm1809 = vweird.f32 %v342
        %v1810 = vadd.s32 %v1793, 3
        %v1811 = vand.u32 %v1810, 3
        %vm1812 = vcmp.lt.s32.totalorder %v1811, 2
        %vm1813 = vcmp.eq.s32.totalorder %v1811, 0
        %v1814 = vxor.u32 %v1808, 2147483648
        %v1815 = vsel %vm1813, %v1800, %v1814
        %vm1816 = vcmp.eq.s32.totalorder %v1811, 2
        %v1817 = vxor.u32 %v1800, 2147483648
        %v1818 = vsel %vm1816, %v1817, %v1808
        %v1819 = vsel %vm1812, %v1815, %v1818
        %v1820 = vsel %vm1809, nan, %v1819
        %v1821 = vand.u32 2147483647, %v343
        %vm1822 = vcmp.le.f32.partialorder %v1821, 0.7853982
        %vm1823 = vcmp.lt.s32.totalorder %v343, 0
        %v1824 = vand.u32 %v343, 2139095040
        %v1825 = vshrl.u32 %v1824, 23
        %v1826 = vsub.s32 %v1825, 127
        %v1827 = vand.u32 2147483647, %v343
        %v1828 = vand.u32 %v1827, 8388607
        %v1829 = vor.u32 %v1828, 8388608
        %v1830 = vsub.s32 0, %v1829
        %v1831 = vadd.s32 %v1826, 1
        %vm1832 = vcmp.gt.s32.totalorder %v1831, 0
        %v1833 = vsel %vm1832, %v1831, 0
        %v1834 = vshrl.u32 %v1833, 5
        %v1835 = vand.u32 %v1833, 31
        %v1836 = vsub.s32 32, %v1835
        %v1837 = vshrl.u32 683565275, %v1836
        %v1838 = vshll.u32 683565275, %v1835
        %v1839 = vshrl.u32 2475754826, %v1836
        %v1840 = vor.u32 %v1838, %v1839
        %v1841 = vshll.u32 2475754826, %v1835
        %v1842 = vshrl.u32 2131351028, %v1836
        %v1843 = vor.u32 %v1841, %v1842
        %v1844 = vshll.u32 2131351028, %v1835
        %v1845 = vshrl.u32 2102212464, %v1836
        %v1846 = vor.u32 %v1844, %v1845
        %v1847 = vshll.u32 2102212464, %v1835
        %v1848 = vshrl.u32 920167782, %v1836
        %v1849 = vor.u32 %v1847, %v1848
        %v1850 = vshll.u32 920167782, %v1835
        %v1851 = vshrl.u32 1326507024, %v1836
        %v1852 = vor.u32 %v1850, %v1851
        %vm1853 = vcmp.lt.s32.totalorder %v1834, 1
        %vm1854 = vcmp.lt.s32.totalorder %v1834, 2
        %vm1855 = vcmp.lt.s32.totalorder %v1834, 3
        %vm1856 = vcmp.lt.s32.totalorder %v1834, 4
        %v1857 = vsel %vm1853, %v1837, %v1840
        %v1858 = vsel %vm1856, %v1846, 2102212464
        %v1859 = vsel %vm1855, %v1843, %v1858
        %v1860 = vsel %vm1854, %v1857, %v1859
        %v1861 = vsel %vm1853, %v1840, %v1843
        %v1862 = vsel %vm1856, %v1849, 920167782
        %v1863 = vsel %vm1855, %v1846, %v1862
        %v1864 = vsel %vm1854, %v1861, %v1863
        %v1865 = vsel %vm1853, %v1843, %v1846
        %v1866 = vsel %vm1856, %v1852, 1326507024
        %v1867 = vsel %vm1855, %v1849, %v1866
        %v1868 = vsel %vm1854, %v1865, %v1867
        %v1869 = vshll.u32 %v1829, 8
        %v1870 = vand.u32 %v1869, 65535
        %v1871 = vshrl.u32 %v1869, 16
        %v1872 = vand.u32 %v1868, 65535
        %v1873 = vshrl.u32 %v1868, 16
        %v1874 = vmul.u32 %v1870, %v1872
        %v1875 = vmul.u32 %v1870, %v1873
        %v1876 = vmul.u32 %v1871, %v1872
        %v1877 = vmul.u32 %v1871, %v1873
        %v1878 = vshll.u32 %v1875, 16
        %v1879 = vshrl.u32 %v1875, 16
        %v1880 = vshll.u32 %v1876, 16
        %v1881 = vshrl.u32 %v1876, 16
        %vm1882 = vc.u32 %v1874, %v1878
        %v1883 = vsel %vm1882, 1, 0
        %v1884 = vadd.s32 %v1874, %v1878
        %v1885 = vadd.s32 %v1877, %v1883
        %vm1886 = vc.u32 %v1884, %v1880
        %v1887 = vsel %vm1886, 1, 0
        %v1888 = vadd.s32 %v1884, %v1880
        %v1889 = vadd.s32 %v1885, %v1887
        %v1890 = vadd.s32 %v1889, %v1879
        %v1891 = vadd.s32 %v1890, %v1881
        %v1892 = vand.u32 %v1869, 65535
        %v1893 = vshrl.u32 %v1869, 16
        %v1894 = vand.u32 %v1864, 65535
        %v1895 = vshrl.u32 %v1864, 16
        %v1896 = vmul.u32 %v1892, %v1894
        %v1897 = vmul.u32 %v1892, %v1895
        %v1898 = vmul.u32 %v1893, %v1894
        %v1899 = vmul.u32 %v1893, %v1895
        %v1900 = vshll.u32 %v1897, 16
        %v1901 = vshrl.u32 %v1897, 16
        %v1902 = vshll.u32 %v1898, 16
        %v1903 = vshrl.u32 %v1898, 16
        %vm1904 = vc.u32 %v1896, %v1900
        %v1905 = vsel %vm1904, 1, 0
        %v1906 = vadd.s32 %v1896, %v1900
        %v1907 = vadd.s32 %v1899, %v1905
        %vm1908 = vc.u32 %v1906, %v1902
        %v1909 = vsel %vm1908, 1, 0
        %v1910 = vadd.s32 %v1906, %v1902
        %v1911 = vadd.s32 %v1907, %v1909
        %v1912 = vadd.s32 %v1911, %v1901
        %v1913 = vadd.s32 %v1912, %v1903
        %v1914 = vmul.u32 %v1869, %v1860
        %v1915 = vadd.s32 %v1891, %v1910
        %vm1916 = vc.u32 %v1891, %v1910
        %v1917 = vadd.s32 %v1913, 1
        %v1918 = vsel %vm1916, %v1917, %v1913
        %v1919 = vadd.s32 %v1914, %v1918
        %v1920 = vadd.s32 %v1919, 536870912
        %v1921 = vshrl.u32 %v1920, 30
        %v1922 = vshll.u32 %v1921, 30
        %v1923 = vsub.s32 %v1919, %v1922
        %vm1924 = vcmp.lt.s32.totalorder %v1923, 0
        %v1925 = vsub.s32 0, %v1923
        %v1926 = vsel %vm1924, %v1925, %v1923
        %v1927 = vclz %v1926
        %v1928 = vsub.s32 %v1927, 2
        %vm1929 = vcmp.gt.s32.totalorder 0, %v1928
        %v1930 = vsel %vm1929, 0, %v1928
        %v1931 = vsub.s32 32, %v1930
        %v1932 = vshll.u32 %v1923, %v1930
        %v1933 = vshrl.u32 %v1915, %v1931
        %v1934 = vor.u32 %v1932, %v1933
        %v1935 = vsub.s32 4294967266, %v1930
        %v1936 = vadd.s32 %v1935, 127
        %v1937 = vshll.u32 %v1936, 23
        %v1938 = vor.u32 4788187, %v1937
        %v1939 = vand.u32 2147483647, %v1938
        %v1941 = vcvt.s32.f32 %v1934
        %v1942 = vmul.f32 %v1941, %v1939
        %v1943 = vxor.u32 %v1942, 2147483648
        %v1944 = vsel %vm1823, %v1943, %v1942
        %v1945 = vsub.s32 4, %v1921
        %v1946 = vsel %vm1823, %v1945, %v1921
        %v1947 = vsel %vm1822, %v343, %v1944
        %v1948 = vsel %vm1822, 0, %v1946
        %v1949 = vmul.f32 %v1947, %v1947
        %v1950 = vmul.f32 %v1949, -0.001358992
        %v1951 = vadd.f32 %v1950, 0.041655596
        %v1952 = vmul.f32 %v1949, %v1951
        %v1953 = vadd.f32 %v1952, -0.4999988
        %v1954 = vmul.f32 %v1949, %v1953
        %v1955 = vadd.f32 1.0, %v1954
        %v1956 = vmul.f32 %v1947, %v1947
        %v1957 = vmul.f32 %v1956, -0.00019511016
        %v1958 = vadd.f32 %v1957, 0.008332121
        %v1959 = vmul.f32 %v1956, %v1958
        %v1960 = vadd.f32 %v1959, -0.16666654
        %v1961 = vmul.f32 %v1956, %v1960
        %v1962 = vadd.f32 %v1961, 1.0
        %v1963 = vmul.f32 %v1962, %v1947
        %vm1964 = vweird.f32 %v343
        %v1965 = vadd.s32 %v1948, 3
        %v1966 = vand.u32 %v1965, 3
        %vm1967 = vcmp.lt.s32.totalorder %v1966, 2
        %vm1968 = vcmp.eq.s32.totalorder %v1966, 0
        %v1969 = vxor.u32 %v1963, 2147483648
        %v1970 = vsel %vm1968, %v1955, %v1969
        %vm1971 = vcmp.eq.s32.totalorder %v1966, 2
        %v1972 = vxor.u32 %v1955, 2147483648
        %v1973 = vsel %vm1971, %v1972, %v1963
        %v1974 = vsel %vm1967, %v1970, %v1973
        %v1975 = vsel %vm1964, nan, %v1974
        %v1976 = vand.u32 2147483647, %v344
        %vm1977 = vcmp.le.f32.partialorder %v1976, 0.7853982
        %vm1978 = vcmp.lt.s32.totalorder %v344, 0
        %v1979 = vand.u32 %v344, 2139095040
        %v1980 = vshrl.u32 %v1979, 23
        %v1981 = vsub.s32 %v1980, 127
        %v1982 = vand.u32 2147483647, %v344
        %v1983 = vand.u32 %v1982, 8388607
        %v1984 = vor.u32 %v1983, 8388608
        %v1985 = vsub.s32 0, %v1984
        %v1986 = vadd.s32 %v1981, 1
        %vm1987 = vcmp.gt.s32.totalorder %v1986, 0
        %v1988 = vsel %vm1987, %v1986, 0
        %v1989 = vshrl.u32 %v1988, 5
        %v1990 = vand.u32 %v1988, 31
        %v1991 = vsub.s32 32, %v1990
        %v1992 = vshrl.u32 683565275, %v1991
        %v1993 = vshll.u32 683565275, %v1990
        %v1994 = vshrl.u32 2475754826, %v1991
        %v1995 = vor.u32 %v1993, %v1994
        %v1996 = vshll.u32 2475754826, %v1990
        %v1997 = vshrl.u32 2131351028, %v1991
        %v1998 = vor.u32 %v1996, %v1997
        %v1999 = vshll.u32 2131351028, %v1990
        %v2000 = vshrl.u32 2102212464, %v1991
        %v2001 = vor.u32 %v1999, %v2000
        %v2002 = vshll.u32 2102212464, %v1990
        %v2003 = vshrl.u32 920167782, %v1991
        %v2004 = vor.u32 %v2002, %v2003
        %v2005 = vshll.u32 920167782, %v1990
        %v2006 = vshrl.u32 1326507024, %v1991
        %v2007 = vor.u32 %v2005, %v2006
        %vm2008 = vcmp.lt.s32.totalorder %v1989, 1
        %vm2009 = vcmp.lt.s32.totalorder %v1989, 2
        %vm2010 = vcmp.lt.s32.totalorder %v1989, 3
        %vm2011 = vcmp.lt.s32.totalorder %v1989, 4
        %v2012 = vsel %vm2008, %v1992, %v1995
        %v2013 = vsel %vm2011, %v2001, 2102212464
        %v2014 = vsel %vm2010, %v1998, %v2013
        %v2015 = vsel %vm2009, %v2012, %v2014
        %v2016 = vsel %vm2008, %v1995, %v1998
        %v2017 = vsel %vm2011, %v2004, 920167782
        %v2018 = vsel %vm2010, %v2001, %v2017
        %v2019 = vsel %vm2009, %v2016, %v2018
        %v2020 = vsel %vm2008, %v1998, %v2001
        %v2021 = vsel %vm2011, %v2007, 1326507024
        %v2022 = vsel %vm2010, %v2004, %v2021
        %v2023 = vsel %vm2009, %v2020, %v2022
        %v2024 = vshll.u32 %v1984, 8
        %v2025 = vand.u32 %v2024, 65535
        %v2026 = vshrl.u32 %v2024, 16
        %v2027 = vand.u32 %v2023, 65535
        %v2028 = vshrl.u32 %v2023, 16
        %v2029 = vmul.u32 %v2025, %v2027
        %v2030 = vmul.u32 %v2025, %v2028
        %v2031 = vmul.u32 %v2026, %v2027
        %v2032 = vmul.u32 %v2026, %v2028
        %v2033 = vshll.u32 %v2030, 16
        %v2034 = vshrl.u32 %v2030, 16
        %v2035 = vshll.u32 %v2031, 16
        %v2036 = vshrl.u32 %v2031, 16
        %vm2037 = vc.u32 %v2029, %v2033
        %v2038 = vsel %vm2037, 1, 0
        %v2039 = vadd.s32 %v2029, %v2033
        %v2040 = vadd.s32 %v2032, %v2038
        %vm2041 = vc.u32 %v2039, %v2035
        %v2042 = vsel %vm2041, 1, 0
        %v2043 = vadd.s32 %v2039, %v2035
        %v2044 = vadd.s32 %v2040, %v2042
        %v2045 = vadd.s32 %v2044, %v2034
        %v2046 = vadd.s32 %v2045, %v2036
        %v2047 = vand.u32 %v2024, 65535
        %v2048 = vshrl.u32 %v2024, 16
        %v2049 = vand.u32 %v2019, 65535
        %v2050 = vshrl.u32 %v2019, 16
        %v2051 = vmul.u32 %v2047, %v2049
        %v2052 = vmul.u32 %v2047, %v2050
        %v2053 = vmul.u32 %v2048, %v2049
        %v2054 = vmul.u32 %v2048, %v2050
        %v2055 = vshll.u32 %v2052, 16
        %v2056 = vshrl.u32 %v2052, 16
        %v2057 = vshll.u32 %v2053, 16
        %v2058 = vshrl.u32 %v2053, 16
        %vm2059 = vc.u32 %v2051, %v2055
        %v2060 = vsel %vm2059, 1, 0
        %v2061 = vadd.s32 %v2051, %v2055
        %v2062 = vadd.s32 %v2054, %v2060
        %vm2063 = vc.u32 %v2061, %v2057
        %v2064 = vsel %vm2063, 1, 0
        %v2065 = vadd.s32 %v2061, %v2057
        %v2066 = vadd.s32 %v2062, %v2064
        %v2067 = vadd.s32 %v2066, %v2056
        %v2068 = vadd.s32 %v2067, %v2058
        %v2069 = vmul.u32 %v2024, %v2015
        %v2070 = vadd.s32 %v2046, %v2065
        %vm2071 = vc.u32 %v2046, %v2065
        %v2072 = vadd.s32 %v2068, 1
        %v2073 = vsel %vm2071, %v2072, %v2068
        %v2074 = vadd.s32 %v2069, %v2073
        %v2075 = vadd.s32 %v2074, 536870912
        %v2076 = vshrl.u32 %v2075, 30
        %v2077 = vshll.u32 %v2076, 30
        %v2078 = vsub.s32 %v2074, %v2077
        %vm2079 = vcmp.lt.s32.totalorder %v2078, 0
        %v2080 = vsub.s32 0, %v2078
        %v2081 = vsel %vm2079, %v2080, %v2078
        %v2082 = vclz %v2081
        %v2083 = vsub.s32 %v2082, 2
        %vm2084 = vcmp.gt.s32.totalorder 0, %v2083
        %v2085 = vsel %vm2084, 0, %v2083
        %v2086 = vsub.s32 32, %v2085
        %v2087 = vshll.u32 %v2078, %v2085
        %v2088 = vshrl.u32 %v2070, %v2086
        %v2089 = vor.u32 %v2087, %v2088
        %v2090 = vsub.s32 4294967266, %v2085
        %v2091 = vadd.s32 %v2090, 127
        %v2092 = vshll.u32 %v2091, 23
        %v2093 = vor.u32 4788187, %v2092
        %v2094 = vand.u32 2147483647, %v2093
        %v2096 = vcvt.s32.f32 %v2089
        %v2097 = vmul.f32 %v2096, %v2094
        %v2098 = vxor.u32 %v2097, 2147483648
        %v2099 = vsel %vm1978, %v2098, %v2097
        %v2100 = vsub.s32 4, %v2076
        %v2101 = vsel %vm1978, %v2100, %v2076
        %v2102 = vsel %vm1977, %v344, %v2099
        %v2103 = vsel %vm1977, 0, %v2101
        %v2104 = vmul.f32 %v2102, %v2102
        %v2105 = vmul.f32 %v2104, -0.001358992
        %v2106 = vadd.f32 %v2105, 0.041655596
        %v2107 = vmul.f32 %v2104, %v2106
        %v2108 = vadd.f32 %v2107, -0.4999988
        %v2109 = vmul.f32 %v2104, %v2108
        %v2110 = vadd.f32 1.0, %v2109
        %v2111 = vmul.f32 %v2102, %v2102
        %v2112 = vmul.f32 %v2111, -0.00019511016
        %v2113 = vadd.f32 %v2112, 0.008332121
        %v2114 = vmul.f32 %v2111, %v2113
        %v2115 = vadd.f32 %v2114, -0.16666654
        %v2116 = vmul.f32 %v2111, %v2115
        %v2117 = vadd.f32 %v2116, 1.0
        %v2118 = vmul.f32 %v2117, %v2102
        %vm2119 = vweird.f32 %v344
        %v2120 = vadd.s32 %v2103, 3
        %v2121 = vand.u32 %v2120, 3
        %vm2122 = vcmp.lt.s32.totalorder %v2121, 2
        %vm2123 = vcmp.eq.s32.totalorder %v2121, 0
        %v2124 = vxor.u32 %v2118, 2147483648
        %v2125 = vsel %vm2123, %v2110, %v2124
        %vm2126 = vcmp.eq.s32.totalorder %v2121, 2
        %v2127 = vxor.u32 %v2110, 2147483648
        %v2128 = vsel %vm2126, %v2127, %v2118
        %v2129 = vsel %vm2122, %v2125, %v2128
        %v2130 = vsel %vm2119, nan, %v2129
        %v2131 = vand.u32 2147483647, %v345
        %vm2132 = vcmp.le.f32.partialorder %v2131, 0.7853982
        %vm2133 = vcmp.lt.s32.totalorder %v345, 0
        %v2134 = vand.u32 %v345, 2139095040
        %v2135 = vshrl.u32 %v2134, 23
        %v2136 = vsub.s32 %v2135, 127
        %v2137 = vand.u32 2147483647, %v345
        %v2138 = vand.u32 %v2137, 8388607
        %v2139 = vor.u32 %v2138, 8388608
        %v2140 = vsub.s32 0, %v2139
        %v2141 = vadd.s32 %v2136, 1
        %vm2142 = vcmp.gt.s32.totalorder %v2141, 0
        %v2143 = vsel %vm2142, %v2141, 0
        %v2144 = vshrl.u32 %v2143, 5
        %v2145 = vand.u32 %v2143, 31
        %v2146 = vsub.s32 32, %v2145
        %v2147 = vshrl.u32 683565275, %v2146
        %v2148 = vshll.u32 683565275, %v2145
        %v2149 = vshrl.u32 2475754826, %v2146
        %v2150 = vor.u32 %v2148, %v2149
        %v2151 = vshll.u32 2475754826, %v2145
        %v2152 = vshrl.u32 2131351028, %v2146
        %v2153 = vor.u32 %v2151, %v2152
        %v2154 = vshll.u32 2131351028, %v2145
        %v2155 = vshrl.u32 2102212464, %v2146
        %v2156 = vor.u32 %v2154, %v2155
        %v2157 = vshll.u32 2102212464, %v2145
        %v2158 = vshrl.u32 920167782, %v2146
        %v2159 = vor.u32 %v2157, %v2158
        %v2160 = vshll.u32 920167782, %v2145
        %v2161 = vshrl.u32 1326507024, %v2146
        %v2162 = vor.u32 %v2160, %v2161
        %vm2163 = vcmp.lt.s32.totalorder %v2144, 1
        %vm2164 = vcmp.lt.s32.totalorder %v2144, 2
        %vm2165 = vcmp.lt.s32.totalorder %v2144, 3
        %vm2166 = vcmp.lt.s32.totalorder %v2144, 4
        %v2167 = vsel %vm2163, %v2147, %v2150
        %v2168 = vsel %vm2166, %v2156, 2102212464
        %v2169 = vsel %vm2165, %v2153, %v2168
        %v2170 = vsel %vm2164, %v2167, %v2169
        %v2171 = vsel %vm2163, %v2150, %v2153
        %v2172 = vsel %vm2166, %v2159, 920167782
        %v2173 = vsel %vm2165, %v2156, %v2172
        %v2174 = vsel %vm2164, %v2171, %v2173
        %v2175 = vsel %vm2163, %v2153, %v2156
        %v2176 = vsel %vm2166, %v2162, 1326507024
        %v2177 = vsel %vm2165, %v2159, %v2176
        %v2178 = vsel %vm2164, %v2175, %v2177
        %v2179 = vshll.u32 %v2139, 8
        %v2180 = vand.u32 %v2179, 65535
        %v2181 = vshrl.u32 %v2179, 16
        %v2182 = vand.u32 %v2178, 65535
        %v2183 = vshrl.u32 %v2178, 16
        %v2184 = vmul.u32 %v2180, %v2182
        %v2185 = vmul.u32 %v2180, %v2183
        %v2186 = vmul.u32 %v2181, %v2182
        %v2187 = vmul.u32 %v2181, %v2183
        %v2188 = vshll.u32 %v2185, 16
        %v2189 = vshrl.u32 %v2185, 16
        %v2190 = vshll.u32 %v2186, 16
        %v2191 = vshrl.u32 %v2186, 16
        %vm2192 = vc.u32 %v2184, %v2188
        %v2193 = vsel %vm2192, 1, 0
        %v2194 = vadd.s32 %v2184, %v2188
        %v2195 = vadd.s32 %v2187, %v2193
        %vm2196 = vc.u32 %v2194, %v2190
        %v2197 = vsel %vm2196, 1, 0
        %v2198 = vadd.s32 %v2194, %v2190
        %v2199 = vadd.s32 %v2195, %v2197
        %v2200 = vadd.s32 %v2199, %v2189
        %v2201 = vadd.s32 %v2200, %v2191
        %v2202 = vand.u32 %v2179, 65535
        %v2203 = vshrl.u32 %v2179, 16
        %v2204 = vand.u32 %v2174, 65535
        %v2205 = vshrl.u32 %v2174, 16
        %v2206 = vmul.u32 %v2202, %v2204
        %v2207 = vmul.u32 %v2202, %v2205
        %v2208 = vmul.u32 %v2203, %v2204
        %v2209 = vmul.u32 %v2203, %v2205
        %v2210 = vshll.u32 %v2207, 16
        %v2211 = vshrl.u32 %v2207, 16
        %v2212 = vshll.u32 %v2208, 16
        %v2213 = vshrl.u32 %v2208, 16
        %vm2214 = vc.u32 %v2206, %v2210
        %v2215 = vsel %vm2214, 1, 0
        %v2216 = vadd.s32 %v2206, %v2210
        %v2217 = vadd.s32 %v2209, %v2215
        %vm2218 = vc.u32 %v2216, %v2212
        %v2219 = vsel %vm2218, 1, 0
        %v2220 = vadd.s32 %v2216, %v2212
        %v2221 = vadd.s32 %v2217, %v2219
        %v2222 = vadd.s32 %v2221, %v2211
        %v2223 = vadd.s32 %v2222, %v2213
        %v2224 = vmul.u32 %v2179, %v2170
        %v2225 = vadd.s32 %v2201, %v2220
        %vm2226 = vc.u32 %v2201, %v2220
        %v2227 = vadd.s32 %v2223, 1
        %v2228 = vsel %vm2226, %v2227, %v2223
        %v2229 = vadd.s32 %v2224, %v2228
        %v2230 = vadd.s32 %v2229, 536870912
        %v2231 = vshrl.u32 %v2230, 30
        %v2232 = vshll.u32 %v2231, 30
        %v2233 = vsub.s32 %v2229, %v2232
        %vm2234 = vcmp.lt.s32.totalorder %v2233, 0
        %v2235 = vsub.s32 0, %v2233
        %v2236 = vsel %vm2234, %v2235, %v2233
        %v2237 = vclz %v2236
        %v2238 = vsub.s32 %v2237, 2
        %vm2239 = vcmp.gt.s32.totalorder 0, %v2238
        %v2240 = vsel %vm2239, 0, %v2238
        %v2241 = vsub.s32 32, %v2240
        %v2242 = vshll.u32 %v2233, %v2240
        %v2243 = vshrl.u32 %v2225, %v2241
        %v2244 = vor.u32 %v2242, %v2243
        %v2245 = vsub.s32 4294967266, %v2240
        %v2246 = vadd.s32 %v2245, 127
        %v2247 = vshll.u32 %v2246, 23
        %v2248 = vor.u32 4788187, %v2247
        %v2249 = vand.u32 2147483647, %v2248
        %v2251 = vcvt.s32.f32 %v2244
        %v2252 = vmul.f32 %v2251, %v2249
        %v2253 = vxor.u32 %v2252, 2147483648
        %v2254 = vsel %vm2133, %v2253, %v2252
        %v2255 = vsub.s32 4, %v2231
        %v2256 = vsel %vm2133, %v2255, %v2231
        %v2257 = vsel %vm2132, %v345, %v2254
        %v2258 = vsel %vm2132, 0, %v2256
        %v2259 = vmul.f32 %v2257, %v2257
        %v2260 = vmul.f32 %v2259, -0.001358992
        %v2261 = vadd.f32 %v2260, 0.041655596
        %v2262 = vmul.f32 %v2259, %v2261
        %v2263 = vadd.f32 %v2262, -0.4999988
        %v2264 = vmul.f32 %v2259, %v2263
        %v2265 = vadd.f32 1.0, %v2264
        %v2266 = vmul.f32 %v2257, %v2257
        %v2267 = vmul.f32 %v2266, -0.00019511016
        %v2268 = vadd.f32 %v2267, 0.008332121
        %v2269 = vmul.f32 %v2266, %v2268
        %v2270 = vadd.f32 %v2269, -0.16666654
        %v2271 = vmul.f32 %v2266, %v2270
        %v2272 = vadd.f32 %v2271, 1.0
        %v2273 = vmul.f32 %v2272, %v2257
        %vm2274 = vweird.f32 %v345
        %v2275 = vadd.s32 %v2258, 3
        %v2276 = vand.u32 %v2275, 3
        %vm2277 = vcmp.lt.s32.totalorder %v2276, 2
        %vm2278 = vcmp.eq.s32.totalorder %v2276, 0
        %v2279 = vxor.u32 %v2273, 2147483648
        %v2280 = vsel %vm2278, %v2265, %v2279
        %vm2281 = vcmp.eq.s32.totalorder %v2276, 2
        %v2282 = vxor.u32 %v2265, 2147483648
        %v2283 = vsel %vm2281, %v2282, %v2273
        %v2284 = vsel %vm2277, %v2280, %v2283
        %v2285 = vsel %vm2274, nan, %v2284
        %v2286 = vand.u32 2147483647, %v346
        %vm2287 = vcmp.le.f32.partialorder %v2286, 0.7853982
        %vm2288 = vcmp.lt.s32.totalorder %v346, 0
        %v2289 = vand.u32 %v346, 2139095040
        %v2290 = vshrl.u32 %v2289, 23
        %v2291 = vsub.s32 %v2290, 127
        %v2292 = vand.u32 2147483647, %v346
        %v2293 = vand.u32 %v2292, 8388607
        %v2294 = vor.u32 %v2293, 8388608
        %v2295 = vsub.s32 0, %v2294
        %v2296 = vadd.s32 %v2291, 1
        %vm2297 = vcmp.gt.s32.totalorder %v2296, 0
        %v2298 = vsel %vm2297, %v2296, 0
        %v2299 = vshrl.u32 %v2298, 5
        %v2300 = vand.u32 %v2298, 31
        %v2301 = vsub.s32 32, %v2300
        %v2302 = vshrl.u32 683565275, %v2301
        %v2303 = vshll.u32 683565275, %v2300
        %v2304 = vshrl.u32 2475754826, %v2301
        %v2305 = vor.u32 %v2303, %v2304
        %v2306 = vshll.u32 2475754826, %v2300
        %v2307 = vshrl.u32 2131351028, %v2301
        %v2308 = vor.u32 %v2306, %v2307
        %v2309 = vshll.u32 2131351028, %v2300
        %v2310 = vshrl.u32 2102212464, %v2301
        %v2311 = vor.u32 %v2309, %v2310
        %v2312 = vshll.u32 2102212464, %v2300
        %v2313 = vshrl.u32 920167782, %v2301
        %v2314 = vor.u32 %v2312, %v2313
        %v2315 = vshll.u32 920167782, %v2300
        %v2316 = vshrl.u32 1326507024, %v2301
        %v2317 = vor.u32 %v2315, %v2316
        %vm2318 = vcmp.lt.s32.totalorder %v2299, 1
        %vm2319 = vcmp.lt.s32.totalorder %v2299, 2
        %vm2320 = vcmp.lt.s32.totalorder %v2299, 3
        %vm2321 = vcmp.lt.s32.totalorder %v2299, 4
        %v2322 = vsel %vm2318, %v2302, %v2305
        %v2323 = vsel %vm2321, %v2311, 2102212464
        %v2324 = vsel %vm2320, %v2308, %v2323
        %v2325 = vsel %vm2319, %v2322, %v2324
        %v2326 = vsel %vm2318, %v2305, %v2308
        %v2327 = vsel %vm2321, %v2314, 920167782
        %v2328 = vsel %vm2320, %v2311, %v2327
        %v2329 = vsel %vm2319, %v2326, %v2328
        %v2330 = vsel %vm2318, %v2308, %v2311
        %v2331 = vsel %vm2321, %v2317, 1326507024
        %v2332 = vsel %vm2320, %v2314, %v2331
        %v2333 = vsel %vm2319, %v2330, %v2332
        %v2334 = vshll.u32 %v2294, 8
        %v2335 = vand.u32 %v2334, 65535
        %v2336 = vshrl.u32 %v2334, 16
        %v2337 = vand.u32 %v2333, 65535
        %v2338 = vshrl.u32 %v2333, 16
        %v2339 = vmul.u32 %v2335, %v2337
        %v2340 = vmul.u32 %v2335, %v2338
        %v2341 = vmul.u32 %v2336, %v2337
        %v2342 = vmul.u32 %v2336, %v2338
        %v2343 = vshll.u32 %v2340, 16
        %v2344 = vshrl.u32 %v2340, 16
        %v2345 = vshll.u32 %v2341, 16
        %v2346 = vshrl.u32 %v2341, 16
        %vm2347 = vc.u32 %v2339, %v2343
        %v2348 = vsel %vm2347, 1, 0
        %v2349 = vadd.s32 %v2339, %v2343
        %v2350 = vadd.s32 %v2342, %v2348
        %vm2351 = vc.u32 %v2349, %v2345
        %v2352 = vsel %vm2351, 1, 0
        %v2353 = vadd.s32 %v2349, %v2345
        %v2354 = vadd.s32 %v2350, %v2352
        %v2355 = vadd.s32 %v2354, %v2344
        %v2356 = vadd.s32 %v2355, %v2346
        %v2357 = vand.u32 %v2334, 65535
        %v2358 = vshrl.u32 %v2334, 16
        %v2359 = vand.u32 %v2329, 65535
        %v2360 = vshrl.u32 %v2329, 16
        %v2361 = vmul.u32 %v2357, %v2359
        %v2362 = vmul.u32 %v2357, %v2360
        %v2363 = vmul.u32 %v2358, %v2359
        %v2364 = vmul.u32 %v2358, %v2360
        %v2365 = vshll.u32 %v2362, 16
        %v2366 = vshrl.u32 %v2362, 16
        %v2367 = vshll.u32 %v2363, 16
        %v2368 = vshrl.u32 %v2363, 16
        %vm2369 = vc.u32 %v2361, %v2365
        %v2370 = vsel %vm2369, 1, 0
        %v2371 = vadd.s32 %v2361, %v2365
        %v2372 = vadd.s32 %v2364, %v2370
        %vm2373 = vc.u32 %v2371, %v2367
        %v2374 = vsel %vm2373, 1, 0
        %v2375 = vadd.s32 %v2371, %v2367
        %v2376 = vadd.s32 %v2372, %v2374
        %v2377 = vadd.s32 %v2376, %v2366
        %v2378 = vadd.s32 %v2377, %v2368
        %v2379 = vmul.u32 %v2334, %v2325
        %v2380 = vadd.s32 %v2356, %v2375
        %vm2381 = vc.u32 %v2356, %v2375
        %v2382 = vadd.s32 %v2378, 1
        %v2383 = vsel %vm2381, %v2382, %v2378
        %v2384 = vadd.s32 %v2379, %v2383
        %v2385 = vadd.s32 %v2384, 536870912
        %v2386 = vshrl.u32 %v2385, 30
        %v2387 = vshll.u32 %v2386, 30
        %v2388 = vsub.s32 %v2384, %v2387
        %vm2389 = vcmp.lt.s32.totalorder %v2388, 0
        %v2390 = vsub.s32 0, %v2388
        %v2391 = vsel %vm2389, %v2390, %v2388
        %v2392 = vclz %v2391
        %v2393 = vsub.s32 %v2392, 2
        %vm2394 = vcmp.gt.s32.totalorder 0, %v2393
        %v2395 = vsel %vm2394, 0, %v2393
        %v2396 = vsub.s32 32, %v2395
        %v2397 = vshll.u32 %v2388, %v2395
        %v2398 = vshrl.u32 %v2380, %v2396
        %v2399 = vor.u32 %v2397, %v2398
        %v2400 = vsub.s32 4294967266, %v2395
        %v2401 = vadd.s32 %v2400, 127
        %v2402 = vshll.u32 %v2401, 23
        %v2403 = vor.u32 4788187, %v2402
        %v2404 = vand.u32 2147483647, %v2403
        %v2406 = vcvt.s32.f32 %v2399
        %v2407 = vmul.f32 %v2406, %v2404
        %v2408 = vxor.u32 %v2407, 2147483648
        %v2409 = vsel %vm2288, %v2408, %v2407
        %v2410 = vsub.s32 4, %v2386
        %v2411 = vsel %vm2288, %v2410, %v2386
        %v2412 = vsel %vm2287, %v346, %v2409
        %v2413 = vsel %vm2287, 0, %v2411
        %v2414 = vmul.f32 %v2412, %v2412
        %v2415 = vmul.f32 %v2414, -0.001358992
        %v2416 = vadd.f32 %v2415, 0.041655596
        %v2417 = vmul.f32 %v2414, %v2416
        %v2418 = vadd.f32 %v2417, -0.4999988
        %v2419 = vmul.f32 %v2414, %v2418
        %v2420 = vadd.f32 1.0, %v2419
        %v2421 = vmul.f32 %v2412, %v2412
        %v2422 = vmul.f32 %v2421, -0.00019511016
        %v2423 = vadd.f32 %v2422, 0.008332121
        %v2424 = vmul.f32 %v2421, %v2423
        %v2425 = vadd.f32 %v2424, -0.16666654
        %v2426 = vmul.f32 %v2421, %v2425
        %v2427 = vadd.f32 %v2426, 1.0
        %v2428 = vmul.f32 %v2427, %v2412
        %vm2429 = vweird.f32 %v346
        %v2430 = vadd.s32 %v2413, 3
        %v2431 = vand.u32 %v2430, 3
        %vm2432 = vcmp.lt.s32.totalorder %v2431, 2
        %vm2433 = vcmp.eq.s32.totalorder %v2431, 0
        %v2434 = vxor.u32 %v2428, 2147483648
        %v2435 = vsel %vm2433, %v2420, %v2434
        %vm2436 = vcmp.eq.s32.totalorder %v2431, 2
        %v2437 = vxor.u32 %v2420, 2147483648
        %v2438 = vsel %vm2436, %v2437, %v2428
        %v2439 = vsel %vm2432, %v2435, %v2438
        %v2440 = vsel %vm2429, nan, %v2439
        %v2441 = vand.u32 2147483647, %v347
        %vm2442 = vcmp.le.f32.partialorder %v2441, 0.7853982
        %vm2443 = vcmp.lt.s32.totalorder %v347, 0
        %v2444 = vand.u32 %v347, 2139095040
        %v2445 = vshrl.u32 %v2444, 23
        %v2446 = vsub.s32 %v2445, 127
        %v2447 = vand.u32 2147483647, %v347
        %v2448 = vand.u32 %v2447, 8388607
        %v2449 = vor.u32 %v2448, 8388608
        %v2450 = vsub.s32 0, %v2449
        %v2451 = vadd.s32 %v2446, 1
        %vm2452 = vcmp.gt.s32.totalorder %v2451, 0
        %v2453 = vsel %vm2452, %v2451, 0
        %v2454 = vshrl.u32 %v2453, 5
        %v2455 = vand.u32 %v2453, 31
        %v2456 = vsub.s32 32, %v2455
        %v2457 = vshrl.u32 683565275, %v2456
        %v2458 = vshll.u32 683565275, %v2455
        %v2459 = vshrl.u32 2475754826, %v2456
        %v2460 = vor.u32 %v2458, %v2459
        %v2461 = vshll.u32 2475754826, %v2455
        %v2462 = vshrl.u32 2131351028, %v2456
        %v2463 = vor.u32 %v2461, %v2462
        %v2464 = vshll.u32 2131351028, %v2455
        %v2465 = vshrl.u32 2102212464, %v2456
        %v2466 = vor.u32 %v2464, %v2465
        %v2467 = vshll.u32 2102212464, %v2455
        %v2468 = vshrl.u32 920167782, %v2456
        %v2469 = vor.u32 %v2467, %v2468
        %v2470 = vshll.u32 920167782, %v2455
        %v2471 = vshrl.u32 1326507024, %v2456
        %v2472 = vor.u32 %v2470, %v2471
        %vm2473 = vcmp.lt.s32.totalorder %v2454, 1
        %vm2474 = vcmp.lt.s32.totalorder %v2454, 2
        %vm2475 = vcmp.lt.s32.totalorder %v2454, 3
        %vm2476 = vcmp.lt.s32.totalorder %v2454, 4
        %v2477 = vsel %vm2473, %v2457, %v2460
        %v2478 = vsel %vm2476, %v2466, 2102212464
        %v2479 = vsel %vm2475, %v2463, %v2478
        %v2480 = vsel %vm2474, %v2477, %v2479
        %v2481 = vsel %vm2473, %v2460, %v2463
        %v2482 = vsel %vm2476, %v2469, 920167782
        %v2483 = vsel %vm2475, %v2466, %v2482
        %v2484 = vsel %vm2474, %v2481, %v2483
        %v2485 = vsel %vm2473, %v2463, %v2466
        %v2486 = vsel %vm2476, %v2472, 1326507024
        %v2487 = vsel %vm2475, %v2469, %v2486
        %v2488 = vsel %vm2474, %v2485, %v2487
        %v2489 = vshll.u32 %v2449, 8
        %v2490 = vand.u32 %v2489, 65535
        %v2491 = vshrl.u32 %v2489, 16
        %v2492 = vand.u32 %v2488, 65535
        %v2493 = vshrl.u32 %v2488, 16
        %v2494 = vmul.u32 %v2490, %v2492
        %v2495 = vmul.u32 %v2490, %v2493
        %v2496 = vmul.u32 %v2491, %v2492
        %v2497 = vmul.u32 %v2491, %v2493
        %v2498 = vshll.u32 %v2495, 16
        %v2499 = vshrl.u32 %v2495, 16
        %v2500 = vshll.u32 %v2496, 16
        %v2501 = vshrl.u32 %v2496, 16
        %vm2502 = vc.u32 %v2494, %v2498
        %v2503 = vsel %vm2502, 1, 0
        %v2504 = vadd.s32 %v2494, %v2498
        %v2505 = vadd.s32 %v2497, %v2503
        %vm2506 = vc.u32 %v2504, %v2500
        %v2507 = vsel %vm2506, 1, 0
        %v2508 = vadd.s32 %v2504, %v2500
        %v2509 = vadd.s32 %v2505, %v2507
        %v2510 = vadd.s32 %v2509, %v2499
        %v2511 = vadd.s32 %v2510, %v2501
        %v2512 = vand.u32 %v2489, 65535
        %v2513 = vshrl.u32 %v2489, 16
        %v2514 = vand.u32 %v2484, 65535
        %v2515 = vshrl.u32 %v2484, 16
        %v2516 = vmul.u32 %v2512, %v2514
        %v2517 = vmul.u32 %v2512, %v2515
        %v2518 = vmul.u32 %v2513, %v2514
        %v2519 = vmul.u32 %v2513, %v2515
        %v2520 = vshll.u32 %v2517, 16
        %v2521 = vshrl.u32 %v2517, 16
        %v2522 = vshll.u32 %v2518, 16
        %v2523 = vshrl.u32 %v2518, 16
        %vm2524 = vc.u32 %v2516, %v2520
        %v2525 = vsel %vm2524, 1, 0
        %v2526 = vadd.s32 %v2516, %v2520
        %v2527 = vadd.s32 %v2519, %v2525
        %vm2528 = vc.u32 %v2526, %v2522
        %v2529 = vsel %vm2528, 1, 0
        %v2530 = vadd.s32 %v2526, %v2522
        %v2531 = vadd.s32 %v2527, %v2529
        %v2532 = vadd.s32 %v2531, %v2521
        %v2533 = vadd.s32 %v2532, %v2523
        %v2534 = vmul.u32 %v2489, %v2480
        %v2535 = vadd.s32 %v2511, %v2530
        %vm2536 = vc.u32 %v2511, %v2530
        %v2537 = vadd.s32 %v2533, 1
        %v2538 = vsel %vm2536, %v2537, %v2533
        %v2539 = vadd.s32 %v2534, %v2538
        %v2540 = vadd.s32 %v2539, 536870912
        %v2541 = vshrl.u32 %v2540, 30
        %v2542 = vshll.u32 %v2541, 30
        %v2543 = vsub.s32 %v2539, %v2542
        %vm2544 = vcmp.lt.s32.totalorder %v2543, 0
        %v2545 = vsub.s32 0, %v2543
        %v2546 = vsel %vm2544, %v2545, %v2543
        %v2547 = vclz %v2546
        %v2548 = vsub.s32 %v2547, 2
        %vm2549 = vcmp.gt.s32.totalorder 0, %v2548
        %v2550 = vsel %vm2549, 0, %v2548
        %v2551 = vsub.s32 32, %v2550
        %v2552 = vshll.u32 %v2543, %v2550
        %v2553 = vshrl.u32 %v2535, %v2551
        %v2554 = vor.u32 %v2552, %v2553
        %v2555 = vsub.s32 4294967266, %v2550
        %v2556 = vadd.s32 %v2555, 127
        %v2557 = vshll.u32 %v2556, 23
        %v2558 = vor.u32 4788187, %v2557
        %v2559 = vand.u32 2147483647, %v2558
        %v2561 = vcvt.s32.f32 %v2554
        %v2562 = vmul.f32 %v2561, %v2559
        %v2563 = vxor.u32 %v2562, 2147483648
        %v2564 = vsel %vm2443, %v2563, %v2562
        %v2565 = vsub.s32 4, %v2541
        %v2566 = vsel %vm2443, %v2565, %v2541
        %v2567 = vsel %vm2442, %v347, %v2564
        %v2568 = vsel %vm2442, 0, %v2566
        %v2569 = vmul.f32 %v2567, %v2567
        %v2570 = vmul.f32 %v2569, -0.001358992
        %v2571 = vadd.f32 %v2570, 0.041655596
        %v2572 = vmul.f32 %v2569, %v2571
        %v2573 = vadd.f32 %v2572, -0.4999988
        %v2574 = vmul.f32 %v2569, %v2573
        %v2575 = vadd.f32 1.0, %v2574
        %v2576 = vmul.f32 %v2567, %v2567
        %v2577 = vmul.f32 %v2576, -0.00019511016
        %v2578 = vadd.f32 %v2577, 0.008332121
        %v2579 = vmul.f32 %v2576, %v2578
        %v2580 = vadd.f32 %v2579, -0.16666654
        %v2581 = vmul.f32 %v2576, %v2580
        %v2582 = vadd.f32 %v2581, 1.0
        %v2583 = vmul.f32 %v2582, %v2567
        %vm2584 = vweird.f32 %v347
        %v2585 = vadd.s32 %v2568, 3
        %v2586 = vand.u32 %v2585, 3
        %vm2587 = vcmp.lt.s32.totalorder %v2586, 2
        %vm2588 = vcmp.eq.s32.totalorder %v2586, 0
        %v2589 = vxor.u32 %v2583, 2147483648
        %v2590 = vsel %vm2588, %v2575, %v2589
        %vm2591 = vcmp.eq.s32.totalorder %v2586, 2
        %v2592 = vxor.u32 %v2575, 2147483648
        %v2593 = vsel %vm2591, %v2592, %v2583
        %v2594 = vsel %vm2587, %v2590, %v2593
        %v2595 = vsel %vm2584, nan, %v2594
        %v2596 = vand.u32 2147483647, %v348
        %vm2597 = vcmp.le.f32.partialorder %v2596, 0.7853982
        %vm2598 = vcmp.lt.s32.totalorder %v348, 0
        %v2599 = vand.u32 %v348, 2139095040
        %v2600 = vshrl.u32 %v2599, 23
        %v2601 = vsub.s32 %v2600, 127
        %v2602 = vand.u32 2147483647, %v348
        %v2603 = vand.u32 %v2602, 8388607
        %v2604 = vor.u32 %v2603, 8388608
        %v2605 = vsub.s32 0, %v2604
        %v2606 = vadd.s32 %v2601, 1
        %vm2607 = vcmp.gt.s32.totalorder %v2606, 0
        %v2608 = vsel %vm2607, %v2606, 0
        %v2609 = vshrl.u32 %v2608, 5
        %v2610 = vand.u32 %v2608, 31
        %v2611 = vsub.s32 32, %v2610
        %v2612 = vshrl.u32 683565275, %v2611
        %v2613 = vshll.u32 683565275, %v2610
        %v2614 = vshrl.u32 2475754826, %v2611
        %v2615 = vor.u32 %v2613, %v2614
        %v2616 = vshll.u32 2475754826, %v2610
        %v2617 = vshrl.u32 2131351028, %v2611
        %v2618 = vor.u32 %v2616, %v2617
        %v2619 = vshll.u32 2131351028, %v2610
        %v2620 = vshrl.u32 2102212464, %v2611
        %v2621 = vor.u32 %v2619, %v2620
        %v2622 = vshll.u32 2102212464, %v2610
        %v2623 = vshrl.u32 920167782, %v2611
        %v2624 = vor.u32 %v2622, %v2623
        %v2625 = vshll.u32 920167782, %v2610
        %v2626 = vshrl.u32 1326507024, %v2611
        %v2627 = vor.u32 %v2625, %v2626
        %vm2628 = vcmp.lt.s32.totalorder %v2609, 1
        %vm2629 = vcmp.lt.s32.totalorder %v2609, 2
        %vm2630 = vcmp.lt.s32.totalorder %v2609, 3
        %vm2631 = vcmp.lt.s32.totalorder %v2609, 4
        %v2632 = vsel %vm2628, %v2612, %v2615
        %v2633 = vsel %vm2631, %v2621, 2102212464
        %v2634 = vsel %vm2630, %v2618, %v2633
        %v2635 = vsel %vm2629, %v2632, %v2634
        %v2636 = vsel %vm2628, %v2615, %v2618
        %v2637 = vsel %vm2631, %v2624, 920167782
        %v2638 = vsel %vm2630, %v2621, %v2637
        %v2639 = vsel %vm2629, %v2636, %v2638
        %v2640 = vsel %vm2628, %v2618, %v2621
        %v2641 = vsel %vm2631, %v2627, 1326507024
        %v2642 = vsel %vm2630, %v2624, %v2641
        %v2643 = vsel %vm2629, %v2640, %v2642
        %v2644 = vshll.u32 %v2604, 8
        %v2645 = vand.u32 %v2644, 65535
        %v2646 = vshrl.u32 %v2644, 16
        %v2647 = vand.u32 %v2643, 65535
        %v2648 = vshrl.u32 %v2643, 16
        %v2649 = vmul.u32 %v2645, %v2647
        %v2650 = vmul.u32 %v2645, %v2648
        %v2651 = vmul.u32 %v2646, %v2647
        %v2652 = vmul.u32 %v2646, %v2648
        %v2653 = vshll.u32 %v2650, 16
        %v2654 = vshrl.u32 %v2650, 16
        %v2655 = vshll.u32 %v2651, 16
        %v2656 = vshrl.u32 %v2651, 16
        %vm2657 = vc.u32 %v2649, %v2653
        %v2658 = vsel %vm2657, 1, 0
        %v2659 = vadd.s32 %v2649, %v2653
        %v2660 = vadd.s32 %v2652, %v2658
        %vm2661 = vc.u32 %v2659, %v2655
        %v2662 = vsel %vm2661, 1, 0
        %v2663 = vadd.s32 %v2659, %v2655
        %v2664 = vadd.s32 %v2660, %v2662
        %v2665 = vadd.s32 %v2664, %v2654
        %v2666 = vadd.s32 %v2665, %v2656
        %v2667 = vand.u32 %v2644, 65535
        %v2668 = vshrl.u32 %v2644, 16
        %v2669 = vand.u32 %v2639, 65535
        %v2670 = vshrl.u32 %v2639, 16
        %v2671 = vmul.u32 %v2667, %v2669
        %v2672 = vmul.u32 %v2667, %v2670
        %v2673 = vmul.u32 %v2668, %v2669
        %v2674 = vmul.u32 %v2668, %v2670
        %v2675 = vshll.u32 %v2672, 16
        %v2676 = vshrl.u32 %v2672, 16
        %v2677 = vshll.u32 %v2673, 16
        %v2678 = vshrl.u32 %v2673, 16
        %vm2679 = vc.u32 %v2671, %v2675
        %v2680 = vsel %vm2679, 1, 0
        %v2681 = vadd.s32 %v2671, %v2675
        %v2682 = vadd.s32 %v2674, %v2680
        %vm2683 = vc.u32 %v2681, %v2677
        %v2684 = vsel %vm2683, 1, 0
        %v2685 = vadd.s32 %v2681, %v2677
        %v2686 = vadd.s32 %v2682, %v2684
        %v2687 = vadd.s32 %v2686, %v2676
        %v2688 = vadd.s32 %v2687, %v2678
        %v2689 = vmul.u32 %v2644, %v2635
        %v2690 = vadd.s32 %v2666, %v2685
        %vm2691 = vc.u32 %v2666, %v2685
        %v2692 = vadd.s32 %v2688, 1
        %v2693 = vsel %vm2691, %v2692, %v2688
        %v2694 = vadd.s32 %v2689, %v2693
        %v2695 = vadd.s32 %v2694, 536870912
        %v2696 = vshrl.u32 %v2695, 30
        %v2697 = vshll.u32 %v2696, 30
        %v2698 = vsub.s32 %v2694, %v2697
        %vm2699 = vcmp.lt.s32.totalorder %v2698, 0
        %v2700 = vsub.s32 0, %v2698
        %v2701 = vsel %vm2699, %v2700, %v2698
        %v2702 = vclz %v2701
        %v2703 = vsub.s32 %v2702, 2
        %vm2704 = vcmp.gt.s32.totalorder 0, %v2703
        %v2705 = vsel %vm2704, 0, %v2703
        %v2706 = vsub.s32 32, %v2705
        %v2707 = vshll.u32 %v2698, %v2705
        %v2708 = vshrl.u32 %v2690, %v2706
        %v2709 = vor.u32 %v2707, %v2708
        %v2710 = vsub.s32 4294967266, %v2705
        %v2711 = vadd.s32 %v2710, 127
        %v2712 = vshll.u32 %v2711, 23
        %v2713 = vor.u32 4788187, %v2712
        %v2714 = vand.u32 2147483647, %v2713
        %v2716 = vcvt.s32.f32 %v2709
        %v2717 = vmul.f32 %v2716, %v2714
        %v2718 = vxor.u32 %v2717, 2147483648
        %v2719 = vsel %vm2598, %v2718, %v2717
        %v2720 = vsub.s32 4, %v2696
        %v2721 = vsel %vm2598, %v2720, %v2696
        %v2722 = vsel %vm2597, %v348, %v2719
        %v2723 = vsel %vm2597, 0, %v2721
        %v2724 = vmul.f32 %v2722, %v2722
        %v2725 = vmul.f32 %v2724, -0.001358992
        %v2726 = vadd.f32 %v2725, 0.041655596
        %v2727 = vmul.f32 %v2724, %v2726
        %v2728 = vadd.f32 %v2727, -0.4999988
        %v2729 = vmul.f32 %v2724, %v2728
        %v2730 = vadd.f32 1.0, %v2729
        %v2731 = vmul.f32 %v2722, %v2722
        %v2732 = vmul.f32 %v2731, -0.00019511016
        %v2733 = vadd.f32 %v2732, 0.008332121
        %v2734 = vmul.f32 %v2731, %v2733
        %v2735 = vadd.f32 %v2734, -0.16666654
        %v2736 = vmul.f32 %v2731, %v2735
        %v2737 = vadd.f32 %v2736, 1.0
        %v2738 = vmul.f32 %v2737, %v2722
        %vm2739 = vweird.f32 %v348
        %v2740 = vadd.s32 %v2723, 3
        %v2741 = vand.u32 %v2740, 3
        %vm2742 = vcmp.lt.s32.totalorder %v2741, 2
        %vm2743 = vcmp.eq.s32.totalorder %v2741, 0
        %v2744 = vxor.u32 %v2738, 2147483648
        %v2745 = vsel %vm2743, %v2730, %v2744
        %vm2746 = vcmp.eq.s32.totalorder %v2741, 2
        %v2747 = vxor.u32 %v2730, 2147483648
        %v2748 = vsel %vm2746, %v2747, %v2738
        %v2749 = vsel %vm2742, %v2745, %v2748
        %v2750 = vsel %vm2739, nan, %v2749
        %v2751 = vand.u32 2147483647, %v349
        %vm2752 = vcmp.le.f32.partialorder %v2751, 0.7853982
        %vm2753 = vcmp.lt.s32.totalorder %v349, 0
        %v2754 = vand.u32 %v349, 2139095040
        %v2755 = vshrl.u32 %v2754, 23
        %v2756 = vsub.s32 %v2755, 127
        %v2757 = vand.u32 2147483647, %v349
        %v2758 = vand.u32 %v2757, 8388607
        %v2759 = vor.u32 %v2758, 8388608
        %v2760 = vsub.s32 0, %v2759
        %v2761 = vadd.s32 %v2756, 1
        %vm2762 = vcmp.gt.s32.totalorder %v2761, 0
        %v2763 = vsel %vm2762, %v2761, 0
        %v2764 = vshrl.u32 %v2763, 5
        %v2765 = vand.u32 %v2763, 31
        %v2766 = vsub.s32 32, %v2765
        %v2767 = vshrl.u32 683565275, %v2766
        %v2768 = vshll.u32 683565275, %v2765
        %v2769 = vshrl.u32 2475754826, %v2766
        %v2770 = vor.u32 %v2768, %v2769
        %v2771 = vshll.u32 2475754826, %v2765
        %v2772 = vshrl.u32 2131351028, %v2766
        %v2773 = vor.u32 %v2771, %v2772
        %v2774 = vshll.u32 2131351028, %v2765
        %v2775 = vshrl.u32 2102212464, %v2766
        %v2776 = vor.u32 %v2774, %v2775
        %v2777 = vshll.u32 2102212464, %v2765
        %v2778 = vshrl.u32 920167782, %v2766
        %v2779 = vor.u32 %v2777, %v2778
        %v2780 = vshll.u32 920167782, %v2765
        %v2781 = vshrl.u32 1326507024, %v2766
        %v2782 = vor.u32 %v2780, %v2781
        %vm2783 = vcmp.lt.s32.totalorder %v2764, 1
        %vm2784 = vcmp.lt.s32.totalorder %v2764, 2
        %vm2785 = vcmp.lt.s32.totalorder %v2764, 3
        %vm2786 = vcmp.lt.s32.totalorder %v2764, 4
        %v2787 = vsel %vm2783, %v2767, %v2770
        %v2788 = vsel %vm2786, %v2776, 2102212464
        %v2789 = vsel %vm2785, %v2773, %v2788
        %v2790 = vsel %vm2784, %v2787, %v2789
        %v2791 = vsel %vm2783, %v2770, %v2773
        %v2792 = vsel %vm2786, %v2779, 920167782
        %v2793 = vsel %vm2785, %v2776, %v2792
        %v2794 = vsel %vm2784, %v2791, %v2793
        %v2795 = vsel %vm2783, %v2773, %v2776
        %v2796 = vsel %vm2786, %v2782, 1326507024
        %v2797 = vsel %vm2785, %v2779, %v2796
        %v2798 = vsel %vm2784, %v2795, %v2797
        %v2799 = vshll.u32 %v2759, 8
        %v2800 = vand.u32 %v2799, 65535
        %v2801 = vshrl.u32 %v2799, 16
        %v2802 = vand.u32 %v2798, 65535
        %v2803 = vshrl.u32 %v2798, 16
        %v2804 = vmul.u32 %v2800, %v2802
        %v2805 = vmul.u32 %v2800, %v2803
        %v2806 = vmul.u32 %v2801, %v2802
        %v2807 = vmul.u32 %v2801, %v2803
        %v2808 = vshll.u32 %v2805, 16
        %v2809 = vshrl.u32 %v2805, 16
        %v2810 = vshll.u32 %v2806, 16
        %v2811 = vshrl.u32 %v2806, 16
        %vm2812 = vc.u32 %v2804, %v2808
        %v2813 = vsel %vm2812, 1, 0
        %v2814 = vadd.s32 %v2804, %v2808
        %v2815 = vadd.s32 %v2807, %v2813
        %vm2816 = vc.u32 %v2814, %v2810
        %v2817 = vsel %vm2816, 1, 0
        %v2818 = vadd.s32 %v2814, %v2810
        %v2819 = vadd.s32 %v2815, %v2817
        %v2820 = vadd.s32 %v2819, %v2809
        %v2821 = vadd.s32 %v2820, %v2811
        %v2822 = vand.u32 %v2799, 65535
        %v2823 = vshrl.u32 %v2799, 16
        %v2824 = vand.u32 %v2794, 65535
        %v2825 = vshrl.u32 %v2794, 16
        %v2826 = vmul.u32 %v2822, %v2824
        %v2827 = vmul.u32 %v2822, %v2825
        %v2828 = vmul.u32 %v2823, %v2824
        %v2829 = vmul.u32 %v2823, %v2825
        %v2830 = vshll.u32 %v2827, 16
        %v2831 = vshrl.u32 %v2827, 16
        %v2832 = vshll.u32 %v2828, 16
        %v2833 = vshrl.u32 %v2828, 16
        %vm2834 = vc.u32 %v2826, %v2830
        %v2835 = vsel %vm2834, 1, 0
        %v2836 = vadd.s32 %v2826, %v2830
        %v2837 = vadd.s32 %v2829, %v2835
        %vm2838 = vc.u32 %v2836, %v2832
        %v2839 = vsel %vm2838, 1, 0
        %v2840 = vadd.s32 %v2836, %v2832
        %v2841 = vadd.s32 %v2837, %v2839
        %v2842 = vadd.s32 %v2841, %v2831
        %v2843 = vadd.s32 %v2842, %v2833
        %v2844 = vmul.u32 %v2799, %v2790
        %v2845 = vadd.s32 %v2821, %v2840
        %vm2846 = vc.u32 %v2821, %v2840
        %v2847 = vadd.s32 %v2843, 1
        %v2848 = vsel %vm2846, %v2847, %v2843
        %v2849 = vadd.s32 %v2844, %v2848
        %v2850 = vadd.s32 %v2849, 536870912
        %v2851 = vshrl.u32 %v2850, 30
        %v2852 = vshll.u32 %v2851, 30
        %v2853 = vsub.s32 %v2849, %v2852
        %vm2854 = vcmp.lt.s32.totalorder %v2853, 0
        %v2855 = vsub.s32 0, %v2853
        %v2856 = vsel %vm2854, %v2855, %v2853
        %v2857 = vclz %v2856
        %v2858 = vsub.s32 %v2857, 2
        %vm2859 = vcmp.gt.s32.totalorder 0, %v2858
        %v2860 = vsel %vm2859, 0, %v2858
        %v2861 = vsub.s32 32, %v2860
        %v2862 = vshll.u32 %v2853, %v2860
        %v2863 = vshrl.u32 %v2845, %v2861
        %v2864 = vor.u32 %v2862, %v2863
        %v2865 = vsub.s32 4294967266, %v2860
        %v2866 = vadd.s32 %v2865, 127
        %v2867 = vshll.u32 %v2866, 23
        %v2868 = vor.u32 4788187, %v2867
        %v2869 = vand.u32 2147483647, %v2868
        %v2871 = vcvt.s32.f32 %v2864
        %v2872 = vmul.f32 %v2871, %v2869
        %v2873 = vxor.u32 %v2872, 2147483648
        %v2874 = vsel %vm2753, %v2873, %v2872
        %v2875 = vsub.s32 4, %v2851
        %v2876 = vsel %vm2753, %v2875, %v2851
        %v2877 = vsel %vm2752, %v349, %v2874
        %v2878 = vsel %vm2752, 0, %v2876
        %v2879 = vmul.f32 %v2877, %v2877
        %v2880 = vmul.f32 %v2879, -0.001358992
        %v2881 = vadd.f32 %v2880, 0.041655596
        %v2882 = vmul.f32 %v2879, %v2881
        %v2883 = vadd.f32 %v2882, -0.4999988
        %v2884 = vmul.f32 %v2879, %v2883
        %v2885 = vadd.f32 1.0, %v2884
        %v2886 = vmul.f32 %v2877, %v2877
        %v2887 = vmul.f32 %v2886, -0.00019511016
        %v2888 = vadd.f32 %v2887, 0.008332121
        %v2889 = vmul.f32 %v2886, %v2888
        %v2890 = vadd.f32 %v2889, -0.16666654
        %v2891 = vmul.f32 %v2886, %v2890
        %v2892 = vadd.f32 %v2891, 1.0
        %v2893 = vmul.f32 %v2892, %v2877
        %vm2894 = vweird.f32 %v349
        %v2895 = vadd.s32 %v2878, 3
        %v2896 = vand.u32 %v2895, 3
        %vm2897 = vcmp.lt.s32.totalorder %v2896, 2
        %vm2898 = vcmp.eq.s32.totalorder %v2896, 0
        %v2899 = vxor.u32 %v2893, 2147483648
        %v2900 = vsel %vm2898, %v2885, %v2899
        %vm2901 = vcmp.eq.s32.totalorder %v2896, 2
        %v2902 = vxor.u32 %v2885, 2147483648
        %v2903 = vsel %vm2901, %v2902, %v2893
        %v2904 = vsel %vm2897, %v2900, %v2903
        %v2905 = vsel %vm2894, nan, %v2904
        %v2906 = vand.u32 2147483647, %v350
        %vm2907 = vcmp.le.f32.partialorder %v2906, 0.7853982
        %vm2908 = vcmp.lt.s32.totalorder %v350, 0
        %v2909 = vand.u32 %v350, 2139095040
        %v2910 = vshrl.u32 %v2909, 23
        %v2911 = vsub.s32 %v2910, 127
        %v2912 = vand.u32 2147483647, %v350
        %v2913 = vand.u32 %v2912, 8388607
        %v2914 = vor.u32 %v2913, 8388608
        %v2915 = vsub.s32 0, %v2914
        %v2916 = vadd.s32 %v2911, 1
        %vm2917 = vcmp.gt.s32.totalorder %v2916, 0
        %v2918 = vsel %vm2917, %v2916, 0
        %v2919 = vshrl.u32 %v2918, 5
        %v2920 = vand.u32 %v2918, 31
        %v2921 = vsub.s32 32, %v2920
        %v2922 = vshrl.u32 683565275, %v2921
        %v2923 = vshll.u32 683565275, %v2920
        %v2924 = vshrl.u32 2475754826, %v2921
        %v2925 = vor.u32 %v2923, %v2924
        %v2926 = vshll.u32 2475754826, %v2920
        %v2927 = vshrl.u32 2131351028, %v2921
        %v2928 = vor.u32 %v2926, %v2927
        %v2929 = vshll.u32 2131351028, %v2920
        %v2930 = vshrl.u32 2102212464, %v2921
        %v2931 = vor.u32 %v2929, %v2930
        %v2932 = vshll.u32 2102212464, %v2920
        %v2933 = vshrl.u32 920167782, %v2921
        %v2934 = vor.u32 %v2932, %v2933
        %v2935 = vshll.u32 920167782, %v2920
        %v2936 = vshrl.u32 1326507024, %v2921
        %v2937 = vor.u32 %v2935, %v2936
        %vm2938 = vcmp.lt.s32.totalorder %v2919, 1
        %vm2939 = vcmp.lt.s32.totalorder %v2919, 2
        %vm2940 = vcmp.lt.s32.totalorder %v2919, 3
        %vm2941 = vcmp.lt.s32.totalorder %v2919, 4
        %v2942 = vsel %vm2938, %v2922, %v2925
        %v2943 = vsel %vm2941, %v2931, 2102212464
        %v2944 = vsel %vm2940, %v2928, %v2943
        %v2945 = vsel %vm2939, %v2942, %v2944
        %v2946 = vsel %vm2938, %v2925, %v2928
        %v2947 = vsel %vm2941, %v2934, 920167782
        %v2948 = vsel %vm2940, %v2931, %v2947
        %v2949 = vsel %vm2939, %v2946, %v2948
        %v2950 = vsel %vm2938, %v2928, %v2931
        %v2951 = vsel %vm2941, %v2937, 1326507024
        %v2952 = vsel %vm2940, %v2934, %v2951
        %v2953 = vsel %vm2939, %v2950, %v2952
        %v2954 = vshll.u32 %v2914, 8
        %v2955 = vand.u32 %v2954, 65535
        %v2956 = vshrl.u32 %v2954, 16
        %v2957 = vand.u32 %v2953, 65535
        %v2958 = vshrl.u32 %v2953, 16
        %v2959 = vmul.u32 %v2955, %v2957
        %v2960 = vmul.u32 %v2955, %v2958
        %v2961 = vmul.u32 %v2956, %v2957
        %v2962 = vmul.u32 %v2956, %v2958
        %v2963 = vshll.u32 %v2960, 16
        %v2964 = vshrl.u32 %v2960, 16
        %v2965 = vshll.u32 %v2961, 16
        %v2966 = vshrl.u32 %v2961, 16
        %vm2967 = vc.u32 %v2959, %v2963
        %v2968 = vsel %vm2967, 1, 0
        %v2969 = vadd.s32 %v2959, %v2963
        %v2970 = vadd.s32 %v2962, %v2968
        %vm2971 = vc.u32 %v2969, %v2965
        %v2972 = vsel %vm2971, 1, 0
        %v2973 = vadd.s32 %v2969, %v2965
        %v2974 = vadd.s32 %v2970, %v2972
        %v2975 = vadd.s32 %v2974, %v2964
        %v2976 = vadd.s32 %v2975, %v2966
        %v2977 = vand.u32 %v2954, 65535
        %v2978 = vshrl.u32 %v2954, 16
        %v2979 = vand.u32 %v2949, 65535
        %v2980 = vshrl.u32 %v2949, 16
        %v2981 = vmul.u32 %v2977, %v2979
        %v2982 = vmul.u32 %v2977, %v2980
        %v2983 = vmul.u32 %v2978, %v2979
        %v2984 = vmul.u32 %v2978, %v2980
        %v2985 = vshll.u32 %v2982, 16
        %v2986 = vshrl.u32 %v2982, 16
        %v2987 = vshll.u32 %v2983, 16
        %v2988 = vshrl.u32 %v2983, 16
        %vm2989 = vc.u32 %v2981, %v2985
        %v2990 = vsel %vm2989, 1, 0
        %v2991 = vadd.s32 %v2981, %v2985
        %v2992 = vadd.s32 %v2984, %v2990
        %vm2993 = vc.u32 %v2991, %v2987
        %v2994 = vsel %vm2993, 1, 0
        %v2995 = vadd.s32 %v2991, %v2987
        %v2996 = vadd.s32 %v2992, %v2994
        %v2997 = vadd.s32 %v2996, %v2986
        %v2998 = vadd.s32 %v2997, %v2988
        %v2999 = vmul.u32 %v2954, %v2945
        %v3000 = vadd.s32 %v2976, %v2995
        %vm3001 = vc.u32 %v2976, %v2995
        %v3002 = vadd.s32 %v2998, 1
        %v3003 = vsel %vm3001, %v3002, %v2998
        %v3004 = vadd.s32 %v2999, %v3003
        %v3005 = vadd.s32 %v3004, 536870912
        %v3006 = vshrl.u32 %v3005, 30
        %v3007 = vshll.u32 %v3006, 30
        %v3008 = vsub.s32 %v3004, %v3007
        %vm3009 = vcmp.lt.s32.totalorder %v3008, 0
        %v3010 = vsub.s32 0, %v3008
        %v3011 = vsel %vm3009, %v3010, %v3008
        %v3012 = vclz %v3011
        %v3013 = vsub.s32 %v3012, 2
        %vm3014 = vcmp.gt.s32.totalorder 0, %v3013
        %v3015 = vsel %vm3014, 0, %v3013
        %v3016 = vsub.s32 32, %v3015
        %v3017 = vshll.u32 %v3008, %v3015
        %v3018 = vshrl.u32 %v3000, %v3016
        %v3019 = vor.u32 %v3017, %v3018
        %v3020 = vsub.s32 4294967266, %v3015
        %v3021 = vadd.s32 %v3020, 127
        %v3022 = vshll.u32 %v3021, 23
        %v3023 = vor.u32 4788187, %v3022
        %v3024 = vand.u32 2147483647, %v3023
        %v3026 = vcvt.s32.f32 %v3019
        %v3027 = vmul.f32 %v3026, %v3024
        %v3028 = vxor.u32 %v3027, 2147483648
        %v3029 = vsel %vm2908, %v3028, %v3027
        %v3030 = vsub.s32 4, %v3006
        %v3031 = vsel %vm2908, %v3030, %v3006
        %v3032 = vsel %vm2907, %v350, %v3029
        %v3033 = vsel %vm2907, 0, %v3031
        %v3034 = vmul.f32 %v3032, %v3032
        %v3035 = vmul.f32 %v3034, -0.001358992
        %v3036 = vadd.f32 %v3035, 0.041655596
        %v3037 = vmul.f32 %v3034, %v3036
        %v3038 = vadd.f32 %v3037, -0.4999988
        %v3039 = vmul.f32 %v3034, %v3038
        %v3040 = vadd.f32 1.0, %v3039
        %v3041 = vmul.f32 %v3032, %v3032
        %v3042 = vmul.f32 %v3041, -0.00019511016
        %v3043 = vadd.f32 %v3042, 0.008332121
        %v3044 = vmul.f32 %v3041, %v3043
        %v3045 = vadd.f32 %v3044, -0.16666654
        %v3046 = vmul.f32 %v3041, %v3045
        %v3047 = vadd.f32 %v3046, 1.0
        %v3048 = vmul.f32 %v3047, %v3032
        %vm3049 = vweird.f32 %v350
        %v3050 = vadd.s32 %v3033, 3
        %v3051 = vand.u32 %v3050, 3
        %vm3052 = vcmp.lt.s32.totalorder %v3051, 2
        %vm3053 = vcmp.eq.s32.totalorder %v3051, 0
        %v3054 = vxor.u32 %v3048, 2147483648
        %v3055 = vsel %vm3053, %v3040, %v3054
        %vm3056 = vcmp.eq.s32.totalorder %v3051, 2
        %v3057 = vxor.u32 %v3040, 2147483648
        %v3058 = vsel %vm3056, %v3057, %v3048
        %v3059 = vsel %vm3052, %v3055, %v3058
        %v3060 = vsel %vm3049, nan, %v3059
        %v3061 = vand.u32 2147483647, %v351
        %vm3062 = vcmp.le.f32.partialorder %v3061, 0.7853982
        %vm3063 = vcmp.lt.s32.totalorder %v351, 0
        %v3064 = vand.u32 %v351, 2139095040
        %v3065 = vshrl.u32 %v3064, 23
        %v3066 = vsub.s32 %v3065, 127
        %v3067 = vand.u32 2147483647, %v351
        %v3068 = vand.u32 %v3067, 8388607
        %v3069 = vor.u32 %v3068, 8388608
        %v3070 = vsub.s32 0, %v3069
        %v3071 = vadd.s32 %v3066, 1
        %vm3072 = vcmp.gt.s32.totalorder %v3071, 0
        %v3073 = vsel %vm3072, %v3071, 0
        %v3074 = vshrl.u32 %v3073, 5
        %v3075 = vand.u32 %v3073, 31
        %v3076 = vsub.s32 32, %v3075
        %v3077 = vshrl.u32 683565275, %v3076
        %v3078 = vshll.u32 683565275, %v3075
        %v3079 = vshrl.u32 2475754826, %v3076
        %v3080 = vor.u32 %v3078, %v3079
        %v3081 = vshll.u32 2475754826, %v3075
        %v3082 = vshrl.u32 2131351028, %v3076
        %v3083 = vor.u32 %v3081, %v3082
        %v3084 = vshll.u32 2131351028, %v3075
        %v3085 = vshrl.u32 2102212464, %v3076
        %v3086 = vor.u32 %v3084, %v3085
        %v3087 = vshll.u32 2102212464, %v3075
        %v3088 = vshrl.u32 920167782, %v3076
        %v3089 = vor.u32 %v3087, %v3088
        %v3090 = vshll.u32 920167782, %v3075
        %v3091 = vshrl.u32 1326507024, %v3076
        %v3092 = vor.u32 %v3090, %v3091
        %vm3093 = vcmp.lt.s32.totalorder %v3074, 1
        %vm3094 = vcmp.lt.s32.totalorder %v3074, 2
        %vm3095 = vcmp.lt.s32.totalorder %v3074, 3
        %vm3096 = vcmp.lt.s32.totalorder %v3074, 4
        %v3097 = vsel %vm3093, %v3077, %v3080
        %v3098 = vsel %vm3096, %v3086, 2102212464
        %v3099 = vsel %vm3095, %v3083, %v3098
        %v3100 = vsel %vm3094, %v3097, %v3099
        %v3101 = vsel %vm3093, %v3080, %v3083
        %v3102 = vsel %vm3096, %v3089, 920167782
        %v3103 = vsel %vm3095, %v3086, %v3102
        %v3104 = vsel %vm3094, %v3101, %v3103
        %v3105 = vsel %vm3093, %v3083, %v3086
        %v3106 = vsel %vm3096, %v3092, 1326507024
        %v3107 = vsel %vm3095, %v3089, %v3106
        %v3108 = vsel %vm3094, %v3105, %v3107
        %v3109 = vshll.u32 %v3069, 8
        %v3110 = vand.u32 %v3109, 65535
        %v3111 = vshrl.u32 %v3109, 16
        %v3112 = vand.u32 %v3108, 65535
        %v3113 = vshrl.u32 %v3108, 16
        %v3114 = vmul.u32 %v3110, %v3112
        %v3115 = vmul.u32 %v3110, %v3113
        %v3116 = vmul.u32 %v3111, %v3112
        %v3117 = vmul.u32 %v3111, %v3113
        %v3118 = vshll.u32 %v3115, 16
        %v3119 = vshrl.u32 %v3115, 16
        %v3120 = vshll.u32 %v3116, 16
        %v3121 = vshrl.u32 %v3116, 16
        %vm3122 = vc.u32 %v3114, %v3118
        %v3123 = vsel %vm3122, 1, 0
        %v3124 = vadd.s32 %v3114, %v3118
        %v3125 = vadd.s32 %v3117, %v3123
        %vm3126 = vc.u32 %v3124, %v3120
        %v3127 = vsel %vm3126, 1, 0
        %v3128 = vadd.s32 %v3124, %v3120
        %v3129 = vadd.s32 %v3125, %v3127
        %v3130 = vadd.s32 %v3129, %v3119
        %v3131 = vadd.s32 %v3130, %v3121
        %v3132 = vand.u32 %v3109, 65535
        %v3133 = vshrl.u32 %v3109, 16
        %v3134 = vand.u32 %v3104, 65535
        %v3135 = vshrl.u32 %v3104, 16
        %v3136 = vmul.u32 %v3132, %v3134
        %v3137 = vmul.u32 %v3132, %v3135
        %v3138 = vmul.u32 %v3133, %v3134
        %v3139 = vmul.u32 %v3133, %v3135
        %v3140 = vshll.u32 %v3137, 16
        %v3141 = vshrl.u32 %v3137, 16
        %v3142 = vshll.u32 %v3138, 16
        %v3143 = vshrl.u32 %v3138, 16
        %vm3144 = vc.u32 %v3136, %v3140
        %v3145 = vsel %vm3144, 1, 0
        %v3146 = vadd.s32 %v3136, %v3140
        %v3147 = vadd.s32 %v3139, %v3145
        %vm3148 = vc.u32 %v3146, %v3142
        %v3149 = vsel %vm3148, 1, 0
        %v3150 = vadd.s32 %v3146, %v3142
        %v3151 = vadd.s32 %v3147, %v3149
        %v3152 = vadd.s32 %v3151, %v3141
        %v3153 = vadd.s32 %v3152, %v3143
        %v3154 = vmul.u32 %v3109, %v3100
        %v3155 = vadd.s32 %v3131, %v3150
        %vm3156 = vc.u32 %v3131, %v3150
        %v3157 = vadd.s32 %v3153, 1
        %v3158 = vsel %vm3156, %v3157, %v3153
        %v3159 = vadd.s32 %v3154, %v3158
        %v3160 = vadd.s32 %v3159, 536870912
        %v3161 = vshrl.u32 %v3160, 30
        %v3162 = vshll.u32 %v3161, 30
        %v3163 = vsub.s32 %v3159, %v3162
        %vm3164 = vcmp.lt.s32.totalorder %v3163, 0
        %v3165 = vsub.s32 0, %v3163
        %v3166 = vsel %vm3164, %v3165, %v3163
        %v3167 = vclz %v3166
        %v3168 = vsub.s32 %v3167, 2
        %vm3169 = vcmp.gt.s32.totalorder 0, %v3168
        %v3170 = vsel %vm3169, 0, %v3168
        %v3171 = vsub.s32 32, %v3170
        %v3172 = vshll.u32 %v3163, %v3170
        %v3173 = vshrl.u32 %v3155, %v3171
        %v3174 = vor.u32 %v3172, %v3173
        %v3175 = vsub.s32 4294967266, %v3170
        %v3176 = vadd.s32 %v3175, 127
        %v3177 = vshll.u32 %v3176, 23
        %v3178 = vor.u32 4788187, %v3177
        %v3179 = vand.u32 2147483647, %v3178
        %v3181 = vcvt.s32.f32 %v3174
        %v3182 = vmul.f32 %v3181, %v3179
        %v3183 = vxor.u32 %v3182, 2147483648
        %v3184 = vsel %vm3063, %v3183, %v3182
        %v3185 = vsub.s32 4, %v3161
        %v3186 = vsel %vm3063, %v3185, %v3161
        %v3187 = vsel %vm3062, %v351, %v3184
        %v3188 = vsel %vm3062, 0, %v3186
        %v3189 = vmul.f32 %v3187, %v3187
        %v3190 = vmul.f32 %v3189, -0.001358992
        %v3191 = vadd.f32 %v3190, 0.041655596
        %v3192 = vmul.f32 %v3189, %v3191
        %v3193 = vadd.f32 %v3192, -0.4999988
        %v3194 = vmul.f32 %v3189, %v3193
        %v3195 = vadd.f32 1.0, %v3194
        %v3196 = vmul.f32 %v3187, %v3187
        %v3197 = vmul.f32 %v3196, -0.00019511016
        %v3198 = vadd.f32 %v3197, 0.008332121
        %v3199 = vmul.f32 %v3196, %v3198
        %v3200 = vadd.f32 %v3199, -0.16666654
        %v3201 = vmul.f32 %v3196, %v3200
        %v3202 = vadd.f32 %v3201, 1.0
        %v3203 = vmul.f32 %v3202, %v3187
        %vm3204 = vweird.f32 %v351
        %v3205 = vadd.s32 %v3188, 3
        %v3206 = vand.u32 %v3205, 3
        %vm3207 = vcmp.lt.s32.totalorder %v3206, 2
        %vm3208 = vcmp.eq.s32.totalorder %v3206, 0
        %v3209 = vxor.u32 %v3203, 2147483648
        %v3210 = vsel %vm3208, %v3195, %v3209
        %vm3211 = vcmp.eq.s32.totalorder %v3206, 2
        %v3212 = vxor.u32 %v3195, 2147483648
        %v3213 = vsel %vm3211, %v3212, %v3203
        %v3214 = vsel %vm3207, %v3210, %v3213
        %v3215 = vsel %vm3204, nan, %v3214
        %v3216 = vand.u32 2147483647, %v352
        %vm3217 = vcmp.le.f32.partialorder %v3216, 0.7853982
        %vm3218 = vcmp.lt.s32.totalorder %v352, 0
        %v3219 = vand.u32 %v352, 2139095040
        %v3220 = vshrl.u32 %v3219, 23
        %v3221 = vsub.s32 %v3220, 127
        %v3222 = vand.u32 2147483647, %v352
        %v3223 = vand.u32 %v3222, 8388607
        %v3224 = vor.u32 %v3223, 8388608
        %v3225 = vsub.s32 0, %v3224
        %v3226 = vadd.s32 %v3221, 1
        %vm3227 = vcmp.gt.s32.totalorder %v3226, 0
        %v3228 = vsel %vm3227, %v3226, 0
        %v3229 = vshrl.u32 %v3228, 5
        %v3230 = vand.u32 %v3228, 31
        %v3231 = vsub.s32 32, %v3230
        %v3232 = vshrl.u32 683565275, %v3231
        %v3233 = vshll.u32 683565275, %v3230
        %v3234 = vshrl.u32 2475754826, %v3231
        %v3235 = vor.u32 %v3233, %v3234
        %v3236 = vshll.u32 2475754826, %v3230
        %v3237 = vshrl.u32 2131351028, %v3231
        %v3238 = vor.u32 %v3236, %v3237
        %v3239 = vshll.u32 2131351028, %v3230
        %v3240 = vshrl.u32 2102212464, %v3231
        %v3241 = vor.u32 %v3239, %v3240
        %v3242 = vshll.u32 2102212464, %v3230
        %v3243 = vshrl.u32 920167782, %v3231
        %v3244 = vor.u32 %v3242, %v3243
        %v3245 = vshll.u32 920167782, %v3230
        %v3246 = vshrl.u32 1326507024, %v3231
        %v3247 = vor.u32 %v3245, %v3246
        %vm3248 = vcmp.lt.s32.totalorder %v3229, 1
        %vm3249 = vcmp.lt.s32.totalorder %v3229, 2
        %vm3250 = vcmp.lt.s32.totalorder %v3229, 3
        %vm3251 = vcmp.lt.s32.totalorder %v3229, 4
        %v3252 = vsel %vm3248, %v3232, %v3235
        %v3253 = vsel %vm3251, %v3241, 2102212464
        %v3254 = vsel %vm3250, %v3238, %v3253
        %v3255 = vsel %vm3249, %v3252, %v3254
        %v3256 = vsel %vm3248, %v3235, %v3238
        %v3257 = vsel %vm3251, %v3244, 920167782
        %v3258 = vsel %vm3250, %v3241, %v3257
        %v3259 = vsel %vm3249, %v3256, %v3258
        %v3260 = vsel %vm3248, %v3238, %v3241
        %v3261 = vsel %vm3251, %v3247, 1326507024
        %v3262 = vsel %vm3250, %v3244, %v3261
        %v3263 = vsel %vm3249, %v3260, %v3262
        %v3264 = vshll.u32 %v3224, 8
        %v3265 = vand.u32 %v3264, 65535
        %v3266 = vshrl.u32 %v3264, 16
        %v3267 = vand.u32 %v3263, 65535
        %v3268 = vshrl.u32 %v3263, 16
        %v3269 = vmul.u32 %v3265, %v3267
        %v3270 = vmul.u32 %v3265, %v3268
        %v3271 = vmul.u32 %v3266, %v3267
        %v3272 = vmul.u32 %v3266, %v3268
        %v3273 = vshll.u32 %v3270, 16
        %v3274 = vshrl.u32 %v3270, 16
        %v3275 = vshll.u32 %v3271, 16
        %v3276 = vshrl.u32 %v3271, 16
        %vm3277 = vc.u32 %v3269, %v3273
        %v3278 = vsel %vm3277, 1, 0
        %v3279 = vadd.s32 %v3269, %v3273
        %v3280 = vadd.s32 %v3272, %v3278
        %vm3281 = vc.u32 %v3279, %v3275
        %v3282 = vsel %vm3281, 1, 0
        %v3283 = vadd.s32 %v3279, %v3275
        %v3284 = vadd.s32 %v3280, %v3282
        %v3285 = vadd.s32 %v3284, %v3274
        %v3286 = vadd.s32 %v3285, %v3276
        %v3287 = vand.u32 %v3264, 65535
        %v3288 = vshrl.u32 %v3264, 16
        %v3289 = vand.u32 %v3259, 65535
        %v3290 = vshrl.u32 %v3259, 16
        %v3291 = vmul.u32 %v3287, %v3289
        %v3292 = vmul.u32 %v3287, %v3290
        %v3293 = vmul.u32 %v3288, %v3289
        %v3294 = vmul.u32 %v3288, %v3290
        %v3295 = vshll.u32 %v3292, 16
        %v3296 = vshrl.u32 %v3292, 16
        %v3297 = vshll.u32 %v3293, 16
        %v3298 = vshrl.u32 %v3293, 16
        %vm3299 = vc.u32 %v3291, %v3295
        %v3300 = vsel %vm3299, 1, 0
        %v3301 = vadd.s32 %v3291, %v3295
        %v3302 = vadd.s32 %v3294, %v3300
        %vm3303 = vc.u32 %v3301, %v3297
        %v3304 = vsel %vm3303, 1, 0
        %v3305 = vadd.s32 %v3301, %v3297
        %v3306 = vadd.s32 %v3302, %v3304
        %v3307 = vadd.s32 %v3306, %v3296
        %v3308 = vadd.s32 %v3307, %v3298
        %v3309 = vmul.u32 %v3264, %v3255
        %v3310 = vadd.s32 %v3286, %v3305
        %vm3311 = vc.u32 %v3286, %v3305
        %v3312 = vadd.s32 %v3308, 1
        %v3313 = vsel %vm3311, %v3312, %v3308
        %v3314 = vadd.s32 %v3309, %v3313
        %v3315 = vadd.s32 %v3314, 536870912
        %v3316 = vshrl.u32 %v3315, 30
        %v3317 = vshll.u32 %v3316, 30
        %v3318 = vsub.s32 %v3314, %v3317
        %vm3319 = vcmp.lt.s32.totalorder %v3318, 0
        %v3320 = vsub.s32 0, %v3318
        %v3321 = vsel %vm3319, %v3320, %v3318
        %v3322 = vclz %v3321
        %v3323 = vsub.s32 %v3322, 2
        %vm3324 = vcmp.gt.s32.totalorder 0, %v3323
        %v3325 = vsel %vm3324, 0, %v3323
        %v3326 = vsub.s32 32, %v3325
        %v3327 = vshll.u32 %v3318, %v3325
        %v3328 = vshrl.u32 %v3310, %v3326
        %v3329 = vor.u32 %v3327, %v3328
        %v3330 = vsub.s32 4294967266, %v3325
        %v3331 = vadd.s32 %v3330, 127
        %v3332 = vshll.u32 %v3331, 23
        %v3333 = vor.u32 4788187, %v3332
        %v3334 = vand.u32 2147483647, %v3333
        %v3336 = vcvt.s32.f32 %v3329
        %v3337 = vmul.f32 %v3336, %v3334
        %v3338 = vxor.u32 %v3337, 2147483648
        %v3339 = vsel %vm3218, %v3338, %v3337
        %v3340 = vsub.s32 4, %v3316
        %v3341 = vsel %vm3218, %v3340, %v3316
        %v3342 = vsel %vm3217, %v352, %v3339
        %v3343 = vsel %vm3217, 0, %v3341
        %v3344 = vmul.f32 %v3342, %v3342
        %v3345 = vmul.f32 %v3344, -0.001358992
        %v3346 = vadd.f32 %v3345, 0.041655596
        %v3347 = vmul.f32 %v3344, %v3346
        %v3348 = vadd.f32 %v3347, -0.4999988
        %v3349 = vmul.f32 %v3344, %v3348
        %v3350 = vadd.f32 1.0, %v3349
        %v3351 = vmul.f32 %v3342, %v3342
        %v3352 = vmul.f32 %v3351, -0.00019511016
        %v3353 = vadd.f32 %v3352, 0.008332121
        %v3354 = vmul.f32 %v3351, %v3353
        %v3355 = vadd.f32 %v3354, -0.16666654
        %v3356 = vmul.f32 %v3351, %v3355
        %v3357 = vadd.f32 %v3356, 1.0
        %v3358 = vmul.f32 %v3357, %v3342
        %vm3359 = vweird.f32 %v352
        %v3360 = vadd.s32 %v3343, 3
        %v3361 = vand.u32 %v3360, 3
        %vm3362 = vcmp.lt.s32.totalorder %v3361, 2
        %vm3363 = vcmp.eq.s32.totalorder %v3361, 0
        %v3364 = vxor.u32 %v3358, 2147483648
        %v3365 = vsel %vm3363, %v3350, %v3364
        %vm3366 = vcmp.eq.s32.totalorder %v3361, 2
        %v3367 = vxor.u32 %v3350, 2147483648
        %v3368 = vsel %vm3366, %v3367, %v3358
        %v3369 = vsel %vm3362, %v3365, %v3368
        %v3370 = vsel %vm3359, nan, %v3369
        %v3371 = vand.u32 2147483647, %v353
        %vm3372 = vcmp.le.f32.partialorder %v3371, 0.7853982
        %vm3373 = vcmp.lt.s32.totalorder %v353, 0
        %v3374 = vand.u32 %v353, 2139095040
        %v3375 = vshrl.u32 %v3374, 23
        %v3376 = vsub.s32 %v3375, 127
        %v3377 = vand.u32 2147483647, %v353
        %v3378 = vand.u32 %v3377, 8388607
        %v3379 = vor.u32 %v3378, 8388608
        %v3380 = vsub.s32 0, %v3379
        %v3381 = vadd.s32 %v3376, 1
        %vm3382 = vcmp.gt.s32.totalorder %v3381, 0
        %v3383 = vsel %vm3382, %v3381, 0
        %v3384 = vshrl.u32 %v3383, 5
        %v3385 = vand.u32 %v3383, 31
        %v3386 = vsub.s32 32, %v3385
        %v3387 = vshrl.u32 683565275, %v3386
        %v3388 = vshll.u32 683565275, %v3385
        %v3389 = vshrl.u32 2475754826, %v3386
        %v3390 = vor.u32 %v3388, %v3389
        %v3391 = vshll.u32 2475754826, %v3385
        %v3392 = vshrl.u32 2131351028, %v3386
        %v3393 = vor.u32 %v3391, %v3392
        %v3394 = vshll.u32 2131351028, %v3385
        %v3395 = vshrl.u32 2102212464, %v3386
        %v3396 = vor.u32 %v3394, %v3395
        %v3397 = vshll.u32 2102212464, %v3385
        %v3398 = vshrl.u32 920167782, %v3386
        %v3399 = vor.u32 %v3397, %v3398
        %v3400 = vshll.u32 920167782, %v3385
        %v3401 = vshrl.u32 1326507024, %v3386
        %v3402 = vor.u32 %v3400, %v3401
        %vm3403 = vcmp.lt.s32.totalorder %v3384, 1
        %vm3404 = vcmp.lt.s32.totalorder %v3384, 2
        %vm3405 = vcmp.lt.s32.totalorder %v3384, 3
        %vm3406 = vcmp.lt.s32.totalorder %v3384, 4
        %v3407 = vsel %vm3403, %v3387, %v3390
        %v3408 = vsel %vm3406, %v3396, 2102212464
        %v3409 = vsel %vm3405, %v3393, %v3408
        %v3410 = vsel %vm3404, %v3407, %v3409
        %v3411 = vsel %vm3403, %v3390, %v3393
        %v3412 = vsel %vm3406, %v3399, 920167782
        %v3413 = vsel %vm3405, %v3396, %v3412
        %v3414 = vsel %vm3404, %v3411, %v3413
        %v3415 = vsel %vm3403, %v3393, %v3396
        %v3416 = vsel %vm3406, %v3402, 1326507024
        %v3417 = vsel %vm3405, %v3399, %v3416
        %v3418 = vsel %vm3404, %v3415, %v3417
        %v3419 = vshll.u32 %v3379, 8
        %v3420 = vand.u32 %v3419, 65535
        %v3421 = vshrl.u32 %v3419, 16
        %v3422 = vand.u32 %v3418, 65535
        %v3423 = vshrl.u32 %v3418, 16
        %v3424 = vmul.u32 %v3420, %v3422
        %v3425 = vmul.u32 %v3420, %v3423
        %v3426 = vmul.u32 %v3421, %v3422
        %v3427 = vmul.u32 %v3421, %v3423
        %v3428 = vshll.u32 %v3425, 16
        %v3429 = vshrl.u32 %v3425, 16
        %v3430 = vshll.u32 %v3426, 16
        %v3431 = vshrl.u32 %v3426, 16
        %vm3432 = vc.u32 %v3424, %v3428
        %v3433 = vsel %vm3432, 1, 0
        %v3434 = vadd.s32 %v3424, %v3428
        %v3435 = vadd.s32 %v3427, %v3433
        %vm3436 = vc.u32 %v3434, %v3430
        %v3437 = vsel %vm3436, 1, 0
        %v3438 = vadd.s32 %v3434, %v3430
        %v3439 = vadd.s32 %v3435, %v3437
        %v3440 = vadd.s32 %v3439, %v3429
        %v3441 = vadd.s32 %v3440, %v3431
        %v3442 = vand.u32 %v3419, 65535
        %v3443 = vshrl.u32 %v3419, 16
        %v3444 = vand.u32 %v3414, 65535
        %v3445 = vshrl.u32 %v3414, 16
        %v3446 = vmul.u32 %v3442, %v3444
        %v3447 = vmul.u32 %v3442, %v3445
        %v3448 = vmul.u32 %v3443, %v3444
        %v3449 = vmul.u32 %v3443, %v3445
        %v3450 = vshll.u32 %v3447, 16
        %v3451 = vshrl.u32 %v3447, 16
        %v3452 = vshll.u32 %v3448, 16
        %v3453 = vshrl.u32 %v3448, 16
        %vm3454 = vc.u32 %v3446, %v3450
        %v3455 = vsel %vm3454, 1, 0
        %v3456 = vadd.s32 %v3446, %v3450
        %v3457 = vadd.s32 %v3449, %v3455
        %vm3458 = vc.u32 %v3456, %v3452
        %v3459 = vsel %vm3458, 1, 0
        %v3460 = vadd.s32 %v3456, %v3452
        %v3461 = vadd.s32 %v3457, %v3459
        %v3462 = vadd.s32 %v3461, %v3451
        %v3463 = vadd.s32 %v3462, %v3453
        %v3464 = vmul.u32 %v3419, %v3410
        %v3465 = vadd.s32 %v3441, %v3460
        %vm3466 = vc.u32 %v3441, %v3460
        %v3467 = vadd.s32 %v3463, 1
        %v3468 = vsel %vm3466, %v3467, %v3463
        %v3469 = vadd.s32 %v3464, %v3468
        %v3470 = vadd.s32 %v3469, 536870912
        %v3471 = vshrl.u32 %v3470, 30
        %v3472 = vshll.u32 %v3471, 30
        %v3473 = vsub.s32 %v3469, %v3472
        %vm3474 = vcmp.lt.s32.totalorder %v3473, 0
        %v3475 = vsub.s32 0, %v3473
        %v3476 = vsel %vm3474, %v3475, %v3473
        %v3477 = vclz %v3476
        %v3478 = vsub.s32 %v3477, 2
        %vm3479 = vcmp.gt.s32.totalorder 0, %v3478
        %v3480 = vsel %vm3479, 0, %v3478
        %v3481 = vsub.s32 32, %v3480
        %v3482 = vshll.u32 %v3473, %v3480
        %v3483 = vshrl.u32 %v3465, %v3481
        %v3484 = vor.u32 %v3482, %v3483
        %v3485 = vsub.s32 4294967266, %v3480
        %v3486 = vadd.s32 %v3485, 127
        %v3487 = vshll.u32 %v3486, 23
        %v3488 = vor.u32 4788187, %v3487
        %v3489 = vand.u32 2147483647, %v3488
        %v3491 = vcvt.s32.f32 %v3484
        %v3492 = vmul.f32 %v3491, %v3489
        %v3493 = vxor.u32 %v3492, 2147483648
        %v3494 = vsel %vm3373, %v3493, %v3492
        %v3495 = vsub.s32 4, %v3471
        %v3496 = vsel %vm3373, %v3495, %v3471
        %v3497 = vsel %vm3372, %v353, %v3494
        %v3498 = vsel %vm3372, 0, %v3496
        %v3499 = vmul.f32 %v3497, %v3497
        %v3500 = vmul.f32 %v3499, -0.001358992
        %v3501 = vadd.f32 %v3500, 0.041655596
        %v3502 = vmul.f32 %v3499, %v3501
        %v3503 = vadd.f32 %v3502, -0.4999988
        %v3504 = vmul.f32 %v3499, %v3503
        %v3505 = vadd.f32 1.0, %v3504
        %v3506 = vmul.f32 %v3497, %v3497
        %v3507 = vmul.f32 %v3506, -0.00019511016
        %v3508 = vadd.f32 %v3507, 0.008332121
        %v3509 = vmul.f32 %v3506, %v3508
        %v3510 = vadd.f32 %v3509, -0.16666654
        %v3511 = vmul.f32 %v3506, %v3510
        %v3512 = vadd.f32 %v3511, 1.0
        %v3513 = vmul.f32 %v3512, %v3497
        %vm3514 = vweird.f32 %v353
        %v3515 = vadd.s32 %v3498, 3
        %v3516 = vand.u32 %v3515, 3
        %vm3517 = vcmp.lt.s32.totalorder %v3516, 2
        %vm3518 = vcmp.eq.s32.totalorder %v3516, 0
        %v3519 = vxor.u32 %v3513, 2147483648
        %v3520 = vsel %vm3518, %v3505, %v3519
        %vm3521 = vcmp.eq.s32.totalorder %v3516, 2
        %v3522 = vxor.u32 %v3505, 2147483648
        %v3523 = vsel %vm3521, %v3522, %v3513
        %v3524 = vsel %vm3517, %v3520, %v3523
        %v3525 = vsel %vm3514, nan, %v3524
        %v3526 = vand.u32 2147483647, %v354
        %vm3527 = vcmp.le.f32.partialorder %v3526, 0.7853982
        %vm3528 = vcmp.lt.s32.totalorder %v354, 0
        %v3529 = vand.u32 %v354, 2139095040
        %v3530 = vshrl.u32 %v3529, 23
        %v3531 = vsub.s32 %v3530, 127
        %v3532 = vand.u32 2147483647, %v354
        %v3533 = vand.u32 %v3532, 8388607
        %v3534 = vor.u32 %v3533, 8388608
        %v3535 = vsub.s32 0, %v3534
        %v3536 = vadd.s32 %v3531, 1
        %vm3537 = vcmp.gt.s32.totalorder %v3536, 0
        %v3538 = vsel %vm3537, %v3536, 0
        %v3539 = vshrl.u32 %v3538, 5
        %v3540 = vand.u32 %v3538, 31
        %v3541 = vsub.s32 32, %v3540
        %v3542 = vshrl.u32 683565275, %v3541
        %v3543 = vshll.u32 683565275, %v3540
        %v3544 = vshrl.u32 2475754826, %v3541
        %v3545 = vor.u32 %v3543, %v3544
        %v3546 = vshll.u32 2475754826, %v3540
        %v3547 = vshrl.u32 2131351028, %v3541
        %v3548 = vor.u32 %v3546, %v3547
        %v3549 = vshll.u32 2131351028, %v3540
        %v3550 = vshrl.u32 2102212464, %v3541
        %v3551 = vor.u32 %v3549, %v3550
        %v3552 = vshll.u32 2102212464, %v3540
        %v3553 = vshrl.u32 920167782, %v3541
        %v3554 = vor.u32 %v3552, %v3553
        %v3555 = vshll.u32 920167782, %v3540
        %v3556 = vshrl.u32 1326507024, %v3541
        %v3557 = vor.u32 %v3555, %v3556
        %vm3558 = vcmp.lt.s32.totalorder %v3539, 1
        %vm3559 = vcmp.lt.s32.totalorder %v3539, 2
        %vm3560 = vcmp.lt.s32.totalorder %v3539, 3
        %vm3561 = vcmp.lt.s32.totalorder %v3539, 4
        %v3562 = vsel %vm3558, %v3542, %v3545
        %v3563 = vsel %vm3561, %v3551, 2102212464
        %v3564 = vsel %vm3560, %v3548, %v3563
        %v3565 = vsel %vm3559, %v3562, %v3564
        %v3566 = vsel %vm3558, %v3545, %v3548
        %v3567 = vsel %vm3561, %v3554, 920167782
        %v3568 = vsel %vm3560, %v3551, %v3567
        %v3569 = vsel %vm3559, %v3566, %v3568
        %v3570 = vsel %vm3558, %v3548, %v3551
        %v3571 = vsel %vm3561, %v3557, 1326507024
        %v3572 = vsel %vm3560, %v3554, %v3571
        %v3573 = vsel %vm3559, %v3570, %v3572
        %v3574 = vshll.u32 %v3534, 8
        %v3575 = vand.u32 %v3574, 65535
        %v3576 = vshrl.u32 %v3574, 16
        %v3577 = vand.u32 %v3573, 65535
        %v3578 = vshrl.u32 %v3573, 16
        %v3579 = vmul.u32 %v3575, %v3577
        %v3580 = vmul.u32 %v3575, %v3578
        %v3581 = vmul.u32 %v3576, %v3577
        %v3582 = vmul.u32 %v3576, %v3578
        %v3583 = vshll.u32 %v3580, 16
        %v3584 = vshrl.u32 %v3580, 16
        %v3585 = vshll.u32 %v3581, 16
        %v3586 = vshrl.u32 %v3581, 16
        %vm3587 = vc.u32 %v3579, %v3583
        %v3588 = vsel %vm3587, 1, 0
        %v3589 = vadd.s32 %v3579, %v3583
        %v3590 = vadd.s32 %v3582, %v3588
        %vm3591 = vc.u32 %v3589, %v3585
        %v3592 = vsel %vm3591, 1, 0
        %v3593 = vadd.s32 %v3589, %v3585
        %v3594 = vadd.s32 %v3590, %v3592
        %v3595 = vadd.s32 %v3594, %v3584
        %v3596 = vadd.s32 %v3595, %v3586
        %v3597 = vand.u32 %v3574, 65535
        %v3598 = vshrl.u32 %v3574, 16
        %v3599 = vand.u32 %v3569, 65535
        %v3600 = vshrl.u32 %v3569, 16
        %v3601 = vmul.u32 %v3597, %v3599
        %v3602 = vmul.u32 %v3597, %v3600
        %v3603 = vmul.u32 %v3598, %v3599
        %v3604 = vmul.u32 %v3598, %v3600
        %v3605 = vshll.u32 %v3602, 16
        %v3606 = vshrl.u32 %v3602, 16
        %v3607 = vshll.u32 %v3603, 16
        %v3608 = vshrl.u32 %v3603, 16
        %vm3609 = vc.u32 %v3601, %v3605
        %v3610 = vsel %vm3609, 1, 0
        %v3611 = vadd.s32 %v3601, %v3605
        %v3612 = vadd.s32 %v3604, %v3610
        %vm3613 = vc.u32 %v3611, %v3607
        %v3614 = vsel %vm3613, 1, 0
        %v3615 = vadd.s32 %v3611, %v3607
        %v3616 = vadd.s32 %v3612, %v3614
        %v3617 = vadd.s32 %v3616, %v3606
        %v3618 = vadd.s32 %v3617, %v3608
        %v3619 = vmul.u32 %v3574, %v3565
        %v3620 = vadd.s32 %v3596, %v3615
        %vm3621 = vc.u32 %v3596, %v3615
        %v3622 = vadd.s32 %v3618, 1
        %v3623 = vsel %vm3621, %v3622, %v3618
        %v3624 = vadd.s32 %v3619, %v3623
        %v3625 = vadd.s32 %v3624, 536870912
        %v3626 = vshrl.u32 %v3625, 30
        %v3627 = vshll.u32 %v3626, 30
        %v3628 = vsub.s32 %v3624, %v3627
        %vm3629 = vcmp.lt.s32.totalorder %v3628, 0
        %v3630 = vsub.s32 0, %v3628
        %v3631 = vsel %vm3629, %v3630, %v3628
        %v3632 = vclz %v3631
        %v3633 = vsub.s32 %v3632, 2
        %vm3634 = vcmp.gt.s32.totalorder 0, %v3633
        %v3635 = vsel %vm3634, 0, %v3633
        %v3636 = vsub.s32 32, %v3635
        %v3637 = vshll.u32 %v3628, %v3635
        %v3638 = vshrl.u32 %v3620, %v3636
        %v3639 = vor.u32 %v3637, %v3638
        %v3640 = vsub.s32 4294967266, %v3635
        %v3641 = vadd.s32 %v3640, 127
        %v3642 = vshll.u32 %v3641, 23
        %v3643 = vor.u32 4788187, %v3642
        %v3644 = vand.u32 2147483647, %v3643
        %v3646 = vcvt.s32.f32 %v3639
        %v3647 = vmul.f32 %v3646, %v3644
        %v3648 = vxor.u32 %v3647, 2147483648
        %v3649 = vsel %vm3528, %v3648, %v3647
        %v3650 = vsub.s32 4, %v3626
        %v3651 = vsel %vm3528, %v3650, %v3626
        %v3652 = vsel %vm3527, %v354, %v3649
        %v3653 = vsel %vm3527, 0, %v3651
        %v3654 = vmul.f32 %v3652, %v3652
        %v3655 = vmul.f32 %v3654, -0.001358992
        %v3656 = vadd.f32 %v3655, 0.041655596
        %v3657 = vmul.f32 %v3654, %v3656
        %v3658 = vadd.f32 %v3657, -0.4999988
        %v3659 = vmul.f32 %v3654, %v3658
        %v3660 = vadd.f32 1.0, %v3659
        %v3661 = vmul.f32 %v3652, %v3652
        %v3662 = vmul.f32 %v3661, -0.00019511016
        %v3663 = vadd.f32 %v3662, 0.008332121
        %v3664 = vmul.f32 %v3661, %v3663
        %v3665 = vadd.f32 %v3664, -0.16666654
        %v3666 = vmul.f32 %v3661, %v3665
        %v3667 = vadd.f32 %v3666, 1.0
        %v3668 = vmul.f32 %v3667, %v3652
        %vm3669 = vweird.f32 %v354
        %v3670 = vadd.s32 %v3653, 3
        %v3671 = vand.u32 %v3670, 3
        %vm3672 = vcmp.lt.s32.totalorder %v3671, 2
        %vm3673 = vcmp.eq.s32.totalorder %v3671, 0
        %v3674 = vxor.u32 %v3668, 2147483648
        %v3675 = vsel %vm3673, %v3660, %v3674
        %vm3676 = vcmp.eq.s32.totalorder %v3671, 2
        %v3677 = vxor.u32 %v3660, 2147483648
        %v3678 = vsel %vm3676, %v3677, %v3668
        %v3679 = vsel %vm3672, %v3675, %v3678
        %v3680 = vsel %vm3669, nan, %v3679
        %v3681 = vand.u32 2147483647, %v355
        %vm3682 = vcmp.le.f32.partialorder %v3681, 0.7853982
        %vm3683 = vcmp.lt.s32.totalorder %v355, 0
        %v3684 = vand.u32 %v355, 2139095040
        %v3685 = vshrl.u32 %v3684, 23
        %v3686 = vsub.s32 %v3685, 127
        %v3687 = vand.u32 2147483647, %v355
        %v3688 = vand.u32 %v3687, 8388607
        %v3689 = vor.u32 %v3688, 8388608
        %v3690 = vsub.s32 0, %v3689
        %v3691 = vadd.s32 %v3686, 1
        %vm3692 = vcmp.gt.s32.totalorder %v3691, 0
        %v3693 = vsel %vm3692, %v3691, 0
        %v3694 = vshrl.u32 %v3693, 5
        %v3695 = vand.u32 %v3693, 31
        %v3696 = vsub.s32 32, %v3695
        %v3697 = vshrl.u32 683565275, %v3696
        %v3698 = vshll.u32 683565275, %v3695
        %v3699 = vshrl.u32 2475754826, %v3696
        %v3700 = vor.u32 %v3698, %v3699
        %v3701 = vshll.u32 2475754826, %v3695
        %v3702 = vshrl.u32 2131351028, %v3696
        %v3703 = vor.u32 %v3701, %v3702
        %v3704 = vshll.u32 2131351028, %v3695
        %v3705 = vshrl.u32 2102212464, %v3696
        %v3706 = vor.u32 %v3704, %v3705
        %v3707 = vshll.u32 2102212464, %v3695
        %v3708 = vshrl.u32 920167782, %v3696
        %v3709 = vor.u32 %v3707, %v3708
        %v3710 = vshll.u32 920167782, %v3695
        %v3711 = vshrl.u32 1326507024, %v3696
        %v3712 = vor.u32 %v3710, %v3711
        %vm3713 = vcmp.lt.s32.totalorder %v3694, 1
        %vm3714 = vcmp.lt.s32.totalorder %v3694, 2
        %vm3715 = vcmp.lt.s32.totalorder %v3694, 3
        %vm3716 = vcmp.lt.s32.totalorder %v3694, 4
        %v3717 = vsel %vm3713, %v3697, %v3700
        %v3718 = vsel %vm3716, %v3706, 2102212464
        %v3719 = vsel %vm3715, %v3703, %v3718
        %v3720 = vsel %vm3714, %v3717, %v3719
        %v3721 = vsel %vm3713, %v3700, %v3703
        %v3722 = vsel %vm3716, %v3709, 920167782
        %v3723 = vsel %vm3715, %v3706, %v3722
        %v3724 = vsel %vm3714, %v3721, %v3723
        %v3725 = vsel %vm3713, %v3703, %v3706
        %v3726 = vsel %vm3716, %v3712, 1326507024
        %v3727 = vsel %vm3715, %v3709, %v3726
        %v3728 = vsel %vm3714, %v3725, %v3727
        %v3729 = vshll.u32 %v3689, 8
        %v3730 = vand.u32 %v3729, 65535
        %v3731 = vshrl.u32 %v3729, 16
        %v3732 = vand.u32 %v3728, 65535
        %v3733 = vshrl.u32 %v3728, 16
        %v3734 = vmul.u32 %v3730, %v3732
        %v3735 = vmul.u32 %v3730, %v3733
        %v3736 = vmul.u32 %v3731, %v3732
        %v3737 = vmul.u32 %v3731, %v3733
        %v3738 = vshll.u32 %v3735, 16
        %v3739 = vshrl.u32 %v3735, 16
        %v3740 = vshll.u32 %v3736, 16
        %v3741 = vshrl.u32 %v3736, 16
        %vm3742 = vc.u32 %v3734, %v3738
        %v3743 = vsel %vm3742, 1, 0
        %v3744 = vadd.s32 %v3734, %v3738
        %v3745 = vadd.s32 %v3737, %v3743
        %vm3746 = vc.u32 %v3744, %v3740
        %v3747 = vsel %vm3746, 1, 0
        %v3748 = vadd.s32 %v3744, %v3740
        %v3749 = vadd.s32 %v3745, %v3747
        %v3750 = vadd.s32 %v3749, %v3739
        %v3751 = vadd.s32 %v3750, %v3741
        %v3752 = vand.u32 %v3729, 65535
        %v3753 = vshrl.u32 %v3729, 16
        %v3754 = vand.u32 %v3724, 65535
        %v3755 = vshrl.u32 %v3724, 16
        %v3756 = vmul.u32 %v3752, %v3754
        %v3757 = vmul.u32 %v3752, %v3755
        %v3758 = vmul.u32 %v3753, %v3754
        %v3759 = vmul.u32 %v3753, %v3755
        %v3760 = vshll.u32 %v3757, 16
        %v3761 = vshrl.u32 %v3757, 16
        %v3762 = vshll.u32 %v3758, 16
        %v3763 = vshrl.u32 %v3758, 16
        %vm3764 = vc.u32 %v3756, %v3760
        %v3765 = vsel %vm3764, 1, 0
        %v3766 = vadd.s32 %v3756, %v3760
        %v3767 = vadd.s32 %v3759, %v3765
        %vm3768 = vc.u32 %v3766, %v3762
        %v3769 = vsel %vm3768, 1, 0
        %v3770 = vadd.s32 %v3766, %v3762
        %v3771 = vadd.s32 %v3767, %v3769
        %v3772 = vadd.s32 %v3771, %v3761
        %v3773 = vadd.s32 %v3772, %v3763
        %v3774 = vmul.u32 %v3729, %v3720
        %v3775 = vadd.s32 %v3751, %v3770
        %vm3776 = vc.u32 %v3751, %v3770
        %v3777 = vadd.s32 %v3773, 1
        %v3778 = vsel %vm3776, %v3777, %v3773
        %v3779 = vadd.s32 %v3774, %v3778
        %v3780 = vadd.s32 %v3779, 536870912
        %v3781 = vshrl.u32 %v3780, 30
        %v3782 = vshll.u32 %v3781, 30
        %v3783 = vsub.s32 %v3779, %v3782
        %vm3784 = vcmp.lt.s32.totalorder %v3783, 0
        %v3785 = vsub.s32 0, %v3783
        %v3786 = vsel %vm3784, %v3785, %v3783
        %v3787 = vclz %v3786
        %v3788 = vsub.s32 %v3787, 2
        %vm3789 = vcmp.gt.s32.totalorder 0, %v3788
        %v3790 = vsel %vm3789, 0, %v3788
        %v3791 = vsub.s32 32, %v3790
        %v3792 = vshll.u32 %v3783, %v3790
        %v3793 = vshrl.u32 %v3775, %v3791
        %v3794 = vor.u32 %v3792, %v3793
        %v3795 = vsub.s32 4294967266, %v3790
        %v3796 = vadd.s32 %v3795, 127
        %v3797 = vshll.u32 %v3796, 23
        %v3798 = vor.u32 4788187, %v3797
        %v3799 = vand.u32 2147483647, %v3798
        %v3801 = vcvt.s32.f32 %v3794
        %v3802 = vmul.f32 %v3801, %v3799
        %v3803 = vxor.u32 %v3802, 2147483648
        %v3804 = vsel %vm3683, %v3803, %v3802
        %v3805 = vsub.s32 4, %v3781
        %v3806 = vsel %vm3683, %v3805, %v3781
        %v3807 = vsel %vm3682, %v355, %v3804
        %v3808 = vsel %vm3682, 0, %v3806
        %v3809 = vmul.f32 %v3807, %v3807
        %v3810 = vmul.f32 %v3809, -0.001358992
        %v3811 = vadd.f32 %v3810, 0.041655596
        %v3812 = vmul.f32 %v3809, %v3811
        %v3813 = vadd.f32 %v3812, -0.4999988
        %v3814 = vmul.f32 %v3809, %v3813
        %v3815 = vadd.f32 1.0, %v3814
        %v3816 = vmul.f32 %v3807, %v3807
        %v3817 = vmul.f32 %v3816, -0.00019511016
        %v3818 = vadd.f32 %v3817, 0.008332121
        %v3819 = vmul.f32 %v3816, %v3818
        %v3820 = vadd.f32 %v3819, -0.16666654
        %v3821 = vmul.f32 %v3816, %v3820
        %v3822 = vadd.f32 %v3821, 1.0
        %v3823 = vmul.f32 %v3822, %v3807
        %vm3824 = vweird.f32 %v355
        %v3825 = vadd.s32 %v3808, 3
        %v3826 = vand.u32 %v3825, 3
        %vm3827 = vcmp.lt.s32.totalorder %v3826, 2
        %vm3828 = vcmp.eq.s32.totalorder %v3826, 0
        %v3829 = vxor.u32 %v3823, 2147483648
        %v3830 = vsel %vm3828, %v3815, %v3829
        %vm3831 = vcmp.eq.s32.totalorder %v3826, 2
        %v3832 = vxor.u32 %v3815, 2147483648
        %v3833 = vsel %vm3831, %v3832, %v3823
        %v3834 = vsel %vm3827, %v3830, %v3833
        %v3835 = vsel %vm3824, nan, %v3834
        %v3836 = vand.u32 2147483647, %v356
        %vm3837 = vcmp.le.f32.partialorder %v3836, 0.7853982
        %vm3838 = vcmp.lt.s32.totalorder %v356, 0
        %v3839 = vand.u32 %v356, 2139095040
        %v3840 = vshrl.u32 %v3839, 23
        %v3841 = vsub.s32 %v3840, 127
        %v3842 = vand.u32 2147483647, %v356
        %v3843 = vand.u32 %v3842, 8388607
        %v3844 = vor.u32 %v3843, 8388608
        %v3845 = vsub.s32 0, %v3844
        %v3846 = vadd.s32 %v3841, 1
        %vm3847 = vcmp.gt.s32.totalorder %v3846, 0
        %v3848 = vsel %vm3847, %v3846, 0
        %v3849 = vshrl.u32 %v3848, 5
        %v3850 = vand.u32 %v3848, 31
        %v3851 = vsub.s32 32, %v3850
        %v3852 = vshrl.u32 683565275, %v3851
        %v3853 = vshll.u32 683565275, %v3850
        %v3854 = vshrl.u32 2475754826, %v3851
        %v3855 = vor.u32 %v3853, %v3854
        %v3856 = vshll.u32 2475754826, %v3850
        %v3857 = vshrl.u32 2131351028, %v3851
        %v3858 = vor.u32 %v3856, %v3857
        %v3859 = vshll.u32 2131351028, %v3850
        %v3860 = vshrl.u32 2102212464, %v3851
        %v3861 = vor.u32 %v3859, %v3860
        %v3862 = vshll.u32 2102212464, %v3850
        %v3863 = vshrl.u32 920167782, %v3851
        %v3864 = vor.u32 %v3862, %v3863
        %v3865 = vshll.u32 920167782, %v3850
        %v3866 = vshrl.u32 1326507024, %v3851
        %v3867 = vor.u32 %v3865, %v3866
        %vm3868 = vcmp.lt.s32.totalorder %v3849, 1
        %vm3869 = vcmp.lt.s32.totalorder %v3849, 2
        %vm3870 = vcmp.lt.s32.totalorder %v3849, 3
        %vm3871 = vcmp.lt.s32.totalorder %v3849, 4
        %v3872 = vsel %vm3868, %v3852, %v3855
        %v3873 = vsel %vm3871, %v3861, 2102212464
        %v3874 = vsel %vm3870, %v3858, %v3873
        %v3875 = vsel %vm3869, %v3872, %v3874
        %v3876 = vsel %vm3868, %v3855, %v3858
        %v3877 = vsel %vm3871, %v3864, 920167782
        %v3878 = vsel %vm3870, %v3861, %v3877
        %v3879 = vsel %vm3869, %v3876, %v3878
        %v3880 = vsel %vm3868, %v3858, %v3861
        %v3881 = vsel %vm3871, %v3867, 1326507024
        %v3882 = vsel %vm3870, %v3864, %v3881
        %v3883 = vsel %vm3869, %v3880, %v3882
        %v3884 = vshll.u32 %v3844, 8
        %v3885 = vand.u32 %v3884, 65535
        %v3886 = vshrl.u32 %v3884, 16
        %v3887 = vand.u32 %v3883, 65535
        %v3888 = vshrl.u32 %v3883, 16
        %v3889 = vmul.u32 %v3885, %v3887
        %v3890 = vmul.u32 %v3885, %v3888
        %v3891 = vmul.u32 %v3886, %v3887
        %v3892 = vmul.u32 %v3886, %v3888
        %v3893 = vshll.u32 %v3890, 16
        %v3894 = vshrl.u32 %v3890, 16
        %v3895 = vshll.u32 %v3891, 16
        %v3896 = vshrl.u32 %v3891, 16
        %vm3897 = vc.u32 %v3889, %v3893
        %v3898 = vsel %vm3897, 1, 0
        %v3899 = vadd.s32 %v3889, %v3893
        %v3900 = vadd.s32 %v3892, %v3898
        %vm3901 = vc.u32 %v3899, %v3895
        %v3902 = vsel %vm3901, 1, 0
        %v3903 = vadd.s32 %v3899, %v3895
        %v3904 = vadd.s32 %v3900, %v3902
        %v3905 = vadd.s32 %v3904, %v3894
        %v3906 = vadd.s32 %v3905, %v3896
        %v3907 = vand.u32 %v3884, 65535
        %v3908 = vshrl.u32 %v3884, 16
        %v3909 = vand.u32 %v3879, 65535
        %v3910 = vshrl.u32 %v3879, 16
        %v3911 = vmul.u32 %v3907, %v3909
        %v3912 = vmul.u32 %v3907, %v3910
        %v3913 = vmul.u32 %v3908, %v3909
        %v3914 = vmul.u32 %v3908, %v3910
        %v3915 = vshll.u32 %v3912, 16
        %v3916 = vshrl.u32 %v3912, 16
        %v3917 = vshll.u32 %v3913, 16
        %v3918 = vshrl.u32 %v3913, 16
        %vm3919 = vc.u32 %v3911, %v3915
        %v3920 = vsel %vm3919, 1, 0
        %v3921 = vadd.s32 %v3911, %v3915
        %v3922 = vadd.s32 %v3914, %v3920
        %vm3923 = vc.u32 %v3921, %v3917
        %v3924 = vsel %vm3923, 1, 0
        %v3925 = vadd.s32 %v3921, %v3917
        %v3926 = vadd.s32 %v3922, %v3924
        %v3927 = vadd.s32 %v3926, %v3916
        %v3928 = vadd.s32 %v3927, %v3918
        %v3929 = vmul.u32 %v3884, %v3875
        %v3930 = vadd.s32 %v3906, %v3925
        %vm3931 = vc.u32 %v3906, %v3925
        %v3932 = vadd.s32 %v3928, 1
        %v3933 = vsel %vm3931, %v3932, %v3928
        %v3934 = vadd.s32 %v3929, %v3933
        %v3935 = vadd.s32 %v3934, 536870912
        %v3936 = vshrl.u32 %v3935, 30
        %v3937 = vshll.u32 %v3936, 30
        %v3938 = vsub.s32 %v3934, %v3937
        %vm3939 = vcmp.lt.s32.totalorder %v3938, 0
        %v3940 = vsub.s32 0, %v3938
        %v3941 = vsel %vm3939, %v3940, %v3938
        %v3942 = vclz %v3941
        %v3943 = vsub.s32 %v3942, 2
        %vm3944 = vcmp.gt.s32.totalorder 0, %v3943
        %v3945 = vsel %vm3944, 0, %v3943
        %v3946 = vsub.s32 32, %v3945
        %v3947 = vshll.u32 %v3938, %v3945
        %v3948 = vshrl.u32 %v3930, %v3946
        %v3949 = vor.u32 %v3947, %v3948
        %v3950 = vsub.s32 4294967266, %v3945
        %v3951 = vadd.s32 %v3950, 127
        %v3952 = vshll.u32 %v3951, 23
        %v3953 = vor.u32 4788187, %v3952
        %v3954 = vand.u32 2147483647, %v3953
        %v3956 = vcvt.s32.f32 %v3949
        %v3957 = vmul.f32 %v3956, %v3954
        %v3958 = vxor.u32 %v3957, 2147483648
        %v3959 = vsel %vm3838, %v3958, %v3957
        %v3960 = vsub.s32 4, %v3936
        %v3961 = vsel %vm3838, %v3960, %v3936
        %v3962 = vsel %vm3837, %v356, %v3959
        %v3963 = vsel %vm3837, 0, %v3961
        %v3964 = vmul.f32 %v3962, %v3962
        %v3965 = vmul.f32 %v3964, -0.001358992
        %v3966 = vadd.f32 %v3965, 0.041655596
        %v3967 = vmul.f32 %v3964, %v3966
        %v3968 = vadd.f32 %v3967, -0.4999988
        %v3969 = vmul.f32 %v3964, %v3968
        %v3970 = vadd.f32 1.0, %v3969
        %v3971 = vmul.f32 %v3962, %v3962
        %v3972 = vmul.f32 %v3971, -0.00019511016
        %v3973 = vadd.f32 %v3972, 0.008332121
        %v3974 = vmul.f32 %v3971, %v3973
        %v3975 = vadd.f32 %v3974, -0.16666654
        %v3976 = vmul.f32 %v3971, %v3975
        %v3977 = vadd.f32 %v3976, 1.0
        %v3978 = vmul.f32 %v3977, %v3962
        %vm3979 = vweird.f32 %v356
        %v3980 = vadd.s32 %v3963, 3
        %v3981 = vand.u32 %v3980, 3
        %vm3982 = vcmp.lt.s32.totalorder %v3981, 2
        %vm3983 = vcmp.eq.s32.totalorder %v3981, 0
        %v3984 = vxor.u32 %v3978, 2147483648
        %v3985 = vsel %vm3983, %v3970, %v3984
        %vm3986 = vcmp.eq.s32.totalorder %v3981, 2
        %v3987 = vxor.u32 %v3970, 2147483648
        %v3988 = vsel %vm3986, %v3987, %v3978
        %v3989 = vsel %vm3982, %v3985, %v3988
        %v3990 = vsel %vm3979, nan, %v3989
        %v3991 = vand.u32 2147483647, %v357
        %vm3992 = vcmp.le.f32.partialorder %v3991, 0.7853982
        %vm3993 = vcmp.lt.s32.totalorder %v357, 0
        %v3994 = vand.u32 %v357, 2139095040
        %v3995 = vshrl.u32 %v3994, 23
        %v3996 = vsub.s32 %v3995, 127
        %v3997 = vand.u32 2147483647, %v357
        %v3998 = vand.u32 %v3997, 8388607
        %v3999 = vor.u32 %v3998, 8388608
        %v4000 = vsub.s32 0, %v3999
        %v4001 = vadd.s32 %v3996, 1
        %vm4002 = vcmp.gt.s32.totalorder %v4001, 0
        %v4003 = vsel %vm4002, %v4001, 0
        %v4004 = vshrl.u32 %v4003, 5
        %v4005 = vand.u32 %v4003, 31
        %v4006 = vsub.s32 32, %v4005
        %v4007 = vshrl.u32 683565275, %v4006
        %v4008 = vshll.u32 683565275, %v4005
        %v4009 = vshrl.u32 2475754826, %v4006
        %v4010 = vor.u32 %v4008, %v4009
        %v4011 = vshll.u32 2475754826, %v4005
        %v4012 = vshrl.u32 2131351028, %v4006
        %v4013 = vor.u32 %v4011, %v4012
        %v4014 = vshll.u32 2131351028, %v4005
        %v4015 = vshrl.u32 2102212464, %v4006
        %v4016 = vor.u32 %v4014, %v4015
        %v4017 = vshll.u32 2102212464, %v4005
        %v4018 = vshrl.u32 920167782, %v4006
        %v4019 = vor.u32 %v4017, %v4018
        %v4020 = vshll.u32 920167782, %v4005
        %v4021 = vshrl.u32 1326507024, %v4006
        %v4022 = vor.u32 %v4020, %v4021
        %vm4023 = vcmp.lt.s32.totalorder %v4004, 1
        %vm4024 = vcmp.lt.s32.totalorder %v4004, 2
        %vm4025 = vcmp.lt.s32.totalorder %v4004, 3
        %vm4026 = vcmp.lt.s32.totalorder %v4004, 4
        %v4027 = vsel %vm4023, %v4007, %v4010
        %v4028 = vsel %vm4026, %v4016, 2102212464
        %v4029 = vsel %vm4025, %v4013, %v4028
        %v4030 = vsel %vm4024, %v4027, %v4029
        %v4031 = vsel %vm4023, %v4010, %v4013
        %v4032 = vsel %vm4026, %v4019, 920167782
        %v4033 = vsel %vm4025, %v4016, %v4032
        %v4034 = vsel %vm4024, %v4031, %v4033
        %v4035 = vsel %vm4023, %v4013, %v4016
        %v4036 = vsel %vm4026, %v4022, 1326507024
        %v4037 = vsel %vm4025, %v4019, %v4036
        %v4038 = vsel %vm4024, %v4035, %v4037
        %v4039 = vshll.u32 %v3999, 8
        %v4040 = vand.u32 %v4039, 65535
        %v4041 = vshrl.u32 %v4039, 16
        %v4042 = vand.u32 %v4038, 65535
        %v4043 = vshrl.u32 %v4038, 16
        %v4044 = vmul.u32 %v4040, %v4042
        %v4045 = vmul.u32 %v4040, %v4043
        %v4046 = vmul.u32 %v4041, %v4042
        %v4047 = vmul.u32 %v4041, %v4043
        %v4048 = vshll.u32 %v4045, 16
        %v4049 = vshrl.u32 %v4045, 16
        %v4050 = vshll.u32 %v4046, 16
        %v4051 = vshrl.u32 %v4046, 16
        %vm4052 = vc.u32 %v4044, %v4048
        %v4053 = vsel %vm4052, 1, 0
        %v4054 = vadd.s32 %v4044, %v4048
        %v4055 = vadd.s32 %v4047, %v4053
        %vm4056 = vc.u32 %v4054, %v4050
        %v4057 = vsel %vm4056, 1, 0
        %v4058 = vadd.s32 %v4054, %v4050
        %v4059 = vadd.s32 %v4055, %v4057
        %v4060 = vadd.s32 %v4059, %v4049
        %v4061 = vadd.s32 %v4060, %v4051
        %v4062 = vand.u32 %v4039, 65535
        %v4063 = vshrl.u32 %v4039, 16
        %v4064 = vand.u32 %v4034, 65535
        %v4065 = vshrl.u32 %v4034, 16
        %v4066 = vmul.u32 %v4062, %v4064
        %v4067 = vmul.u32 %v4062, %v4065
        %v4068 = vmul.u32 %v4063, %v4064
        %v4069 = vmul.u32 %v4063, %v4065
        %v4070 = vshll.u32 %v4067, 16
        %v4071 = vshrl.u32 %v4067, 16
        %v4072 = vshll.u32 %v4068, 16
        %v4073 = vshrl.u32 %v4068, 16
        %vm4074 = vc.u32 %v4066, %v4070
        %v4075 = vsel %vm4074, 1, 0
        %v4076 = vadd.s32 %v4066, %v4070
        %v4077 = vadd.s32 %v4069, %v4075
        %vm4078 = vc.u32 %v4076, %v4072
        %v4079 = vsel %vm4078, 1, 0
        %v4080 = vadd.s32 %v4076, %v4072
        %v4081 = vadd.s32 %v4077, %v4079
        %v4082 = vadd.s32 %v4081, %v4071
        %v4083 = vadd.s32 %v4082, %v4073
        %v4084 = vmul.u32 %v4039, %v4030
        %v4085 = vadd.s32 %v4061, %v4080
        %vm4086 = vc.u32 %v4061, %v4080
        %v4087 = vadd.s32 %v4083, 1
        %v4088 = vsel %vm4086, %v4087, %v4083
        %v4089 = vadd.s32 %v4084, %v4088
        %v4090 = vadd.s32 %v4089, 536870912
        %v4091 = vshrl.u32 %v4090, 30
        %v4092 = vshll.u32 %v4091, 30
        %v4093 = vsub.s32 %v4089, %v4092
        %vm4094 = vcmp.lt.s32.totalorder %v4093, 0
        %v4095 = vsub.s32 0, %v4093
        %v4096 = vsel %vm4094, %v4095, %v4093
        %v4097 = vclz %v4096
        %v4098 = vsub.s32 %v4097, 2
        %vm4099 = vcmp.gt.s32.totalorder 0, %v4098
        %v4100 = vsel %vm4099, 0, %v4098
        %v4101 = vsub.s32 32, %v4100
        %v4102 = vshll.u32 %v4093, %v4100
        %v4103 = vshrl.u32 %v4085, %v4101
        %v4104 = vor.u32 %v4102, %v4103
        %v4105 = vsub.s32 4294967266, %v4100
        %v4106 = vadd.s32 %v4105, 127
        %v4107 = vshll.u32 %v4106, 23
        %v4108 = vor.u32 4788187, %v4107
        %v4109 = vand.u32 2147483647, %v4108
        %v4111 = vcvt.s32.f32 %v4104
        %v4112 = vmul.f32 %v4111, %v4109
        %v4113 = vxor.u32 %v4112, 2147483648
        %v4114 = vsel %vm3993, %v4113, %v4112
        %v4115 = vsub.s32 4, %v4091
        %v4116 = vsel %vm3993, %v4115, %v4091
        %v4117 = vsel %vm3992, %v357, %v4114
        %v4118 = vsel %vm3992, 0, %v4116
        %v4119 = vmul.f32 %v4117, %v4117
        %v4120 = vmul.f32 %v4119, -0.001358992
        %v4121 = vadd.f32 %v4120, 0.041655596
        %v4122 = vmul.f32 %v4119, %v4121
        %v4123 = vadd.f32 %v4122, -0.4999988
        %v4124 = vmul.f32 %v4119, %v4123
        %v4125 = vadd.f32 1.0, %v4124
        %v4126 = vmul.f32 %v4117, %v4117
        %v4127 = vmul.f32 %v4126, -0.00019511016
        %v4128 = vadd.f32 %v4127, 0.008332121
        %v4129 = vmul.f32 %v4126, %v4128
        %v4130 = vadd.f32 %v4129, -0.16666654
        %v4131 = vmul.f32 %v4126, %v4130
        %v4132 = vadd.f32 %v4131, 1.0
        %v4133 = vmul.f32 %v4132, %v4117
        %vm4134 = vweird.f32 %v357
        %v4135 = vadd.s32 %v4118, 3
        %v4136 = vand.u32 %v4135, 3
        %vm4137 = vcmp.lt.s32.totalorder %v4136, 2
        %vm4138 = vcmp.eq.s32.totalorder %v4136, 0
        %v4139 = vxor.u32 %v4133, 2147483648
        %v4140 = vsel %vm4138, %v4125, %v4139
        %vm4141 = vcmp.eq.s32.totalorder %v4136, 2
        %v4142 = vxor.u32 %v4125, 2147483648
        %v4143 = vsel %vm4141, %v4142, %v4133
        %v4144 = vsel %vm4137, %v4140, %v4143
        %v4145 = vsel %vm4134, nan, %v4144
        %v4146 = vand.u32 2147483647, %v358
        %vm4147 = vcmp.le.f32.partialorder %v4146, 0.7853982
        %vm4148 = vcmp.lt.s32.totalorder %v358, 0
        %v4149 = vand.u32 %v358, 2139095040
        %v4150 = vshrl.u32 %v4149, 23
        %v4151 = vsub.s32 %v4150, 127
        %v4152 = vand.u32 2147483647, %v358
        %v4153 = vand.u32 %v4152, 8388607
        %v4154 = vor.u32 %v4153, 8388608
        %v4155 = vsub.s32 0, %v4154
        %v4156 = vadd.s32 %v4151, 1
        %vm4157 = vcmp.gt.s32.totalorder %v4156, 0
        %v4158 = vsel %vm4157, %v4156, 0
        %v4159 = vshrl.u32 %v4158, 5
        %v4160 = vand.u32 %v4158, 31
        %v4161 = vsub.s32 32, %v4160
        %v4162 = vshrl.u32 683565275, %v4161
        %v4163 = vshll.u32 683565275, %v4160
        %v4164 = vshrl.u32 2475754826, %v4161
        %v4165 = vor.u32 %v4163, %v4164
        %v4166 = vshll.u32 2475754826, %v4160
        %v4167 = vshrl.u32 2131351028, %v4161
        %v4168 = vor.u32 %v4166, %v4167
        %v4169 = vshll.u32 2131351028, %v4160
        %v4170 = vshrl.u32 2102212464, %v4161
        %v4171 = vor.u32 %v4169, %v4170
        %v4172 = vshll.u32 2102212464, %v4160
        %v4173 = vshrl.u32 920167782, %v4161
        %v4174 = vor.u32 %v4172, %v4173
        %v4175 = vshll.u32 920167782, %v4160
        %v4176 = vshrl.u32 1326507024, %v4161
        %v4177 = vor.u32 %v4175, %v4176
        %vm4178 = vcmp.lt.s32.totalorder %v4159, 1
        %vm4179 = vcmp.lt.s32.totalorder %v4159, 2
        %vm4180 = vcmp.lt.s32.totalorder %v4159, 3
        %vm4181 = vcmp.lt.s32.totalorder %v4159, 4
        %v4182 = vsel %vm4178, %v4162, %v4165
        %v4183 = vsel %vm4181, %v4171, 2102212464
        %v4184 = vsel %vm4180, %v4168, %v4183
        %v4185 = vsel %vm4179, %v4182, %v4184
        %v4186 = vsel %vm4178, %v4165, %v4168
        %v4187 = vsel %vm4181, %v4174, 920167782
        %v4188 = vsel %vm4180, %v4171, %v4187
        %v4189 = vsel %vm4179, %v4186, %v4188
        %v4190 = vsel %vm4178, %v4168, %v4171
        %v4191 = vsel %vm4181, %v4177, 1326507024
        %v4192 = vsel %vm4180, %v4174, %v4191
        %v4193 = vsel %vm4179, %v4190, %v4192
        %v4194 = vshll.u32 %v4154, 8
        %v4195 = vand.u32 %v4194, 65535
        %v4196 = vshrl.u32 %v4194, 16
        %v4197 = vand.u32 %v4193, 65535
        %v4198 = vshrl.u32 %v4193, 16
        %v4199 = vmul.u32 %v4195, %v4197
        %v4200 = vmul.u32 %v4195, %v4198
        %v4201 = vmul.u32 %v4196, %v4197
        %v4202 = vmul.u32 %v4196, %v4198
        %v4203 = vshll.u32 %v4200, 16
        %v4204 = vshrl.u32 %v4200, 16
        %v4205 = vshll.u32 %v4201, 16
        %v4206 = vshrl.u32 %v4201, 16
        %vm4207 = vc.u32 %v4199, %v4203
        %v4208 = vsel %vm4207, 1, 0
        %v4209 = vadd.s32 %v4199, %v4203
        %v4210 = vadd.s32 %v4202, %v4208
        %vm4211 = vc.u32 %v4209, %v4205
        %v4212 = vsel %vm4211, 1, 0
        %v4213 = vadd.s32 %v4209, %v4205
        %v4214 = vadd.s32 %v4210, %v4212
        %v4215 = vadd.s32 %v4214, %v4204
        %v4216 = vadd.s32 %v4215, %v4206
        %v4217 = vand.u32 %v4194, 65535
        %v4218 = vshrl.u32 %v4194, 16
        %v4219 = vand.u32 %v4189, 65535
        %v4220 = vshrl.u32 %v4189, 16
        %v4221 = vmul.u32 %v4217, %v4219
        %v4222 = vmul.u32 %v4217, %v4220
        %v4223 = vmul.u32 %v4218, %v4219
        %v4224 = vmul.u32 %v4218, %v4220
        %v4225 = vshll.u32 %v4222, 16
        %v4226 = vshrl.u32 %v4222, 16
        %v4227 = vshll.u32 %v4223, 16
        %v4228 = vshrl.u32 %v4223, 16
        %vm4229 = vc.u32 %v4221, %v4225
        %v4230 = vsel %vm4229, 1, 0
        %v4231 = vadd.s32 %v4221, %v4225
        %v4232 = vadd.s32 %v4224, %v4230
        %vm4233 = vc.u32 %v4231, %v4227
        %v4234 = vsel %vm4233, 1, 0
        %v4235 = vadd.s32 %v4231, %v4227
        %v4236 = vadd.s32 %v4232, %v4234
        %v4237 = vadd.s32 %v4236, %v4226
        %v4238 = vadd.s32 %v4237, %v4228
        %v4239 = vmul.u32 %v4194, %v4185
        %v4240 = vadd.s32 %v4216, %v4235
        %vm4241 = vc.u32 %v4216, %v4235
        %v4242 = vadd.s32 %v4238, 1
        %v4243 = vsel %vm4241, %v4242, %v4238
        %v4244 = vadd.s32 %v4239, %v4243
        %v4245 = vadd.s32 %v4244, 536870912
        %v4246 = vshrl.u32 %v4245, 30
        %v4247 = vshll.u32 %v4246, 30
        %v4248 = vsub.s32 %v4244, %v4247
        %vm4249 = vcmp.lt.s32.totalorder %v4248, 0
        %v4250 = vsub.s32 0, %v4248
        %v4251 = vsel %vm4249, %v4250, %v4248
        %v4252 = vclz %v4251
        %v4253 = vsub.s32 %v4252, 2
        %vm4254 = vcmp.gt.s32.totalorder 0, %v4253
        %v4255 = vsel %vm4254, 0, %v4253
        %v4256 = vsub.s32 32, %v4255
        %v4257 = vshll.u32 %v4248, %v4255
        %v4258 = vshrl.u32 %v4240, %v4256
        %v4259 = vor.u32 %v4257, %v4258
        %v4260 = vsub.s32 4294967266, %v4255
        %v4261 = vadd.s32 %v4260, 127
        %v4262 = vshll.u32 %v4261, 23
        %v4263 = vor.u32 4788187, %v4262
        %v4264 = vand.u32 2147483647, %v4263
        %v4266 = vcvt.s32.f32 %v4259
        %v4267 = vmul.f32 %v4266, %v4264
        %v4268 = vxor.u32 %v4267, 2147483648
        %v4269 = vsel %vm4148, %v4268, %v4267
        %v4270 = vsub.s32 4, %v4246
        %v4271 = vsel %vm4148, %v4270, %v4246
        %v4272 = vsel %vm4147, %v358, %v4269
        %v4273 = vsel %vm4147, 0, %v4271
        %v4274 = vmul.f32 %v4272, %v4272
        %v4275 = vmul.f32 %v4274, -0.001358992
        %v4276 = vadd.f32 %v4275, 0.041655596
        %v4277 = vmul.f32 %v4274, %v4276
        %v4278 = vadd.f32 %v4277, -0.4999988
        %v4279 = vmul.f32 %v4274, %v4278
        %v4280 = vadd.f32 1.0, %v4279
        %v4281 = vmul.f32 %v4272, %v4272
        %v4282 = vmul.f32 %v4281, -0.00019511016
        %v4283 = vadd.f32 %v4282, 0.008332121
        %v4284 = vmul.f32 %v4281, %v4283
        %v4285 = vadd.f32 %v4284, -0.16666654
        %v4286 = vmul.f32 %v4281, %v4285
        %v4287 = vadd.f32 %v4286, 1.0
        %v4288 = vmul.f32 %v4287, %v4272
        %vm4289 = vweird.f32 %v358
        %v4290 = vadd.s32 %v4273, 3
        %v4291 = vand.u32 %v4290, 3
        %vm4292 = vcmp.lt.s32.totalorder %v4291, 2
        %vm4293 = vcmp.eq.s32.totalorder %v4291, 0
        %v4294 = vxor.u32 %v4288, 2147483648
        %v4295 = vsel %vm4293, %v4280, %v4294
        %vm4296 = vcmp.eq.s32.totalorder %v4291, 2
        %v4297 = vxor.u32 %v4280, 2147483648
        %v4298 = vsel %vm4296, %v4297, %v4288
        %v4299 = vsel %vm4292, %v4295, %v4298
        %v4300 = vsel %vm4289, nan, %v4299
        %v4301 = vand.u32 2147483647, %v359
        %vm4302 = vcmp.le.f32.partialorder %v4301, 0.7853982
        %vm4303 = vcmp.lt.s32.totalorder %v359, 0
        %v4304 = vand.u32 %v359, 2139095040
        %v4305 = vshrl.u32 %v4304, 23
        %v4306 = vsub.s32 %v4305, 127
        %v4307 = vand.u32 2147483647, %v359
        %v4308 = vand.u32 %v4307, 8388607
        %v4309 = vor.u32 %v4308, 8388608
        %v4310 = vsub.s32 0, %v4309
        %v4311 = vadd.s32 %v4306, 1
        %vm4312 = vcmp.gt.s32.totalorder %v4311, 0
        %v4313 = vsel %vm4312, %v4311, 0
        %v4314 = vshrl.u32 %v4313, 5
        %v4315 = vand.u32 %v4313, 31
        %v4316 = vsub.s32 32, %v4315
        %v4317 = vshrl.u32 683565275, %v4316
        %v4318 = vshll.u32 683565275, %v4315
        %v4319 = vshrl.u32 2475754826, %v4316
        %v4320 = vor.u32 %v4318, %v4319
        %v4321 = vshll.u32 2475754826, %v4315
        %v4322 = vshrl.u32 2131351028, %v4316
        %v4323 = vor.u32 %v4321, %v4322
        %v4324 = vshll.u32 2131351028, %v4315
        %v4325 = vshrl.u32 2102212464, %v4316
        %v4326 = vor.u32 %v4324, %v4325
        %v4327 = vshll.u32 2102212464, %v4315
        %v4328 = vshrl.u32 920167782, %v4316
        %v4329 = vor.u32 %v4327, %v4328
        %v4330 = vshll.u32 920167782, %v4315
        %v4331 = vshrl.u32 1326507024, %v4316
        %v4332 = vor.u32 %v4330, %v4331
        %vm4333 = vcmp.lt.s32.totalorder %v4314, 1
        %vm4334 = vcmp.lt.s32.totalorder %v4314, 2
        %vm4335 = vcmp.lt.s32.totalorder %v4314, 3
        %vm4336 = vcmp.lt.s32.totalorder %v4314, 4
        %v4337 = vsel %vm4333, %v4317, %v4320
        %v4338 = vsel %vm4336, %v4326, 2102212464
        %v4339 = vsel %vm4335, %v4323, %v4338
        %v4340 = vsel %vm4334, %v4337, %v4339
        %v4341 = vsel %vm4333, %v4320, %v4323
        %v4342 = vsel %vm4336, %v4329, 920167782
        %v4343 = vsel %vm4335, %v4326, %v4342
        %v4344 = vsel %vm4334, %v4341, %v4343
        %v4345 = vsel %vm4333, %v4323, %v4326
        %v4346 = vsel %vm4336, %v4332, 1326507024
        %v4347 = vsel %vm4335, %v4329, %v4346
        %v4348 = vsel %vm4334, %v4345, %v4347
        %v4349 = vshll.u32 %v4309, 8
        %v4350 = vand.u32 %v4349, 65535
        %v4351 = vshrl.u32 %v4349, 16
        %v4352 = vand.u32 %v4348, 65535
        %v4353 = vshrl.u32 %v4348, 16
        %v4354 = vmul.u32 %v4350, %v4352
        %v4355 = vmul.u32 %v4350, %v4353
        %v4356 = vmul.u32 %v4351, %v4352
        %v4357 = vmul.u32 %v4351, %v4353
        %v4358 = vshll.u32 %v4355, 16
        %v4359 = vshrl.u32 %v4355, 16
        %v4360 = vshll.u32 %v4356, 16
        %v4361 = vshrl.u32 %v4356, 16
        %vm4362 = vc.u32 %v4354, %v4358
        %v4363 = vsel %vm4362, 1, 0
        %v4364 = vadd.s32 %v4354, %v4358
        %v4365 = vadd.s32 %v4357, %v4363
        %vm4366 = vc.u32 %v4364, %v4360
        %v4367 = vsel %vm4366, 1, 0
        %v4368 = vadd.s32 %v4364, %v4360
        %v4369 = vadd.s32 %v4365, %v4367
        %v4370 = vadd.s32 %v4369, %v4359
        %v4371 = vadd.s32 %v4370, %v4361
        %v4372 = vand.u32 %v4349, 65535
        %v4373 = vshrl.u32 %v4349, 16
        %v4374 = vand.u32 %v4344, 65535
        %v4375 = vshrl.u32 %v4344, 16
        %v4376 = vmul.u32 %v4372, %v4374
        %v4377 = vmul.u32 %v4372, %v4375
        %v4378 = vmul.u32 %v4373, %v4374
        %v4379 = vmul.u32 %v4373, %v4375
        %v4380 = vshll.u32 %v4377, 16
        %v4381 = vshrl.u32 %v4377, 16
        %v4382 = vshll.u32 %v4378, 16
        %v4383 = vshrl.u32 %v4378, 16
        %vm4384 = vc.u32 %v4376, %v4380
        %v4385 = vsel %vm4384, 1, 0
        %v4386 = vadd.s32 %v4376, %v4380
        %v4387 = vadd.s32 %v4379, %v4385
        %vm4388 = vc.u32 %v4386, %v4382
        %v4389 = vsel %vm4388, 1, 0
        %v4390 = vadd.s32 %v4386, %v4382
        %v4391 = vadd.s32 %v4387, %v4389
        %v4392 = vadd.s32 %v4391, %v4381
        %v4393 = vadd.s32 %v4392, %v4383
        %v4394 = vmul.u32 %v4349, %v4340
        %v4395 = vadd.s32 %v4371, %v4390
        %vm4396 = vc.u32 %v4371, %v4390
        %v4397 = vadd.s32 %v4393, 1
        %v4398 = vsel %vm4396, %v4397, %v4393
        %v4399 = vadd.s32 %v4394, %v4398
        %v4400 = vadd.s32 %v4399, 536870912
        %v4401 = vshrl.u32 %v4400, 30
        %v4402 = vshll.u32 %v4401, 30
        %v4403 = vsub.s32 %v4399, %v4402
        %vm4404 = vcmp.lt.s32.totalorder %v4403, 0
        %v4405 = vsub.s32 0, %v4403
        %v4406 = vsel %vm4404, %v4405, %v4403
        %v4407 = vclz %v4406
        %v4408 = vsub.s32 %v4407, 2
        %vm4409 = vcmp.gt.s32.totalorder 0, %v4408
        %v4410 = vsel %vm4409, 0, %v4408
        %v4411 = vsub.s32 32, %v4410
        %v4412 = vshll.u32 %v4403, %v4410
        %v4413 = vshrl.u32 %v4395, %v4411
        %v4414 = vor.u32 %v4412, %v4413
        %v4415 = vsub.s32 4294967266, %v4410
        %v4416 = vadd.s32 %v4415, 127
        %v4417 = vshll.u32 %v4416, 23
        %v4418 = vor.u32 4788187, %v4417
        %v4419 = vand.u32 2147483647, %v4418
        %v4421 = vcvt.s32.f32 %v4414
        %v4422 = vmul.f32 %v4421, %v4419
        %v4423 = vxor.u32 %v4422, 2147483648
        %v4424 = vsel %vm4303, %v4423, %v4422
        %v4425 = vsub.s32 4, %v4401
        %v4426 = vsel %vm4303, %v4425, %v4401
        %v4427 = vsel %vm4302, %v359, %v4424
        %v4428 = vsel %vm4302, 0, %v4426
        %v4429 = vmul.f32 %v4427, %v4427
        %v4430 = vmul.f32 %v4429, -0.001358992
        %v4431 = vadd.f32 %v4430, 0.041655596
        %v4432 = vmul.f32 %v4429, %v4431
        %v4433 = vadd.f32 %v4432, -0.4999988
        %v4434 = vmul.f32 %v4429, %v4433
        %v4435 = vadd.f32 1.0, %v4434
        %v4436 = vmul.f32 %v4427, %v4427
        %v4437 = vmul.f32 %v4436, -0.00019511016
        %v4438 = vadd.f32 %v4437, 0.008332121
        %v4439 = vmul.f32 %v4436, %v4438
        %v4440 = vadd.f32 %v4439, -0.16666654
        %v4441 = vmul.f32 %v4436, %v4440
        %v4442 = vadd.f32 %v4441, 1.0
        %v4443 = vmul.f32 %v4442, %v4427
        %vm4444 = vweird.f32 %v359
        %v4445 = vadd.s32 %v4428, 3
        %v4446 = vand.u32 %v4445, 3
        %vm4447 = vcmp.lt.s32.totalorder %v4446, 2
        %vm4448 = vcmp.eq.s32.totalorder %v4446, 0
        %v4449 = vxor.u32 %v4443, 2147483648
        %v4450 = vsel %vm4448, %v4435, %v4449
        %vm4451 = vcmp.eq.s32.totalorder %v4446, 2
        %v4452 = vxor.u32 %v4435, 2147483648
        %v4453 = vsel %vm4451, %v4452, %v4443
        %v4454 = vsel %vm4447, %v4450, %v4453
        %v4455 = vsel %vm4444, nan, %v4454
        %v4456 = vand.u32 2147483647, %v360
        %vm4457 = vcmp.le.f32.partialorder %v4456, 0.7853982
        %vm4458 = vcmp.lt.s32.totalorder %v360, 0
        %v4459 = vand.u32 %v360, 2139095040
        %v4460 = vshrl.u32 %v4459, 23
        %v4461 = vsub.s32 %v4460, 127
        %v4462 = vand.u32 2147483647, %v360
        %v4463 = vand.u32 %v4462, 8388607
        %v4464 = vor.u32 %v4463, 8388608
        %v4465 = vsub.s32 0, %v4464
        %v4466 = vadd.s32 %v4461, 1
        %vm4467 = vcmp.gt.s32.totalorder %v4466, 0
        %v4468 = vsel %vm4467, %v4466, 0
        %v4469 = vshrl.u32 %v4468, 5
        %v4470 = vand.u32 %v4468, 31
        %v4471 = vsub.s32 32, %v4470
        %v4472 = vshrl.u32 683565275, %v4471
        %v4473 = vshll.u32 683565275, %v4470
        %v4474 = vshrl.u32 2475754826, %v4471
        %v4475 = vor.u32 %v4473, %v4474
        %v4476 = vshll.u32 2475754826, %v4470
        %v4477 = vshrl.u32 2131351028, %v4471
        %v4478 = vor.u32 %v4476, %v4477
        %v4479 = vshll.u32 2131351028, %v4470
        %v4480 = vshrl.u32 2102212464, %v4471
        %v4481 = vor.u32 %v4479, %v4480
        %v4482 = vshll.u32 2102212464, %v4470
        %v4483 = vshrl.u32 920167782, %v4471
        %v4484 = vor.u32 %v4482, %v4483
        %v4485 = vshll.u32 920167782, %v4470
        %v4486 = vshrl.u32 1326507024, %v4471
        %v4487 = vor.u32 %v4485, %v4486
        %vm4488 = vcmp.lt.s32.totalorder %v4469, 1
        %vm4489 = vcmp.lt.s32.totalorder %v4469, 2
        %vm4490 = vcmp.lt.s32.totalorder %v4469, 3
        %vm4491 = vcmp.lt.s32.totalorder %v4469, 4
        %v4492 = vsel %vm4488, %v4472, %v4475
        %v4493 = vsel %vm4491, %v4481, 2102212464
        %v4494 = vsel %vm4490, %v4478, %v4493
        %v4495 = vsel %vm4489, %v4492, %v4494
        %v4496 = vsel %vm4488, %v4475, %v4478
        %v4497 = vsel %vm4491, %v4484, 920167782
        %v4498 = vsel %vm4490, %v4481, %v4497
        %v4499 = vsel %vm4489, %v4496, %v4498
        %v4500 = vsel %vm4488, %v4478, %v4481
        %v4501 = vsel %vm4491, %v4487, 1326507024
        %v4502 = vsel %vm4490, %v4484, %v4501
        %v4503 = vsel %vm4489, %v4500, %v4502
        %v4504 = vshll.u32 %v4464, 8
        %v4505 = vand.u32 %v4504, 65535
        %v4506 = vshrl.u32 %v4504, 16
        %v4507 = vand.u32 %v4503, 65535
        %v4508 = vshrl.u32 %v4503, 16
        %v4509 = vmul.u32 %v4505, %v4507
        %v4510 = vmul.u32 %v4505, %v4508
        %v4511 = vmul.u32 %v4506, %v4507
        %v4512 = vmul.u32 %v4506, %v4508
        %v4513 = vshll.u32 %v4510, 16
        %v4514 = vshrl.u32 %v4510, 16
        %v4515 = vshll.u32 %v4511, 16
        %v4516 = vshrl.u32 %v4511, 16
        %vm4517 = vc.u32 %v4509, %v4513
        %v4518 = vsel %vm4517, 1, 0
        %v4519 = vadd.s32 %v4509, %v4513
        %v4520 = vadd.s32 %v4512, %v4518
        %vm4521 = vc.u32 %v4519, %v4515
        %v4522 = vsel %vm4521, 1, 0
        %v4523 = vadd.s32 %v4519, %v4515
        %v4524 = vadd.s32 %v4520, %v4522
        %v4525 = vadd.s32 %v4524, %v4514
        %v4526 = vadd.s32 %v4525, %v4516
        %v4527 = vand.u32 %v4504, 65535
        %v4528 = vshrl.u32 %v4504, 16
        %v4529 = vand.u32 %v4499, 65535
        %v4530 = vshrl.u32 %v4499, 16
        %v4531 = vmul.u32 %v4527, %v4529
        %v4532 = vmul.u32 %v4527, %v4530
        %v4533 = vmul.u32 %v4528, %v4529
        %v4534 = vmul.u32 %v4528, %v4530
        %v4535 = vshll.u32 %v4532, 16
        %v4536 = vshrl.u32 %v4532, 16
        %v4537 = vshll.u32 %v4533, 16
        %v4538 = vshrl.u32 %v4533, 16
        %vm4539 = vc.u32 %v4531, %v4535
        %v4540 = vsel %vm4539, 1, 0
        %v4541 = vadd.s32 %v4531, %v4535
        %v4542 = vadd.s32 %v4534, %v4540
        %vm4543 = vc.u32 %v4541, %v4537
        %v4544 = vsel %vm4543, 1, 0
        %v4545 = vadd.s32 %v4541, %v4537
        %v4546 = vadd.s32 %v4542, %v4544
        %v4547 = vadd.s32 %v4546, %v4536
        %v4548 = vadd.s32 %v4547, %v4538
        %v4549 = vmul.u32 %v4504, %v4495
        %v4550 = vadd.s32 %v4526, %v4545
        %vm4551 = vc.u32 %v4526, %v4545
        %v4552 = vadd.s32 %v4548, 1
        %v4553 = vsel %vm4551, %v4552, %v4548
        %v4554 = vadd.s32 %v4549, %v4553
        %v4555 = vadd.s32 %v4554, 536870912
        %v4556 = vshrl.u32 %v4555, 30
        %v4557 = vshll.u32 %v4556, 30
        %v4558 = vsub.s32 %v4554, %v4557
        %vm4559 = vcmp.lt.s32.totalorder %v4558, 0
        %v4560 = vsub.s32 0, %v4558
        %v4561 = vsel %vm4559, %v4560, %v4558
        %v4562 = vclz %v4561
        %v4563 = vsub.s32 %v4562, 2
        %vm4564 = vcmp.gt.s32.totalorder 0, %v4563
        %v4565 = vsel %vm4564, 0, %v4563
        %v4566 = vsub.s32 32, %v4565
        %v4567 = vshll.u32 %v4558, %v4565
        %v4568 = vshrl.u32 %v4550, %v4566
        %v4569 = vor.u32 %v4567, %v4568
        %v4570 = vsub.s32 4294967266, %v4565
        %v4571 = vadd.s32 %v4570, 127
        %v4572 = vshll.u32 %v4571, 23
        %v4573 = vor.u32 4788187, %v4572
        %v4574 = vand.u32 2147483647, %v4573
        %v4576 = vcvt.s32.f32 %v4569
        %v4577 = vmul.f32 %v4576, %v4574
        %v4578 = vxor.u32 %v4577, 2147483648
        %v4579 = vsel %vm4458, %v4578, %v4577
        %v4580 = vsub.s32 4, %v4556
        %v4581 = vsel %vm4458, %v4580, %v4556
        %v4582 = vsel %vm4457, %v360, %v4579
        %v4583 = vsel %vm4457, 0, %v4581
        %v4584 = vmul.f32 %v4582, %v4582
        %v4585 = vmul.f32 %v4584, -0.001358992
        %v4586 = vadd.f32 %v4585, 0.041655596
        %v4587 = vmul.f32 %v4584, %v4586
        %v4588 = vadd.f32 %v4587, -0.4999988
        %v4589 = vmul.f32 %v4584, %v4588
        %v4590 = vadd.f32 1.0, %v4589
        %v4591 = vmul.f32 %v4582, %v4582
        %v4592 = vmul.f32 %v4591, -0.00019511016
        %v4593 = vadd.f32 %v4592, 0.008332121
        %v4594 = vmul.f32 %v4591, %v4593
        %v4595 = vadd.f32 %v4594, -0.16666654
        %v4596 = vmul.f32 %v4591, %v4595
        %v4597 = vadd.f32 %v4596, 1.0
        %v4598 = vmul.f32 %v4597, %v4582
        %vm4599 = vweird.f32 %v360
        %v4600 = vadd.s32 %v4583, 3
        %v4601 = vand.u32 %v4600, 3
        %vm4602 = vcmp.lt.s32.totalorder %v4601, 2
        %vm4603 = vcmp.eq.s32.totalorder %v4601, 0
        %v4604 = vxor.u32 %v4598, 2147483648
        %v4605 = vsel %vm4603, %v4590, %v4604
        %vm4606 = vcmp.eq.s32.totalorder %v4601, 2
        %v4607 = vxor.u32 %v4590, 2147483648
        %v4608 = vsel %vm4606, %v4607, %v4598
        %v4609 = vsel %vm4602, %v4605, %v4608
        %v4610 = vsel %vm4599, nan, %v4609
        %v4611 = vand.u32 2147483647, %v361
        %vm4612 = vcmp.le.f32.partialorder %v4611, 0.7853982
        %vm4613 = vcmp.lt.s32.totalorder %v361, 0
        %v4614 = vand.u32 %v361, 2139095040
        %v4615 = vshrl.u32 %v4614, 23
        %v4616 = vsub.s32 %v4615, 127
        %v4617 = vand.u32 2147483647, %v361
        %v4618 = vand.u32 %v4617, 8388607
        %v4619 = vor.u32 %v4618, 8388608
        %v4620 = vsub.s32 0, %v4619
        %v4621 = vadd.s32 %v4616, 1
        %vm4622 = vcmp.gt.s32.totalorder %v4621, 0
        %v4623 = vsel %vm4622, %v4621, 0
        %v4624 = vshrl.u32 %v4623, 5
        %v4625 = vand.u32 %v4623, 31
        %v4626 = vsub.s32 32, %v4625
        %v4627 = vshrl.u32 683565275, %v4626
        %v4628 = vshll.u32 683565275, %v4625
        %v4629 = vshrl.u32 2475754826, %v4626
        %v4630 = vor.u32 %v4628, %v4629
        %v4631 = vshll.u32 2475754826, %v4625
        %v4632 = vshrl.u32 2131351028, %v4626
        %v4633 = vor.u32 %v4631, %v4632
        %v4634 = vshll.u32 2131351028, %v4625
        %v4635 = vshrl.u32 2102212464, %v4626
        %v4636 = vor.u32 %v4634, %v4635
        %v4637 = vshll.u32 2102212464, %v4625
        %v4638 = vshrl.u32 920167782, %v4626
        %v4639 = vor.u32 %v4637, %v4638
        %v4640 = vshll.u32 920167782, %v4625
        %v4641 = vshrl.u32 1326507024, %v4626
        %v4642 = vor.u32 %v4640, %v4641
        %vm4643 = vcmp.lt.s32.totalorder %v4624, 1
        %vm4644 = vcmp.lt.s32.totalorder %v4624, 2
        %vm4645 = vcmp.lt.s32.totalorder %v4624, 3
        %vm4646 = vcmp.lt.s32.totalorder %v4624, 4
        %v4647 = vsel %vm4643, %v4627, %v4630
        %v4648 = vsel %vm4646, %v4636, 2102212464
        %v4649 = vsel %vm4645, %v4633, %v4648
        %v4650 = vsel %vm4644, %v4647, %v4649
        %v4651 = vsel %vm4643, %v4630, %v4633
        %v4652 = vsel %vm4646, %v4639, 920167782
        %v4653 = vsel %vm4645, %v4636, %v4652
        %v4654 = vsel %vm4644, %v4651, %v4653
        %v4655 = vsel %vm4643, %v4633, %v4636
        %v4656 = vsel %vm4646, %v4642, 1326507024
        %v4657 = vsel %vm4645, %v4639, %v4656
        %v4658 = vsel %vm4644, %v4655, %v4657
        %v4659 = vshll.u32 %v4619, 8
        %v4660 = vand.u32 %v4659, 65535
        %v4661 = vshrl.u32 %v4659, 16
        %v4662 = vand.u32 %v4658, 65535
        %v4663 = vshrl.u32 %v4658, 16
        %v4664 = vmul.u32 %v4660, %v4662
        %v4665 = vmul.u32 %v4660, %v4663
        %v4666 = vmul.u32 %v4661, %v4662
        %v4667 = vmul.u32 %v4661, %v4663
        %v4668 = vshll.u32 %v4665, 16
        %v4669 = vshrl.u32 %v4665, 16
        %v4670 = vshll.u32 %v4666, 16
        %v4671 = vshrl.u32 %v4666, 16
        %vm4672 = vc.u32 %v4664, %v4668
        %v4673 = vsel %vm4672, 1, 0
        %v4674 = vadd.s32 %v4664, %v4668
        %v4675 = vadd.s32 %v4667, %v4673
        %vm4676 = vc.u32 %v4674, %v4670
        %v4677 = vsel %vm4676, 1, 0
        %v4678 = vadd.s32 %v4674, %v4670
        %v4679 = vadd.s32 %v4675, %v4677
        %v4680 = vadd.s32 %v4679, %v4669
        %v4681 = vadd.s32 %v4680, %v4671
        %v4682 = vand.u32 %v4659, 65535
        %v4683 = vshrl.u32 %v4659, 16
        %v4684 = vand.u32 %v4654, 65535
        %v4685 = vshrl.u32 %v4654, 16
        %v4686 = vmul.u32 %v4682, %v4684
        %v4687 = vmul.u32 %v4682, %v4685
        %v4688 = vmul.u32 %v4683, %v4684
        %v4689 = vmul.u32 %v4683, %v4685
        %v4690 = vshll.u32 %v4687, 16
        %v4691 = vshrl.u32 %v4687, 16
        %v4692 = vshll.u32 %v4688, 16
        %v4693 = vshrl.u32 %v4688, 16
        %vm4694 = vc.u32 %v4686, %v4690
        %v4695 = vsel %vm4694, 1, 0
        %v4696 = vadd.s32 %v4686, %v4690
        %v4697 = vadd.s32 %v4689, %v4695
        %vm4698 = vc.u32 %v4696, %v4692
        %v4699 = vsel %vm4698, 1, 0
        %v4700 = vadd.s32 %v4696, %v4692
        %v4701 = vadd.s32 %v4697, %v4699
        %v4702 = vadd.s32 %v4701, %v4691
        %v4703 = vadd.s32 %v4702, %v4693
        %v4704 = vmul.u32 %v4659, %v4650
        %v4705 = vadd.s32 %v4681, %v4700
        %vm4706 = vc.u32 %v4681, %v4700
        %v4707 = vadd.s32 %v4703, 1
        %v4708 = vsel %vm4706, %v4707, %v4703
        %v4709 = vadd.s32 %v4704, %v4708
        %v4710 = vadd.s32 %v4709, 536870912
        %v4711 = vshrl.u32 %v4710, 30
        %v4712 = vshll.u32 %v4711, 30
        %v4713 = vsub.s32 %v4709, %v4712
        %vm4714 = vcmp.lt.s32.totalorder %v4713, 0
        %v4715 = vsub.s32 0, %v4713
        %v4716 = vsel %vm4714, %v4715, %v4713
        %v4717 = vclz %v4716
        %v4718 = vsub.s32 %v4717, 2
        %vm4719 = vcmp.gt.s32.totalorder 0, %v4718
        %v4720 = vsel %vm4719, 0, %v4718
        %v4721 = vsub.s32 32, %v4720
        %v4722 = vshll.u32 %v4713, %v4720
        %v4723 = vshrl.u32 %v4705, %v4721
        %v4724 = vor.u32 %v4722, %v4723
        %v4725 = vsub.s32 4294967266, %v4720
        %v4726 = vadd.s32 %v4725, 127
        %v4727 = vshll.u32 %v4726, 23
        %v4728 = vor.u32 4788187, %v4727
        %v4729 = vand.u32 2147483647, %v4728
        %v4731 = vcvt.s32.f32 %v4724
        %v4732 = vmul.f32 %v4731, %v4729
        %v4733 = vxor.u32 %v4732, 2147483648
        %v4734 = vsel %vm4613, %v4733, %v4732
        %v4735 = vsub.s32 4, %v4711
        %v4736 = vsel %vm4613, %v4735, %v4711
        %v4737 = vsel %vm4612, %v361, %v4734
        %v4738 = vsel %vm4612, 0, %v4736
        %v4739 = vmul.f32 %v4737, %v4737
        %v4740 = vmul.f32 %v4739, -0.001358992
        %v4741 = vadd.f32 %v4740, 0.041655596
        %v4742 = vmul.f32 %v4739, %v4741
        %v4743 = vadd.f32 %v4742, -0.4999988
        %v4744 = vmul.f32 %v4739, %v4743
        %v4745 = vadd.f32 1.0, %v4744
        %v4746 = vmul.f32 %v4737, %v4737
        %v4747 = vmul.f32 %v4746, -0.00019511016
        %v4748 = vadd.f32 %v4747, 0.008332121
        %v4749 = vmul.f32 %v4746, %v4748
        %v4750 = vadd.f32 %v4749, -0.16666654
        %v4751 = vmul.f32 %v4746, %v4750
        %v4752 = vadd.f32 %v4751, 1.0
        %v4753 = vmul.f32 %v4752, %v4737
        %vm4754 = vweird.f32 %v361
        %v4755 = vadd.s32 %v4738, 3
        %v4756 = vand.u32 %v4755, 3
        %vm4757 = vcmp.lt.s32.totalorder %v4756, 2
        %vm4758 = vcmp.eq.s32.totalorder %v4756, 0
        %v4759 = vxor.u32 %v4753, 2147483648
        %v4760 = vsel %vm4758, %v4745, %v4759
        %vm4761 = vcmp.eq.s32.totalorder %v4756, 2
        %v4762 = vxor.u32 %v4745, 2147483648
        %v4763 = vsel %vm4761, %v4762, %v4753
        %v4764 = vsel %vm4757, %v4760, %v4763
        %v4765 = vsel %vm4754, nan, %v4764
        %v4766 = vand.u32 2147483647, %v362
        %vm4767 = vcmp.le.f32.partialorder %v4766, 0.7853982
        %vm4768 = vcmp.lt.s32.totalorder %v362, 0
        %v4769 = vand.u32 %v362, 2139095040
        %v4770 = vshrl.u32 %v4769, 23
        %v4771 = vsub.s32 %v4770, 127
        %v4772 = vand.u32 2147483647, %v362
        %v4773 = vand.u32 %v4772, 8388607
        %v4774 = vor.u32 %v4773, 8388608
        %v4775 = vsub.s32 0, %v4774
        %v4776 = vadd.s32 %v4771, 1
        %vm4777 = vcmp.gt.s32.totalorder %v4776, 0
        %v4778 = vsel %vm4777, %v4776, 0
        %v4779 = vshrl.u32 %v4778, 5
        %v4780 = vand.u32 %v4778, 31
        %v4781 = vsub.s32 32, %v4780
        %v4782 = vshrl.u32 683565275, %v4781
        %v4783 = vshll.u32 683565275, %v4780
        %v4784 = vshrl.u32 2475754826, %v4781
        %v4785 = vor.u32 %v4783, %v4784
        %v4786 = vshll.u32 2475754826, %v4780
        %v4787 = vshrl.u32 2131351028, %v4781
        %v4788 = vor.u32 %v4786, %v4787
        %v4789 = vshll.u32 2131351028, %v4780
        %v4790 = vshrl.u32 2102212464, %v4781
        %v4791 = vor.u32 %v4789, %v4790
        %v4792 = vshll.u32 2102212464, %v4780
        %v4793 = vshrl.u32 920167782, %v4781
        %v4794 = vor.u32 %v4792, %v4793
        %v4795 = vshll.u32 920167782, %v4780
        %v4796 = vshrl.u32 1326507024, %v4781
        %v4797 = vor.u32 %v4795, %v4796
        %vm4798 = vcmp.lt.s32.totalorder %v4779, 1
        %vm4799 = vcmp.lt.s32.totalorder %v4779, 2
        %vm4800 = vcmp.lt.s32.totalorder %v4779, 3
        %vm4801 = vcmp.lt.s32.totalorder %v4779, 4
        %v4802 = vsel %vm4798, %v4782, %v4785
        %v4803 = vsel %vm4801, %v4791, 2102212464
        %v4804 = vsel %vm4800, %v4788, %v4803
        %v4805 = vsel %vm4799, %v4802, %v4804
        %v4806 = vsel %vm4798, %v4785, %v4788
        %v4807 = vsel %vm4801, %v4794, 920167782
        %v4808 = vsel %vm4800, %v4791, %v4807
        %v4809 = vsel %vm4799, %v4806, %v4808
        %v4810 = vsel %vm4798, %v4788, %v4791
        %v4811 = vsel %vm4801, %v4797, 1326507024
        %v4812 = vsel %vm4800, %v4794, %v4811
        %v4813 = vsel %vm4799, %v4810, %v4812
        %v4814 = vshll.u32 %v4774, 8
        %v4815 = vand.u32 %v4814, 65535
        %v4816 = vshrl.u32 %v4814, 16
        %v4817 = vand.u32 %v4813, 65535
        %v4818 = vshrl.u32 %v4813, 16
        %v4819 = vmul.u32 %v4815, %v4817
        %v4820 = vmul.u32 %v4815, %v4818
        %v4821 = vmul.u32 %v4816, %v4817
        %v4822 = vmul.u32 %v4816, %v4818
        %v4823 = vshll.u32 %v4820, 16
        %v4824 = vshrl.u32 %v4820, 16
        %v4825 = vshll.u32 %v4821, 16
        %v4826 = vshrl.u32 %v4821, 16
        %vm4827 = vc.u32 %v4819, %v4823
        %v4828 = vsel %vm4827, 1, 0
        %v4829 = vadd.s32 %v4819, %v4823
        %v4830 = vadd.s32 %v4822, %v4828
        %vm4831 = vc.u32 %v4829, %v4825
        %v4832 = vsel %vm4831, 1, 0
        %v4833 = vadd.s32 %v4829, %v4825
        %v4834 = vadd.s32 %v4830, %v4832
        %v4835 = vadd.s32 %v4834, %v4824
        %v4836 = vadd.s32 %v4835, %v4826
        %v4837 = vand.u32 %v4814, 65535
        %v4838 = vshrl.u32 %v4814, 16
        %v4839 = vand.u32 %v4809, 65535
        %v4840 = vshrl.u32 %v4809, 16
        %v4841 = vmul.u32 %v4837, %v4839
        %v4842 = vmul.u32 %v4837, %v4840
        %v4843 = vmul.u32 %v4838, %v4839
        %v4844 = vmul.u32 %v4838, %v4840
        %v4845 = vshll.u32 %v4842, 16
        %v4846 = vshrl.u32 %v4842, 16
        %v4847 = vshll.u32 %v4843, 16
        %v4848 = vshrl.u32 %v4843, 16
        %vm4849 = vc.u32 %v4841, %v4845
        %v4850 = vsel %vm4849, 1, 0
        %v4851 = vadd.s32 %v4841, %v4845
        %v4852 = vadd.s32 %v4844, %v4850
        %vm4853 = vc.u32 %v4851, %v4847
        %v4854 = vsel %vm4853, 1, 0
        %v4855 = vadd.s32 %v4851, %v4847
        %v4856 = vadd.s32 %v4852, %v4854
        %v4857 = vadd.s32 %v4856, %v4846
        %v4858 = vadd.s32 %v4857, %v4848
        %v4859 = vmul.u32 %v4814, %v4805
        %v4860 = vadd.s32 %v4836, %v4855
        %vm4861 = vc.u32 %v4836, %v4855
        %v4862 = vadd.s32 %v4858, 1
        %v4863 = vsel %vm4861, %v4862, %v4858
        %v4864 = vadd.s32 %v4859, %v4863
        %v4865 = vadd.s32 %v4864, 536870912
        %v4866 = vshrl.u32 %v4865, 30
        %v4867 = vshll.u32 %v4866, 30
        %v4868 = vsub.s32 %v4864, %v4867
        %vm4869 = vcmp.lt.s32.totalorder %v4868, 0
        %v4870 = vsub.s32 0, %v4868
        %v4871 = vsel %vm4869, %v4870, %v4868
        %v4872 = vclz %v4871
        %v4873 = vsub.s32 %v4872, 2
        %vm4874 = vcmp.gt.s32.totalorder 0, %v4873
        %v4875 = vsel %vm4874, 0, %v4873
        %v4876 = vsub.s32 32, %v4875
        %v4877 = vshll.u32 %v4868, %v4875
        %v4878 = vshrl.u32 %v4860, %v4876
        %v4879 = vor.u32 %v4877, %v4878
        %v4880 = vsub.s32 4294967266, %v4875
        %v4881 = vadd.s32 %v4880, 127
        %v4882 = vshll.u32 %v4881, 23
        %v4883 = vor.u32 4788187, %v4882
        %v4884 = vand.u32 2147483647, %v4883
        %v4886 = vcvt.s32.f32 %v4879
        %v4887 = vmul.f32 %v4886, %v4884
        %v4888 = vxor.u32 %v4887, 2147483648
        %v4889 = vsel %vm4768, %v4888, %v4887
        %v4890 = vsub.s32 4, %v4866
        %v4891 = vsel %vm4768, %v4890, %v4866
        %v4892 = vsel %vm4767, %v362, %v4889
        %v4893 = vsel %vm4767, 0, %v4891
        %v4894 = vmul.f32 %v4892, %v4892
        %v4895 = vmul.f32 %v4894, -0.001358992
        %v4896 = vadd.f32 %v4895, 0.041655596
        %v4897 = vmul.f32 %v4894, %v4896
        %v4898 = vadd.f32 %v4897, -0.4999988
        %v4899 = vmul.f32 %v4894, %v4898
        %v4900 = vadd.f32 1.0, %v4899
        %v4901 = vmul.f32 %v4892, %v4892
        %v4902 = vmul.f32 %v4901, -0.00019511016
        %v4903 = vadd.f32 %v4902, 0.008332121
        %v4904 = vmul.f32 %v4901, %v4903
        %v4905 = vadd.f32 %v4904, -0.16666654
        %v4906 = vmul.f32 %v4901, %v4905
        %v4907 = vadd.f32 %v4906, 1.0
        %v4908 = vmul.f32 %v4907, %v4892
        %vm4909 = vweird.f32 %v362
        %v4910 = vadd.s32 %v4893, 3
        %v4911 = vand.u32 %v4910, 3
        %vm4912 = vcmp.lt.s32.totalorder %v4911, 2
        %vm4913 = vcmp.eq.s32.totalorder %v4911, 0
        %v4914 = vxor.u32 %v4908, 2147483648
        %v4915 = vsel %vm4913, %v4900, %v4914
        %vm4916 = vcmp.eq.s32.totalorder %v4911, 2
        %v4917 = vxor.u32 %v4900, 2147483648
        %v4918 = vsel %vm4916, %v4917, %v4908
        %v4919 = vsel %vm4912, %v4915, %v4918
        %v4920 = vsel %vm4909, nan, %v4919
        %v4921 = vand.u32 2147483647, %v363
        %vm4922 = vcmp.le.f32.partialorder %v4921, 0.7853982
        %vm4923 = vcmp.lt.s32.totalorder %v363, 0
        %v4924 = vand.u32 %v363, 2139095040
        %v4925 = vshrl.u32 %v4924, 23
        %v4926 = vsub.s32 %v4925, 127
        %v4927 = vand.u32 2147483647, %v363
        %v4928 = vand.u32 %v4927, 8388607
        %v4929 = vor.u32 %v4928, 8388608
        %v4930 = vsub.s32 0, %v4929
        %v4931 = vadd.s32 %v4926, 1
        %vm4932 = vcmp.gt.s32.totalorder %v4931, 0
        %v4933 = vsel %vm4932, %v4931, 0
        %v4934 = vshrl.u32 %v4933, 5
        %v4935 = vand.u32 %v4933, 31
        %v4936 = vsub.s32 32, %v4935
        %v4937 = vshrl.u32 683565275, %v4936
        %v4938 = vshll.u32 683565275, %v4935
        %v4939 = vshrl.u32 2475754826, %v4936
        %v4940 = vor.u32 %v4938, %v4939
        %v4941 = vshll.u32 2475754826, %v4935
        %v4942 = vshrl.u32 2131351028, %v4936
        %v4943 = vor.u32 %v4941, %v4942
        %v4944 = vshll.u32 2131351028, %v4935
        %v4945 = vshrl.u32 2102212464, %v4936
        %v4946 = vor.u32 %v4944, %v4945
        %v4947 = vshll.u32 2102212464, %v4935
        %v4948 = vshrl.u32 920167782, %v4936
        %v4949 = vor.u32 %v4947, %v4948
        %v4950 = vshll.u32 920167782, %v4935
        %v4951 = vshrl.u32 1326507024, %v4936
        %v4952 = vor.u32 %v4950, %v4951
        %vm4953 = vcmp.lt.s32.totalorder %v4934, 1
        %vm4954 = vcmp.lt.s32.totalorder %v4934, 2
        %vm4955 = vcmp.lt.s32.totalorder %v4934, 3
        %vm4956 = vcmp.lt.s32.totalorder %v4934, 4
        %v4957 = vsel %vm4953, %v4937, %v4940
        %v4958 = vsel %vm4956, %v4946, 2102212464
        %v4959 = vsel %vm4955, %v4943, %v4958
        %v4960 = vsel %vm4954, %v4957, %v4959
        %v4961 = vsel %vm4953, %v4940, %v4943
        %v4962 = vsel %vm4956, %v4949, 920167782
        %v4963 = vsel %vm4955, %v4946, %v4962
        %v4964 = vsel %vm4954, %v4961, %v4963
        %v4965 = vsel %vm4953, %v4943, %v4946
        %v4966 = vsel %vm4956, %v4952, 1326507024
        %v4967 = vsel %vm4955, %v4949, %v4966
        %v4968 = vsel %vm4954, %v4965, %v4967
        %v4969 = vshll.u32 %v4929, 8
        %v4970 = vand.u32 %v4969, 65535
        %v4971 = vshrl.u32 %v4969, 16
        %v4972 = vand.u32 %v4968, 65535
        %v4973 = vshrl.u32 %v4968, 16
        %v4974 = vmul.u32 %v4970, %v4972
        %v4975 = vmul.u32 %v4970, %v4973
        %v4976 = vmul.u32 %v4971, %v4972
        %v4977 = vmul.u32 %v4971, %v4973
        %v4978 = vshll.u32 %v4975, 16
        %v4979 = vshrl.u32 %v4975, 16
        %v4980 = vshll.u32 %v4976, 16
        %v4981 = vshrl.u32 %v4976, 16
        %vm4982 = vc.u32 %v4974, %v4978
        %v4983 = vsel %vm4982, 1, 0
        %v4984 = vadd.s32 %v4974, %v4978
        %v4985 = vadd.s32 %v4977, %v4983
        %vm4986 = vc.u32 %v4984, %v4980
        %v4987 = vsel %vm4986, 1, 0
        %v4988 = vadd.s32 %v4984, %v4980
        %v4989 = vadd.s32 %v4985, %v4987
        %v4990 = vadd.s32 %v4989, %v4979
        %v4991 = vadd.s32 %v4990, %v4981
        %v4992 = vand.u32 %v4969, 65535
        %v4993 = vshrl.u32 %v4969, 16
        %v4994 = vand.u32 %v4964, 65535
        %v4995 = vshrl.u32 %v4964, 16
        %v4996 = vmul.u32 %v4992, %v4994
        %v4997 = vmul.u32 %v4992, %v4995
        %v4998 = vmul.u32 %v4993, %v4994
        %v4999 = vmul.u32 %v4993, %v4995
        %v5000 = vshll.u32 %v4997, 16
        %v5001 = vshrl.u32 %v4997, 16
        %v5002 = vshll.u32 %v4998, 16
        %v5003 = vshrl.u32 %v4998, 16
        %vm5004 = vc.u32 %v4996, %v5000
        %v5005 = vsel %vm5004, 1, 0
        %v5006 = vadd.s32 %v4996, %v5000
        %v5007 = vadd.s32 %v4999, %v5005
        %vm5008 = vc.u32 %v5006, %v5002
        %v5009 = vsel %vm5008, 1, 0
        %v5010 = vadd.s32 %v5006, %v5002
        %v5011 = vadd.s32 %v5007, %v5009
        %v5012 = vadd.s32 %v5011, %v5001
        %v5013 = vadd.s32 %v5012, %v5003
        %v5014 = vmul.u32 %v4969, %v4960
        %v5015 = vadd.s32 %v4991, %v5010
        %vm5016 = vc.u32 %v4991, %v5010
        %v5017 = vadd.s32 %v5013, 1
        %v5018 = vsel %vm5016, %v5017, %v5013
        %v5019 = vadd.s32 %v5014, %v5018
        %v5020 = vadd.s32 %v5019, 536870912
        %v5021 = vshrl.u32 %v5020, 30
        %v5022 = vshll.u32 %v5021, 30
        %v5023 = vsub.s32 %v5019, %v5022
        %vm5024 = vcmp.lt.s32.totalorder %v5023, 0
        %v5025 = vsub.s32 0, %v5023
        %v5026 = vsel %vm5024, %v5025, %v5023
        %v5027 = vclz %v5026
        %v5028 = vsub.s32 %v5027, 2
        %vm5029 = vcmp.gt.s32.totalorder 0, %v5028
        %v5030 = vsel %vm5029, 0, %v5028
        %v5031 = vsub.s32 32, %v5030
        %v5032 = vshll.u32 %v5023, %v5030
        %v5033 = vshrl.u32 %v5015, %v5031
        %v5034 = vor.u32 %v5032, %v5033
        %v5035 = vsub.s32 4294967266, %v5030
        %v5036 = vadd.s32 %v5035, 127
        %v5037 = vshll.u32 %v5036, 23
        %v5038 = vor.u32 4788187, %v5037
        %v5039 = vand.u32 2147483647, %v5038
        %v5041 = vcvt.s32.f32 %v5034
        %v5042 = vmul.f32 %v5041, %v5039
        %v5043 = vxor.u32 %v5042, 2147483648
        %v5044 = vsel %vm4923, %v5043, %v5042
        %v5045 = vsub.s32 4, %v5021
        %v5046 = vsel %vm4923, %v5045, %v5021
        %v5047 = vsel %vm4922, %v363, %v5044
        %v5048 = vsel %vm4922, 0, %v5046
        %v5049 = vmul.f32 %v5047, %v5047
        %v5050 = vmul.f32 %v5049, -0.001358992
        %v5051 = vadd.f32 %v5050, 0.041655596
        %v5052 = vmul.f32 %v5049, %v5051
        %v5053 = vadd.f32 %v5052, -0.4999988
        %v5054 = vmul.f32 %v5049, %v5053
        %v5055 = vadd.f32 1.0, %v5054
        %v5056 = vmul.f32 %v5047, %v5047
        %v5057 = vmul.f32 %v5056, -0.00019511016
        %v5058 = vadd.f32 %v5057, 0.008332121
        %v5059 = vmul.f32 %v5056, %v5058
        %v5060 = vadd.f32 %v5059, -0.16666654
        %v5061 = vmul.f32 %v5056, %v5060
        %v5062 = vadd.f32 %v5061, 1.0
        %v5063 = vmul.f32 %v5062, %v5047
        %vm5064 = vweird.f32 %v363
        %v5065 = vadd.s32 %v5048, 3
        %v5066 = vand.u32 %v5065, 3
        %vm5067 = vcmp.lt.s32.totalorder %v5066, 2
        %vm5068 = vcmp.eq.s32.totalorder %v5066, 0
        %v5069 = vxor.u32 %v5063, 2147483648
        %v5070 = vsel %vm5068, %v5055, %v5069
        %vm5071 = vcmp.eq.s32.totalorder %v5066, 2
        %v5072 = vxor.u32 %v5055, 2147483648
        %v5073 = vsel %vm5071, %v5072, %v5063
        %v5074 = vsel %vm5067, %v5070, %v5073
        %v5075 = vsel %vm5064, nan, %v5074
        %v5076 = vand.u32 2147483647, %v364
        %vm5077 = vcmp.le.f32.partialorder %v5076, 0.7853982
        %vm5078 = vcmp.lt.s32.totalorder %v364, 0
        %v5079 = vand.u32 %v364, 2139095040
        %v5080 = vshrl.u32 %v5079, 23
        %v5081 = vsub.s32 %v5080, 127
        %v5082 = vand.u32 2147483647, %v364
        %v5083 = vand.u32 %v5082, 8388607
        %v5084 = vor.u32 %v5083, 8388608
        %v5085 = vsub.s32 0, %v5084
        %v5086 = vadd.s32 %v5081, 1
        %vm5087 = vcmp.gt.s32.totalorder %v5086, 0
        %v5088 = vsel %vm5087, %v5086, 0
        %v5089 = vshrl.u32 %v5088, 5
        %v5090 = vand.u32 %v5088, 31
        %v5091 = vsub.s32 32, %v5090
        %v5092 = vshrl.u32 683565275, %v5091
        %v5093 = vshll.u32 683565275, %v5090
        %v5094 = vshrl.u32 2475754826, %v5091
        %v5095 = vor.u32 %v5093, %v5094
        %v5096 = vshll.u32 2475754826, %v5090
        %v5097 = vshrl.u32 2131351028, %v5091
        %v5098 = vor.u32 %v5096, %v5097
        %v5099 = vshll.u32 2131351028, %v5090
        %v5100 = vshrl.u32 2102212464, %v5091
        %v5101 = vor.u32 %v5099, %v5100
        %v5102 = vshll.u32 2102212464, %v5090
        %v5103 = vshrl.u32 920167782, %v5091
        %v5104 = vor.u32 %v5102, %v5103
        %v5105 = vshll.u32 920167782, %v5090
        %v5106 = vshrl.u32 1326507024, %v5091
        %v5107 = vor.u32 %v5105, %v5106
        %vm5108 = vcmp.lt.s32.totalorder %v5089, 1
        %vm5109 = vcmp.lt.s32.totalorder %v5089, 2
        %vm5110 = vcmp.lt.s32.totalorder %v5089, 3
        %vm5111 = vcmp.lt.s32.totalorder %v5089, 4
        %v5112 = vsel %vm5108, %v5092, %v5095
        %v5113 = vsel %vm5111, %v5101, 2102212464
        %v5114 = vsel %vm5110, %v5098, %v5113
        %v5115 = vsel %vm5109, %v5112, %v5114
        %v5116 = vsel %vm5108, %v5095, %v5098
        %v5117 = vsel %vm5111, %v5104, 920167782
        %v5118 = vsel %vm5110, %v5101, %v5117
        %v5119 = vsel %vm5109, %v5116, %v5118
        %v5120 = vsel %vm5108, %v5098, %v5101
        %v5121 = vsel %vm5111, %v5107, 1326507024
        %v5122 = vsel %vm5110, %v5104, %v5121
        %v5123 = vsel %vm5109, %v5120, %v5122
        %v5124 = vshll.u32 %v5084, 8
        %v5125 = vand.u32 %v5124, 65535
        %v5126 = vshrl.u32 %v5124, 16
        %v5127 = vand.u32 %v5123, 65535
        %v5128 = vshrl.u32 %v5123, 16
        %v5129 = vmul.u32 %v5125, %v5127
        %v5130 = vmul.u32 %v5125, %v5128
        %v5131 = vmul.u32 %v5126, %v5127
        %v5132 = vmul.u32 %v5126, %v5128
        %v5133 = vshll.u32 %v5130, 16
        %v5134 = vshrl.u32 %v5130, 16
        %v5135 = vshll.u32 %v5131, 16
        %v5136 = vshrl.u32 %v5131, 16
        %vm5137 = vc.u32 %v5129, %v5133
        %v5138 = vsel %vm5137, 1, 0
        %v5139 = vadd.s32 %v5129, %v5133
        %v5140 = vadd.s32 %v5132, %v5138
        %vm5141 = vc.u32 %v5139, %v5135
        %v5142 = vsel %vm5141, 1, 0
        %v5143 = vadd.s32 %v5139, %v5135
        %v5144 = vadd.s32 %v5140, %v5142
        %v5145 = vadd.s32 %v5144, %v5134
        %v5146 = vadd.s32 %v5145, %v5136
        %v5147 = vand.u32 %v5124, 65535
        %v5148 = vshrl.u32 %v5124, 16
        %v5149 = vand.u32 %v5119, 65535
        %v5150 = vshrl.u32 %v5119, 16
        %v5151 = vmul.u32 %v5147, %v5149
        %v5152 = vmul.u32 %v5147, %v5150
        %v5153 = vmul.u32 %v5148, %v5149
        %v5154 = vmul.u32 %v5148, %v5150
        %v5155 = vshll.u32 %v5152, 16
        %v5156 = vshrl.u32 %v5152, 16
        %v5157 = vshll.u32 %v5153, 16
        %v5158 = vshrl.u32 %v5153, 16
        %vm5159 = vc.u32 %v5151, %v5155
        %v5160 = vsel %vm5159, 1, 0
        %v5161 = vadd.s32 %v5151, %v5155
        %v5162 = vadd.s32 %v5154, %v5160
        %vm5163 = vc.u32 %v5161, %v5157
        %v5164 = vsel %vm5163, 1, 0
        %v5165 = vadd.s32 %v5161, %v5157
        %v5166 = vadd.s32 %v5162, %v5164
        %v5167 = vadd.s32 %v5166, %v5156
        %v5168 = vadd.s32 %v5167, %v5158
        %v5169 = vmul.u32 %v5124, %v5115
        %v5170 = vadd.s32 %v5146, %v5165
        %vm5171 = vc.u32 %v5146, %v5165
        %v5172 = vadd.s32 %v5168, 1
        %v5173 = vsel %vm5171, %v5172, %v5168
        %v5174 = vadd.s32 %v5169, %v5173
        %v5175 = vadd.s32 %v5174, 536870912
        %v5176 = vshrl.u32 %v5175, 30
        %v5177 = vshll.u32 %v5176, 30
        %v5178 = vsub.s32 %v5174, %v5177
        %vm5179 = vcmp.lt.s32.totalorder %v5178, 0
        %v5180 = vsub.s32 0, %v5178
        %v5181 = vsel %vm5179, %v5180, %v5178
        %v5182 = vclz %v5181
        %v5183 = vsub.s32 %v5182, 2
        %vm5184 = vcmp.gt.s32.totalorder 0, %v5183
        %v5185 = vsel %vm5184, 0, %v5183
        %v5186 = vsub.s32 32, %v5185
        %v5187 = vshll.u32 %v5178, %v5185
        %v5188 = vshrl.u32 %v5170, %v5186
        %v5189 = vor.u32 %v5187, %v5188
        %v5190 = vsub.s32 4294967266, %v5185
        %v5191 = vadd.s32 %v5190, 127
        %v5192 = vshll.u32 %v5191, 23
        %v5193 = vor.u32 4788187, %v5192
        %v5194 = vand.u32 2147483647, %v5193
        %v5196 = vcvt.s32.f32 %v5189
        %v5197 = vmul.f32 %v5196, %v5194
        %v5198 = vxor.u32 %v5197, 2147483648
        %v5199 = vsel %vm5078, %v5198, %v5197
        %v5200 = vsub.s32 4, %v5176
        %v5201 = vsel %vm5078, %v5200, %v5176
        %v5202 = vsel %vm5077, %v364, %v5199
        %v5203 = vsel %vm5077, 0, %v5201
        %v5204 = vmul.f32 %v5202, %v5202
        %v5205 = vmul.f32 %v5204, -0.001358992
        %v5206 = vadd.f32 %v5205, 0.041655596
        %v5207 = vmul.f32 %v5204, %v5206
        %v5208 = vadd.f32 %v5207, -0.4999988
        %v5209 = vmul.f32 %v5204, %v5208
        %v5210 = vadd.f32 1.0, %v5209
        %v5211 = vmul.f32 %v5202, %v5202
        %v5212 = vmul.f32 %v5211, -0.00019511016
        %v5213 = vadd.f32 %v5212, 0.008332121
        %v5214 = vmul.f32 %v5211, %v5213
        %v5215 = vadd.f32 %v5214, -0.16666654
        %v5216 = vmul.f32 %v5211, %v5215
        %v5217 = vadd.f32 %v5216, 1.0
        %v5218 = vmul.f32 %v5217, %v5202
        %vm5219 = vweird.f32 %v364
        %v5220 = vadd.s32 %v5203, 3
        %v5221 = vand.u32 %v5220, 3
        %vm5222 = vcmp.lt.s32.totalorder %v5221, 2
        %vm5223 = vcmp.eq.s32.totalorder %v5221, 0
        %v5224 = vxor.u32 %v5218, 2147483648
        %v5225 = vsel %vm5223, %v5210, %v5224
        %vm5226 = vcmp.eq.s32.totalorder %v5221, 2
        %v5227 = vxor.u32 %v5210, 2147483648
        %v5228 = vsel %vm5226, %v5227, %v5218
        %v5229 = vsel %vm5222, %v5225, %v5228
        %v5230 = vsel %vm5219, nan, %v5229
        %v5231 = vand.u32 2147483647, %v365
        %vm5232 = vcmp.le.f32.partialorder %v5231, 0.7853982
        %vm5233 = vcmp.lt.s32.totalorder %v365, 0
        %v5234 = vand.u32 %v365, 2139095040
        %v5235 = vshrl.u32 %v5234, 23
        %v5236 = vsub.s32 %v5235, 127
        %v5237 = vand.u32 2147483647, %v365
        %v5238 = vand.u32 %v5237, 8388607
        %v5239 = vor.u32 %v5238, 8388608
        %v5240 = vsub.s32 0, %v5239
        %v5241 = vadd.s32 %v5236, 1
        %vm5242 = vcmp.gt.s32.totalorder %v5241, 0
        %v5243 = vsel %vm5242, %v5241, 0
        %v5244 = vshrl.u32 %v5243, 5
        %v5245 = vand.u32 %v5243, 31
        %v5246 = vsub.s32 32, %v5245
        %v5247 = vshrl.u32 683565275, %v5246
        %v5248 = vshll.u32 683565275, %v5245
        %v5249 = vshrl.u32 2475754826, %v5246
        %v5250 = vor.u32 %v5248, %v5249
        %v5251 = vshll.u32 2475754826, %v5245
        %v5252 = vshrl.u32 2131351028, %v5246
        %v5253 = vor.u32 %v5251, %v5252
        %v5254 = vshll.u32 2131351028, %v5245
        %v5255 = vshrl.u32 2102212464, %v5246
        %v5256 = vor.u32 %v5254, %v5255
        %v5257 = vshll.u32 2102212464, %v5245
        %v5258 = vshrl.u32 920167782, %v5246
        %v5259 = vor.u32 %v5257, %v5258
        %v5260 = vshll.u32 920167782, %v5245
        %v5261 = vshrl.u32 1326507024, %v5246
        %v5262 = vor.u32 %v5260, %v5261
        %vm5263 = vcmp.lt.s32.totalorder %v5244, 1
        %vm5264 = vcmp.lt.s32.totalorder %v5244, 2
        %vm5265 = vcmp.lt.s32.totalorder %v5244, 3
        %vm5266 = vcmp.lt.s32.totalorder %v5244, 4
        %v5267 = vsel %vm5263, %v5247, %v5250
        %v5268 = vsel %vm5266, %v5256, 2102212464
        %v5269 = vsel %vm5265, %v5253, %v5268
        %v5270 = vsel %vm5264, %v5267, %v5269
        %v5271 = vsel %vm5263, %v5250, %v5253
        %v5272 = vsel %vm5266, %v5259, 920167782
        %v5273 = vsel %vm5265, %v5256, %v5272
        %v5274 = vsel %vm5264, %v5271, %v5273
        %v5275 = vsel %vm5263, %v5253, %v5256
        %v5276 = vsel %vm5266, %v5262, 1326507024
        %v5277 = vsel %vm5265, %v5259, %v5276
        %v5278 = vsel %vm5264, %v5275, %v5277
        %v5279 = vshll.u32 %v5239, 8
        %v5280 = vand.u32 %v5279, 65535
        %v5281 = vshrl.u32 %v5279, 16
        %v5282 = vand.u32 %v5278, 65535
        %v5283 = vshrl.u32 %v5278, 16
        %v5284 = vmul.u32 %v5280, %v5282
        %v5285 = vmul.u32 %v5280, %v5283
        %v5286 = vmul.u32 %v5281, %v5282
        %v5287 = vmul.u32 %v5281, %v5283
        %v5288 = vshll.u32 %v5285, 16
        %v5289 = vshrl.u32 %v5285, 16
        %v5290 = vshll.u32 %v5286, 16
        %v5291 = vshrl.u32 %v5286, 16
        %vm5292 = vc.u32 %v5284, %v5288
        %v5293 = vsel %vm5292, 1, 0
        %v5294 = vadd.s32 %v5284, %v5288
        %v5295 = vadd.s32 %v5287, %v5293
        %vm5296 = vc.u32 %v5294, %v5290
        %v5297 = vsel %vm5296, 1, 0
        %v5298 = vadd.s32 %v5294, %v5290
        %v5299 = vadd.s32 %v5295, %v5297
        %v5300 = vadd.s32 %v5299, %v5289
        %v5301 = vadd.s32 %v5300, %v5291
        %v5302 = vand.u32 %v5279, 65535
        %v5303 = vshrl.u32 %v5279, 16
        %v5304 = vand.u32 %v5274, 65535
        %v5305 = vshrl.u32 %v5274, 16
        %v5306 = vmul.u32 %v5302, %v5304
        %v5307 = vmul.u32 %v5302, %v5305
        %v5308 = vmul.u32 %v5303, %v5304
        %v5309 = vmul.u32 %v5303, %v5305
        %v5310 = vshll.u32 %v5307, 16
        %v5311 = vshrl.u32 %v5307, 16
        %v5312 = vshll.u32 %v5308, 16
        %v5313 = vshrl.u32 %v5308, 16
        %vm5314 = vc.u32 %v5306, %v5310
        %v5315 = vsel %vm5314, 1, 0
        %v5316 = vadd.s32 %v5306, %v5310
        %v5317 = vadd.s32 %v5309, %v5315
        %vm5318 = vc.u32 %v5316, %v5312
        %v5319 = vsel %vm5318, 1, 0
        %v5320 = vadd.s32 %v5316, %v5312
        %v5321 = vadd.s32 %v5317, %v5319
        %v5322 = vadd.s32 %v5321, %v5311
        %v5323 = vadd.s32 %v5322, %v5313
        %v5324 = vmul.u32 %v5279, %v5270
        %v5325 = vadd.s32 %v5301, %v5320
        %vm5326 = vc.u32 %v5301, %v5320
        %v5327 = vadd.s32 %v5323, 1
        %v5328 = vsel %vm5326, %v5327, %v5323
        %v5329 = vadd.s32 %v5324, %v5328
        %v5330 = vadd.s32 %v5329, 536870912
        %v5331 = vshrl.u32 %v5330, 30
        %v5332 = vshll.u32 %v5331, 30
        %v5333 = vsub.s32 %v5329, %v5332
        %vm5334 = vcmp.lt.s32.totalorder %v5333, 0
        %v5335 = vsub.s32 0, %v5333
        %v5336 = vsel %vm5334, %v5335, %v5333
        %v5337 = vclz %v5336
        %v5338 = vsub.s32 %v5337, 2
        %vm5339 = vcmp.gt.s32.totalorder 0, %v5338
        %v5340 = vsel %vm5339, 0, %v5338
        %v5341 = vsub.s32 32, %v5340
        %v5342 = vshll.u32 %v5333, %v5340
        %v5343 = vshrl.u32 %v5325, %v5341
        %v5344 = vor.u32 %v5342, %v5343
        %v5345 = vsub.s32 4294967266, %v5340
        %v5346 = vadd.s32 %v5345, 127
        %v5347 = vshll.u32 %v5346, 23
        %v5348 = vor.u32 4788187, %v5347
        %v5349 = vand.u32 2147483647, %v5348
        %v5351 = vcvt.s32.f32 %v5344
        %v5352 = vmul.f32 %v5351, %v5349
        %v5353 = vxor.u32 %v5352, 2147483648
        %v5354 = vsel %vm5233, %v5353, %v5352
        %v5355 = vsub.s32 4, %v5331
        %v5356 = vsel %vm5233, %v5355, %v5331
        %v5357 = vsel %vm5232, %v365, %v5354
        %v5358 = vsel %vm5232, 0, %v5356
        %v5359 = vmul.f32 %v5357, %v5357
        %v5360 = vmul.f32 %v5359, -0.001358992
        %v5361 = vadd.f32 %v5360, 0.041655596
        %v5362 = vmul.f32 %v5359, %v5361
        %v5363 = vadd.f32 %v5362, -0.4999988
        %v5364 = vmul.f32 %v5359, %v5363
        %v5365 = vadd.f32 1.0, %v5364
        %v5366 = vmul.f32 %v5357, %v5357
        %v5367 = vmul.f32 %v5366, -0.00019511016
        %v5368 = vadd.f32 %v5367, 0.008332121
        %v5369 = vmul.f32 %v5366, %v5368
        %v5370 = vadd.f32 %v5369, -0.16666654
        %v5371 = vmul.f32 %v5366, %v5370
        %v5372 = vadd.f32 %v5371, 1.0
        %v5373 = vmul.f32 %v5372, %v5357
        %vm5374 = vweird.f32 %v365
        %v5375 = vadd.s32 %v5358, 3
        %v5376 = vand.u32 %v5375, 3
        %vm5377 = vcmp.lt.s32.totalorder %v5376, 2
        %vm5378 = vcmp.eq.s32.totalorder %v5376, 0
        %v5379 = vxor.u32 %v5373, 2147483648
        %v5380 = vsel %vm5378, %v5365, %v5379
        %vm5381 = vcmp.eq.s32.totalorder %v5376, 2
        %v5382 = vxor.u32 %v5365, 2147483648
        %v5383 = vsel %vm5381, %v5382, %v5373
        %v5384 = vsel %vm5377, %v5380, %v5383
        %v5385 = vsel %vm5374, nan, %v5384
        %v5386 = vand.u32 2147483647, %v366
        %vm5387 = vcmp.le.f32.partialorder %v5386, 0.7853982
        %vm5388 = vcmp.lt.s32.totalorder %v366, 0
        %v5389 = vand.u32 %v366, 2139095040
        %v5390 = vshrl.u32 %v5389, 23
        %v5391 = vsub.s32 %v5390, 127
        %v5392 = vand.u32 2147483647, %v366
        %v5393 = vand.u32 %v5392, 8388607
        %v5394 = vor.u32 %v5393, 8388608
        %v5395 = vsub.s32 0, %v5394
        %v5396 = vadd.s32 %v5391, 1
        %vm5397 = vcmp.gt.s32.totalorder %v5396, 0
        %v5398 = vsel %vm5397, %v5396, 0
        %v5399 = vshrl.u32 %v5398, 5
        %v5400 = vand.u32 %v5398, 31
        %v5401 = vsub.s32 32, %v5400
        %v5402 = vshrl.u32 683565275, %v5401
        %v5403 = vshll.u32 683565275, %v5400
        %v5404 = vshrl.u32 2475754826, %v5401
        %v5405 = vor.u32 %v5403, %v5404
        %v5406 = vshll.u32 2475754826, %v5400
        %v5407 = vshrl.u32 2131351028, %v5401
        %v5408 = vor.u32 %v5406, %v5407
        %v5409 = vshll.u32 2131351028, %v5400
        %v5410 = vshrl.u32 2102212464, %v5401
        %v5411 = vor.u32 %v5409, %v5410
        %v5412 = vshll.u32 2102212464, %v5400
        %v5413 = vshrl.u32 920167782, %v5401
        %v5414 = vor.u32 %v5412, %v5413
        %v5415 = vshll.u32 920167782, %v5400
        %v5416 = vshrl.u32 1326507024, %v5401
        %v5417 = vor.u32 %v5415, %v5416
        %vm5418 = vcmp.lt.s32.totalorder %v5399, 1
        %vm5419 = vcmp.lt.s32.totalorder %v5399, 2
        %vm5420 = vcmp.lt.s32.totalorder %v5399, 3
        %vm5421 = vcmp.lt.s32.totalorder %v5399, 4
        %v5422 = vsel %vm5418, %v5402, %v5405
        %v5423 = vsel %vm5421, %v5411, 2102212464
        %v5424 = vsel %vm5420, %v5408, %v5423
        %v5425 = vsel %vm5419, %v5422, %v5424
        %v5426 = vsel %vm5418, %v5405, %v5408
        %v5427 = vsel %vm5421, %v5414, 920167782
        %v5428 = vsel %vm5420, %v5411, %v5427
        %v5429 = vsel %vm5419, %v5426, %v5428
        %v5430 = vsel %vm5418, %v5408, %v5411
        %v5431 = vsel %vm5421, %v5417, 1326507024
        %v5432 = vsel %vm5420, %v5414, %v5431
        %v5433 = vsel %vm5419, %v5430, %v5432
        %v5434 = vshll.u32 %v5394, 8
        %v5435 = vand.u32 %v5434, 65535
        %v5436 = vshrl.u32 %v5434, 16
        %v5437 = vand.u32 %v5433, 65535
        %v5438 = vshrl.u32 %v5433, 16
        %v5439 = vmul.u32 %v5435, %v5437
        %v5440 = vmul.u32 %v5435, %v5438
        %v5441 = vmul.u32 %v5436, %v5437
        %v5442 = vmul.u32 %v5436, %v5438
        %v5443 = vshll.u32 %v5440, 16
        %v5444 = vshrl.u32 %v5440, 16
        %v5445 = vshll.u32 %v5441, 16
        %v5446 = vshrl.u32 %v5441, 16
        %vm5447 = vc.u32 %v5439, %v5443
        %v5448 = vsel %vm5447, 1, 0
        %v5449 = vadd.s32 %v5439, %v5443
        %v5450 = vadd.s32 %v5442, %v5448
        %vm5451 = vc.u32 %v5449, %v5445
        %v5452 = vsel %vm5451, 1, 0
        %v5453 = vadd.s32 %v5449, %v5445
        %v5454 = vadd.s32 %v5450, %v5452
        %v5455 = vadd.s32 %v5454, %v5444
        %v5456 = vadd.s32 %v5455, %v5446
        %v5457 = vand.u32 %v5434, 65535
        %v5458 = vshrl.u32 %v5434, 16
        %v5459 = vand.u32 %v5429, 65535
        %v5460 = vshrl.u32 %v5429, 16
        %v5461 = vmul.u32 %v5457, %v5459
        %v5462 = vmul.u32 %v5457, %v5460
        %v5463 = vmul.u32 %v5458, %v5459
        %v5464 = vmul.u32 %v5458, %v5460
        %v5465 = vshll.u32 %v5462, 16
        %v5466 = vshrl.u32 %v5462, 16
        %v5467 = vshll.u32 %v5463, 16
        %v5468 = vshrl.u32 %v5463, 16
        %vm5469 = vc.u32 %v5461, %v5465
        %v5470 = vsel %vm5469, 1, 0
        %v5471 = vadd.s32 %v5461, %v5465
        %v5472 = vadd.s32 %v5464, %v5470
        %vm5473 = vc.u32 %v5471, %v5467
        %v5474 = vsel %vm5473, 1, 0
        %v5475 = vadd.s32 %v5471, %v5467
        %v5476 = vadd.s32 %v5472, %v5474
        %v5477 = vadd.s32 %v5476, %v5466
        %v5478 = vadd.s32 %v5477, %v5468
        %v5479 = vmul.u32 %v5434, %v5425
        %v5480 = vadd.s32 %v5456, %v5475
        %vm5481 = vc.u32 %v5456, %v5475
        %v5482 = vadd.s32 %v5478, 1
        %v5483 = vsel %vm5481, %v5482, %v5478
        %v5484 = vadd.s32 %v5479, %v5483
        %v5485 = vadd.s32 %v5484, 536870912
        %v5486 = vshrl.u32 %v5485, 30
        %v5487 = vshll.u32 %v5486, 30
        %v5488 = vsub.s32 %v5484, %v5487
        %vm5489 = vcmp.lt.s32.totalorder %v5488, 0
        %v5490 = vsub.s32 0, %v5488
        %v5491 = vsel %vm5489, %v5490, %v5488
        %v5492 = vclz %v5491
        %v5493 = vsub.s32 %v5492, 2
        %vm5494 = vcmp.gt.s32.totalorder 0, %v5493
        %v5495 = vsel %vm5494, 0, %v5493
        %v5496 = vsub.s32 32, %v5495
        %v5497 = vshll.u32 %v5488, %v5495
        %v5498 = vshrl.u32 %v5480, %v5496
        %v5499 = vor.u32 %v5497, %v5498
        %v5500 = vsub.s32 4294967266, %v5495
        %v5501 = vadd.s32 %v5500, 127
        %v5502 = vshll.u32 %v5501, 23
        %v5503 = vor.u32 4788187, %v5502
        %v5504 = vand.u32 2147483647, %v5503
        %v5506 = vcvt.s32.f32 %v5499
        %v5507 = vmul.f32 %v5506, %v5504
        %v5508 = vxor.u32 %v5507, 2147483648
        %v5509 = vsel %vm5388, %v5508, %v5507
        %v5510 = vsub.s32 4, %v5486
        %v5511 = vsel %vm5388, %v5510, %v5486
        %v5512 = vsel %vm5387, %v366, %v5509
        %v5513 = vsel %vm5387, 0, %v5511
        %v5514 = vmul.f32 %v5512, %v5512
        %v5515 = vmul.f32 %v5514, -0.001358992
        %v5516 = vadd.f32 %v5515, 0.041655596
        %v5517 = vmul.f32 %v5514, %v5516
        %v5518 = vadd.f32 %v5517, -0.4999988
        %v5519 = vmul.f32 %v5514, %v5518
        %v5520 = vadd.f32 1.0, %v5519
        %v5521 = vmul.f32 %v5512, %v5512
        %v5522 = vmul.f32 %v5521, -0.00019511016
        %v5523 = vadd.f32 %v5522, 0.008332121
        %v5524 = vmul.f32 %v5521, %v5523
        %v5525 = vadd.f32 %v5524, -0.16666654
        %v5526 = vmul.f32 %v5521, %v5525
        %v5527 = vadd.f32 %v5526, 1.0
        %v5528 = vmul.f32 %v5527, %v5512
        %vm5529 = vweird.f32 %v366
        %v5530 = vadd.s32 %v5513, 3
        %v5531 = vand.u32 %v5530, 3
        %vm5532 = vcmp.lt.s32.totalorder %v5531, 2
        %vm5533 = vcmp.eq.s32.totalorder %v5531, 0
        %v5534 = vxor.u32 %v5528, 2147483648
        %v5535 = vsel %vm5533, %v5520, %v5534
        %vm5536 = vcmp.eq.s32.totalorder %v5531, 2
        %v5537 = vxor.u32 %v5520, 2147483648
        %v5538 = vsel %vm5536, %v5537, %v5528
        %v5539 = vsel %vm5532, %v5535, %v5538
        %v5540 = vsel %vm5529, nan, %v5539
        %v5541 = vand.u32 2147483647, %v367
        %vm5542 = vcmp.le.f32.partialorder %v5541, 0.7853982
        %vm5543 = vcmp.lt.s32.totalorder %v367, 0
        %v5544 = vand.u32 %v367, 2139095040
        %v5545 = vshrl.u32 %v5544, 23
        %v5546 = vsub.s32 %v5545, 127
        %v5547 = vand.u32 2147483647, %v367
        %v5548 = vand.u32 %v5547, 8388607
        %v5549 = vor.u32 %v5548, 8388608
        %v5550 = vsub.s32 0, %v5549
        %v5551 = vadd.s32 %v5546, 1
        %vm5552 = vcmp.gt.s32.totalorder %v5551, 0
        %v5553 = vsel %vm5552, %v5551, 0
        %v5554 = vshrl.u32 %v5553, 5
        %v5555 = vand.u32 %v5553, 31
        %v5556 = vsub.s32 32, %v5555
        %v5557 = vshrl.u32 683565275, %v5556
        %v5558 = vshll.u32 683565275, %v5555
        %v5559 = vshrl.u32 2475754826, %v5556
        %v5560 = vor.u32 %v5558, %v5559
        %v5561 = vshll.u32 2475754826, %v5555
        %v5562 = vshrl.u32 2131351028, %v5556
        %v5563 = vor.u32 %v5561, %v5562
        %v5564 = vshll.u32 2131351028, %v5555
        %v5565 = vshrl.u32 2102212464, %v5556
        %v5566 = vor.u32 %v5564, %v5565
        %v5567 = vshll.u32 2102212464, %v5555
        %v5568 = vshrl.u32 920167782, %v5556
        %v5569 = vor.u32 %v5567, %v5568
        %v5570 = vshll.u32 920167782, %v5555
        %v5571 = vshrl.u32 1326507024, %v5556
        %v5572 = vor.u32 %v5570, %v5571
        %vm5573 = vcmp.lt.s32.totalorder %v5554, 1
        %vm5574 = vcmp.lt.s32.totalorder %v5554, 2
        %vm5575 = vcmp.lt.s32.totalorder %v5554, 3
        %vm5576 = vcmp.lt.s32.totalorder %v5554, 4
        %v5577 = vsel %vm5573, %v5557, %v5560
        %v5578 = vsel %vm5576, %v5566, 2102212464
        %v5579 = vsel %vm5575, %v5563, %v5578
        %v5580 = vsel %vm5574, %v5577, %v5579
        %v5581 = vsel %vm5573, %v5560, %v5563
        %v5582 = vsel %vm5576, %v5569, 920167782
        %v5583 = vsel %vm5575, %v5566, %v5582
        %v5584 = vsel %vm5574, %v5581, %v5583
        %v5585 = vsel %vm5573, %v5563, %v5566
        %v5586 = vsel %vm5576, %v5572, 1326507024
        %v5587 = vsel %vm5575, %v5569, %v5586
        %v5588 = vsel %vm5574, %v5585, %v5587
        %v5589 = vshll.u32 %v5549, 8
        %v5590 = vand.u32 %v5589, 65535
        %v5591 = vshrl.u32 %v5589, 16
        %v5592 = vand.u32 %v5588, 65535
        %v5593 = vshrl.u32 %v5588, 16
        %v5594 = vmul.u32 %v5590, %v5592
        %v5595 = vmul.u32 %v5590, %v5593
        %v5596 = vmul.u32 %v5591, %v5592
        %v5597 = vmul.u32 %v5591, %v5593
        %v5598 = vshll.u32 %v5595, 16
        %v5599 = vshrl.u32 %v5595, 16
        %v5600 = vshll.u32 %v5596, 16
        %v5601 = vshrl.u32 %v5596, 16
        %vm5602 = vc.u32 %v5594, %v5598
        %v5603 = vsel %vm5602, 1, 0
        %v5604 = vadd.s32 %v5594, %v5598
        %v5605 = vadd.s32 %v5597, %v5603
        %vm5606 = vc.u32 %v5604, %v5600
        %v5607 = vsel %vm5606, 1, 0
        %v5608 = vadd.s32 %v5604, %v5600
        %v5609 = vadd.s32 %v5605, %v5607
        %v5610 = vadd.s32 %v5609, %v5599
        %v5611 = vadd.s32 %v5610, %v5601
        %v5612 = vand.u32 %v5589, 65535
        %v5613 = vshrl.u32 %v5589, 16
        %v5614 = vand.u32 %v5584, 65535
        %v5615 = vshrl.u32 %v5584, 16
        %v5616 = vmul.u32 %v5612, %v5614
        %v5617 = vmul.u32 %v5612, %v5615
        %v5618 = vmul.u32 %v5613, %v5614
        %v5619 = vmul.u32 %v5613, %v5615
        %v5620 = vshll.u32 %v5617, 16
        %v5621 = vshrl.u32 %v5617, 16
        %v5622 = vshll.u32 %v5618, 16
        %v5623 = vshrl.u32 %v5618, 16
        %vm5624 = vc.u32 %v5616, %v5620
        %v5625 = vsel %vm5624, 1, 0
        %v5626 = vadd.s32 %v5616, %v5620
        %v5627 = vadd.s32 %v5619, %v5625
        %vm5628 = vc.u32 %v5626, %v5622
        %v5629 = vsel %vm5628, 1, 0
        %v5630 = vadd.s32 %v5626, %v5622
        %v5631 = vadd.s32 %v5627, %v5629
        %v5632 = vadd.s32 %v5631, %v5621
        %v5633 = vadd.s32 %v5632, %v5623
        %v5634 = vmul.u32 %v5589, %v5580
        %v5635 = vadd.s32 %v5611, %v5630
        %vm5636 = vc.u32 %v5611, %v5630
        %v5637 = vadd.s32 %v5633, 1
        %v5638 = vsel %vm5636, %v5637, %v5633
        %v5639 = vadd.s32 %v5634, %v5638
        %v5640 = vadd.s32 %v5639, 536870912
        %v5641 = vshrl.u32 %v5640, 30
        %v5642 = vshll.u32 %v5641, 30
        %v5643 = vsub.s32 %v5639, %v5642
        %vm5644 = vcmp.lt.s32.totalorder %v5643, 0
        %v5645 = vsub.s32 0, %v5643
        %v5646 = vsel %vm5644, %v5645, %v5643
        %v5647 = vclz %v5646
        %v5648 = vsub.s32 %v5647, 2
        %vm5649 = vcmp.gt.s32.totalorder 0, %v5648
        %v5650 = vsel %vm5649, 0, %v5648
        %v5651 = vsub.s32 32, %v5650
        %v5652 = vshll.u32 %v5643, %v5650
        %v5653 = vshrl.u32 %v5635, %v5651
        %v5654 = vor.u32 %v5652, %v5653
        %v5655 = vsub.s32 4294967266, %v5650
        %v5656 = vadd.s32 %v5655, 127
        %v5657 = vshll.u32 %v5656, 23
        %v5658 = vor.u32 4788187, %v5657
        %v5659 = vand.u32 2147483647, %v5658
        %v5661 = vcvt.s32.f32 %v5654
        %v5662 = vmul.f32 %v5661, %v5659
        %v5663 = vxor.u32 %v5662, 2147483648
        %v5664 = vsel %vm5543, %v5663, %v5662
        %v5665 = vsub.s32 4, %v5641
        %v5666 = vsel %vm5543, %v5665, %v5641
        %v5667 = vsel %vm5542, %v367, %v5664
        %v5668 = vsel %vm5542, 0, %v5666
        %v5669 = vmul.f32 %v5667, %v5667
        %v5670 = vmul.f32 %v5669, -0.001358992
        %v5671 = vadd.f32 %v5670, 0.041655596
        %v5672 = vmul.f32 %v5669, %v5671
        %v5673 = vadd.f32 %v5672, -0.4999988
        %v5674 = vmul.f32 %v5669, %v5673
        %v5675 = vadd.f32 1.0, %v5674
        %v5676 = vmul.f32 %v5667, %v5667
        %v5677 = vmul.f32 %v5676, -0.00019511016
        %v5678 = vadd.f32 %v5677, 0.008332121
        %v5679 = vmul.f32 %v5676, %v5678
        %v5680 = vadd.f32 %v5679, -0.16666654
        %v5681 = vmul.f32 %v5676, %v5680
        %v5682 = vadd.f32 %v5681, 1.0
        %v5683 = vmul.f32 %v5682, %v5667
        %vm5684 = vweird.f32 %v367
        %v5685 = vadd.s32 %v5668, 3
        %v5686 = vand.u32 %v5685, 3
        %vm5687 = vcmp.lt.s32.totalorder %v5686, 2
        %vm5688 = vcmp.eq.s32.totalorder %v5686, 0
        %v5689 = vxor.u32 %v5683, 2147483648
        %v5690 = vsel %vm5688, %v5675, %v5689
        %vm5691 = vcmp.eq.s32.totalorder %v5686, 2
        %v5692 = vxor.u32 %v5675, 2147483648
        %v5693 = vsel %vm5691, %v5692, %v5683
        %v5694 = vsel %vm5687, %v5690, %v5693
        %v5695 = vsel %vm5684, nan, %v5694
        %v5696 = vand.u32 2147483647, %v368
        %vm5697 = vcmp.le.f32.partialorder %v5696, 0.7853982
        %vm5698 = vcmp.lt.s32.totalorder %v368, 0
        %v5699 = vand.u32 %v368, 2139095040
        %v5700 = vshrl.u32 %v5699, 23
        %v5701 = vsub.s32 %v5700, 127
        %v5702 = vand.u32 2147483647, %v368
        %v5703 = vand.u32 %v5702, 8388607
        %v5704 = vor.u32 %v5703, 8388608
        %v5705 = vsub.s32 0, %v5704
        %v5706 = vadd.s32 %v5701, 1
        %vm5707 = vcmp.gt.s32.totalorder %v5706, 0
        %v5708 = vsel %vm5707, %v5706, 0
        %v5709 = vshrl.u32 %v5708, 5
        %v5710 = vand.u32 %v5708, 31
        %v5711 = vsub.s32 32, %v5710
        %v5712 = vshrl.u32 683565275, %v5711
        %v5713 = vshll.u32 683565275, %v5710
        %v5714 = vshrl.u32 2475754826, %v5711
        %v5715 = vor.u32 %v5713, %v5714
        %v5716 = vshll.u32 2475754826, %v5710
        %v5717 = vshrl.u32 2131351028, %v5711
        %v5718 = vor.u32 %v5716, %v5717
        %v5719 = vshll.u32 2131351028, %v5710
        %v5720 = vshrl.u32 2102212464, %v5711
        %v5721 = vor.u32 %v5719, %v5720
        %v5722 = vshll.u32 2102212464, %v5710
        %v5723 = vshrl.u32 920167782, %v5711
        %v5724 = vor.u32 %v5722, %v5723
        %v5725 = vshll.u32 920167782, %v5710
        %v5726 = vshrl.u32 1326507024, %v5711
        %v5727 = vor.u32 %v5725, %v5726
        %vm5728 = vcmp.lt.s32.totalorder %v5709, 1
        %vm5729 = vcmp.lt.s32.totalorder %v5709, 2
        %vm5730 = vcmp.lt.s32.totalorder %v5709, 3
        %vm5731 = vcmp.lt.s32.totalorder %v5709, 4
        %v5732 = vsel %vm5728, %v5712, %v5715
        %v5733 = vsel %vm5731, %v5721, 2102212464
        %v5734 = vsel %vm5730, %v5718, %v5733
        %v5735 = vsel %vm5729, %v5732, %v5734
        %v5736 = vsel %vm5728, %v5715, %v5718
        %v5737 = vsel %vm5731, %v5724, 920167782
        %v5738 = vsel %vm5730, %v5721, %v5737
        %v5739 = vsel %vm5729, %v5736, %v5738
        %v5740 = vsel %vm5728, %v5718, %v5721
        %v5741 = vsel %vm5731, %v5727, 1326507024
        %v5742 = vsel %vm5730, %v5724, %v5741
        %v5743 = vsel %vm5729, %v5740, %v5742
        %v5744 = vshll.u32 %v5704, 8
        %v5745 = vand.u32 %v5744, 65535
        %v5746 = vshrl.u32 %v5744, 16
        %v5747 = vand.u32 %v5743, 65535
        %v5748 = vshrl.u32 %v5743, 16
        %v5749 = vmul.u32 %v5745, %v5747
        %v5750 = vmul.u32 %v5745, %v5748
        %v5751 = vmul.u32 %v5746, %v5747
        %v5752 = vmul.u32 %v5746, %v5748
        %v5753 = vshll.u32 %v5750, 16
        %v5754 = vshrl.u32 %v5750, 16
        %v5755 = vshll.u32 %v5751, 16
        %v5756 = vshrl.u32 %v5751, 16
        %vm5757 = vc.u32 %v5749, %v5753
        %v5758 = vsel %vm5757, 1, 0
        %v5759 = vadd.s32 %v5749, %v5753
        %v5760 = vadd.s32 %v5752, %v5758
        %vm5761 = vc.u32 %v5759, %v5755
        %v5762 = vsel %vm5761, 1, 0
        %v5763 = vadd.s32 %v5759, %v5755
        %v5764 = vadd.s32 %v5760, %v5762
        %v5765 = vadd.s32 %v5764, %v5754
        %v5766 = vadd.s32 %v5765, %v5756
        %v5767 = vand.u32 %v5744, 65535
        %v5768 = vshrl.u32 %v5744, 16
        %v5769 = vand.u32 %v5739, 65535
        %v5770 = vshrl.u32 %v5739, 16
        %v5771 = vmul.u32 %v5767, %v5769
        %v5772 = vmul.u32 %v5767, %v5770
        %v5773 = vmul.u32 %v5768, %v5769
        %v5774 = vmul.u32 %v5768, %v5770
        %v5775 = vshll.u32 %v5772, 16
        %v5776 = vshrl.u32 %v5772, 16
        %v5777 = vshll.u32 %v5773, 16
        %v5778 = vshrl.u32 %v5773, 16
        %vm5779 = vc.u32 %v5771, %v5775
        %v5780 = vsel %vm5779, 1, 0
        %v5781 = vadd.s32 %v5771, %v5775
        %v5782 = vadd.s32 %v5774, %v5780
        %vm5783 = vc.u32 %v5781, %v5777
        %v5784 = vsel %vm5783, 1, 0
        %v5785 = vadd.s32 %v5781, %v5777
        %v5786 = vadd.s32 %v5782, %v5784
        %v5787 = vadd.s32 %v5786, %v5776
        %v5788 = vadd.s32 %v5787, %v5778
        %v5789 = vmul.u32 %v5744, %v5735
        %v5790 = vadd.s32 %v5766, %v5785
        %vm5791 = vc.u32 %v5766, %v5785
        %v5792 = vadd.s32 %v5788, 1
        %v5793 = vsel %vm5791, %v5792, %v5788
        %v5794 = vadd.s32 %v5789, %v5793
        %v5795 = vadd.s32 %v5794, 536870912
        %v5796 = vshrl.u32 %v5795, 30
        %v5797 = vshll.u32 %v5796, 30
        %v5798 = vsub.s32 %v5794, %v5797
        %vm5799 = vcmp.lt.s32.totalorder %v5798, 0
        %v5800 = vsub.s32 0, %v5798
        %v5801 = vsel %vm5799, %v5800, %v5798
        %v5802 = vclz %v5801
        %v5803 = vsub.s32 %v5802, 2
        %vm5804 = vcmp.gt.s32.totalorder 0, %v5803
        %v5805 = vsel %vm5804, 0, %v5803
        %v5806 = vsub.s32 32, %v5805
        %v5807 = vshll.u32 %v5798, %v5805
        %v5808 = vshrl.u32 %v5790, %v5806
        %v5809 = vor.u32 %v5807, %v5808
        %v5810 = vsub.s32 4294967266, %v5805
        %v5811 = vadd.s32 %v5810, 127
        %v5812 = vshll.u32 %v5811, 23
        %v5813 = vor.u32 4788187, %v5812
        %v5814 = vand.u32 2147483647, %v5813
        %v5816 = vcvt.s32.f32 %v5809
        %v5817 = vmul.f32 %v5816, %v5814
        %v5818 = vxor.u32 %v5817, 2147483648
        %v5819 = vsel %vm5698, %v5818, %v5817
        %v5820 = vsub.s32 4, %v5796
        %v5821 = vsel %vm5698, %v5820, %v5796
        %v5822 = vsel %vm5697, %v368, %v5819
        %v5823 = vsel %vm5697, 0, %v5821
        %v5824 = vmul.f32 %v5822, %v5822
        %v5825 = vmul.f32 %v5824, -0.001358992
        %v5826 = vadd.f32 %v5825, 0.041655596
        %v5827 = vmul.f32 %v5824, %v5826
        %v5828 = vadd.f32 %v5827, -0.4999988
        %v5829 = vmul.f32 %v5824, %v5828
        %v5830 = vadd.f32 1.0, %v5829
        %v5831 = vmul.f32 %v5822, %v5822
        %v5832 = vmul.f32 %v5831, -0.00019511016
        %v5833 = vadd.f32 %v5832, 0.008332121
        %v5834 = vmul.f32 %v5831, %v5833
        %v5835 = vadd.f32 %v5834, -0.16666654
        %v5836 = vmul.f32 %v5831, %v5835
        %v5837 = vadd.f32 %v5836, 1.0
        %v5838 = vmul.f32 %v5837, %v5822
        %vm5839 = vweird.f32 %v368
        %v5840 = vadd.s32 %v5823, 3
        %v5841 = vand.u32 %v5840, 3
        %vm5842 = vcmp.lt.s32.totalorder %v5841, 2
        %vm5843 = vcmp.eq.s32.totalorder %v5841, 0
        %v5844 = vxor.u32 %v5838, 2147483648
        %v5845 = vsel %vm5843, %v5830, %v5844
        %vm5846 = vcmp.eq.s32.totalorder %v5841, 2
        %v5847 = vxor.u32 %v5830, 2147483648
        %v5848 = vsel %vm5846, %v5847, %v5838
        %v5849 = vsel %vm5842, %v5845, %v5848
        %v5850 = vsel %vm5839, nan, %v5849
        %v5851 = vand.u32 2147483647, %v369
        %vm5852 = vcmp.le.f32.partialorder %v5851, 0.7853982
        %vm5853 = vcmp.lt.s32.totalorder %v369, 0
        %v5854 = vand.u32 %v369, 2139095040
        %v5855 = vshrl.u32 %v5854, 23
        %v5856 = vsub.s32 %v5855, 127
        %v5857 = vand.u32 2147483647, %v369
        %v5858 = vand.u32 %v5857, 8388607
        %v5859 = vor.u32 %v5858, 8388608
        %v5860 = vsub.s32 0, %v5859
        %v5861 = vadd.s32 %v5856, 1
        %vm5862 = vcmp.gt.s32.totalorder %v5861, 0
        %v5863 = vsel %vm5862, %v5861, 0
        %v5864 = vshrl.u32 %v5863, 5
        %v5865 = vand.u32 %v5863, 31
        %v5866 = vsub.s32 32, %v5865
        %v5867 = vshrl.u32 683565275, %v5866
        %v5868 = vshll.u32 683565275, %v5865
        %v5869 = vshrl.u32 2475754826, %v5866
        %v5870 = vor.u32 %v5868, %v5869
        %v5871 = vshll.u32 2475754826, %v5865
        %v5872 = vshrl.u32 2131351028, %v5866
        %v5873 = vor.u32 %v5871, %v5872
        %v5874 = vshll.u32 2131351028, %v5865
        %v5875 = vshrl.u32 2102212464, %v5866
        %v5876 = vor.u32 %v5874, %v5875
        %v5877 = vshll.u32 2102212464, %v5865
        %v5878 = vshrl.u32 920167782, %v5866
        %v5879 = vor.u32 %v5877, %v5878
        %v5880 = vshll.u32 920167782, %v5865
        %v5881 = vshrl.u32 1326507024, %v5866
        %v5882 = vor.u32 %v5880, %v5881
        %vm5883 = vcmp.lt.s32.totalorder %v5864, 1
        %vm5884 = vcmp.lt.s32.totalorder %v5864, 2
        %vm5885 = vcmp.lt.s32.totalorder %v5864, 3
        %vm5886 = vcmp.lt.s32.totalorder %v5864, 4
        %v5887 = vsel %vm5883, %v5867, %v5870
        %v5888 = vsel %vm5886, %v5876, 2102212464
        %v5889 = vsel %vm5885, %v5873, %v5888
        %v5890 = vsel %vm5884, %v5887, %v5889
        %v5891 = vsel %vm5883, %v5870, %v5873
        %v5892 = vsel %vm5886, %v5879, 920167782
        %v5893 = vsel %vm5885, %v5876, %v5892
        %v5894 = vsel %vm5884, %v5891, %v5893
        %v5895 = vsel %vm5883, %v5873, %v5876
        %v5896 = vsel %vm5886, %v5882, 1326507024
        %v5897 = vsel %vm5885, %v5879, %v5896
        %v5898 = vsel %vm5884, %v5895, %v5897
        %v5899 = vshll.u32 %v5859, 8
        %v5900 = vand.u32 %v5899, 65535
        %v5901 = vshrl.u32 %v5899, 16
        %v5902 = vand.u32 %v5898, 65535
        %v5903 = vshrl.u32 %v5898, 16
        %v5904 = vmul.u32 %v5900, %v5902
        %v5905 = vmul.u32 %v5900, %v5903
        %v5906 = vmul.u32 %v5901, %v5902
        %v5907 = vmul.u32 %v5901, %v5903
        %v5908 = vshll.u32 %v5905, 16
        %v5909 = vshrl.u32 %v5905, 16
        %v5910 = vshll.u32 %v5906, 16
        %v5911 = vshrl.u32 %v5906, 16
        %vm5912 = vc.u32 %v5904, %v5908
        %v5913 = vsel %vm5912, 1, 0
        %v5914 = vadd.s32 %v5904, %v5908
        %v5915 = vadd.s32 %v5907, %v5913
        %vm5916 = vc.u32 %v5914, %v5910
        %v5917 = vsel %vm5916, 1, 0
        %v5918 = vadd.s32 %v5914, %v5910
        %v5919 = vadd.s32 %v5915, %v5917
        %v5920 = vadd.s32 %v5919, %v5909
        %v5921 = vadd.s32 %v5920, %v5911
        %v5922 = vand.u32 %v5899, 65535
        %v5923 = vshrl.u32 %v5899, 16
        %v5924 = vand.u32 %v5894, 65535
        %v5925 = vshrl.u32 %v5894, 16
        %v5926 = vmul.u32 %v5922, %v5924
        %v5927 = vmul.u32 %v5922, %v5925
        %v5928 = vmul.u32 %v5923, %v5924
        %v5929 = vmul.u32 %v5923, %v5925
        %v5930 = vshll.u32 %v5927, 16
        %v5931 = vshrl.u32 %v5927, 16
        %v5932 = vshll.u32 %v5928, 16
        %v5933 = vshrl.u32 %v5928, 16
        %vm5934 = vc.u32 %v5926, %v5930
        %v5935 = vsel %vm5934, 1, 0
        %v5936 = vadd.s32 %v5926, %v5930
        %v5937 = vadd.s32 %v5929, %v5935
        %vm5938 = vc.u32 %v5936, %v5932
        %v5939 = vsel %vm5938, 1, 0
        %v5940 = vadd.s32 %v5936, %v5932
        %v5941 = vadd.s32 %v5937, %v5939
        %v5942 = vadd.s32 %v5941, %v5931
        %v5943 = vadd.s32 %v5942, %v5933
        %v5944 = vmul.u32 %v5899, %v5890
        %v5945 = vadd.s32 %v5921, %v5940
        %vm5946 = vc.u32 %v5921, %v5940
        %v5947 = vadd.s32 %v5943, 1
        %v5948 = vsel %vm5946, %v5947, %v5943
        %v5949 = vadd.s32 %v5944, %v5948
        %v5950 = vadd.s32 %v5949, 536870912
        %v5951 = vshrl.u32 %v5950, 30
        %v5952 = vshll.u32 %v5951, 30
        %v5953 = vsub.s32 %v5949, %v5952
        %vm5954 = vcmp.lt.s32.totalorder %v5953, 0
        %v5955 = vsub.s32 0, %v5953
        %v5956 = vsel %vm5954, %v5955, %v5953
        %v5957 = vclz %v5956
        %v5958 = vsub.s32 %v5957, 2
        %vm5959 = vcmp.gt.s32.totalorder 0, %v5958
        %v5960 = vsel %vm5959, 0, %v5958
        %v5961 = vsub.s32 32, %v5960
        %v5962 = vshll.u32 %v5953, %v5960
        %v5963 = vshrl.u32 %v5945, %v5961
        %v5964 = vor.u32 %v5962, %v5963
        %v5965 = vsub.s32 4294967266, %v5960
        %v5966 = vadd.s32 %v5965, 127
        %v5967 = vshll.u32 %v5966, 23
        %v5968 = vor.u32 4788187, %v5967
        %v5969 = vand.u32 2147483647, %v5968
        %v5971 = vcvt.s32.f32 %v5964
        %v5972 = vmul.f32 %v5971, %v5969
        %v5973 = vxor.u32 %v5972, 2147483648
        %v5974 = vsel %vm5853, %v5973, %v5972
        %v5975 = vsub.s32 4, %v5951
        %v5976 = vsel %vm5853, %v5975, %v5951
        %v5977 = vsel %vm5852, %v369, %v5974
        %v5978 = vsel %vm5852, 0, %v5976
        %v5979 = vmul.f32 %v5977, %v5977
        %v5980 = vmul.f32 %v5979, -0.001358992
        %v5981 = vadd.f32 %v5980, 0.041655596
        %v5982 = vmul.f32 %v5979, %v5981
        %v5983 = vadd.f32 %v5982, -0.4999988
        %v5984 = vmul.f32 %v5979, %v5983
        %v5985 = vadd.f32 1.0, %v5984
        %v5986 = vmul.f32 %v5977, %v5977
        %v5987 = vmul.f32 %v5986, -0.00019511016
        %v5988 = vadd.f32 %v5987, 0.008332121
        %v5989 = vmul.f32 %v5986, %v5988
        %v5990 = vadd.f32 %v5989, -0.16666654
        %v5991 = vmul.f32 %v5986, %v5990
        %v5992 = vadd.f32 %v5991, 1.0
        %v5993 = vmul.f32 %v5992, %v5977
        %vm5994 = vweird.f32 %v369
        %v5995 = vadd.s32 %v5978, 3
        %v5996 = vand.u32 %v5995, 3
        %vm5997 = vcmp.lt.s32.totalorder %v5996, 2
        %vm5998 = vcmp.eq.s32.totalorder %v5996, 0
        %v5999 = vxor.u32 %v5993, 2147483648
        %v6000 = vsel %vm5998, %v5985, %v5999
        %vm6001 = vcmp.eq.s32.totalorder %v5996, 2
        %v6002 = vxor.u32 %v5985, 2147483648
        %v6003 = vsel %vm6001, %v6002, %v5993
        %v6004 = vsel %vm5997, %v6000, %v6003
        %v6005 = vsel %vm5994, nan, %v6004
        %v6006 = vand.u32 2147483647, %v370
        %vm6007 = vcmp.le.f32.partialorder %v6006, 0.7853982
        %vm6008 = vcmp.lt.s32.totalorder %v370, 0
        %v6009 = vand.u32 %v370, 2139095040
        %v6010 = vshrl.u32 %v6009, 23
        %v6011 = vsub.s32 %v6010, 127
        %v6012 = vand.u32 2147483647, %v370
        %v6013 = vand.u32 %v6012, 8388607
        %v6014 = vor.u32 %v6013, 8388608
        %v6015 = vsub.s32 0, %v6014
        %v6016 = vadd.s32 %v6011, 1
        %vm6017 = vcmp.gt.s32.totalorder %v6016, 0
        %v6018 = vsel %vm6017, %v6016, 0
        %v6019 = vshrl.u32 %v6018, 5
        %v6020 = vand.u32 %v6018, 31
        %v6021 = vsub.s32 32, %v6020
        %v6022 = vshrl.u32 683565275, %v6021
        %v6023 = vshll.u32 683565275, %v6020
        %v6024 = vshrl.u32 2475754826, %v6021
        %v6025 = vor.u32 %v6023, %v6024
        %v6026 = vshll.u32 2475754826, %v6020
        %v6027 = vshrl.u32 2131351028, %v6021
        %v6028 = vor.u32 %v6026, %v6027
        %v6029 = vshll.u32 2131351028, %v6020
        %v6030 = vshrl.u32 2102212464, %v6021
        %v6031 = vor.u32 %v6029, %v6030
        %v6032 = vshll.u32 2102212464, %v6020
        %v6033 = vshrl.u32 920167782, %v6021
        %v6034 = vor.u32 %v6032, %v6033
        %v6035 = vshll.u32 920167782, %v6020
        %v6036 = vshrl.u32 1326507024, %v6021
        %v6037 = vor.u32 %v6035, %v6036
        %vm6038 = vcmp.lt.s32.totalorder %v6019, 1
        %vm6039 = vcmp.lt.s32.totalorder %v6019, 2
        %vm6040 = vcmp.lt.s32.totalorder %v6019, 3
        %vm6041 = vcmp.lt.s32.totalorder %v6019, 4
        %v6042 = vsel %vm6038, %v6022, %v6025
        %v6043 = vsel %vm6041, %v6031, 2102212464
        %v6044 = vsel %vm6040, %v6028, %v6043
        %v6045 = vsel %vm6039, %v6042, %v6044
        %v6046 = vsel %vm6038, %v6025, %v6028
        %v6047 = vsel %vm6041, %v6034, 920167782
        %v6048 = vsel %vm6040, %v6031, %v6047
        %v6049 = vsel %vm6039, %v6046, %v6048
        %v6050 = vsel %vm6038, %v6028, %v6031
        %v6051 = vsel %vm6041, %v6037, 1326507024
        %v6052 = vsel %vm6040, %v6034, %v6051
        %v6053 = vsel %vm6039, %v6050, %v6052
        %v6054 = vshll.u32 %v6014, 8
        %v6055 = vand.u32 %v6054, 65535
        %v6056 = vshrl.u32 %v6054, 16
        %v6057 = vand.u32 %v6053, 65535
        %v6058 = vshrl.u32 %v6053, 16
        %v6059 = vmul.u32 %v6055, %v6057
        %v6060 = vmul.u32 %v6055, %v6058
        %v6061 = vmul.u32 %v6056, %v6057
        %v6062 = vmul.u32 %v6056, %v6058
        %v6063 = vshll.u32 %v6060, 16
        %v6064 = vshrl.u32 %v6060, 16
        %v6065 = vshll.u32 %v6061, 16
        %v6066 = vshrl.u32 %v6061, 16
        %vm6067 = vc.u32 %v6059, %v6063
        %v6068 = vsel %vm6067, 1, 0
        %v6069 = vadd.s32 %v6059, %v6063
        %v6070 = vadd.s32 %v6062, %v6068
        %vm6071 = vc.u32 %v6069, %v6065
        %v6072 = vsel %vm6071, 1, 0
        %v6073 = vadd.s32 %v6069, %v6065
        %v6074 = vadd.s32 %v6070, %v6072
        %v6075 = vadd.s32 %v6074, %v6064
        %v6076 = vadd.s32 %v6075, %v6066
        %v6077 = vand.u32 %v6054, 65535
        %v6078 = vshrl.u32 %v6054, 16
        %v6079 = vand.u32 %v6049, 65535
        %v6080 = vshrl.u32 %v6049, 16
        %v6081 = vmul.u32 %v6077, %v6079
        %v6082 = vmul.u32 %v6077, %v6080
        %v6083 = vmul.u32 %v6078, %v6079
        %v6084 = vmul.u32 %v6078, %v6080
        %v6085 = vshll.u32 %v6082, 16
        %v6086 = vshrl.u32 %v6082, 16
        %v6087 = vshll.u32 %v6083, 16
        %v6088 = vshrl.u32 %v6083, 16
        %vm6089 = vc.u32 %v6081, %v6085
        %v6090 = vsel %vm6089, 1, 0
        %v6091 = vadd.s32 %v6081, %v6085
        %v6092 = vadd.s32 %v6084, %v6090
        %vm6093 = vc.u32 %v6091, %v6087
        %v6094 = vsel %vm6093, 1, 0
        %v6095 = vadd.s32 %v6091, %v6087
        %v6096 = vadd.s32 %v6092, %v6094
        %v6097 = vadd.s32 %v6096, %v6086
        %v6098 = vadd.s32 %v6097, %v6088
        %v6099 = vmul.u32 %v6054, %v6045
        %v6100 = vadd.s32 %v6076, %v6095
        %vm6101 = vc.u32 %v6076, %v6095
        %v6102 = vadd.s32 %v6098, 1
        %v6103 = vsel %vm6101, %v6102, %v6098
        %v6104 = vadd.s32 %v6099, %v6103
        %v6105 = vadd.s32 %v6104, 536870912
        %v6106 = vshrl.u32 %v6105, 30
        %v6107 = vshll.u32 %v6106, 30
        %v6108 = vsub.s32 %v6104, %v6107
        %vm6109 = vcmp.lt.s32.totalorder %v6108, 0
        %v6110 = vsub.s32 0, %v6108
        %v6111 = vsel %vm6109, %v6110, %v6108
        %v6112 = vclz %v6111
        %v6113 = vsub.s32 %v6112, 2
        %vm6114 = vcmp.gt.s32.totalorder 0, %v6113
        %v6115 = vsel %vm6114, 0, %v6113
        %v6116 = vsub.s32 32, %v6115
        %v6117 = vshll.u32 %v6108, %v6115
        %v6118 = vshrl.u32 %v6100, %v6116
        %v6119 = vor.u32 %v6117, %v6118
        %v6120 = vsub.s32 4294967266, %v6115
        %v6121 = vadd.s32 %v6120, 127
        %v6122 = vshll.u32 %v6121, 23
        %v6123 = vor.u32 4788187, %v6122
        %v6124 = vand.u32 2147483647, %v6123
        %v6126 = vcvt.s32.f32 %v6119
        %v6127 = vmul.f32 %v6126, %v6124
        %v6128 = vxor.u32 %v6127, 2147483648
        %v6129 = vsel %vm6008, %v6128, %v6127
        %v6130 = vsub.s32 4, %v6106
        %v6131 = vsel %vm6008, %v6130, %v6106
        %v6132 = vsel %vm6007, %v370, %v6129
        %v6133 = vsel %vm6007, 0, %v6131
        %v6134 = vmul.f32 %v6132, %v6132
        %v6135 = vmul.f32 %v6134, -0.001358992
        %v6136 = vadd.f32 %v6135, 0.041655596
        %v6137 = vmul.f32 %v6134, %v6136
        %v6138 = vadd.f32 %v6137, -0.4999988
        %v6139 = vmul.f32 %v6134, %v6138
        %v6140 = vadd.f32 1.0, %v6139
        %v6141 = vmul.f32 %v6132, %v6132
        %v6142 = vmul.f32 %v6141, -0.00019511016
        %v6143 = vadd.f32 %v6142, 0.008332121
        %v6144 = vmul.f32 %v6141, %v6143
        %v6145 = vadd.f32 %v6144, -0.16666654
        %v6146 = vmul.f32 %v6141, %v6145
        %v6147 = vadd.f32 %v6146, 1.0
        %v6148 = vmul.f32 %v6147, %v6132
        %vm6149 = vweird.f32 %v370
        %v6150 = vadd.s32 %v6133, 3
        %v6151 = vand.u32 %v6150, 3
        %vm6152 = vcmp.lt.s32.totalorder %v6151, 2
        %vm6153 = vcmp.eq.s32.totalorder %v6151, 0
        %v6154 = vxor.u32 %v6148, 2147483648
        %v6155 = vsel %vm6153, %v6140, %v6154
        %vm6156 = vcmp.eq.s32.totalorder %v6151, 2
        %v6157 = vxor.u32 %v6140, 2147483648
        %v6158 = vsel %vm6156, %v6157, %v6148
        %v6159 = vsel %vm6152, %v6155, %v6158
        %v6160 = vsel %vm6149, nan, %v6159
        %v6161 = vand.u32 2147483647, %v371
        %vm6162 = vcmp.le.f32.partialorder %v6161, 0.7853982
        %vm6163 = vcmp.lt.s32.totalorder %v371, 0
        %v6164 = vand.u32 %v371, 2139095040
        %v6165 = vshrl.u32 %v6164, 23
        %v6166 = vsub.s32 %v6165, 127
        %v6167 = vand.u32 2147483647, %v371
        %v6168 = vand.u32 %v6167, 8388607
        %v6169 = vor.u32 %v6168, 8388608
        %v6170 = vsub.s32 0, %v6169
        %v6171 = vadd.s32 %v6166, 1
        %vm6172 = vcmp.gt.s32.totalorder %v6171, 0
        %v6173 = vsel %vm6172, %v6171, 0
        %v6174 = vshrl.u32 %v6173, 5
        %v6175 = vand.u32 %v6173, 31
        %v6176 = vsub.s32 32, %v6175
        %v6177 = vshrl.u32 683565275, %v6176
        %v6178 = vshll.u32 683565275, %v6175
        %v6179 = vshrl.u32 2475754826, %v6176
        %v6180 = vor.u32 %v6178, %v6179
        %v6181 = vshll.u32 2475754826, %v6175
        %v6182 = vshrl.u32 2131351028, %v6176
        %v6183 = vor.u32 %v6181, %v6182
        %v6184 = vshll.u32 2131351028, %v6175
        %v6185 = vshrl.u32 2102212464, %v6176
        %v6186 = vor.u32 %v6184, %v6185
        %v6187 = vshll.u32 2102212464, %v6175
        %v6188 = vshrl.u32 920167782, %v6176
        %v6189 = vor.u32 %v6187, %v6188
        %v6190 = vshll.u32 920167782, %v6175
        %v6191 = vshrl.u32 1326507024, %v6176
        %v6192 = vor.u32 %v6190, %v6191
        %vm6193 = vcmp.lt.s32.totalorder %v6174, 1
        %vm6194 = vcmp.lt.s32.totalorder %v6174, 2
        %vm6195 = vcmp.lt.s32.totalorder %v6174, 3
        %vm6196 = vcmp.lt.s32.totalorder %v6174, 4
        %v6197 = vsel %vm6193, %v6177, %v6180
        %v6198 = vsel %vm6196, %v6186, 2102212464
        %v6199 = vsel %vm6195, %v6183, %v6198
        %v6200 = vsel %vm6194, %v6197, %v6199
        %v6201 = vsel %vm6193, %v6180, %v6183
        %v6202 = vsel %vm6196, %v6189, 920167782
        %v6203 = vsel %vm6195, %v6186, %v6202
        %v6204 = vsel %vm6194, %v6201, %v6203
        %v6205 = vsel %vm6193, %v6183, %v6186
        %v6206 = vsel %vm6196, %v6192, 1326507024
        %v6207 = vsel %vm6195, %v6189, %v6206
        %v6208 = vsel %vm6194, %v6205, %v6207
        %v6209 = vshll.u32 %v6169, 8
        %v6210 = vand.u32 %v6209, 65535
        %v6211 = vshrl.u32 %v6209, 16
        %v6212 = vand.u32 %v6208, 65535
        %v6213 = vshrl.u32 %v6208, 16
        %v6214 = vmul.u32 %v6210, %v6212
        %v6215 = vmul.u32 %v6210, %v6213
        %v6216 = vmul.u32 %v6211, %v6212
        %v6217 = vmul.u32 %v6211, %v6213
        %v6218 = vshll.u32 %v6215, 16
        %v6219 = vshrl.u32 %v6215, 16
        %v6220 = vshll.u32 %v6216, 16
        %v6221 = vshrl.u32 %v6216, 16
        %vm6222 = vc.u32 %v6214, %v6218
        %v6223 = vsel %vm6222, 1, 0
        %v6224 = vadd.s32 %v6214, %v6218
        %v6225 = vadd.s32 %v6217, %v6223
        %vm6226 = vc.u32 %v6224, %v6220
        %v6227 = vsel %vm6226, 1, 0
        %v6228 = vadd.s32 %v6224, %v6220
        %v6229 = vadd.s32 %v6225, %v6227
        %v6230 = vadd.s32 %v6229, %v6219
        %v6231 = vadd.s32 %v6230, %v6221
        %v6232 = vand.u32 %v6209, 65535
        %v6233 = vshrl.u32 %v6209, 16
        %v6234 = vand.u32 %v6204, 65535
        %v6235 = vshrl.u32 %v6204, 16
        %v6236 = vmul.u32 %v6232, %v6234
        %v6237 = vmul.u32 %v6232, %v6235
        %v6238 = vmul.u32 %v6233, %v6234
        %v6239 = vmul.u32 %v6233, %v6235
        %v6240 = vshll.u32 %v6237, 16
        %v6241 = vshrl.u32 %v6237, 16
        %v6242 = vshll.u32 %v6238, 16
        %v6243 = vshrl.u32 %v6238, 16
        %vm6244 = vc.u32 %v6236, %v6240
        %v6245 = vsel %vm6244, 1, 0
        %v6246 = vadd.s32 %v6236, %v6240
        %v6247 = vadd.s32 %v6239, %v6245
        %vm6248 = vc.u32 %v6246, %v6242
        %v6249 = vsel %vm6248, 1, 0
        %v6250 = vadd.s32 %v6246, %v6242
        %v6251 = vadd.s32 %v6247, %v6249
        %v6252 = vadd.s32 %v6251, %v6241
        %v6253 = vadd.s32 %v6252, %v6243
        %v6254 = vmul.u32 %v6209, %v6200
        %v6255 = vadd.s32 %v6231, %v6250
        %vm6256 = vc.u32 %v6231, %v6250
        %v6257 = vadd.s32 %v6253, 1
        %v6258 = vsel %vm6256, %v6257, %v6253
        %v6259 = vadd.s32 %v6254, %v6258
        %v6260 = vadd.s32 %v6259, 536870912
        %v6261 = vshrl.u32 %v6260, 30
        %v6262 = vshll.u32 %v6261, 30
        %v6263 = vsub.s32 %v6259, %v6262
        %vm6264 = vcmp.lt.s32.totalorder %v6263, 0
        %v6265 = vsub.s32 0, %v6263
        %v6266 = vsel %vm6264, %v6265, %v6263
        %v6267 = vclz %v6266
        %v6268 = vsub.s32 %v6267, 2
        %vm6269 = vcmp.gt.s32.totalorder 0, %v6268
        %v6270 = vsel %vm6269, 0, %v6268
        %v6271 = vsub.s32 32, %v6270
        %v6272 = vshll.u32 %v6263, %v6270
        %v6273 = vshrl.u32 %v6255, %v6271
        %v6274 = vor.u32 %v6272, %v6273
        %v6275 = vsub.s32 4294967266, %v6270
        %v6276 = vadd.s32 %v6275, 127
        %v6277 = vshll.u32 %v6276, 23
        %v6278 = vor.u32 4788187, %v6277
        %v6279 = vand.u32 2147483647, %v6278
        %v6281 = vcvt.s32.f32 %v6274
        %v6282 = vmul.f32 %v6281, %v6279
        %v6283 = vxor.u32 %v6282, 2147483648
        %v6284 = vsel %vm6163, %v6283, %v6282
        %v6285 = vsub.s32 4, %v6261
        %v6286 = vsel %vm6163, %v6285, %v6261
        %v6287 = vsel %vm6162, %v371, %v6284
        %v6288 = vsel %vm6162, 0, %v6286
        %v6289 = vmul.f32 %v6287, %v6287
        %v6290 = vmul.f32 %v6289, -0.001358992
        %v6291 = vadd.f32 %v6290, 0.041655596
        %v6292 = vmul.f32 %v6289, %v6291
        %v6293 = vadd.f32 %v6292, -0.4999988
        %v6294 = vmul.f32 %v6289, %v6293
        %v6295 = vadd.f32 1.0, %v6294
        %v6296 = vmul.f32 %v6287, %v6287
        %v6297 = vmul.f32 %v6296, -0.00019511016
        %v6298 = vadd.f32 %v6297, 0.008332121
        %v6299 = vmul.f32 %v6296, %v6298
        %v6300 = vadd.f32 %v6299, -0.16666654
        %v6301 = vmul.f32 %v6296, %v6300
        %v6302 = vadd.f32 %v6301, 1.0
        %v6303 = vmul.f32 %v6302, %v6287
        %vm6304 = vweird.f32 %v371
        %v6305 = vadd.s32 %v6288, 3
        %v6306 = vand.u32 %v6305, 3
        %vm6307 = vcmp.lt.s32.totalorder %v6306, 2
        %vm6308 = vcmp.eq.s32.totalorder %v6306, 0
        %v6309 = vxor.u32 %v6303, 2147483648
        %v6310 = vsel %vm6308, %v6295, %v6309
        %vm6311 = vcmp.eq.s32.totalorder %v6306, 2
        %v6312 = vxor.u32 %v6295, 2147483648
        %v6313 = vsel %vm6311, %v6312, %v6303
        %v6314 = vsel %vm6307, %v6310, %v6313
        %v6315 = vsel %vm6304, nan, %v6314
        %v6316 = vand.u32 2147483647, %v372
        %vm6317 = vcmp.le.f32.partialorder %v6316, 0.7853982
        %vm6318 = vcmp.lt.s32.totalorder %v372, 0
        %v6319 = vand.u32 %v372, 2139095040
        %v6320 = vshrl.u32 %v6319, 23
        %v6321 = vsub.s32 %v6320, 127
        %v6322 = vand.u32 2147483647, %v372
        %v6323 = vand.u32 %v6322, 8388607
        %v6324 = vor.u32 %v6323, 8388608
        %v6325 = vsub.s32 0, %v6324
        %v6326 = vadd.s32 %v6321, 1
        %vm6327 = vcmp.gt.s32.totalorder %v6326, 0
        %v6328 = vsel %vm6327, %v6326, 0
        %v6329 = vshrl.u32 %v6328, 5
        %v6330 = vand.u32 %v6328, 31
        %v6331 = vsub.s32 32, %v6330
        %v6332 = vshrl.u32 683565275, %v6331
        %v6333 = vshll.u32 683565275, %v6330
        %v6334 = vshrl.u32 2475754826, %v6331
        %v6335 = vor.u32 %v6333, %v6334
        %v6336 = vshll.u32 2475754826, %v6330
        %v6337 = vshrl.u32 2131351028, %v6331
        %v6338 = vor.u32 %v6336, %v6337
        %v6339 = vshll.u32 2131351028, %v6330
        %v6340 = vshrl.u32 2102212464, %v6331
        %v6341 = vor.u32 %v6339, %v6340
        %v6342 = vshll.u32 2102212464, %v6330
        %v6343 = vshrl.u32 920167782, %v6331
        %v6344 = vor.u32 %v6342, %v6343
        %v6345 = vshll.u32 920167782, %v6330
        %v6346 = vshrl.u32 1326507024, %v6331
        %v6347 = vor.u32 %v6345, %v6346
        %vm6348 = vcmp.lt.s32.totalorder %v6329, 1
        %vm6349 = vcmp.lt.s32.totalorder %v6329, 2
        %vm6350 = vcmp.lt.s32.totalorder %v6329, 3
        %vm6351 = vcmp.lt.s32.totalorder %v6329, 4
        %v6352 = vsel %vm6348, %v6332, %v6335
        %v6353 = vsel %vm6351, %v6341, 2102212464
        %v6354 = vsel %vm6350, %v6338, %v6353
        %v6355 = vsel %vm6349, %v6352, %v6354
        %v6356 = vsel %vm6348, %v6335, %v6338
        %v6357 = vsel %vm6351, %v6344, 920167782
        %v6358 = vsel %vm6350, %v6341, %v6357
        %v6359 = vsel %vm6349, %v6356, %v6358
        %v6360 = vsel %vm6348, %v6338, %v6341
        %v6361 = vsel %vm6351, %v6347, 1326507024
        %v6362 = vsel %vm6350, %v6344, %v6361
        %v6363 = vsel %vm6349, %v6360, %v6362
        %v6364 = vshll.u32 %v6324, 8
        %v6365 = vand.u32 %v6364, 65535
        %v6366 = vshrl.u32 %v6364, 16
        %v6367 = vand.u32 %v6363, 65535
        %v6368 = vshrl.u32 %v6363, 16
        %v6369 = vmul.u32 %v6365, %v6367
        %v6370 = vmul.u32 %v6365, %v6368
        %v6371 = vmul.u32 %v6366, %v6367
        %v6372 = vmul.u32 %v6366, %v6368
        %v6373 = vshll.u32 %v6370, 16
        %v6374 = vshrl.u32 %v6370, 16
        %v6375 = vshll.u32 %v6371, 16
        %v6376 = vshrl.u32 %v6371, 16
        %vm6377 = vc.u32 %v6369, %v6373
        %v6378 = vsel %vm6377, 1, 0
        %v6379 = vadd.s32 %v6369, %v6373
        %v6380 = vadd.s32 %v6372, %v6378
        %vm6381 = vc.u32 %v6379, %v6375
        %v6382 = vsel %vm6381, 1, 0
        %v6383 = vadd.s32 %v6379, %v6375
        %v6384 = vadd.s32 %v6380, %v6382
        %v6385 = vadd.s32 %v6384, %v6374
        %v6386 = vadd.s32 %v6385, %v6376
        %v6387 = vand.u32 %v6364, 65535
        %v6388 = vshrl.u32 %v6364, 16
        %v6389 = vand.u32 %v6359, 65535
        %v6390 = vshrl.u32 %v6359, 16
        %v6391 = vmul.u32 %v6387, %v6389
        %v6392 = vmul.u32 %v6387, %v6390
        %v6393 = vmul.u32 %v6388, %v6389
        %v6394 = vmul.u32 %v6388, %v6390
        %v6395 = vshll.u32 %v6392, 16
        %v6396 = vshrl.u32 %v6392, 16
        %v6397 = vshll.u32 %v6393, 16
        %v6398 = vshrl.u32 %v6393, 16
        %vm6399 = vc.u32 %v6391, %v6395
        %v6400 = vsel %vm6399, 1, 0
        %v6401 = vadd.s32 %v6391, %v6395
        %v6402 = vadd.s32 %v6394, %v6400
        %vm6403 = vc.u32 %v6401, %v6397
        %v6404 = vsel %vm6403, 1, 0
        %v6405 = vadd.s32 %v6401, %v6397
        %v6406 = vadd.s32 %v6402, %v6404
        %v6407 = vadd.s32 %v6406, %v6396
        %v6408 = vadd.s32 %v6407, %v6398
        %v6409 = vmul.u32 %v6364, %v6355
        %v6410 = vadd.s32 %v6386, %v6405
        %vm6411 = vc.u32 %v6386, %v6405
        %v6412 = vadd.s32 %v6408, 1
        %v6413 = vsel %vm6411, %v6412, %v6408
        %v6414 = vadd.s32 %v6409, %v6413
        %v6415 = vadd.s32 %v6414, 536870912
        %v6416 = vshrl.u32 %v6415, 30
        %v6417 = vshll.u32 %v6416, 30
        %v6418 = vsub.s32 %v6414, %v6417
        %vm6419 = vcmp.lt.s32.totalorder %v6418, 0
        %v6420 = vsub.s32 0, %v6418
        %v6421 = vsel %vm6419, %v6420, %v6418
        %v6422 = vclz %v6421
        %v6423 = vsub.s32 %v6422, 2
        %vm6424 = vcmp.gt.s32.totalorder 0, %v6423
        %v6425 = vsel %vm6424, 0, %v6423
        %v6426 = vsub.s32 32, %v6425
        %v6427 = vshll.u32 %v6418, %v6425
        %v6428 = vshrl.u32 %v6410, %v6426
        %v6429 = vor.u32 %v6427, %v6428
        %v6430 = vsub.s32 4294967266, %v6425
        %v6431 = vadd.s32 %v6430, 127
        %v6432 = vshll.u32 %v6431, 23
        %v6433 = vor.u32 4788187, %v6432
        %v6434 = vand.u32 2147483647, %v6433
        %v6436 = vcvt.s32.f32 %v6429
        %v6437 = vmul.f32 %v6436, %v6434
        %v6438 = vxor.u32 %v6437, 2147483648
        %v6439 = vsel %vm6318, %v6438, %v6437
        %v6440 = vsub.s32 4, %v6416
        %v6441 = vsel %vm6318, %v6440, %v6416
        %v6442 = vsel %vm6317, %v372, %v6439
        %v6443 = vsel %vm6317, 0, %v6441
        %v6444 = vmul.f32 %v6442, %v6442
        %v6445 = vmul.f32 %v6444, -0.001358992
        %v6446 = vadd.f32 %v6445, 0.041655596
        %v6447 = vmul.f32 %v6444, %v6446
        %v6448 = vadd.f32 %v6447, -0.4999988
        %v6449 = vmul.f32 %v6444, %v6448
        %v6450 = vadd.f32 1.0, %v6449
        %v6451 = vmul.f32 %v6442, %v6442
        %v6452 = vmul.f32 %v6451, -0.00019511016
        %v6453 = vadd.f32 %v6452, 0.008332121
        %v6454 = vmul.f32 %v6451, %v6453
        %v6455 = vadd.f32 %v6454, -0.16666654
        %v6456 = vmul.f32 %v6451, %v6455
        %v6457 = vadd.f32 %v6456, 1.0
        %v6458 = vmul.f32 %v6457, %v6442
        %vm6459 = vweird.f32 %v372
        %v6460 = vadd.s32 %v6443, 3
        %v6461 = vand.u32 %v6460, 3
        %vm6462 = vcmp.lt.s32.totalorder %v6461, 2
        %vm6463 = vcmp.eq.s32.totalorder %v6461, 0
        %v6464 = vxor.u32 %v6458, 2147483648
        %v6465 = vsel %vm6463, %v6450, %v6464
        %vm6466 = vcmp.eq.s32.totalorder %v6461, 2
        %v6467 = vxor.u32 %v6450, 2147483648
        %v6468 = vsel %vm6466, %v6467, %v6458
        %v6469 = vsel %vm6462, %v6465, %v6468
        %v6470 = vsel %vm6459, nan, %v6469
        %v6471 = vand.u32 2147483647, %v373
        %vm6472 = vcmp.le.f32.partialorder %v6471, 0.7853982
        %vm6473 = vcmp.lt.s32.totalorder %v373, 0
        %v6474 = vand.u32 %v373, 2139095040
        %v6475 = vshrl.u32 %v6474, 23
        %v6476 = vsub.s32 %v6475, 127
        %v6477 = vand.u32 2147483647, %v373
        %v6478 = vand.u32 %v6477, 8388607
        %v6479 = vor.u32 %v6478, 8388608
        %v6480 = vsub.s32 0, %v6479
        %v6481 = vadd.s32 %v6476, 1
        %vm6482 = vcmp.gt.s32.totalorder %v6481, 0
        %v6483 = vsel %vm6482, %v6481, 0
        %v6484 = vshrl.u32 %v6483, 5
        %v6485 = vand.u32 %v6483, 31
        %v6486 = vsub.s32 32, %v6485
        %v6487 = vshrl.u32 683565275, %v6486
        %v6488 = vshll.u32 683565275, %v6485
        %v6489 = vshrl.u32 2475754826, %v6486
        %v6490 = vor.u32 %v6488, %v6489
        %v6491 = vshll.u32 2475754826, %v6485
        %v6492 = vshrl.u32 2131351028, %v6486
        %v6493 = vor.u32 %v6491, %v6492
        %v6494 = vshll.u32 2131351028, %v6485
        %v6495 = vshrl.u32 2102212464, %v6486
        %v6496 = vor.u32 %v6494, %v6495
        %v6497 = vshll.u32 2102212464, %v6485
        %v6498 = vshrl.u32 920167782, %v6486
        %v6499 = vor.u32 %v6497, %v6498
        %v6500 = vshll.u32 920167782, %v6485
        %v6501 = vshrl.u32 1326507024, %v6486
        %v6502 = vor.u32 %v6500, %v6501
        %vm6503 = vcmp.lt.s32.totalorder %v6484, 1
        %vm6504 = vcmp.lt.s32.totalorder %v6484, 2
        %vm6505 = vcmp.lt.s32.totalorder %v6484, 3
        %vm6506 = vcmp.lt.s32.totalorder %v6484, 4
        %v6507 = vsel %vm6503, %v6487, %v6490
        %v6508 = vsel %vm6506, %v6496, 2102212464
        %v6509 = vsel %vm6505, %v6493, %v6508
        %v6510 = vsel %vm6504, %v6507, %v6509
        %v6511 = vsel %vm6503, %v6490, %v6493
        %v6512 = vsel %vm6506, %v6499, 920167782
        %v6513 = vsel %vm6505, %v6496, %v6512
        %v6514 = vsel %vm6504, %v6511, %v6513
        %v6515 = vsel %vm6503, %v6493, %v6496
        %v6516 = vsel %vm6506, %v6502, 1326507024
        %v6517 = vsel %vm6505, %v6499, %v6516
        %v6518 = vsel %vm6504, %v6515, %v6517
        %v6519 = vshll.u32 %v6479, 8
        %v6520 = vand.u32 %v6519, 65535
        %v6521 = vshrl.u32 %v6519, 16
        %v6522 = vand.u32 %v6518, 65535
        %v6523 = vshrl.u32 %v6518, 16
        %v6524 = vmul.u32 %v6520, %v6522
        %v6525 = vmul.u32 %v6520, %v6523
        %v6526 = vmul.u32 %v6521, %v6522
        %v6527 = vmul.u32 %v6521, %v6523
        %v6528 = vshll.u32 %v6525, 16
        %v6529 = vshrl.u32 %v6525, 16
        %v6530 = vshll.u32 %v6526, 16
        %v6531 = vshrl.u32 %v6526, 16
        %vm6532 = vc.u32 %v6524, %v6528
        %v6533 = vsel %vm6532, 1, 0
        %v6534 = vadd.s32 %v6524, %v6528
        %v6535 = vadd.s32 %v6527, %v6533
        %vm6536 = vc.u32 %v6534, %v6530
        %v6537 = vsel %vm6536, 1, 0
        %v6538 = vadd.s32 %v6534, %v6530
        %v6539 = vadd.s32 %v6535, %v6537
        %v6540 = vadd.s32 %v6539, %v6529
        %v6541 = vadd.s32 %v6540, %v6531
        %v6542 = vand.u32 %v6519, 65535
        %v6543 = vshrl.u32 %v6519, 16
        %v6544 = vand.u32 %v6514, 65535
        %v6545 = vshrl.u32 %v6514, 16
        %v6546 = vmul.u32 %v6542, %v6544
        %v6547 = vmul.u32 %v6542, %v6545
        %v6548 = vmul.u32 %v6543, %v6544
        %v6549 = vmul.u32 %v6543, %v6545
        %v6550 = vshll.u32 %v6547, 16
        %v6551 = vshrl.u32 %v6547, 16
        %v6552 = vshll.u32 %v6548, 16
        %v6553 = vshrl.u32 %v6548, 16
        %vm6554 = vc.u32 %v6546, %v6550
        %v6555 = vsel %vm6554, 1, 0
        %v6556 = vadd.s32 %v6546, %v6550
        %v6557 = vadd.s32 %v6549, %v6555
        %vm6558 = vc.u32 %v6556, %v6552
        %v6559 = vsel %vm6558, 1, 0
        %v6560 = vadd.s32 %v6556, %v6552
        %v6561 = vadd.s32 %v6557, %v6559
        %v6562 = vadd.s32 %v6561, %v6551
        %v6563 = vadd.s32 %v6562, %v6553
        %v6564 = vmul.u32 %v6519, %v6510
        %v6565 = vadd.s32 %v6541, %v6560
        %vm6566 = vc.u32 %v6541, %v6560
        %v6567 = vadd.s32 %v6563, 1
        %v6568 = vsel %vm6566, %v6567, %v6563
        %v6569 = vadd.s32 %v6564, %v6568
        %v6570 = vadd.s32 %v6569, 536870912
        %v6571 = vshrl.u32 %v6570, 30
        %v6572 = vshll.u32 %v6571, 30
        %v6573 = vsub.s32 %v6569, %v6572
        %vm6574 = vcmp.lt.s32.totalorder %v6573, 0
        %v6575 = vsub.s32 0, %v6573
        %v6576 = vsel %vm6574, %v6575, %v6573
        %v6577 = vclz %v6576
        %v6578 = vsub.s32 %v6577, 2
        %vm6579 = vcmp.gt.s32.totalorder 0, %v6578
        %v6580 = vsel %vm6579, 0, %v6578
        %v6581 = vsub.s32 32, %v6580
        %v6582 = vshll.u32 %v6573, %v6580
        %v6583 = vshrl.u32 %v6565, %v6581
        %v6584 = vor.u32 %v6582, %v6583
        %v6585 = vsub.s32 4294967266, %v6580
        %v6586 = vadd.s32 %v6585, 127
        %v6587 = vshll.u32 %v6586, 23
        %v6588 = vor.u32 4788187, %v6587
        %v6589 = vand.u32 2147483647, %v6588
        %v6591 = vcvt.s32.f32 %v6584
        %v6592 = vmul.f32 %v6591, %v6589
        %v6593 = vxor.u32 %v6592, 2147483648
        %v6594 = vsel %vm6473, %v6593, %v6592
        %v6595 = vsub.s32 4, %v6571
        %v6596 = vsel %vm6473, %v6595, %v6571
        %v6597 = vsel %vm6472, %v373, %v6594
        %v6598 = vsel %vm6472, 0, %v6596
        %v6599 = vmul.f32 %v6597, %v6597
        %v6600 = vmul.f32 %v6599, -0.001358992
        %v6601 = vadd.f32 %v6600, 0.041655596
        %v6602 = vmul.f32 %v6599, %v6601
        %v6603 = vadd.f32 %v6602, -0.4999988
        %v6604 = vmul.f32 %v6599, %v6603
        %v6605 = vadd.f32 1.0, %v6604
        %v6606 = vmul.f32 %v6597, %v6597
        %v6607 = vmul.f32 %v6606, -0.00019511016
        %v6608 = vadd.f32 %v6607, 0.008332121
        %v6609 = vmul.f32 %v6606, %v6608
        %v6610 = vadd.f32 %v6609, -0.16666654
        %v6611 = vmul.f32 %v6606, %v6610
        %v6612 = vadd.f32 %v6611, 1.0
        %v6613 = vmul.f32 %v6612, %v6597
        %vm6614 = vweird.f32 %v373
        %v6615 = vadd.s32 %v6598, 3
        %v6616 = vand.u32 %v6615, 3
        %vm6617 = vcmp.lt.s32.totalorder %v6616, 2
        %vm6618 = vcmp.eq.s32.totalorder %v6616, 0
        %v6619 = vxor.u32 %v6613, 2147483648
        %v6620 = vsel %vm6618, %v6605, %v6619
        %vm6621 = vcmp.eq.s32.totalorder %v6616, 2
        %v6622 = vxor.u32 %v6605, 2147483648
        %v6623 = vsel %vm6621, %v6622, %v6613
        %v6624 = vsel %vm6617, %v6620, %v6623
        %v6625 = vsel %vm6614, nan, %v6624
        %v6626 = vand.u32 2147483647, %v374
        %vm6627 = vcmp.le.f32.partialorder %v6626, 0.7853982
        %vm6628 = vcmp.lt.s32.totalorder %v374, 0
        %v6629 = vand.u32 %v374, 2139095040
        %v6630 = vshrl.u32 %v6629, 23
        %v6631 = vsub.s32 %v6630, 127
        %v6632 = vand.u32 2147483647, %v374
        %v6633 = vand.u32 %v6632, 8388607
        %v6634 = vor.u32 %v6633, 8388608
        %v6635 = vsub.s32 0, %v6634
        %v6636 = vadd.s32 %v6631, 1
        %vm6637 = vcmp.gt.s32.totalorder %v6636, 0
        %v6638 = vsel %vm6637, %v6636, 0
        %v6639 = vshrl.u32 %v6638, 5
        %v6640 = vand.u32 %v6638, 31
        %v6641 = vsub.s32 32, %v6640
        %v6642 = vshrl.u32 683565275, %v6641
        %v6643 = vshll.u32 683565275, %v6640
        %v6644 = vshrl.u32 2475754826, %v6641
        %v6645 = vor.u32 %v6643, %v6644
        %v6646 = vshll.u32 2475754826, %v6640
        %v6647 = vshrl.u32 2131351028, %v6641
        %v6648 = vor.u32 %v6646, %v6647
        %v6649 = vshll.u32 2131351028, %v6640
        %v6650 = vshrl.u32 2102212464, %v6641
        %v6651 = vor.u32 %v6649, %v6650
        %v6652 = vshll.u32 2102212464, %v6640
        %v6653 = vshrl.u32 920167782, %v6641
        %v6654 = vor.u32 %v6652, %v6653
        %v6655 = vshll.u32 920167782, %v6640
        %v6656 = vshrl.u32 1326507024, %v6641
        %v6657 = vor.u32 %v6655, %v6656
        %vm6658 = vcmp.lt.s32.totalorder %v6639, 1
        %vm6659 = vcmp.lt.s32.totalorder %v6639, 2
        %vm6660 = vcmp.lt.s32.totalorder %v6639, 3
        %vm6661 = vcmp.lt.s32.totalorder %v6639, 4
        %v6662 = vsel %vm6658, %v6642, %v6645
        %v6663 = vsel %vm6661, %v6651, 2102212464
        %v6664 = vsel %vm6660, %v6648, %v6663
        %v6665 = vsel %vm6659, %v6662, %v6664
        %v6666 = vsel %vm6658, %v6645, %v6648
        %v6667 = vsel %vm6661, %v6654, 920167782
        %v6668 = vsel %vm6660, %v6651, %v6667
        %v6669 = vsel %vm6659, %v6666, %v6668
        %v6670 = vsel %vm6658, %v6648, %v6651
        %v6671 = vsel %vm6661, %v6657, 1326507024
        %v6672 = vsel %vm6660, %v6654, %v6671
        %v6673 = vsel %vm6659, %v6670, %v6672
        %v6674 = vshll.u32 %v6634, 8
        %v6675 = vand.u32 %v6674, 65535
        %v6676 = vshrl.u32 %v6674, 16
        %v6677 = vand.u32 %v6673, 65535
        %v6678 = vshrl.u32 %v6673, 16
        %v6679 = vmul.u32 %v6675, %v6677
        %v6680 = vmul.u32 %v6675, %v6678
        %v6681 = vmul.u32 %v6676, %v6677
        %v6682 = vmul.u32 %v6676, %v6678
        %v6683 = vshll.u32 %v6680, 16
        %v6684 = vshrl.u32 %v6680, 16
        %v6685 = vshll.u32 %v6681, 16
        %v6686 = vshrl.u32 %v6681, 16
        %vm6687 = vc.u32 %v6679, %v6683
        %v6688 = vsel %vm6687, 1, 0
        %v6689 = vadd.s32 %v6679, %v6683
        %v6690 = vadd.s32 %v6682, %v6688
        %vm6691 = vc.u32 %v6689, %v6685
        %v6692 = vsel %vm6691, 1, 0
        %v6693 = vadd.s32 %v6689, %v6685
        %v6694 = vadd.s32 %v6690, %v6692
        %v6695 = vadd.s32 %v6694, %v6684
        %v6696 = vadd.s32 %v6695, %v6686
        %v6697 = vand.u32 %v6674, 65535
        %v6698 = vshrl.u32 %v6674, 16
        %v6699 = vand.u32 %v6669, 65535
        %v6700 = vshrl.u32 %v6669, 16
        %v6701 = vmul.u32 %v6697, %v6699
        %v6702 = vmul.u32 %v6697, %v6700
        %v6703 = vmul.u32 %v6698, %v6699
        %v6704 = vmul.u32 %v6698, %v6700
        %v6705 = vshll.u32 %v6702, 16
        %v6706 = vshrl.u32 %v6702, 16
        %v6707 = vshll.u32 %v6703, 16
        %v6708 = vshrl.u32 %v6703, 16
        %vm6709 = vc.u32 %v6701, %v6705
        %v6710 = vsel %vm6709, 1, 0
        %v6711 = vadd.s32 %v6701, %v6705
        %v6712 = vadd.s32 %v6704, %v6710
        %vm6713 = vc.u32 %v6711, %v6707
        %v6714 = vsel %vm6713, 1, 0
        %v6715 = vadd.s32 %v6711, %v6707
        %v6716 = vadd.s32 %v6712, %v6714
        %v6717 = vadd.s32 %v6716, %v6706
        %v6718 = vadd.s32 %v6717, %v6708
        %v6719 = vmul.u32 %v6674, %v6665
        %v6720 = vadd.s32 %v6696, %v6715
        %vm6721 = vc.u32 %v6696, %v6715
        %v6722 = vadd.s32 %v6718, 1
        %v6723 = vsel %vm6721, %v6722, %v6718
        %v6724 = vadd.s32 %v6719, %v6723
        %v6725 = vadd.s32 %v6724, 536870912
        %v6726 = vshrl.u32 %v6725, 30
        %v6727 = vshll.u32 %v6726, 30
        %v6728 = vsub.s32 %v6724, %v6727
        %vm6729 = vcmp.lt.s32.totalorder %v6728, 0
        %v6730 = vsub.s32 0, %v6728
        %v6731 = vsel %vm6729, %v6730, %v6728
        %v6732 = vclz %v6731
        %v6733 = vsub.s32 %v6732, 2
        %vm6734 = vcmp.gt.s32.totalorder 0, %v6733
        %v6735 = vsel %vm6734, 0, %v6733
        %v6736 = vsub.s32 32, %v6735
        %v6737 = vshll.u32 %v6728, %v6735
        %v6738 = vshrl.u32 %v6720, %v6736
        %v6739 = vor.u32 %v6737, %v6738
        %v6740 = vsub.s32 4294967266, %v6735
        %v6741 = vadd.s32 %v6740, 127
        %v6742 = vshll.u32 %v6741, 23
        %v6743 = vor.u32 4788187, %v6742
        %v6744 = vand.u32 2147483647, %v6743
        %v6746 = vcvt.s32.f32 %v6739
        %v6747 = vmul.f32 %v6746, %v6744
        %v6748 = vxor.u32 %v6747, 2147483648
        %v6749 = vsel %vm6628, %v6748, %v6747
        %v6750 = vsub.s32 4, %v6726
        %v6751 = vsel %vm6628, %v6750, %v6726
        %v6752 = vsel %vm6627, %v374, %v6749
        %v6753 = vsel %vm6627, 0, %v6751
        %v6754 = vmul.f32 %v6752, %v6752
        %v6755 = vmul.f32 %v6754, -0.001358992
        %v6756 = vadd.f32 %v6755, 0.041655596
        %v6757 = vmul.f32 %v6754, %v6756
        %v6758 = vadd.f32 %v6757, -0.4999988
        %v6759 = vmul.f32 %v6754, %v6758
        %v6760 = vadd.f32 1.0, %v6759
        %v6761 = vmul.f32 %v6752, %v6752
        %v6762 = vmul.f32 %v6761, -0.00019511016
        %v6763 = vadd.f32 %v6762, 0.008332121
        %v6764 = vmul.f32 %v6761, %v6763
        %v6765 = vadd.f32 %v6764, -0.16666654
        %v6766 = vmul.f32 %v6761, %v6765
        %v6767 = vadd.f32 %v6766, 1.0
        %v6768 = vmul.f32 %v6767, %v6752
        %vm6769 = vweird.f32 %v374
        %v6770 = vadd.s32 %v6753, 3
        %v6771 = vand.u32 %v6770, 3
        %vm6772 = vcmp.lt.s32.totalorder %v6771, 2
        %vm6773 = vcmp.eq.s32.totalorder %v6771, 0
        %v6774 = vxor.u32 %v6768, 2147483648
        %v6775 = vsel %vm6773, %v6760, %v6774
        %vm6776 = vcmp.eq.s32.totalorder %v6771, 2
        %v6777 = vxor.u32 %v6760, 2147483648
        %v6778 = vsel %vm6776, %v6777, %v6768
        %v6779 = vsel %vm6772, %v6775, %v6778
        %v6780 = vsel %vm6769, nan, %v6779
        %v6781 = vand.u32 2147483647, %v375
        %vm6782 = vcmp.le.f32.partialorder %v6781, 0.7853982
        %vm6783 = vcmp.lt.s32.totalorder %v375, 0
        %v6784 = vand.u32 %v375, 2139095040
        %v6785 = vshrl.u32 %v6784, 23
        %v6786 = vsub.s32 %v6785, 127
        %v6787 = vand.u32 2147483647, %v375
        %v6788 = vand.u32 %v6787, 8388607
        %v6789 = vor.u32 %v6788, 8388608
        %v6790 = vsub.s32 0, %v6789
        %v6791 = vadd.s32 %v6786, 1
        %vm6792 = vcmp.gt.s32.totalorder %v6791, 0
        %v6793 = vsel %vm6792, %v6791, 0
        %v6794 = vshrl.u32 %v6793, 5
        %v6795 = vand.u32 %v6793, 31
        %v6796 = vsub.s32 32, %v6795
        %v6797 = vshrl.u32 683565275, %v6796
        %v6798 = vshll.u32 683565275, %v6795
        %v6799 = vshrl.u32 2475754826, %v6796
        %v6800 = vor.u32 %v6798, %v6799
        %v6801 = vshll.u32 2475754826, %v6795
        %v6802 = vshrl.u32 2131351028, %v6796
        %v6803 = vor.u32 %v6801, %v6802
        %v6804 = vshll.u32 2131351028, %v6795
        %v6805 = vshrl.u32 2102212464, %v6796
        %v6806 = vor.u32 %v6804, %v6805
        %v6807 = vshll.u32 2102212464, %v6795
        %v6808 = vshrl.u32 920167782, %v6796
        %v6809 = vor.u32 %v6807, %v6808
        %v6810 = vshll.u32 920167782, %v6795
        %v6811 = vshrl.u32 1326507024, %v6796
        %v6812 = vor.u32 %v6810, %v6811
        %vm6813 = vcmp.lt.s32.totalorder %v6794, 1
        %vm6814 = vcmp.lt.s32.totalorder %v6794, 2
        %vm6815 = vcmp.lt.s32.totalorder %v6794, 3
        %vm6816 = vcmp.lt.s32.totalorder %v6794, 4
        %v6817 = vsel %vm6813, %v6797, %v6800
        %v6818 = vsel %vm6816, %v6806, 2102212464
        %v6819 = vsel %vm6815, %v6803, %v6818
        %v6820 = vsel %vm6814, %v6817, %v6819
        %v6821 = vsel %vm6813, %v6800, %v6803
        %v6822 = vsel %vm6816, %v6809, 920167782
        %v6823 = vsel %vm6815, %v6806, %v6822
        %v6824 = vsel %vm6814, %v6821, %v6823
        %v6825 = vsel %vm6813, %v6803, %v6806
        %v6826 = vsel %vm6816, %v6812, 1326507024
        %v6827 = vsel %vm6815, %v6809, %v6826
        %v6828 = vsel %vm6814, %v6825, %v6827
        %v6829 = vshll.u32 %v6789, 8
        %v6830 = vand.u32 %v6829, 65535
        %v6831 = vshrl.u32 %v6829, 16
        %v6832 = vand.u32 %v6828, 65535
        %v6833 = vshrl.u32 %v6828, 16
        %v6834 = vmul.u32 %v6830, %v6832
        %v6835 = vmul.u32 %v6830, %v6833
        %v6836 = vmul.u32 %v6831, %v6832
        %v6837 = vmul.u32 %v6831, %v6833
        %v6838 = vshll.u32 %v6835, 16
        %v6839 = vshrl.u32 %v6835, 16
        %v6840 = vshll.u32 %v6836, 16
        %v6841 = vshrl.u32 %v6836, 16
        %vm6842 = vc.u32 %v6834, %v6838
        %v6843 = vsel %vm6842, 1, 0
        %v6844 = vadd.s32 %v6834, %v6838
        %v6845 = vadd.s32 %v6837, %v6843
        %vm6846 = vc.u32 %v6844, %v6840
        %v6847 = vsel %vm6846, 1, 0
        %v6848 = vadd.s32 %v6844, %v6840
        %v6849 = vadd.s32 %v6845, %v6847
        %v6850 = vadd.s32 %v6849, %v6839
        %v6851 = vadd.s32 %v6850, %v6841
        %v6852 = vand.u32 %v6829, 65535
        %v6853 = vshrl.u32 %v6829, 16
        %v6854 = vand.u32 %v6824, 65535
        %v6855 = vshrl.u32 %v6824, 16
        %v6856 = vmul.u32 %v6852, %v6854
        %v6857 = vmul.u32 %v6852, %v6855
        %v6858 = vmul.u32 %v6853, %v6854
        %v6859 = vmul.u32 %v6853, %v6855
        %v6860 = vshll.u32 %v6857, 16
        %v6861 = vshrl.u32 %v6857, 16
        %v6862 = vshll.u32 %v6858, 16
        %v6863 = vshrl.u32 %v6858, 16
        %vm6864 = vc.u32 %v6856, %v6860
        %v6865 = vsel %vm6864, 1, 0
        %v6866 = vadd.s32 %v6856, %v6860
        %v6867 = vadd.s32 %v6859, %v6865
        %vm6868 = vc.u32 %v6866, %v6862
        %v6869 = vsel %vm6868, 1, 0
        %v6870 = vadd.s32 %v6866, %v6862
        %v6871 = vadd.s32 %v6867, %v6869
        %v6872 = vadd.s32 %v6871, %v6861
        %v6873 = vadd.s32 %v6872, %v6863
        %v6874 = vmul.u32 %v6829, %v6820
        %v6875 = vadd.s32 %v6851, %v6870
        %vm6876 = vc.u32 %v6851, %v6870
        %v6877 = vadd.s32 %v6873, 1
        %v6878 = vsel %vm6876, %v6877, %v6873
        %v6879 = vadd.s32 %v6874, %v6878
        %v6880 = vadd.s32 %v6879, 536870912
        %v6881 = vshrl.u32 %v6880, 30
        %v6882 = vshll.u32 %v6881, 30
        %v6883 = vsub.s32 %v6879, %v6882
        %vm6884 = vcmp.lt.s32.totalorder %v6883, 0
        %v6885 = vsub.s32 0, %v6883
        %v6886 = vsel %vm6884, %v6885, %v6883
        %v6887 = vclz %v6886
        %v6888 = vsub.s32 %v6887, 2
        %vm6889 = vcmp.gt.s32.totalorder 0, %v6888
        %v6890 = vsel %vm6889, 0, %v6888
        %v6891 = vsub.s32 32, %v6890
        %v6892 = vshll.u32 %v6883, %v6890
        %v6893 = vshrl.u32 %v6875, %v6891
        %v6894 = vor.u32 %v6892, %v6893
        %v6895 = vsub.s32 4294967266, %v6890
        %v6896 = vadd.s32 %v6895, 127
        %v6897 = vshll.u32 %v6896, 23
        %v6898 = vor.u32 4788187, %v6897
        %v6899 = vand.u32 2147483647, %v6898
        %v6901 = vcvt.s32.f32 %v6894
        %v6902 = vmul.f32 %v6901, %v6899
        %v6903 = vxor.u32 %v6902, 2147483648
        %v6904 = vsel %vm6783, %v6903, %v6902
        %v6905 = vsub.s32 4, %v6881
        %v6906 = vsel %vm6783, %v6905, %v6881
        %v6907 = vsel %vm6782, %v375, %v6904
        %v6908 = vsel %vm6782, 0, %v6906
        %v6909 = vmul.f32 %v6907, %v6907
        %v6910 = vmul.f32 %v6909, -0.001358992
        %v6911 = vadd.f32 %v6910, 0.041655596
        %v6912 = vmul.f32 %v6909, %v6911
        %v6913 = vadd.f32 %v6912, -0.4999988
        %v6914 = vmul.f32 %v6909, %v6913
        %v6915 = vadd.f32 1.0, %v6914
        %v6916 = vmul.f32 %v6907, %v6907
        %v6917 = vmul.f32 %v6916, -0.00019511016
        %v6918 = vadd.f32 %v6917, 0.008332121
        %v6919 = vmul.f32 %v6916, %v6918
        %v6920 = vadd.f32 %v6919, -0.16666654
        %v6921 = vmul.f32 %v6916, %v6920
        %v6922 = vadd.f32 %v6921, 1.0
        %v6923 = vmul.f32 %v6922, %v6907
        %vm6924 = vweird.f32 %v375
        %v6925 = vadd.s32 %v6908, 3
        %v6926 = vand.u32 %v6925, 3
        %vm6927 = vcmp.lt.s32.totalorder %v6926, 2
        %vm6928 = vcmp.eq.s32.totalorder %v6926, 0
        %v6929 = vxor.u32 %v6923, 2147483648
        %v6930 = vsel %vm6928, %v6915, %v6929
        %vm6931 = vcmp.eq.s32.totalorder %v6926, 2
        %v6932 = vxor.u32 %v6915, 2147483648
        %v6933 = vsel %vm6931, %v6932, %v6923
        %v6934 = vsel %vm6927, %v6930, %v6933
        %v6935 = vsel %vm6924, nan, %v6934
        %v6936 = vand.u32 2147483647, %v376
        %vm6937 = vcmp.le.f32.partialorder %v6936, 0.7853982
        %vm6938 = vcmp.lt.s32.totalorder %v376, 0
        %v6939 = vand.u32 %v376, 2139095040
        %v6940 = vshrl.u32 %v6939, 23
        %v6941 = vsub.s32 %v6940, 127
        %v6942 = vand.u32 2147483647, %v376
        %v6943 = vand.u32 %v6942, 8388607
        %v6944 = vor.u32 %v6943, 8388608
        %v6945 = vsub.s32 0, %v6944
        %v6946 = vadd.s32 %v6941, 1
        %vm6947 = vcmp.gt.s32.totalorder %v6946, 0
        %v6948 = vsel %vm6947, %v6946, 0
        %v6949 = vshrl.u32 %v6948, 5
        %v6950 = vand.u32 %v6948, 31
        %v6951 = vsub.s32 32, %v6950
        %v6952 = vshrl.u32 683565275, %v6951
        %v6953 = vshll.u32 683565275, %v6950
        %v6954 = vshrl.u32 2475754826, %v6951
        %v6955 = vor.u32 %v6953, %v6954
        %v6956 = vshll.u32 2475754826, %v6950
        %v6957 = vshrl.u32 2131351028, %v6951
        %v6958 = vor.u32 %v6956, %v6957
        %v6959 = vshll.u32 2131351028, %v6950
        %v6960 = vshrl.u32 2102212464, %v6951
        %v6961 = vor.u32 %v6959, %v6960
        %v6962 = vshll.u32 2102212464, %v6950
        %v6963 = vshrl.u32 920167782, %v6951
        %v6964 = vor.u32 %v6962, %v6963
        %v6965 = vshll.u32 920167782, %v6950
        %v6966 = vshrl.u32 1326507024, %v6951
        %v6967 = vor.u32 %v6965, %v6966
        %vm6968 = vcmp.lt.s32.totalorder %v6949, 1
        %vm6969 = vcmp.lt.s32.totalorder %v6949, 2
        %vm6970 = vcmp.lt.s32.totalorder %v6949, 3
        %vm6971 = vcmp.lt.s32.totalorder %v6949, 4
        %v6972 = vsel %vm6968, %v6952, %v6955
        %v6973 = vsel %vm6971, %v6961, 2102212464
        %v6974 = vsel %vm6970, %v6958, %v6973
        %v6975 = vsel %vm6969, %v6972, %v6974
        %v6976 = vsel %vm6968, %v6955, %v6958
        %v6977 = vsel %vm6971, %v6964, 920167782
        %v6978 = vsel %vm6970, %v6961, %v6977
        %v6979 = vsel %vm6969, %v6976, %v6978
        %v6980 = vsel %vm6968, %v6958, %v6961
        %v6981 = vsel %vm6971, %v6967, 1326507024
        %v6982 = vsel %vm6970, %v6964, %v6981
        %v6983 = vsel %vm6969, %v6980, %v6982
        %v6984 = vshll.u32 %v6944, 8
        %v6985 = vand.u32 %v6984, 65535
        %v6986 = vshrl.u32 %v6984, 16
        %v6987 = vand.u32 %v6983, 65535
        %v6988 = vshrl.u32 %v6983, 16
        %v6989 = vmul.u32 %v6985, %v6987
        %v6990 = vmul.u32 %v6985, %v6988
        %v6991 = vmul.u32 %v6986, %v6987
        %v6992 = vmul.u32 %v6986, %v6988
        %v6993 = vshll.u32 %v6990, 16
        %v6994 = vshrl.u32 %v6990, 16
        %v6995 = vshll.u32 %v6991, 16
        %v6996 = vshrl.u32 %v6991, 16
        %vm6997 = vc.u32 %v6989, %v6993
        %v6998 = vsel %vm6997, 1, 0
        %v6999 = vadd.s32 %v6989, %v6993
        %v7000 = vadd.s32 %v6992, %v6998
        %vm7001 = vc.u32 %v6999, %v6995
        %v7002 = vsel %vm7001, 1, 0
        %v7003 = vadd.s32 %v6999, %v6995
        %v7004 = vadd.s32 %v7000, %v7002
        %v7005 = vadd.s32 %v7004, %v6994
        %v7006 = vadd.s32 %v7005, %v6996
        %v7007 = vand.u32 %v6984, 65535
        %v7008 = vshrl.u32 %v6984, 16
        %v7009 = vand.u32 %v6979, 65535
        %v7010 = vshrl.u32 %v6979, 16
        %v7011 = vmul.u32 %v7007, %v7009
        %v7012 = vmul.u32 %v7007, %v7010
        %v7013 = vmul.u32 %v7008, %v7009
        %v7014 = vmul.u32 %v7008, %v7010
        %v7015 = vshll.u32 %v7012, 16
        %v7016 = vshrl.u32 %v7012, 16
        %v7017 = vshll.u32 %v7013, 16
        %v7018 = vshrl.u32 %v7013, 16
        %vm7019 = vc.u32 %v7011, %v7015
        %v7020 = vsel %vm7019, 1, 0
        %v7021 = vadd.s32 %v7011, %v7015
        %v7022 = vadd.s32 %v7014, %v7020
        %vm7023 = vc.u32 %v7021, %v7017
        %v7024 = vsel %vm7023, 1, 0
        %v7025 = vadd.s32 %v7021, %v7017
        %v7026 = vadd.s32 %v7022, %v7024
        %v7027 = vadd.s32 %v7026, %v7016
        %v7028 = vadd.s32 %v7027, %v7018
        %v7029 = vmul.u32 %v6984, %v6975
        %v7030 = vadd.s32 %v7006, %v7025
        %vm7031 = vc.u32 %v7006, %v7025
        %v7032 = vadd.s32 %v7028, 1
        %v7033 = vsel %vm7031, %v7032, %v7028
        %v7034 = vadd.s32 %v7029, %v7033
        %v7035 = vadd.s32 %v7034, 536870912
        %v7036 = vshrl.u32 %v7035, 30
        %v7037 = vshll.u32 %v7036, 30
        %v7038 = vsub.s32 %v7034, %v7037
        %vm7039 = vcmp.lt.s32.totalorder %v7038, 0
        %v7040 = vsub.s32 0, %v7038
        %v7041 = vsel %vm7039, %v7040, %v7038
        %v7042 = vclz %v7041
        %v7043 = vsub.s32 %v7042, 2
        %vm7044 = vcmp.gt.s32.totalorder 0, %v7043
        %v7045 = vsel %vm7044, 0, %v7043
        %v7046 = vsub.s32 32, %v7045
        %v7047 = vshll.u32 %v7038, %v7045
        %v7048 = vshrl.u32 %v7030, %v7046
        %v7049 = vor.u32 %v7047, %v7048
        %v7050 = vsub.s32 4294967266, %v7045
        %v7051 = vadd.s32 %v7050, 127
        %v7052 = vshll.u32 %v7051, 23
        %v7053 = vor.u32 4788187, %v7052
        %v7054 = vand.u32 2147483647, %v7053
        %v7056 = vcvt.s32.f32 %v7049
        %v7057 = vmul.f32 %v7056, %v7054
        %v7058 = vxor.u32 %v7057, 2147483648
        %v7059 = vsel %vm6938, %v7058, %v7057
        %v7060 = vsub.s32 4, %v7036
        %v7061 = vsel %vm6938, %v7060, %v7036
        %v7062 = vsel %vm6937, %v376, %v7059
        %v7063 = vsel %vm6937, 0, %v7061
        %v7064 = vmul.f32 %v7062, %v7062
        %v7065 = vmul.f32 %v7064, -0.001358992
        %v7066 = vadd.f32 %v7065, 0.041655596
        %v7067 = vmul.f32 %v7064, %v7066
        %v7068 = vadd.f32 %v7067, -0.4999988
        %v7069 = vmul.f32 %v7064, %v7068
        %v7070 = vadd.f32 1.0, %v7069
        %v7071 = vmul.f32 %v7062, %v7062
        %v7072 = vmul.f32 %v7071, -0.00019511016
        %v7073 = vadd.f32 %v7072, 0.008332121
        %v7074 = vmul.f32 %v7071, %v7073
        %v7075 = vadd.f32 %v7074, -0.16666654
        %v7076 = vmul.f32 %v7071, %v7075
        %v7077 = vadd.f32 %v7076, 1.0
        %v7078 = vmul.f32 %v7077, %v7062
        %vm7079 = vweird.f32 %v376
        %v7080 = vadd.s32 %v7063, 3
        %v7081 = vand.u32 %v7080, 3
        %vm7082 = vcmp.lt.s32.totalorder %v7081, 2
        %vm7083 = vcmp.eq.s32.totalorder %v7081, 0
        %v7084 = vxor.u32 %v7078, 2147483648
        %v7085 = vsel %vm7083, %v7070, %v7084
        %vm7086 = vcmp.eq.s32.totalorder %v7081, 2
        %v7087 = vxor.u32 %v7070, 2147483648
        %v7088 = vsel %vm7086, %v7087, %v7078
        %v7089 = vsel %vm7082, %v7085, %v7088
        %v7090 = vsel %vm7079, nan, %v7089
        %v7091 = vand.u32 2147483647, %v377
        %vm7092 = vcmp.le.f32.partialorder %v7091, 0.7853982
        %vm7093 = vcmp.lt.s32.totalorder %v377, 0
        %v7094 = vand.u32 %v377, 2139095040
        %v7095 = vshrl.u32 %v7094, 23
        %v7096 = vsub.s32 %v7095, 127
        %v7097 = vand.u32 2147483647, %v377
        %v7098 = vand.u32 %v7097, 8388607
        %v7099 = vor.u32 %v7098, 8388608
        %v7100 = vsub.s32 0, %v7099
        %v7101 = vadd.s32 %v7096, 1
        %vm7102 = vcmp.gt.s32.totalorder %v7101, 0
        %v7103 = vsel %vm7102, %v7101, 0
        %v7104 = vshrl.u32 %v7103, 5
        %v7105 = vand.u32 %v7103, 31
        %v7106 = vsub.s32 32, %v7105
        %v7107 = vshrl.u32 683565275, %v7106
        %v7108 = vshll.u32 683565275, %v7105
        %v7109 = vshrl.u32 2475754826, %v7106
        %v7110 = vor.u32 %v7108, %v7109
        %v7111 = vshll.u32 2475754826, %v7105
        %v7112 = vshrl.u32 2131351028, %v7106
        %v7113 = vor.u32 %v7111, %v7112
        %v7114 = vshll.u32 2131351028, %v7105
        %v7115 = vshrl.u32 2102212464, %v7106
        %v7116 = vor.u32 %v7114, %v7115
        %v7117 = vshll.u32 2102212464, %v7105
        %v7118 = vshrl.u32 920167782, %v7106
        %v7119 = vor.u32 %v7117, %v7118
        %v7120 = vshll.u32 920167782, %v7105
        %v7121 = vshrl.u32 1326507024, %v7106
        %v7122 = vor.u32 %v7120, %v7121
        %vm7123 = vcmp.lt.s32.totalorder %v7104, 1
        %vm7124 = vcmp.lt.s32.totalorder %v7104, 2
        %vm7125 = vcmp.lt.s32.totalorder %v7104, 3
        %vm7126 = vcmp.lt.s32.totalorder %v7104, 4
        %v7127 = vsel %vm7123, %v7107, %v7110
        %v7128 = vsel %vm7126, %v7116, 2102212464
        %v7129 = vsel %vm7125, %v7113, %v7128
        %v7130 = vsel %vm7124, %v7127, %v7129
        %v7131 = vsel %vm7123, %v7110, %v7113
        %v7132 = vsel %vm7126, %v7119, 920167782
        %v7133 = vsel %vm7125, %v7116, %v7132
        %v7134 = vsel %vm7124, %v7131, %v7133
        %v7135 = vsel %vm7123, %v7113, %v7116
        %v7136 = vsel %vm7126, %v7122, 1326507024
        %v7137 = vsel %vm7125, %v7119, %v7136
        %v7138 = vsel %vm7124, %v7135, %v7137
        %v7139 = vshll.u32 %v7099, 8
        %v7140 = vand.u32 %v7139, 65535
        %v7141 = vshrl.u32 %v7139, 16
        %v7142 = vand.u32 %v7138, 65535
        %v7143 = vshrl.u32 %v7138, 16
        %v7144 = vmul.u32 %v7140, %v7142
        %v7145 = vmul.u32 %v7140, %v7143
        %v7146 = vmul.u32 %v7141, %v7142
        %v7147 = vmul.u32 %v7141, %v7143
        %v7148 = vshll.u32 %v7145, 16
        %v7149 = vshrl.u32 %v7145, 16
        %v7150 = vshll.u32 %v7146, 16
        %v7151 = vshrl.u32 %v7146, 16
        %vm7152 = vc.u32 %v7144, %v7148
        %v7153 = vsel %vm7152, 1, 0
        %v7154 = vadd.s32 %v7144, %v7148
        %v7155 = vadd.s32 %v7147, %v7153
        %vm7156 = vc.u32 %v7154, %v7150
        %v7157 = vsel %vm7156, 1, 0
        %v7158 = vadd.s32 %v7154, %v7150
        %v7159 = vadd.s32 %v7155, %v7157
        %v7160 = vadd.s32 %v7159, %v7149
        %v7161 = vadd.s32 %v7160, %v7151
        %v7162 = vand.u32 %v7139, 65535
        %v7163 = vshrl.u32 %v7139, 16
        %v7164 = vand.u32 %v7134, 65535
        %v7165 = vshrl.u32 %v7134, 16
        %v7166 = vmul.u32 %v7162, %v7164
        %v7167 = vmul.u32 %v7162, %v7165
        %v7168 = vmul.u32 %v7163, %v7164
        %v7169 = vmul.u32 %v7163, %v7165
        %v7170 = vshll.u32 %v7167, 16
        %v7171 = vshrl.u32 %v7167, 16
        %v7172 = vshll.u32 %v7168, 16
        %v7173 = vshrl.u32 %v7168, 16
        %vm7174 = vc.u32 %v7166, %v7170
        %v7175 = vsel %vm7174, 1, 0
        %v7176 = vadd.s32 %v7166, %v7170
        %v7177 = vadd.s32 %v7169, %v7175
        %vm7178 = vc.u32 %v7176, %v7172
        %v7179 = vsel %vm7178, 1, 0
        %v7180 = vadd.s32 %v7176, %v7172
        %v7181 = vadd.s32 %v7177, %v7179
        %v7182 = vadd.s32 %v7181, %v7171
        %v7183 = vadd.s32 %v7182, %v7173
        %v7184 = vmul.u32 %v7139, %v7130
        %v7185 = vadd.s32 %v7161, %v7180
        %vm7186 = vc.u32 %v7161, %v7180
        %v7187 = vadd.s32 %v7183, 1
        %v7188 = vsel %vm7186, %v7187, %v7183
        %v7189 = vadd.s32 %v7184, %v7188
        %v7190 = vadd.s32 %v7189, 536870912
        %v7191 = vshrl.u32 %v7190, 30
        %v7192 = vshll.u32 %v7191, 30
        %v7193 = vsub.s32 %v7189, %v7192
        %vm7194 = vcmp.lt.s32.totalorder %v7193, 0
        %v7195 = vsub.s32 0, %v7193
        %v7196 = vsel %vm7194, %v7195, %v7193
        %v7197 = vclz %v7196
        %v7198 = vsub.s32 %v7197, 2
        %vm7199 = vcmp.gt.s32.totalorder 0, %v7198
        %v7200 = vsel %vm7199, 0, %v7198
        %v7201 = vsub.s32 32, %v7200
        %v7202 = vshll.u32 %v7193, %v7200
        %v7203 = vshrl.u32 %v7185, %v7201
        %v7204 = vor.u32 %v7202, %v7203
        %v7205 = vsub.s32 4294967266, %v7200
        %v7206 = vadd.s32 %v7205, 127
        %v7207 = vshll.u32 %v7206, 23
        %v7208 = vor.u32 4788187, %v7207
        %v7209 = vand.u32 2147483647, %v7208
        %v7211 = vcvt.s32.f32 %v7204
        %v7212 = vmul.f32 %v7211, %v7209
        %v7213 = vxor.u32 %v7212, 2147483648
        %v7214 = vsel %vm7093, %v7213, %v7212
        %v7215 = vsub.s32 4, %v7191
        %v7216 = vsel %vm7093, %v7215, %v7191
        %v7217 = vsel %vm7092, %v377, %v7214
        %v7218 = vsel %vm7092, 0, %v7216
        %v7219 = vmul.f32 %v7217, %v7217
        %v7220 = vmul.f32 %v7219, -0.001358992
        %v7221 = vadd.f32 %v7220, 0.041655596
        %v7222 = vmul.f32 %v7219, %v7221
        %v7223 = vadd.f32 %v7222, -0.4999988
        %v7224 = vmul.f32 %v7219, %v7223
        %v7225 = vadd.f32 1.0, %v7224
        %v7226 = vmul.f32 %v7217, %v7217
        %v7227 = vmul.f32 %v7226, -0.00019511016
        %v7228 = vadd.f32 %v7227, 0.008332121
        %v7229 = vmul.f32 %v7226, %v7228
        %v7230 = vadd.f32 %v7229, -0.16666654
        %v7231 = vmul.f32 %v7226, %v7230
        %v7232 = vadd.f32 %v7231, 1.0
        %v7233 = vmul.f32 %v7232, %v7217
        %vm7234 = vweird.f32 %v377
        %v7235 = vadd.s32 %v7218, 3
        %v7236 = vand.u32 %v7235, 3
        %vm7237 = vcmp.lt.s32.totalorder %v7236, 2
        %vm7238 = vcmp.eq.s32.totalorder %v7236, 0
        %v7239 = vxor.u32 %v7233, 2147483648
        %v7240 = vsel %vm7238, %v7225, %v7239
        %vm7241 = vcmp.eq.s32.totalorder %v7236, 2
        %v7242 = vxor.u32 %v7225, 2147483648
        %v7243 = vsel %vm7241, %v7242, %v7233
        %v7244 = vsel %vm7237, %v7240, %v7243
        %v7245 = vsel %vm7234, nan, %v7244
        %v7246 = vand.u32 2147483647, %v378
        %vm7247 = vcmp.le.f32.partialorder %v7246, 0.7853982
        %vm7248 = vcmp.lt.s32.totalorder %v378, 0
        %v7249 = vand.u32 %v378, 2139095040
        %v7250 = vshrl.u32 %v7249, 23
        %v7251 = vsub.s32 %v7250, 127
        %v7252 = vand.u32 2147483647, %v378
        %v7253 = vand.u32 %v7252, 8388607
        %v7254 = vor.u32 %v7253, 8388608
        %v7255 = vsub.s32 0, %v7254
        %v7256 = vadd.s32 %v7251, 1
        %vm7257 = vcmp.gt.s32.totalorder %v7256, 0
        %v7258 = vsel %vm7257, %v7256, 0
        %v7259 = vshrl.u32 %v7258, 5
        %v7260 = vand.u32 %v7258, 31
        %v7261 = vsub.s32 32, %v7260
        %v7262 = vshrl.u32 683565275, %v7261
        %v7263 = vshll.u32 683565275, %v7260
        %v7264 = vshrl.u32 2475754826, %v7261
        %v7265 = vor.u32 %v7263, %v7264
        %v7266 = vshll.u32 2475754826, %v7260
        %v7267 = vshrl.u32 2131351028, %v7261
        %v7268 = vor.u32 %v7266, %v7267
        %v7269 = vshll.u32 2131351028, %v7260
        %v7270 = vshrl.u32 2102212464, %v7261
        %v7271 = vor.u32 %v7269, %v7270
        %v7272 = vshll.u32 2102212464, %v7260
        %v7273 = vshrl.u32 920167782, %v7261
        %v7274 = vor.u32 %v7272, %v7273
        %v7275 = vshll.u32 920167782, %v7260
        %v7276 = vshrl.u32 1326507024, %v7261
        %v7277 = vor.u32 %v7275, %v7276
        %vm7278 = vcmp.lt.s32.totalorder %v7259, 1
        %vm7279 = vcmp.lt.s32.totalorder %v7259, 2
        %vm7280 = vcmp.lt.s32.totalorder %v7259, 3
        %vm7281 = vcmp.lt.s32.totalorder %v7259, 4
        %v7282 = vsel %vm7278, %v7262, %v7265
        %v7283 = vsel %vm7281, %v7271, 2102212464
        %v7284 = vsel %vm7280, %v7268, %v7283
        %v7285 = vsel %vm7279, %v7282, %v7284
        %v7286 = vsel %vm7278, %v7265, %v7268
        %v7287 = vsel %vm7281, %v7274, 920167782
        %v7288 = vsel %vm7280, %v7271, %v7287
        %v7289 = vsel %vm7279, %v7286, %v7288
        %v7290 = vsel %vm7278, %v7268, %v7271
        %v7291 = vsel %vm7281, %v7277, 1326507024
        %v7292 = vsel %vm7280, %v7274, %v7291
        %v7293 = vsel %vm7279, %v7290, %v7292
        %v7294 = vshll.u32 %v7254, 8
        %v7295 = vand.u32 %v7294, 65535
        %v7296 = vshrl.u32 %v7294, 16
        %v7297 = vand.u32 %v7293, 65535
        %v7298 = vshrl.u32 %v7293, 16
        %v7299 = vmul.u32 %v7295, %v7297
        %v7300 = vmul.u32 %v7295, %v7298
        %v7301 = vmul.u32 %v7296, %v7297
        %v7302 = vmul.u32 %v7296, %v7298
        %v7303 = vshll.u32 %v7300, 16
        %v7304 = vshrl.u32 %v7300, 16
        %v7305 = vshll.u32 %v7301, 16
        %v7306 = vshrl.u32 %v7301, 16
        %vm7307 = vc.u32 %v7299, %v7303
        %v7308 = vsel %vm7307, 1, 0
        %v7309 = vadd.s32 %v7299, %v7303
        %v7310 = vadd.s32 %v7302, %v7308
        %vm7311 = vc.u32 %v7309, %v7305
        %v7312 = vsel %vm7311, 1, 0
        %v7313 = vadd.s32 %v7309, %v7305
        %v7314 = vadd.s32 %v7310, %v7312
        %v7315 = vadd.s32 %v7314, %v7304
        %v7316 = vadd.s32 %v7315, %v7306
        %v7317 = vand.u32 %v7294, 65535
        %v7318 = vshrl.u32 %v7294, 16
        %v7319 = vand.u32 %v7289, 65535
        %v7320 = vshrl.u32 %v7289, 16
        %v7321 = vmul.u32 %v7317, %v7319
        %v7322 = vmul.u32 %v7317, %v7320
        %v7323 = vmul.u32 %v7318, %v7319
        %v7324 = vmul.u32 %v7318, %v7320
        %v7325 = vshll.u32 %v7322, 16
        %v7326 = vshrl.u32 %v7322, 16
        %v7327 = vshll.u32 %v7323, 16
        %v7328 = vshrl.u32 %v7323, 16
        %vm7329 = vc.u32 %v7321, %v7325
        %v7330 = vsel %vm7329, 1, 0
        %v7331 = vadd.s32 %v7321, %v7325
        %v7332 = vadd.s32 %v7324, %v7330
        %vm7333 = vc.u32 %v7331, %v7327
        %v7334 = vsel %vm7333, 1, 0
        %v7335 = vadd.s32 %v7331, %v7327
        %v7336 = vadd.s32 %v7332, %v7334
        %v7337 = vadd.s32 %v7336, %v7326
        %v7338 = vadd.s32 %v7337, %v7328
        %v7339 = vmul.u32 %v7294, %v7285
        %v7340 = vadd.s32 %v7316, %v7335
        %vm7341 = vc.u32 %v7316, %v7335
        %v7342 = vadd.s32 %v7338, 1
        %v7343 = vsel %vm7341, %v7342, %v7338
        %v7344 = vadd.s32 %v7339, %v7343
        %v7345 = vadd.s32 %v7344, 536870912
        %v7346 = vshrl.u32 %v7345, 30
        %v7347 = vshll.u32 %v7346, 30
        %v7348 = vsub.s32 %v7344, %v7347
        %vm7349 = vcmp.lt.s32.totalorder %v7348, 0
        %v7350 = vsub.s32 0, %v7348
        %v7351 = vsel %vm7349, %v7350, %v7348
        %v7352 = vclz %v7351
        %v7353 = vsub.s32 %v7352, 2
        %vm7354 = vcmp.gt.s32.totalorder 0, %v7353
        %v7355 = vsel %vm7354, 0, %v7353
        %v7356 = vsub.s32 32, %v7355
        %v7357 = vshll.u32 %v7348, %v7355
        %v7358 = vshrl.u32 %v7340, %v7356
        %v7359 = vor.u32 %v7357, %v7358
        %v7360 = vsub.s32 4294967266, %v7355
        %v7361 = vadd.s32 %v7360, 127
        %v7362 = vshll.u32 %v7361, 23
        %v7363 = vor.u32 4788187, %v7362
        %v7364 = vand.u32 2147483647, %v7363
        %v7366 = vcvt.s32.f32 %v7359
        %v7367 = vmul.f32 %v7366, %v7364
        %v7368 = vxor.u32 %v7367, 2147483648
        %v7369 = vsel %vm7248, %v7368, %v7367
        %v7370 = vsub.s32 4, %v7346
        %v7371 = vsel %vm7248, %v7370, %v7346
        %v7372 = vsel %vm7247, %v378, %v7369
        %v7373 = vsel %vm7247, 0, %v7371
        %v7374 = vmul.f32 %v7372, %v7372
        %v7375 = vmul.f32 %v7374, -0.001358992
        %v7376 = vadd.f32 %v7375, 0.041655596
        %v7377 = vmul.f32 %v7374, %v7376
        %v7378 = vadd.f32 %v7377, -0.4999988
        %v7379 = vmul.f32 %v7374, %v7378
        %v7380 = vadd.f32 1.0, %v7379
        %v7381 = vmul.f32 %v7372, %v7372
        %v7382 = vmul.f32 %v7381, -0.00019511016
        %v7383 = vadd.f32 %v7382, 0.008332121
        %v7384 = vmul.f32 %v7381, %v7383
        %v7385 = vadd.f32 %v7384, -0.16666654
        %v7386 = vmul.f32 %v7381, %v7385
        %v7387 = vadd.f32 %v7386, 1.0
        %v7388 = vmul.f32 %v7387, %v7372
        %vm7389 = vweird.f32 %v378
        %v7390 = vadd.s32 %v7373, 3
        %v7391 = vand.u32 %v7390, 3
        %vm7392 = vcmp.lt.s32.totalorder %v7391, 2
        %vm7393 = vcmp.eq.s32.totalorder %v7391, 0
        %v7394 = vxor.u32 %v7388, 2147483648
        %v7395 = vsel %vm7393, %v7380, %v7394
        %vm7396 = vcmp.eq.s32.totalorder %v7391, 2
        %v7397 = vxor.u32 %v7380, 2147483648
        %v7398 = vsel %vm7396, %v7397, %v7388
        %v7399 = vsel %vm7392, %v7395, %v7398
        %v7400 = vsel %vm7389, nan, %v7399
        %v7401 = vand.u32 2147483647, %v379
        %vm7402 = vcmp.le.f32.partialorder %v7401, 0.7853982
        %vm7403 = vcmp.lt.s32.totalorder %v379, 0
        %v7404 = vand.u32 %v379, 2139095040
        %v7405 = vshrl.u32 %v7404, 23
        %v7406 = vsub.s32 %v7405, 127
        %v7407 = vand.u32 2147483647, %v379
        %v7408 = vand.u32 %v7407, 8388607
        %v7409 = vor.u32 %v7408, 8388608
        %v7410 = vsub.s32 0, %v7409
        %v7411 = vadd.s32 %v7406, 1
        %vm7412 = vcmp.gt.s32.totalorder %v7411, 0
        %v7413 = vsel %vm7412, %v7411, 0
        %v7414 = vshrl.u32 %v7413, 5
        %v7415 = vand.u32 %v7413, 31
        %v7416 = vsub.s32 32, %v7415
        %v7417 = vshrl.u32 683565275, %v7416
        %v7418 = vshll.u32 683565275, %v7415
        %v7419 = vshrl.u32 2475754826, %v7416
        %v7420 = vor.u32 %v7418, %v7419
        %v7421 = vshll.u32 2475754826, %v7415
        %v7422 = vshrl.u32 2131351028, %v7416
        %v7423 = vor.u32 %v7421, %v7422
        %v7424 = vshll.u32 2131351028, %v7415
        %v7425 = vshrl.u32 2102212464, %v7416
        %v7426 = vor.u32 %v7424, %v7425
        %v7427 = vshll.u32 2102212464, %v7415
        %v7428 = vshrl.u32 920167782, %v7416
        %v7429 = vor.u32 %v7427, %v7428
        %v7430 = vshll.u32 920167782, %v7415
        %v7431 = vshrl.u32 1326507024, %v7416
        %v7432 = vor.u32 %v7430, %v7431
        %vm7433 = vcmp.lt.s32.totalorder %v7414, 1
        %vm7434 = vcmp.lt.s32.totalorder %v7414, 2
        %vm7435 = vcmp.lt.s32.totalorder %v7414, 3
        %vm7436 = vcmp.lt.s32.totalorder %v7414, 4
        %v7437 = vsel %vm7433, %v7417, %v7420
        %v7438 = vsel %vm7436, %v7426, 2102212464
        %v7439 = vsel %vm7435, %v7423, %v7438
        %v7440 = vsel %vm7434, %v7437, %v7439
        %v7441 = vsel %vm7433, %v7420, %v7423
        %v7442 = vsel %vm7436, %v7429, 920167782
        %v7443 = vsel %vm7435, %v7426, %v7442
        %v7444 = vsel %vm7434, %v7441, %v7443
        %v7445 = vsel %vm7433, %v7423, %v7426
        %v7446 = vsel %vm7436, %v7432, 1326507024
        %v7447 = vsel %vm7435, %v7429, %v7446
        %v7448 = vsel %vm7434, %v7445, %v7447
        %v7449 = vshll.u32 %v7409, 8
        %v7450 = vand.u32 %v7449, 65535
        %v7451 = vshrl.u32 %v7449, 16
        %v7452 = vand.u32 %v7448, 65535
        %v7453 = vshrl.u32 %v7448, 16
        %v7454 = vmul.u32 %v7450, %v7452
        %v7455 = vmul.u32 %v7450, %v7453
        %v7456 = vmul.u32 %v7451, %v7452
        %v7457 = vmul.u32 %v7451, %v7453
        %v7458 = vshll.u32 %v7455, 16
        %v7459 = vshrl.u32 %v7455, 16
        %v7460 = vshll.u32 %v7456, 16
        %v7461 = vshrl.u32 %v7456, 16
        %vm7462 = vc.u32 %v7454, %v7458
        %v7463 = vsel %vm7462, 1, 0
        %v7464 = vadd.s32 %v7454, %v7458
        %v7465 = vadd.s32 %v7457, %v7463
        %vm7466 = vc.u32 %v7464, %v7460
        %v7467 = vsel %vm7466, 1, 0
        %v7468 = vadd.s32 %v7464, %v7460
        %v7469 = vadd.s32 %v7465, %v7467
        %v7470 = vadd.s32 %v7469, %v7459
        %v7471 = vadd.s32 %v7470, %v7461
        %v7472 = vand.u32 %v7449, 65535
        %v7473 = vshrl.u32 %v7449, 16
        %v7474 = vand.u32 %v7444, 65535
        %v7475 = vshrl.u32 %v7444, 16
        %v7476 = vmul.u32 %v7472, %v7474
        %v7477 = vmul.u32 %v7472, %v7475
        %v7478 = vmul.u32 %v7473, %v7474
        %v7479 = vmul.u32 %v7473, %v7475
        %v7480 = vshll.u32 %v7477, 16
        %v7481 = vshrl.u32 %v7477, 16
        %v7482 = vshll.u32 %v7478, 16
        %v7483 = vshrl.u32 %v7478, 16
        %vm7484 = vc.u32 %v7476, %v7480
        %v7485 = vsel %vm7484, 1, 0
        %v7486 = vadd.s32 %v7476, %v7480
        %v7487 = vadd.s32 %v7479, %v7485
        %vm7488 = vc.u32 %v7486, %v7482
        %v7489 = vsel %vm7488, 1, 0
        %v7490 = vadd.s32 %v7486, %v7482
        %v7491 = vadd.s32 %v7487, %v7489
        %v7492 = vadd.s32 %v7491, %v7481
        %v7493 = vadd.s32 %v7492, %v7483
        %v7494 = vmul.u32 %v7449, %v7440
        %v7495 = vadd.s32 %v7471, %v7490
        %vm7496 = vc.u32 %v7471, %v7490
        %v7497 = vadd.s32 %v7493, 1
        %v7498 = vsel %vm7496, %v7497, %v7493
        %v7499 = vadd.s32 %v7494, %v7498
        %v7500 = vadd.s32 %v7499, 536870912
        %v7501 = vshrl.u32 %v7500, 30
        %v7502 = vshll.u32 %v7501, 30
        %v7503 = vsub.s32 %v7499, %v7502
        %vm7504 = vcmp.lt.s32.totalorder %v7503, 0
        %v7505 = vsub.s32 0, %v7503
        %v7506 = vsel %vm7504, %v7505, %v7503
        %v7507 = vclz %v7506
        %v7508 = vsub.s32 %v7507, 2
        %vm7509 = vcmp.gt.s32.totalorder 0, %v7508
        %v7510 = vsel %vm7509, 0, %v7508
        %v7511 = vsub.s32 32, %v7510
        %v7512 = vshll.u32 %v7503, %v7510
        %v7513 = vshrl.u32 %v7495, %v7511
        %v7514 = vor.u32 %v7512, %v7513
        %v7515 = vsub.s32 4294967266, %v7510
        %v7516 = vadd.s32 %v7515, 127
        %v7517 = vshll.u32 %v7516, 23
        %v7518 = vor.u32 4788187, %v7517
        %v7519 = vand.u32 2147483647, %v7518
        %v7521 = vcvt.s32.f32 %v7514
        %v7522 = vmul.f32 %v7521, %v7519
        %v7523 = vxor.u32 %v7522, 2147483648
        %v7524 = vsel %vm7403, %v7523, %v7522
        %v7525 = vsub.s32 4, %v7501
        %v7526 = vsel %vm7403, %v7525, %v7501
        %v7527 = vsel %vm7402, %v379, %v7524
        %v7528 = vsel %vm7402, 0, %v7526
        %v7529 = vmul.f32 %v7527, %v7527
        %v7530 = vmul.f32 %v7529, -0.001358992
        %v7531 = vadd.f32 %v7530, 0.041655596
        %v7532 = vmul.f32 %v7529, %v7531
        %v7533 = vadd.f32 %v7532, -0.4999988
        %v7534 = vmul.f32 %v7529, %v7533
        %v7535 = vadd.f32 1.0, %v7534
        %v7536 = vmul.f32 %v7527, %v7527
        %v7537 = vmul.f32 %v7536, -0.00019511016
        %v7538 = vadd.f32 %v7537, 0.008332121
        %v7539 = vmul.f32 %v7536, %v7538
        %v7540 = vadd.f32 %v7539, -0.16666654
        %v7541 = vmul.f32 %v7536, %v7540
        %v7542 = vadd.f32 %v7541, 1.0
        %v7543 = vmul.f32 %v7542, %v7527
        %vm7544 = vweird.f32 %v379
        %v7545 = vadd.s32 %v7528, 3
        %v7546 = vand.u32 %v7545, 3
        %vm7547 = vcmp.lt.s32.totalorder %v7546, 2
        %vm7548 = vcmp.eq.s32.totalorder %v7546, 0
        %v7549 = vxor.u32 %v7543, 2147483648
        %v7550 = vsel %vm7548, %v7535, %v7549
        %vm7551 = vcmp.eq.s32.totalorder %v7546, 2
        %v7552 = vxor.u32 %v7535, 2147483648
        %v7553 = vsel %vm7551, %v7552, %v7543
        %v7554 = vsel %vm7547, %v7550, %v7553
        %v7555 = vsel %vm7544, nan, %v7554
        %v7556 = vand.u32 2147483647, %v380
        %vm7557 = vcmp.le.f32.partialorder %v7556, 0.7853982
        %vm7558 = vcmp.lt.s32.totalorder %v380, 0
        %v7559 = vand.u32 %v380, 2139095040
        %v7560 = vshrl.u32 %v7559, 23
        %v7561 = vsub.s32 %v7560, 127
        %v7562 = vand.u32 2147483647, %v380
        %v7563 = vand.u32 %v7562, 8388607
        %v7564 = vor.u32 %v7563, 8388608
        %v7565 = vsub.s32 0, %v7564
        %v7566 = vadd.s32 %v7561, 1
        %vm7567 = vcmp.gt.s32.totalorder %v7566, 0
        %v7568 = vsel %vm7567, %v7566, 0
        %v7569 = vshrl.u32 %v7568, 5
        %v7570 = vand.u32 %v7568, 31
        %v7571 = vsub.s32 32, %v7570
        %v7572 = vshrl.u32 683565275, %v7571
        %v7573 = vshll.u32 683565275, %v7570
        %v7574 = vshrl.u32 2475754826, %v7571
        %v7575 = vor.u32 %v7573, %v7574
        %v7576 = vshll.u32 2475754826, %v7570
        %v7577 = vshrl.u32 2131351028, %v7571
        %v7578 = vor.u32 %v7576, %v7577
        %v7579 = vshll.u32 2131351028, %v7570
        %v7580 = vshrl.u32 2102212464, %v7571
        %v7581 = vor.u32 %v7579, %v7580
        %v7582 = vshll.u32 2102212464, %v7570
        %v7583 = vshrl.u32 920167782, %v7571
        %v7584 = vor.u32 %v7582, %v7583
        %v7585 = vshll.u32 920167782, %v7570
        %v7586 = vshrl.u32 1326507024, %v7571
        %v7587 = vor.u32 %v7585, %v7586
        %vm7588 = vcmp.lt.s32.totalorder %v7569, 1
        %vm7589 = vcmp.lt.s32.totalorder %v7569, 2
        %vm7590 = vcmp.lt.s32.totalorder %v7569, 3
        %vm7591 = vcmp.lt.s32.totalorder %v7569, 4
        %v7592 = vsel %vm7588, %v7572, %v7575
        %v7593 = vsel %vm7591, %v7581, 2102212464
        %v7594 = vsel %vm7590, %v7578, %v7593
        %v7595 = vsel %vm7589, %v7592, %v7594
        %v7596 = vsel %vm7588, %v7575, %v7578
        %v7597 = vsel %vm7591, %v7584, 920167782
        %v7598 = vsel %vm7590, %v7581, %v7597
        %v7599 = vsel %vm7589, %v7596, %v7598
        %v7600 = vsel %vm7588, %v7578, %v7581
        %v7601 = vsel %vm7591, %v7587, 1326507024
        %v7602 = vsel %vm7590, %v7584, %v7601
        %v7603 = vsel %vm7589, %v7600, %v7602
        %v7604 = vshll.u32 %v7564, 8
        %v7605 = vand.u32 %v7604, 65535
        %v7606 = vshrl.u32 %v7604, 16
        %v7607 = vand.u32 %v7603, 65535
        %v7608 = vshrl.u32 %v7603, 16
        %v7609 = vmul.u32 %v7605, %v7607
        %v7610 = vmul.u32 %v7605, %v7608
        %v7611 = vmul.u32 %v7606, %v7607
        %v7612 = vmul.u32 %v7606, %v7608
        %v7613 = vshll.u32 %v7610, 16
        %v7614 = vshrl.u32 %v7610, 16
        %v7615 = vshll.u32 %v7611, 16
        %v7616 = vshrl.u32 %v7611, 16
        %vm7617 = vc.u32 %v7609, %v7613
        %v7618 = vsel %vm7617, 1, 0
        %v7619 = vadd.s32 %v7609, %v7613
        %v7620 = vadd.s32 %v7612, %v7618
        %vm7621 = vc.u32 %v7619, %v7615
        %v7622 = vsel %vm7621, 1, 0
        %v7623 = vadd.s32 %v7619, %v7615
        %v7624 = vadd.s32 %v7620, %v7622
        %v7625 = vadd.s32 %v7624, %v7614
        %v7626 = vadd.s32 %v7625, %v7616
        %v7627 = vand.u32 %v7604, 65535
        %v7628 = vshrl.u32 %v7604, 16
        %v7629 = vand.u32 %v7599, 65535
        %v7630 = vshrl.u32 %v7599, 16
        %v7631 = vmul.u32 %v7627, %v7629
        %v7632 = vmul.u32 %v7627, %v7630
        %v7633 = vmul.u32 %v7628, %v7629
        %v7634 = vmul.u32 %v7628, %v7630
        %v7635 = vshll.u32 %v7632, 16
        %v7636 = vshrl.u32 %v7632, 16
        %v7637 = vshll.u32 %v7633, 16
        %v7638 = vshrl.u32 %v7633, 16
        %vm7639 = vc.u32 %v7631, %v7635
        %v7640 = vsel %vm7639, 1, 0
        %v7641 = vadd.s32 %v7631, %v7635
        %v7642 = vadd.s32 %v7634, %v7640
        %vm7643 = vc.u32 %v7641, %v7637
        %v7644 = vsel %vm7643, 1, 0
        %v7645 = vadd.s32 %v7641, %v7637
        %v7646 = vadd.s32 %v7642, %v7644
        %v7647 = vadd.s32 %v7646, %v7636
        %v7648 = vadd.s32 %v7647, %v7638
        %v7649 = vmul.u32 %v7604, %v7595
        %v7650 = vadd.s32 %v7626, %v7645
        %vm7651 = vc.u32 %v7626, %v7645
        %v7652 = vadd.s32 %v7648, 1
        %v7653 = vsel %vm7651, %v7652, %v7648
        %v7654 = vadd.s32 %v7649, %v7653
        %v7655 = vadd.s32 %v7654, 536870912
        %v7656 = vshrl.u32 %v7655, 30
        %v7657 = vshll.u32 %v7656, 30
        %v7658 = vsub.s32 %v7654, %v7657
        %vm7659 = vcmp.lt.s32.totalorder %v7658, 0
        %v7660 = vsub.s32 0, %v7658
        %v7661 = vsel %vm7659, %v7660, %v7658
        %v7662 = vclz %v7661
        %v7663 = vsub.s32 %v7662, 2
        %vm7664 = vcmp.gt.s32.totalorder 0, %v7663
        %v7665 = vsel %vm7664, 0, %v7663
        %v7666 = vsub.s32 32, %v7665
        %v7667 = vshll.u32 %v7658, %v7665
        %v7668 = vshrl.u32 %v7650, %v7666
        %v7669 = vor.u32 %v7667, %v7668
        %v7670 = vsub.s32 4294967266, %v7665
        %v7671 = vadd.s32 %v7670, 127
        %v7672 = vshll.u32 %v7671, 23
        %v7673 = vor.u32 4788187, %v7672
        %v7674 = vand.u32 2147483647, %v7673
        %v7676 = vcvt.s32.f32 %v7669
        %v7677 = vmul.f32 %v7676, %v7674
        %v7678 = vxor.u32 %v7677, 2147483648
        %v7679 = vsel %vm7558, %v7678, %v7677
        %v7680 = vsub.s32 4, %v7656
        %v7681 = vsel %vm7558, %v7680, %v7656
        %v7682 = vsel %vm7557, %v380, %v7679
        %v7683 = vsel %vm7557, 0, %v7681
        %v7684 = vmul.f32 %v7682, %v7682
        %v7685 = vmul.f32 %v7684, -0.001358992
        %v7686 = vadd.f32 %v7685, 0.041655596
        %v7687 = vmul.f32 %v7684, %v7686
        %v7688 = vadd.f32 %v7687, -0.4999988
        %v7689 = vmul.f32 %v7684, %v7688
        %v7690 = vadd.f32 1.0, %v7689
        %v7691 = vmul.f32 %v7682, %v7682
        %v7692 = vmul.f32 %v7691, -0.00019511016
        %v7693 = vadd.f32 %v7692, 0.008332121
        %v7694 = vmul.f32 %v7691, %v7693
        %v7695 = vadd.f32 %v7694, -0.16666654
        %v7696 = vmul.f32 %v7691, %v7695
        %v7697 = vadd.f32 %v7696, 1.0
        %v7698 = vmul.f32 %v7697, %v7682
        %vm7699 = vweird.f32 %v380
        %v7700 = vadd.s32 %v7683, 3
        %v7701 = vand.u32 %v7700, 3
        %vm7702 = vcmp.lt.s32.totalorder %v7701, 2
        %vm7703 = vcmp.eq.s32.totalorder %v7701, 0
        %v7704 = vxor.u32 %v7698, 2147483648
        %v7705 = vsel %vm7703, %v7690, %v7704
        %vm7706 = vcmp.eq.s32.totalorder %v7701, 2
        %v7707 = vxor.u32 %v7690, 2147483648
        %v7708 = vsel %vm7706, %v7707, %v7698
        %v7709 = vsel %vm7702, %v7705, %v7708
        %v7710 = vsel %vm7699, nan, %v7709
        %v7711 = vand.u32 2147483647, %v381
        %vm7712 = vcmp.le.f32.partialorder %v7711, 0.7853982
        %vm7713 = vcmp.lt.s32.totalorder %v381, 0
        %v7714 = vand.u32 %v381, 2139095040
        %v7715 = vshrl.u32 %v7714, 23
        %v7716 = vsub.s32 %v7715, 127
        %v7717 = vand.u32 2147483647, %v381
        %v7718 = vand.u32 %v7717, 8388607
        %v7719 = vor.u32 %v7718, 8388608
        %v7720 = vsub.s32 0, %v7719
        %v7721 = vadd.s32 %v7716, 1
        %vm7722 = vcmp.gt.s32.totalorder %v7721, 0
        %v7723 = vsel %vm7722, %v7721, 0
        %v7724 = vshrl.u32 %v7723, 5
        %v7725 = vand.u32 %v7723, 31
        %v7726 = vsub.s32 32, %v7725
        %v7727 = vshrl.u32 683565275, %v7726
        %v7728 = vshll.u32 683565275, %v7725
        %v7729 = vshrl.u32 2475754826, %v7726
        %v7730 = vor.u32 %v7728, %v7729
        %v7731 = vshll.u32 2475754826, %v7725
        %v7732 = vshrl.u32 2131351028, %v7726
        %v7733 = vor.u32 %v7731, %v7732
        %v7734 = vshll.u32 2131351028, %v7725
        %v7735 = vshrl.u32 2102212464, %v7726
        %v7736 = vor.u32 %v7734, %v7735
        %v7737 = vshll.u32 2102212464, %v7725
        %v7738 = vshrl.u32 920167782, %v7726
        %v7739 = vor.u32 %v7737, %v7738
        %v7740 = vshll.u32 920167782, %v7725
        %v7741 = vshrl.u32 1326507024, %v7726
        %v7742 = vor.u32 %v7740, %v7741
        %vm7743 = vcmp.lt.s32.totalorder %v7724, 1
        %vm7744 = vcmp.lt.s32.totalorder %v7724, 2
        %vm7745 = vcmp.lt.s32.totalorder %v7724, 3
        %vm7746 = vcmp.lt.s32.totalorder %v7724, 4
        %v7747 = vsel %vm7743, %v7727, %v7730
        %v7748 = vsel %vm7746, %v7736, 2102212464
        %v7749 = vsel %vm7745, %v7733, %v7748
        %v7750 = vsel %vm7744, %v7747, %v7749
        %v7751 = vsel %vm7743, %v7730, %v7733
        %v7752 = vsel %vm7746, %v7739, 920167782
        %v7753 = vsel %vm7745, %v7736, %v7752
        %v7754 = vsel %vm7744, %v7751, %v7753
        %v7755 = vsel %vm7743, %v7733, %v7736
        %v7756 = vsel %vm7746, %v7742, 1326507024
        %v7757 = vsel %vm7745, %v7739, %v7756
        %v7758 = vsel %vm7744, %v7755, %v7757
        %v7759 = vshll.u32 %v7719, 8
        %v7760 = vand.u32 %v7759, 65535
        %v7761 = vshrl.u32 %v7759, 16
        %v7762 = vand.u32 %v7758, 65535
        %v7763 = vshrl.u32 %v7758, 16
        %v7764 = vmul.u32 %v7760, %v7762
        %v7765 = vmul.u32 %v7760, %v7763
        %v7766 = vmul.u32 %v7761, %v7762
        %v7767 = vmul.u32 %v7761, %v7763
        %v7768 = vshll.u32 %v7765, 16
        %v7769 = vshrl.u32 %v7765, 16
        %v7770 = vshll.u32 %v7766, 16
        %v7771 = vshrl.u32 %v7766, 16
        %vm7772 = vc.u32 %v7764, %v7768
        %v7773 = vsel %vm7772, 1, 0
        %v7774 = vadd.s32 %v7764, %v7768
        %v7775 = vadd.s32 %v7767, %v7773
        %vm7776 = vc.u32 %v7774, %v7770
        %v7777 = vsel %vm7776, 1, 0
        %v7778 = vadd.s32 %v7774, %v7770
        %v7779 = vadd.s32 %v7775, %v7777
        %v7780 = vadd.s32 %v7779, %v7769
        %v7781 = vadd.s32 %v7780, %v7771
        %v7782 = vand.u32 %v7759, 65535
        %v7783 = vshrl.u32 %v7759, 16
        %v7784 = vand.u32 %v7754, 65535
        %v7785 = vshrl.u32 %v7754, 16
        %v7786 = vmul.u32 %v7782, %v7784
        %v7787 = vmul.u32 %v7782, %v7785
        %v7788 = vmul.u32 %v7783, %v7784
        %v7789 = vmul.u32 %v7783, %v7785
        %v7790 = vshll.u32 %v7787, 16
        %v7791 = vshrl.u32 %v7787, 16
        %v7792 = vshll.u32 %v7788, 16
        %v7793 = vshrl.u32 %v7788, 16
        %vm7794 = vc.u32 %v7786, %v7790
        %v7795 = vsel %vm7794, 1, 0
        %v7796 = vadd.s32 %v7786, %v7790
        %v7797 = vadd.s32 %v7789, %v7795
        %vm7798 = vc.u32 %v7796, %v7792
        %v7799 = vsel %vm7798, 1, 0
        %v7800 = vadd.s32 %v7796, %v7792
        %v7801 = vadd.s32 %v7797, %v7799
        %v7802 = vadd.s32 %v7801, %v7791
        %v7803 = vadd.s32 %v7802, %v7793
        %v7804 = vmul.u32 %v7759, %v7750
        %v7805 = vadd.s32 %v7781, %v7800
        %vm7806 = vc.u32 %v7781, %v7800
        %v7807 = vadd.s32 %v7803, 1
        %v7808 = vsel %vm7806, %v7807, %v7803
        %v7809 = vadd.s32 %v7804, %v7808
        %v7810 = vadd.s32 %v7809, 536870912
        %v7811 = vshrl.u32 %v7810, 30
        %v7812 = vshll.u32 %v7811, 30
        %v7813 = vsub.s32 %v7809, %v7812
        %vm7814 = vcmp.lt.s32.totalorder %v7813, 0
        %v7815 = vsub.s32 0, %v7813
        %v7816 = vsel %vm7814, %v7815, %v7813
        %v7817 = vclz %v7816
        %v7818 = vsub.s32 %v7817, 2
        %vm7819 = vcmp.gt.s32.totalorder 0, %v7818
        %v7820 = vsel %vm7819, 0, %v7818
        %v7821 = vsub.s32 32, %v7820
        %v7822 = vshll.u32 %v7813, %v7820
        %v7823 = vshrl.u32 %v7805, %v7821
        %v7824 = vor.u32 %v7822, %v7823
        %v7825 = vsub.s32 4294967266, %v7820
        %v7826 = vadd.s32 %v7825, 127
        %v7827 = vshll.u32 %v7826, 23
        %v7828 = vor.u32 4788187, %v7827
        %v7829 = vand.u32 2147483647, %v7828
        %v7831 = vcvt.s32.f32 %v7824
        %v7832 = vmul.f32 %v7831, %v7829
        %v7833 = vxor.u32 %v7832, 2147483648
        %v7834 = vsel %vm7713, %v7833, %v7832
        %v7835 = vsub.s32 4, %v7811
        %v7836 = vsel %vm7713, %v7835, %v7811
        %v7837 = vsel %vm7712, %v381, %v7834
        %v7838 = vsel %vm7712, 0, %v7836
        %v7839 = vmul.f32 %v7837, %v7837
        %v7840 = vmul.f32 %v7839, -0.001358992
        %v7841 = vadd.f32 %v7840, 0.041655596
        %v7842 = vmul.f32 %v7839, %v7841
        %v7843 = vadd.f32 %v7842, -0.4999988
        %v7844 = vmul.f32 %v7839, %v7843
        %v7845 = vadd.f32 1.0, %v7844
        %v7846 = vmul.f32 %v7837, %v7837
        %v7847 = vmul.f32 %v7846, -0.00019511016
        %v7848 = vadd.f32 %v7847, 0.008332121
        %v7849 = vmul.f32 %v7846, %v7848
        %v7850 = vadd.f32 %v7849, -0.16666654
        %v7851 = vmul.f32 %v7846, %v7850
        %v7852 = vadd.f32 %v7851, 1.0
        %v7853 = vmul.f32 %v7852, %v7837
        %vm7854 = vweird.f32 %v381
        %v7855 = vadd.s32 %v7838, 3
        %v7856 = vand.u32 %v7855, 3
        %vm7857 = vcmp.lt.s32.totalorder %v7856, 2
        %vm7858 = vcmp.eq.s32.totalorder %v7856, 0
        %v7859 = vxor.u32 %v7853, 2147483648
        %v7860 = vsel %vm7858, %v7845, %v7859
        %vm7861 = vcmp.eq.s32.totalorder %v7856, 2
        %v7862 = vxor.u32 %v7845, 2147483648
        %v7863 = vsel %vm7861, %v7862, %v7853
        %v7864 = vsel %vm7857, %v7860, %v7863
        %v7865 = vsel %vm7854, nan, %v7864
        %v7866 = vand.u32 2147483647, %v382
        %vm7867 = vcmp.le.f32.partialorder %v7866, 0.7853982
        %vm7868 = vcmp.lt.s32.totalorder %v382, 0
        %v7869 = vand.u32 %v382, 2139095040
        %v7870 = vshrl.u32 %v7869, 23
        %v7871 = vsub.s32 %v7870, 127
        %v7872 = vand.u32 2147483647, %v382
        %v7873 = vand.u32 %v7872, 8388607
        %v7874 = vor.u32 %v7873, 8388608
        %v7875 = vsub.s32 0, %v7874
        %v7876 = vadd.s32 %v7871, 1
        %vm7877 = vcmp.gt.s32.totalorder %v7876, 0
        %v7878 = vsel %vm7877, %v7876, 0
        %v7879 = vshrl.u32 %v7878, 5
        %v7880 = vand.u32 %v7878, 31
        %v7881 = vsub.s32 32, %v7880
        %v7882 = vshrl.u32 683565275, %v7881
        %v7883 = vshll.u32 683565275, %v7880
        %v7884 = vshrl.u32 2475754826, %v7881
        %v7885 = vor.u32 %v7883, %v7884
        %v7886 = vshll.u32 2475754826, %v7880
        %v7887 = vshrl.u32 2131351028, %v7881
        %v7888 = vor.u32 %v7886, %v7887
        %v7889 = vshll.u32 2131351028, %v7880
        %v7890 = vshrl.u32 2102212464, %v7881
        %v7891 = vor.u32 %v7889, %v7890
        %v7892 = vshll.u32 2102212464, %v7880
        %v7893 = vshrl.u32 920167782, %v7881
        %v7894 = vor.u32 %v7892, %v7893
        %v7895 = vshll.u32 920167782, %v7880
        %v7896 = vshrl.u32 1326507024, %v7881
        %v7897 = vor.u32 %v7895, %v7896
        %vm7898 = vcmp.lt.s32.totalorder %v7879, 1
        %vm7899 = vcmp.lt.s32.totalorder %v7879, 2
        %vm7900 = vcmp.lt.s32.totalorder %v7879, 3
        %vm7901 = vcmp.lt.s32.totalorder %v7879, 4
        %v7902 = vsel %vm7898, %v7882, %v7885
        %v7903 = vsel %vm7901, %v7891, 2102212464
        %v7904 = vsel %vm7900, %v7888, %v7903
        %v7905 = vsel %vm7899, %v7902, %v7904
        %v7906 = vsel %vm7898, %v7885, %v7888
        %v7907 = vsel %vm7901, %v7894, 920167782
        %v7908 = vsel %vm7900, %v7891, %v7907
        %v7909 = vsel %vm7899, %v7906, %v7908
        %v7910 = vsel %vm7898, %v7888, %v7891
        %v7911 = vsel %vm7901, %v7897, 1326507024
        %v7912 = vsel %vm7900, %v7894, %v7911
        %v7913 = vsel %vm7899, %v7910, %v7912
        %v7914 = vshll.u32 %v7874, 8
        %v7915 = vand.u32 %v7914, 65535
        %v7916 = vshrl.u32 %v7914, 16
        %v7917 = vand.u32 %v7913, 65535
        %v7918 = vshrl.u32 %v7913, 16
        %v7919 = vmul.u32 %v7915, %v7917
        %v7920 = vmul.u32 %v7915, %v7918
        %v7921 = vmul.u32 %v7916, %v7917
        %v7922 = vmul.u32 %v7916, %v7918
        %v7923 = vshll.u32 %v7920, 16
        %v7924 = vshrl.u32 %v7920, 16
        %v7925 = vshll.u32 %v7921, 16
        %v7926 = vshrl.u32 %v7921, 16
        %vm7927 = vc.u32 %v7919, %v7923
        %v7928 = vsel %vm7927, 1, 0
        %v7929 = vadd.s32 %v7919, %v7923
        %v7930 = vadd.s32 %v7922, %v7928
        %vm7931 = vc.u32 %v7929, %v7925
        %v7932 = vsel %vm7931, 1, 0
        %v7933 = vadd.s32 %v7929, %v7925
        %v7934 = vadd.s32 %v7930, %v7932
        %v7935 = vadd.s32 %v7934, %v7924
        %v7936 = vadd.s32 %v7935, %v7926
        %v7937 = vand.u32 %v7914, 65535
        %v7938 = vshrl.u32 %v7914, 16
        %v7939 = vand.u32 %v7909, 65535
        %v7940 = vshrl.u32 %v7909, 16
        %v7941 = vmul.u32 %v7937, %v7939
        %v7942 = vmul.u32 %v7937, %v7940
        %v7943 = vmul.u32 %v7938, %v7939
        %v7944 = vmul.u32 %v7938, %v7940
        %v7945 = vshll.u32 %v7942, 16
        %v7946 = vshrl.u32 %v7942, 16
        %v7947 = vshll.u32 %v7943, 16
        %v7948 = vshrl.u32 %v7943, 16
        %vm7949 = vc.u32 %v7941, %v7945
        %v7950 = vsel %vm7949, 1, 0
        %v7951 = vadd.s32 %v7941, %v7945
        %v7952 = vadd.s32 %v7944, %v7950
        %vm7953 = vc.u32 %v7951, %v7947
        %v7954 = vsel %vm7953, 1, 0
        %v7955 = vadd.s32 %v7951, %v7947
        %v7956 = vadd.s32 %v7952, %v7954
        %v7957 = vadd.s32 %v7956, %v7946
        %v7958 = vadd.s32 %v7957, %v7948
        %v7959 = vmul.u32 %v7914, %v7905
        %v7960 = vadd.s32 %v7936, %v7955
        %vm7961 = vc.u32 %v7936, %v7955
        %v7962 = vadd.s32 %v7958, 1
        %v7963 = vsel %vm7961, %v7962, %v7958
        %v7964 = vadd.s32 %v7959, %v7963
        %v7965 = vadd.s32 %v7964, 536870912
        %v7966 = vshrl.u32 %v7965, 30
        %v7967 = vshll.u32 %v7966, 30
        %v7968 = vsub.s32 %v7964, %v7967
        %vm7969 = vcmp.lt.s32.totalorder %v7968, 0
        %v7970 = vsub.s32 0, %v7968
        %v7971 = vsel %vm7969, %v7970, %v7968
        %v7972 = vclz %v7971
        %v7973 = vsub.s32 %v7972, 2
        %vm7974 = vcmp.gt.s32.totalorder 0, %v7973
        %v7975 = vsel %vm7974, 0, %v7973
        %v7976 = vsub.s32 32, %v7975
        %v7977 = vshll.u32 %v7968, %v7975
        %v7978 = vshrl.u32 %v7960, %v7976
        %v7979 = vor.u32 %v7977, %v7978
        %v7980 = vsub.s32 4294967266, %v7975
        %v7981 = vadd.s32 %v7980, 127
        %v7982 = vshll.u32 %v7981, 23
        %v7983 = vor.u32 4788187, %v7982
        %v7984 = vand.u32 2147483647, %v7983
        %v7986 = vcvt.s32.f32 %v7979
        %v7987 = vmul.f32 %v7986, %v7984
        %v7988 = vxor.u32 %v7987, 2147483648
        %v7989 = vsel %vm7868, %v7988, %v7987
        %v7990 = vsub.s32 4, %v7966
        %v7991 = vsel %vm7868, %v7990, %v7966
        %v7992 = vsel %vm7867, %v382, %v7989
        %v7993 = vsel %vm7867, 0, %v7991
        %v7994 = vmul.f32 %v7992, %v7992
        %v7995 = vmul.f32 %v7994, -0.001358992
        %v7996 = vadd.f32 %v7995, 0.041655596
        %v7997 = vmul.f32 %v7994, %v7996
        %v7998 = vadd.f32 %v7997, -0.4999988
        %v7999 = vmul.f32 %v7994, %v7998
        %v8000 = vadd.f32 1.0, %v7999
        %v8001 = vmul.f32 %v7992, %v7992
        %v8002 = vmul.f32 %v8001, -0.00019511016
        %v8003 = vadd.f32 %v8002, 0.008332121
        %v8004 = vmul.f32 %v8001, %v8003
        %v8005 = vadd.f32 %v8004, -0.16666654
        %v8006 = vmul.f32 %v8001, %v8005
        %v8007 = vadd.f32 %v8006, 1.0
        %v8008 = vmul.f32 %v8007, %v7992
        %vm8009 = vweird.f32 %v382
        %v8010 = vadd.s32 %v7993, 3
        %v8011 = vand.u32 %v8010, 3
        %vm8012 = vcmp.lt.s32.totalorder %v8011, 2
        %vm8013 = vcmp.eq.s32.totalorder %v8011, 0
        %v8014 = vxor.u32 %v8008, 2147483648
        %v8015 = vsel %vm8013, %v8000, %v8014
        %vm8016 = vcmp.eq.s32.totalorder %v8011, 2
        %v8017 = vxor.u32 %v8000, 2147483648
        %v8018 = vsel %vm8016, %v8017, %v8008
        %v8019 = vsel %vm8012, %v8015, %v8018
        %v8020 = vsel %vm8009, nan, %v8019
        %v8021 = vand.u32 2147483647, %v383
        %vm8022 = vcmp.le.f32.partialorder %v8021, 0.7853982
        %vm8023 = vcmp.lt.s32.totalorder %v383, 0
        %v8024 = vand.u32 %v383, 2139095040
        %v8025 = vshrl.u32 %v8024, 23
        %v8026 = vsub.s32 %v8025, 127
        %v8027 = vand.u32 2147483647, %v383
        %v8028 = vand.u32 %v8027, 8388607
        %v8029 = vor.u32 %v8028, 8388608
        %v8030 = vsub.s32 0, %v8029
        %v8031 = vadd.s32 %v8026, 1
        %vm8032 = vcmp.gt.s32.totalorder %v8031, 0
        %v8033 = vsel %vm8032, %v8031, 0
        %v8034 = vshrl.u32 %v8033, 5
        %v8035 = vand.u32 %v8033, 31
        %v8036 = vsub.s32 32, %v8035
        %v8037 = vshrl.u32 683565275, %v8036
        %v8038 = vshll.u32 683565275, %v8035
        %v8039 = vshrl.u32 2475754826, %v8036
        %v8040 = vor.u32 %v8038, %v8039
        %v8041 = vshll.u32 2475754826, %v8035
        %v8042 = vshrl.u32 2131351028, %v8036
        %v8043 = vor.u32 %v8041, %v8042
        %v8044 = vshll.u32 2131351028, %v8035
        %v8045 = vshrl.u32 2102212464, %v8036
        %v8046 = vor.u32 %v8044, %v8045
        %v8047 = vshll.u32 2102212464, %v8035
        %v8048 = vshrl.u32 920167782, %v8036
        %v8049 = vor.u32 %v8047, %v8048
        %v8050 = vshll.u32 920167782, %v8035
        %v8051 = vshrl.u32 1326507024, %v8036
        %v8052 = vor.u32 %v8050, %v8051
        %vm8053 = vcmp.lt.s32.totalorder %v8034, 1
        %vm8054 = vcmp.lt.s32.totalorder %v8034, 2
        %vm8055 = vcmp.lt.s32.totalorder %v8034, 3
        %vm8056 = vcmp.lt.s32.totalorder %v8034, 4
        %v8057 = vsel %vm8053, %v8037, %v8040
        %v8058 = vsel %vm8056, %v8046, 2102212464
        %v8059 = vsel %vm8055, %v8043, %v8058
        %v8060 = vsel %vm8054, %v8057, %v8059
        %v8061 = vsel %vm8053, %v8040, %v8043
        %v8062 = vsel %vm8056, %v8049, 920167782
        %v8063 = vsel %vm8055, %v8046, %v8062
        %v8064 = vsel %vm8054, %v8061, %v8063
        %v8065 = vsel %vm8053, %v8043, %v8046
        %v8066 = vsel %vm8056, %v8052, 1326507024
        %v8067 = vsel %vm8055, %v8049, %v8066
        %v8068 = vsel %vm8054, %v8065, %v8067
        %v8069 = vshll.u32 %v8029, 8
        %v8070 = vand.u32 %v8069, 65535
        %v8071 = vshrl.u32 %v8069, 16
        %v8072 = vand.u32 %v8068, 65535
        %v8073 = vshrl.u32 %v8068, 16
        %v8074 = vmul.u32 %v8070, %v8072
        %v8075 = vmul.u32 %v8070, %v8073
        %v8076 = vmul.u32 %v8071, %v8072
        %v8077 = vmul.u32 %v8071, %v8073
        %v8078 = vshll.u32 %v8075, 16
        %v8079 = vshrl.u32 %v8075, 16
        %v8080 = vshll.u32 %v8076, 16
        %v8081 = vshrl.u32 %v8076, 16
        %vm8082 = vc.u32 %v8074, %v8078
        %v8083 = vsel %vm8082, 1, 0
        %v8084 = vadd.s32 %v8074, %v8078
        %v8085 = vadd.s32 %v8077, %v8083
        %vm8086 = vc.u32 %v8084, %v8080
        %v8087 = vsel %vm8086, 1, 0
        %v8088 = vadd.s32 %v8084, %v8080
        %v8089 = vadd.s32 %v8085, %v8087
        %v8090 = vadd.s32 %v8089, %v8079
        %v8091 = vadd.s32 %v8090, %v8081
        %v8092 = vand.u32 %v8069, 65535
        %v8093 = vshrl.u32 %v8069, 16
        %v8094 = vand.u32 %v8064, 65535
        %v8095 = vshrl.u32 %v8064, 16
        %v8096 = vmul.u32 %v8092, %v8094
        %v8097 = vmul.u32 %v8092, %v8095
        %v8098 = vmul.u32 %v8093, %v8094
        %v8099 = vmul.u32 %v8093, %v8095
        %v8100 = vshll.u32 %v8097, 16
        %v8101 = vshrl.u32 %v8097, 16
        %v8102 = vshll.u32 %v8098, 16
        %v8103 = vshrl.u32 %v8098, 16
        %vm8104 = vc.u32 %v8096, %v8100
        %v8105 = vsel %vm8104, 1, 0
        %v8106 = vadd.s32 %v8096, %v8100
        %v8107 = vadd.s32 %v8099, %v8105
        %vm8108 = vc.u32 %v8106, %v8102
        %v8109 = vsel %vm8108, 1, 0
        %v8110 = vadd.s32 %v8106, %v8102
        %v8111 = vadd.s32 %v8107, %v8109
        %v8112 = vadd.s32 %v8111, %v8101
        %v8113 = vadd.s32 %v8112, %v8103
        %v8114 = vmul.u32 %v8069, %v8060
        %v8115 = vadd.s32 %v8091, %v8110
        %vm8116 = vc.u32 %v8091, %v8110
        %v8117 = vadd.s32 %v8113, 1
        %v8118 = vsel %vm8116, %v8117, %v8113
        %v8119 = vadd.s32 %v8114, %v8118
        %v8120 = vadd.s32 %v8119, 536870912
        %v8121 = vshrl.u32 %v8120, 30
        %v8122 = vshll.u32 %v8121, 30
        %v8123 = vsub.s32 %v8119, %v8122
        %vm8124 = vcmp.lt.s32.totalorder %v8123, 0
        %v8125 = vsub.s32 0, %v8123
        %v8126 = vsel %vm8124, %v8125, %v8123
        %v8127 = vclz %v8126
        %v8128 = vsub.s32 %v8127, 2
        %vm8129 = vcmp.gt.s32.totalorder 0, %v8128
        %v8130 = vsel %vm8129, 0, %v8128
        %v8131 = vsub.s32 32, %v8130
        %v8132 = vshll.u32 %v8123, %v8130
        %v8133 = vshrl.u32 %v8115, %v8131
        %v8134 = vor.u32 %v8132, %v8133
        %v8135 = vsub.s32 4294967266, %v8130
        %v8136 = vadd.s32 %v8135, 127
        %v8137 = vshll.u32 %v8136, 23
        %v8138 = vor.u32 4788187, %v8137
        %v8139 = vand.u32 2147483647, %v8138
        %v8141 = vcvt.s32.f32 %v8134
        %v8142 = vmul.f32 %v8141, %v8139
        %v8143 = vxor.u32 %v8142, 2147483648
        %v8144 = vsel %vm8023, %v8143, %v8142
        %v8145 = vsub.s32 4, %v8121
        %v8146 = vsel %vm8023, %v8145, %v8121
        %v8147 = vsel %vm8022, %v383, %v8144
        %v8148 = vsel %vm8022, 0, %v8146
        %v8149 = vmul.f32 %v8147, %v8147
        %v8150 = vmul.f32 %v8149, -0.001358992
        %v8151 = vadd.f32 %v8150, 0.041655596
        %v8152 = vmul.f32 %v8149, %v8151
        %v8153 = vadd.f32 %v8152, -0.4999988
        %v8154 = vmul.f32 %v8149, %v8153
        %v8155 = vadd.f32 1.0, %v8154
        %v8156 = vmul.f32 %v8147, %v8147
        %v8157 = vmul.f32 %v8156, -0.00019511016
        %v8158 = vadd.f32 %v8157, 0.008332121
        %v8159 = vmul.f32 %v8156, %v8158
        %v8160 = vadd.f32 %v8159, -0.16666654
        %v8161 = vmul.f32 %v8156, %v8160
        %v8162 = vadd.f32 %v8161, 1.0
        %v8163 = vmul.f32 %v8162, %v8147
        %vm8164 = vweird.f32 %v383
        %v8165 = vadd.s32 %v8148, 3
        %v8166 = vand.u32 %v8165, 3
        %vm8167 = vcmp.lt.s32.totalorder %v8166, 2
        %vm8168 = vcmp.eq.s32.totalorder %v8166, 0
        %v8169 = vxor.u32 %v8163, 2147483648
        %v8170 = vsel %vm8168, %v8155, %v8169
        %vm8171 = vcmp.eq.s32.totalorder %v8166, 2
        %v8172 = vxor.u32 %v8155, 2147483648
        %v8173 = vsel %vm8171, %v8172, %v8163
        %v8174 = vsel %vm8167, %v8170, %v8173
        %v8175 = vsel %vm8164, nan, %v8174
        %v8176 = vand.u32 2147483647, %v384
        %vm8177 = vcmp.le.f32.partialorder %v8176, 0.7853982
        %vm8178 = vcmp.lt.s32.totalorder %v384, 0
        %v8179 = vand.u32 %v384, 2139095040
        %v8180 = vshrl.u32 %v8179, 23
        %v8181 = vsub.s32 %v8180, 127
        %v8182 = vand.u32 2147483647, %v384
        %v8183 = vand.u32 %v8182, 8388607
        %v8184 = vor.u32 %v8183, 8388608
        %v8185 = vsub.s32 0, %v8184
        %v8186 = vadd.s32 %v8181, 1
        %vm8187 = vcmp.gt.s32.totalorder %v8186, 0
        %v8188 = vsel %vm8187, %v8186, 0
        %v8189 = vshrl.u32 %v8188, 5
        %v8190 = vand.u32 %v8188, 31
        %v8191 = vsub.s32 32, %v8190
        %v8192 = vshrl.u32 683565275, %v8191
        %v8193 = vshll.u32 683565275, %v8190
        %v8194 = vshrl.u32 2475754826, %v8191
        %v8195 = vor.u32 %v8193, %v8194
        %v8196 = vshll.u32 2475754826, %v8190
        %v8197 = vshrl.u32 2131351028, %v8191
        %v8198 = vor.u32 %v8196, %v8197
        %v8199 = vshll.u32 2131351028, %v8190
        %v8200 = vshrl.u32 2102212464, %v8191
        %v8201 = vor.u32 %v8199, %v8200
        %v8202 = vshll.u32 2102212464, %v8190
        %v8203 = vshrl.u32 920167782, %v8191
        %v8204 = vor.u32 %v8202, %v8203
        %v8205 = vshll.u32 920167782, %v8190
        %v8206 = vshrl.u32 1326507024, %v8191
        %v8207 = vor.u32 %v8205, %v8206
        %vm8208 = vcmp.lt.s32.totalorder %v8189, 1
        %vm8209 = vcmp.lt.s32.totalorder %v8189, 2
        %vm8210 = vcmp.lt.s32.totalorder %v8189, 3
        %vm8211 = vcmp.lt.s32.totalorder %v8189, 4
        %v8212 = vsel %vm8208, %v8192, %v8195
        %v8213 = vsel %vm8211, %v8201, 2102212464
        %v8214 = vsel %vm8210, %v8198, %v8213
        %v8215 = vsel %vm8209, %v8212, %v8214
        %v8216 = vsel %vm8208, %v8195, %v8198
        %v8217 = vsel %vm8211, %v8204, 920167782
        %v8218 = vsel %vm8210, %v8201, %v8217
        %v8219 = vsel %vm8209, %v8216, %v8218
        %v8220 = vsel %vm8208, %v8198, %v8201
        %v8221 = vsel %vm8211, %v8207, 1326507024
        %v8222 = vsel %vm8210, %v8204, %v8221
        %v8223 = vsel %vm8209, %v8220, %v8222
        %v8224 = vshll.u32 %v8184, 8
        %v8225 = vand.u32 %v8224, 65535
        %v8226 = vshrl.u32 %v8224, 16
        %v8227 = vand.u32 %v8223, 65535
        %v8228 = vshrl.u32 %v8223, 16
        %v8229 = vmul.u32 %v8225, %v8227
        %v8230 = vmul.u32 %v8225, %v8228
        %v8231 = vmul.u32 %v8226, %v8227
        %v8232 = vmul.u32 %v8226, %v8228
        %v8233 = vshll.u32 %v8230, 16
        %v8234 = vshrl.u32 %v8230, 16
        %v8235 = vshll.u32 %v8231, 16
        %v8236 = vshrl.u32 %v8231, 16
        %vm8237 = vc.u32 %v8229, %v8233
        %v8238 = vsel %vm8237, 1, 0
        %v8239 = vadd.s32 %v8229, %v8233
        %v8240 = vadd.s32 %v8232, %v8238
        %vm8241 = vc.u32 %v8239, %v8235
        %v8242 = vsel %vm8241, 1, 0
        %v8243 = vadd.s32 %v8239, %v8235
        %v8244 = vadd.s32 %v8240, %v8242
        %v8245 = vadd.s32 %v8244, %v8234
        %v8246 = vadd.s32 %v8245, %v8236
        %v8247 = vand.u32 %v8224, 65535
        %v8248 = vshrl.u32 %v8224, 16
        %v8249 = vand.u32 %v8219, 65535
        %v8250 = vshrl.u32 %v8219, 16
        %v8251 = vmul.u32 %v8247, %v8249
        %v8252 = vmul.u32 %v8247, %v8250
        %v8253 = vmul.u32 %v8248, %v8249
        %v8254 = vmul.u32 %v8248, %v8250
        %v8255 = vshll.u32 %v8252, 16
        %v8256 = vshrl.u32 %v8252, 16
        %v8257 = vshll.u32 %v8253, 16
        %v8258 = vshrl.u32 %v8253, 16
        %vm8259 = vc.u32 %v8251, %v8255
        %v8260 = vsel %vm8259, 1, 0
        %v8261 = vadd.s32 %v8251, %v8255
        %v8262 = vadd.s32 %v8254, %v8260
        %vm8263 = vc.u32 %v8261, %v8257
        %v8264 = vsel %vm8263, 1, 0
        %v8265 = vadd.s32 %v8261, %v8257
        %v8266 = vadd.s32 %v8262, %v8264
        %v8267 = vadd.s32 %v8266, %v8256
        %v8268 = vadd.s32 %v8267, %v8258
        %v8269 = vmul.u32 %v8224, %v8215
        %v8270 = vadd.s32 %v8246, %v8265
        %vm8271 = vc.u32 %v8246, %v8265
        %v8272 = vadd.s32 %v8268, 1
        %v8273 = vsel %vm8271, %v8272, %v8268
        %v8274 = vadd.s32 %v8269, %v8273
        %v8275 = vadd.s32 %v8274, 536870912
        %v8276 = vshrl.u32 %v8275, 30
        %v8277 = vshll.u32 %v8276, 30
        %v8278 = vsub.s32 %v8274, %v8277
        %vm8279 = vcmp.lt.s32.totalorder %v8278, 0
        %v8280 = vsub.s32 0, %v8278
        %v8281 = vsel %vm8279, %v8280, %v8278
        %v8282 = vclz %v8281
        %v8283 = vsub.s32 %v8282, 2
        %vm8284 = vcmp.gt.s32.totalorder 0, %v8283
        %v8285 = vsel %vm8284, 0, %v8283
        %v8286 = vsub.s32 32, %v8285
        %v8287 = vshll.u32 %v8278, %v8285
        %v8288 = vshrl.u32 %v8270, %v8286
        %v8289 = vor.u32 %v8287, %v8288
        %v8290 = vsub.s32 4294967266, %v8285
        %v8291 = vadd.s32 %v8290, 127
        %v8292 = vshll.u32 %v8291, 23
        %v8293 = vor.u32 4788187, %v8292
        %v8294 = vand.u32 2147483647, %v8293
        %v8296 = vcvt.s32.f32 %v8289
        %v8297 = vmul.f32 %v8296, %v8294
        %v8298 = vxor.u32 %v8297, 2147483648
        %v8299 = vsel %vm8178, %v8298, %v8297
        %v8300 = vsub.s32 4, %v8276
        %v8301 = vsel %vm8178, %v8300, %v8276
        %v8302 = vsel %vm8177, %v384, %v8299
        %v8303 = vsel %vm8177, 0, %v8301
        %v8304 = vmul.f32 %v8302, %v8302
        %v8305 = vmul.f32 %v8304, -0.001358992
        %v8306 = vadd.f32 %v8305, 0.041655596
        %v8307 = vmul.f32 %v8304, %v8306
        %v8308 = vadd.f32 %v8307, -0.4999988
        %v8309 = vmul.f32 %v8304, %v8308
        %v8310 = vadd.f32 1.0, %v8309
        %v8311 = vmul.f32 %v8302, %v8302
        %v8312 = vmul.f32 %v8311, -0.00019511016
        %v8313 = vadd.f32 %v8312, 0.008332121
        %v8314 = vmul.f32 %v8311, %v8313
        %v8315 = vadd.f32 %v8314, -0.16666654
        %v8316 = vmul.f32 %v8311, %v8315
        %v8317 = vadd.f32 %v8316, 1.0
        %v8318 = vmul.f32 %v8317, %v8302
        %vm8319 = vweird.f32 %v384
        %v8320 = vadd.s32 %v8303, 3
        %v8321 = vand.u32 %v8320, 3
        %vm8322 = vcmp.lt.s32.totalorder %v8321, 2
        %vm8323 = vcmp.eq.s32.totalorder %v8321, 0
        %v8324 = vxor.u32 %v8318, 2147483648
        %v8325 = vsel %vm8323, %v8310, %v8324
        %vm8326 = vcmp.eq.s32.totalorder %v8321, 2
        %v8327 = vxor.u32 %v8310, 2147483648
        %v8328 = vsel %vm8326, %v8327, %v8318
        %v8329 = vsel %vm8322, %v8325, %v8328
        %v8330 = vsel %vm8319, nan, %v8329
        %v8331 = vand.u32 2147483647, %v385
        %vm8332 = vcmp.le.f32.partialorder %v8331, 0.7853982
        %vm8333 = vcmp.lt.s32.totalorder %v385, 0
        %v8334 = vand.u32 %v385, 2139095040
        %v8335 = vshrl.u32 %v8334, 23
        %v8336 = vsub.s32 %v8335, 127
        %v8337 = vand.u32 2147483647, %v385
        %v8338 = vand.u32 %v8337, 8388607
        %v8339 = vor.u32 %v8338, 8388608
        %v8340 = vsub.s32 0, %v8339
        %v8341 = vadd.s32 %v8336, 1
        %vm8342 = vcmp.gt.s32.totalorder %v8341, 0
        %v8343 = vsel %vm8342, %v8341, 0
        %v8344 = vshrl.u32 %v8343, 5
        %v8345 = vand.u32 %v8343, 31
        %v8346 = vsub.s32 32, %v8345
        %v8347 = vshrl.u32 683565275, %v8346
        %v8348 = vshll.u32 683565275, %v8345
        %v8349 = vshrl.u32 2475754826, %v8346
        %v8350 = vor.u32 %v8348, %v8349
        %v8351 = vshll.u32 2475754826, %v8345
        %v8352 = vshrl.u32 2131351028, %v8346
        %v8353 = vor.u32 %v8351, %v8352
        %v8354 = vshll.u32 2131351028, %v8345
        %v8355 = vshrl.u32 2102212464, %v8346
        %v8356 = vor.u32 %v8354, %v8355
        %v8357 = vshll.u32 2102212464, %v8345
        %v8358 = vshrl.u32 920167782, %v8346
        %v8359 = vor.u32 %v8357, %v8358
        %v8360 = vshll.u32 920167782, %v8345
        %v8361 = vshrl.u32 1326507024, %v8346
        %v8362 = vor.u32 %v8360, %v8361
        %vm8363 = vcmp.lt.s32.totalorder %v8344, 1
        %vm8364 = vcmp.lt.s32.totalorder %v8344, 2
        %vm8365 = vcmp.lt.s32.totalorder %v8344, 3
        %vm8366 = vcmp.lt.s32.totalorder %v8344, 4
        %v8367 = vsel %vm8363, %v8347, %v8350
        %v8368 = vsel %vm8366, %v8356, 2102212464
        %v8369 = vsel %vm8365, %v8353, %v8368
        %v8370 = vsel %vm8364, %v8367, %v8369
        %v8371 = vsel %vm8363, %v8350, %v8353
        %v8372 = vsel %vm8366, %v8359, 920167782
        %v8373 = vsel %vm8365, %v8356, %v8372
        %v8374 = vsel %vm8364, %v8371, %v8373
        %v8375 = vsel %vm8363, %v8353, %v8356
        %v8376 = vsel %vm8366, %v8362, 1326507024
        %v8377 = vsel %vm8365, %v8359, %v8376
        %v8378 = vsel %vm8364, %v8375, %v8377
        %v8379 = vshll.u32 %v8339, 8
        %v8380 = vand.u32 %v8379, 65535
        %v8381 = vshrl.u32 %v8379, 16
        %v8382 = vand.u32 %v8378, 65535
        %v8383 = vshrl.u32 %v8378, 16
        %v8384 = vmul.u32 %v8380, %v8382
        %v8385 = vmul.u32 %v8380, %v8383
        %v8386 = vmul.u32 %v8381, %v8382
        %v8387 = vmul.u32 %v8381, %v8383
        %v8388 = vshll.u32 %v8385, 16
        %v8389 = vshrl.u32 %v8385, 16
        %v8390 = vshll.u32 %v8386, 16
        %v8391 = vshrl.u32 %v8386, 16
        %vm8392 = vc.u32 %v8384, %v8388
        %v8393 = vsel %vm8392, 1, 0
        %v8394 = vadd.s32 %v8384, %v8388
        %v8395 = vadd.s32 %v8387, %v8393
        %vm8396 = vc.u32 %v8394, %v8390
        %v8397 = vsel %vm8396, 1, 0
        %v8398 = vadd.s32 %v8394, %v8390
        %v8399 = vadd.s32 %v8395, %v8397
        %v8400 = vadd.s32 %v8399, %v8389
        %v8401 = vadd.s32 %v8400, %v8391
        %v8402 = vand.u32 %v8379, 65535
        %v8403 = vshrl.u32 %v8379, 16
        %v8404 = vand.u32 %v8374, 65535
        %v8405 = vshrl.u32 %v8374, 16
        %v8406 = vmul.u32 %v8402, %v8404
        %v8407 = vmul.u32 %v8402, %v8405
        %v8408 = vmul.u32 %v8403, %v8404
        %v8409 = vmul.u32 %v8403, %v8405
        %v8410 = vshll.u32 %v8407, 16
        %v8411 = vshrl.u32 %v8407, 16
        %v8412 = vshll.u32 %v8408, 16
        %v8413 = vshrl.u32 %v8408, 16
        %vm8414 = vc.u32 %v8406, %v8410
        %v8415 = vsel %vm8414, 1, 0
        %v8416 = vadd.s32 %v8406, %v8410
        %v8417 = vadd.s32 %v8409, %v8415
        %vm8418 = vc.u32 %v8416, %v8412
        %v8419 = vsel %vm8418, 1, 0
        %v8420 = vadd.s32 %v8416, %v8412
        %v8421 = vadd.s32 %v8417, %v8419
        %v8422 = vadd.s32 %v8421, %v8411
        %v8423 = vadd.s32 %v8422, %v8413
        %v8424 = vmul.u32 %v8379, %v8370
        %v8425 = vadd.s32 %v8401, %v8420
        %vm8426 = vc.u32 %v8401, %v8420
        %v8427 = vadd.s32 %v8423, 1
        %v8428 = vsel %vm8426, %v8427, %v8423
        %v8429 = vadd.s32 %v8424, %v8428
        %v8430 = vadd.s32 %v8429, 536870912
        %v8431 = vshrl.u32 %v8430, 30
        %v8432 = vshll.u32 %v8431, 30
        %v8433 = vsub.s32 %v8429, %v8432
        %vm8434 = vcmp.lt.s32.totalorder %v8433, 0
        %v8435 = vsub.s32 0, %v8433
        %v8436 = vsel %vm8434, %v8435, %v8433
        %v8437 = vclz %v8436
        %v8438 = vsub.s32 %v8437, 2
        %vm8439 = vcmp.gt.s32.totalorder 0, %v8438
        %v8440 = vsel %vm8439, 0, %v8438
        %v8441 = vsub.s32 32, %v8440
        %v8442 = vshll.u32 %v8433, %v8440
        %v8443 = vshrl.u32 %v8425, %v8441
        %v8444 = vor.u32 %v8442, %v8443
        %v8445 = vsub.s32 4294967266, %v8440
        %v8446 = vadd.s32 %v8445, 127
        %v8447 = vshll.u32 %v8446, 23
        %v8448 = vor.u32 4788187, %v8447
        %v8449 = vand.u32 2147483647, %v8448
        %v8451 = vcvt.s32.f32 %v8444
        %v8452 = vmul.f32 %v8451, %v8449
        %v8453 = vxor.u32 %v8452, 2147483648
        %v8454 = vsel %vm8333, %v8453, %v8452
        %v8455 = vsub.s32 4, %v8431
        %v8456 = vsel %vm8333, %v8455, %v8431
        %v8457 = vsel %vm8332, %v385, %v8454
        %v8458 = vsel %vm8332, 0, %v8456
        %v8459 = vmul.f32 %v8457, %v8457
        %v8460 = vmul.f32 %v8459, -0.001358992
        %v8461 = vadd.f32 %v8460, 0.041655596
        %v8462 = vmul.f32 %v8459, %v8461
        %v8463 = vadd.f32 %v8462, -0.4999988
        %v8464 = vmul.f32 %v8459, %v8463
        %v8465 = vadd.f32 1.0, %v8464
        %v8466 = vmul.f32 %v8457, %v8457
        %v8467 = vmul.f32 %v8466, -0.00019511016
        %v8468 = vadd.f32 %v8467, 0.008332121
        %v8469 = vmul.f32 %v8466, %v8468
        %v8470 = vadd.f32 %v8469, -0.16666654
        %v8471 = vmul.f32 %v8466, %v8470
        %v8472 = vadd.f32 %v8471, 1.0
        %v8473 = vmul.f32 %v8472, %v8457
        %vm8474 = vweird.f32 %v385
        %v8475 = vadd.s32 %v8458, 3
        %v8476 = vand.u32 %v8475, 3
        %vm8477 = vcmp.lt.s32.totalorder %v8476, 2
        %vm8478 = vcmp.eq.s32.totalorder %v8476, 0
        %v8479 = vxor.u32 %v8473, 2147483648
        %v8480 = vsel %vm8478, %v8465, %v8479
        %vm8481 = vcmp.eq.s32.totalorder %v8476, 2
        %v8482 = vxor.u32 %v8465, 2147483648
        %v8483 = vsel %vm8481, %v8482, %v8473
        %v8484 = vsel %vm8477, %v8480, %v8483
        %v8485 = vsel %vm8474, nan, %v8484
        %v8486 = vand.u32 2147483647, %v386
        %vm8487 = vcmp.le.f32.partialorder %v8486, 0.7853982
        %vm8488 = vcmp.lt.s32.totalorder %v386, 0
        %v8489 = vand.u32 %v386, 2139095040
        %v8490 = vshrl.u32 %v8489, 23
        %v8491 = vsub.s32 %v8490, 127
        %v8492 = vand.u32 2147483647, %v386
        %v8493 = vand.u32 %v8492, 8388607
        %v8494 = vor.u32 %v8493, 8388608
        %v8495 = vsub.s32 0, %v8494
        %v8496 = vadd.s32 %v8491, 1
        %vm8497 = vcmp.gt.s32.totalorder %v8496, 0
        %v8498 = vsel %vm8497, %v8496, 0
        %v8499 = vshrl.u32 %v8498, 5
        %v8500 = vand.u32 %v8498, 31
        %v8501 = vsub.s32 32, %v8500
        %v8502 = vshrl.u32 683565275, %v8501
        %v8503 = vshll.u32 683565275, %v8500
        %v8504 = vshrl.u32 2475754826, %v8501
        %v8505 = vor.u32 %v8503, %v8504
        %v8506 = vshll.u32 2475754826, %v8500
        %v8507 = vshrl.u32 2131351028, %v8501
        %v8508 = vor.u32 %v8506, %v8507
        %v8509 = vshll.u32 2131351028, %v8500
        %v8510 = vshrl.u32 2102212464, %v8501
        %v8511 = vor.u32 %v8509, %v8510
        %v8512 = vshll.u32 2102212464, %v8500
        %v8513 = vshrl.u32 920167782, %v8501
        %v8514 = vor.u32 %v8512, %v8513
        %v8515 = vshll.u32 920167782, %v8500
        %v8516 = vshrl.u32 1326507024, %v8501
        %v8517 = vor.u32 %v8515, %v8516
        %vm8518 = vcmp.lt.s32.totalorder %v8499, 1
        %vm8519 = vcmp.lt.s32.totalorder %v8499, 2
        %vm8520 = vcmp.lt.s32.totalorder %v8499, 3
        %vm8521 = vcmp.lt.s32.totalorder %v8499, 4
        %v8522 = vsel %vm8518, %v8502, %v8505
        %v8523 = vsel %vm8521, %v8511, 2102212464
        %v8524 = vsel %vm8520, %v8508, %v8523
        %v8525 = vsel %vm8519, %v8522, %v8524
        %v8526 = vsel %vm8518, %v8505, %v8508
        %v8527 = vsel %vm8521, %v8514, 920167782
        %v8528 = vsel %vm8520, %v8511, %v8527
        %v8529 = vsel %vm8519, %v8526, %v8528
        %v8530 = vsel %vm8518, %v8508, %v8511
        %v8531 = vsel %vm8521, %v8517, 1326507024
        %v8532 = vsel %vm8520, %v8514, %v8531
        %v8533 = vsel %vm8519, %v8530, %v8532
        %v8534 = vshll.u32 %v8494, 8
        %v8535 = vand.u32 %v8534, 65535
        %v8536 = vshrl.u32 %v8534, 16
        %v8537 = vand.u32 %v8533, 65535
        %v8538 = vshrl.u32 %v8533, 16
        %v8539 = vmul.u32 %v8535, %v8537
        %v8540 = vmul.u32 %v8535, %v8538
        %v8541 = vmul.u32 %v8536, %v8537
        %v8542 = vmul.u32 %v8536, %v8538
        %v8543 = vshll.u32 %v8540, 16
        %v8544 = vshrl.u32 %v8540, 16
        %v8545 = vshll.u32 %v8541, 16
        %v8546 = vshrl.u32 %v8541, 16
        %vm8547 = vc.u32 %v8539, %v8543
        %v8548 = vsel %vm8547, 1, 0
        %v8549 = vadd.s32 %v8539, %v8543
        %v8550 = vadd.s32 %v8542, %v8548
        %vm8551 = vc.u32 %v8549, %v8545
        %v8552 = vsel %vm8551, 1, 0
        %v8553 = vadd.s32 %v8549, %v8545
        %v8554 = vadd.s32 %v8550, %v8552
        %v8555 = vadd.s32 %v8554, %v8544
        %v8556 = vadd.s32 %v8555, %v8546
        %v8557 = vand.u32 %v8534, 65535
        %v8558 = vshrl.u32 %v8534, 16
        %v8559 = vand.u32 %v8529, 65535
        %v8560 = vshrl.u32 %v8529, 16
        %v8561 = vmul.u32 %v8557, %v8559
        %v8562 = vmul.u32 %v8557, %v8560
        %v8563 = vmul.u32 %v8558, %v8559
        %v8564 = vmul.u32 %v8558, %v8560
        %v8565 = vshll.u32 %v8562, 16
        %v8566 = vshrl.u32 %v8562, 16
        %v8567 = vshll.u32 %v8563, 16
        %v8568 = vshrl.u32 %v8563, 16
        %vm8569 = vc.u32 %v8561, %v8565
        %v8570 = vsel %vm8569, 1, 0
        %v8571 = vadd.s32 %v8561, %v8565
        %v8572 = vadd.s32 %v8564, %v8570
        %vm8573 = vc.u32 %v8571, %v8567
        %v8574 = vsel %vm8573, 1, 0
        %v8575 = vadd.s32 %v8571, %v8567
        %v8576 = vadd.s32 %v8572, %v8574
        %v8577 = vadd.s32 %v8576, %v8566
        %v8578 = vadd.s32 %v8577, %v8568
        %v8579 = vmul.u32 %v8534, %v8525
        %v8580 = vadd.s32 %v8556, %v8575
        %vm8581 = vc.u32 %v8556, %v8575
        %v8582 = vadd.s32 %v8578, 1
        %v8583 = vsel %vm8581, %v8582, %v8578
        %v8584 = vadd.s32 %v8579, %v8583
        %v8585 = vadd.s32 %v8584, 536870912
        %v8586 = vshrl.u32 %v8585, 30
        %v8587 = vshll.u32 %v8586, 30
        %v8588 = vsub.s32 %v8584, %v8587
        %vm8589 = vcmp.lt.s32.totalorder %v8588, 0
        %v8590 = vsub.s32 0, %v8588
        %v8591 = vsel %vm8589, %v8590, %v8588
        %v8592 = vclz %v8591
        %v8593 = vsub.s32 %v8592, 2
        %vm8594 = vcmp.gt.s32.totalorder 0, %v8593
        %v8595 = vsel %vm8594, 0, %v8593
        %v8596 = vsub.s32 32, %v8595
        %v8597 = vshll.u32 %v8588, %v8595
        %v8598 = vshrl.u32 %v8580, %v8596
        %v8599 = vor.u32 %v8597, %v8598
        %v8600 = vsub.s32 4294967266, %v8595
        %v8601 = vadd.s32 %v8600, 127
        %v8602 = vshll.u32 %v8601, 23
        %v8603 = vor.u32 4788187, %v8602
        %v8604 = vand.u32 2147483647, %v8603
        %v8606 = vcvt.s32.f32 %v8599
        %v8607 = vmul.f32 %v8606, %v8604
        %v8608 = vxor.u32 %v8607, 2147483648
        %v8609 = vsel %vm8488, %v8608, %v8607
        %v8610 = vsub.s32 4, %v8586
        %v8611 = vsel %vm8488, %v8610, %v8586
        %v8612 = vsel %vm8487, %v386, %v8609
        %v8613 = vsel %vm8487, 0, %v8611
        %v8614 = vmul.f32 %v8612, %v8612
        %v8615 = vmul.f32 %v8614, -0.001358992
        %v8616 = vadd.f32 %v8615, 0.041655596
        %v8617 = vmul.f32 %v8614, %v8616
        %v8618 = vadd.f32 %v8617, -0.4999988
        %v8619 = vmul.f32 %v8614, %v8618
        %v8620 = vadd.f32 1.0, %v8619
        %v8621 = vmul.f32 %v8612, %v8612
        %v8622 = vmul.f32 %v8621, -0.00019511016
        %v8623 = vadd.f32 %v8622, 0.008332121
        %v8624 = vmul.f32 %v8621, %v8623
        %v8625 = vadd.f32 %v8624, -0.16666654
        %v8626 = vmul.f32 %v8621, %v8625
        %v8627 = vadd.f32 %v8626, 1.0
        %v8628 = vmul.f32 %v8627, %v8612
        %vm8629 = vweird.f32 %v386
        %v8630 = vadd.s32 %v8613, 3
        %v8631 = vand.u32 %v8630, 3
        %vm8632 = vcmp.lt.s32.totalorder %v8631, 2
        %vm8633 = vcmp.eq.s32.totalorder %v8631, 0
        %v8634 = vxor.u32 %v8628, 2147483648
        %v8635 = vsel %vm8633, %v8620, %v8634
        %vm8636 = vcmp.eq.s32.totalorder %v8631, 2
        %v8637 = vxor.u32 %v8620, 2147483648
        %v8638 = vsel %vm8636, %v8637, %v8628
        %v8639 = vsel %vm8632, %v8635, %v8638
        %v8640 = vsel %vm8629, nan, %v8639
        %v8641 = vand.u32 2147483647, %v387
        %vm8642 = vcmp.le.f32.partialorder %v8641, 0.7853982
        %vm8643 = vcmp.lt.s32.totalorder %v387, 0
        %v8644 = vand.u32 %v387, 2139095040
        %v8645 = vshrl.u32 %v8644, 23
        %v8646 = vsub.s32 %v8645, 127
        %v8647 = vand.u32 2147483647, %v387
        %v8648 = vand.u32 %v8647, 8388607
        %v8649 = vor.u32 %v8648, 8388608
        %v8650 = vsub.s32 0, %v8649
        %v8651 = vadd.s32 %v8646, 1
        %vm8652 = vcmp.gt.s32.totalorder %v8651, 0
        %v8653 = vsel %vm8652, %v8651, 0
        %v8654 = vshrl.u32 %v8653, 5
        %v8655 = vand.u32 %v8653, 31
        %v8656 = vsub.s32 32, %v8655
        %v8657 = vshrl.u32 683565275, %v8656
        %v8658 = vshll.u32 683565275, %v8655
        %v8659 = vshrl.u32 2475754826, %v8656
        %v8660 = vor.u32 %v8658, %v8659
        %v8661 = vshll.u32 2475754826, %v8655
        %v8662 = vshrl.u32 2131351028, %v8656
        %v8663 = vor.u32 %v8661, %v8662
        %v8664 = vshll.u32 2131351028, %v8655
        %v8665 = vshrl.u32 2102212464, %v8656
        %v8666 = vor.u32 %v8664, %v8665
        %v8667 = vshll.u32 2102212464, %v8655
        %v8668 = vshrl.u32 920167782, %v8656
        %v8669 = vor.u32 %v8667, %v8668
        %v8670 = vshll.u32 920167782, %v8655
        %v8671 = vshrl.u32 1326507024, %v8656
        %v8672 = vor.u32 %v8670, %v8671
        %vm8673 = vcmp.lt.s32.totalorder %v8654, 1
        %vm8674 = vcmp.lt.s32.totalorder %v8654, 2
        %vm8675 = vcmp.lt.s32.totalorder %v8654, 3
        %vm8676 = vcmp.lt.s32.totalorder %v8654, 4
        %v8677 = vsel %vm8673, %v8657, %v8660
        %v8678 = vsel %vm8676, %v8666, 2102212464
        %v8679 = vsel %vm8675, %v8663, %v8678
        %v8680 = vsel %vm8674, %v8677, %v8679
        %v8681 = vsel %vm8673, %v8660, %v8663
        %v8682 = vsel %vm8676, %v8669, 920167782
        %v8683 = vsel %vm8675, %v8666, %v8682
        %v8684 = vsel %vm8674, %v8681, %v8683
        %v8685 = vsel %vm8673, %v8663, %v8666
        %v8686 = vsel %vm8676, %v8672, 1326507024
        %v8687 = vsel %vm8675, %v8669, %v8686
        %v8688 = vsel %vm8674, %v8685, %v8687
        %v8689 = vshll.u32 %v8649, 8
        %v8690 = vand.u32 %v8689, 65535
        %v8691 = vshrl.u32 %v8689, 16
        %v8692 = vand.u32 %v8688, 65535
        %v8693 = vshrl.u32 %v8688, 16
        %v8694 = vmul.u32 %v8690, %v8692
        %v8695 = vmul.u32 %v8690, %v8693
        %v8696 = vmul.u32 %v8691, %v8692
        %v8697 = vmul.u32 %v8691, %v8693
        %v8698 = vshll.u32 %v8695, 16
        %v8699 = vshrl.u32 %v8695, 16
        %v8700 = vshll.u32 %v8696, 16
        %v8701 = vshrl.u32 %v8696, 16
        %vm8702 = vc.u32 %v8694, %v8698
        %v8703 = vsel %vm8702, 1, 0
        %v8704 = vadd.s32 %v8694, %v8698
        %v8705 = vadd.s32 %v8697, %v8703
        %vm8706 = vc.u32 %v8704, %v8700
        %v8707 = vsel %vm8706, 1, 0
        %v8708 = vadd.s32 %v8704, %v8700
        %v8709 = vadd.s32 %v8705, %v8707
        %v8710 = vadd.s32 %v8709, %v8699
        %v8711 = vadd.s32 %v8710, %v8701
        %v8712 = vand.u32 %v8689, 65535
        %v8713 = vshrl.u32 %v8689, 16
        %v8714 = vand.u32 %v8684, 65535
        %v8715 = vshrl.u32 %v8684, 16
        %v8716 = vmul.u32 %v8712, %v8714
        %v8717 = vmul.u32 %v8712, %v8715
        %v8718 = vmul.u32 %v8713, %v8714
        %v8719 = vmul.u32 %v8713, %v8715
        %v8720 = vshll.u32 %v8717, 16
        %v8721 = vshrl.u32 %v8717, 16
        %v8722 = vshll.u32 %v8718, 16
        %v8723 = vshrl.u32 %v8718, 16
        %vm8724 = vc.u32 %v8716, %v8720
        %v8725 = vsel %vm8724, 1, 0
        %v8726 = vadd.s32 %v8716, %v8720
        %v8727 = vadd.s32 %v8719, %v8725
        %vm8728 = vc.u32 %v8726, %v8722
        %v8729 = vsel %vm8728, 1, 0
        %v8730 = vadd.s32 %v8726, %v8722
        %v8731 = vadd.s32 %v8727, %v8729
        %v8732 = vadd.s32 %v8731, %v8721
        %v8733 = vadd.s32 %v8732, %v8723
        %v8734 = vmul.u32 %v8689, %v8680
        %v8735 = vadd.s32 %v8711, %v8730
        %vm8736 = vc.u32 %v8711, %v8730
        %v8737 = vadd.s32 %v8733, 1
        %v8738 = vsel %vm8736, %v8737, %v8733
        %v8739 = vadd.s32 %v8734, %v8738
        %v8740 = vadd.s32 %v8739, 536870912
        %v8741 = vshrl.u32 %v8740, 30
        %v8742 = vshll.u32 %v8741, 30
        %v8743 = vsub.s32 %v8739, %v8742
        %vm8744 = vcmp.lt.s32.totalorder %v8743, 0
        %v8745 = vsub.s32 0, %v8743
        %v8746 = vsel %vm8744, %v8745, %v8743
        %v8747 = vclz %v8746
        %v8748 = vsub.s32 %v8747, 2
        %vm8749 = vcmp.gt.s32.totalorder 0, %v8748
        %v8750 = vsel %vm8749, 0, %v8748
        %v8751 = vsub.s32 32, %v8750
        %v8752 = vshll.u32 %v8743, %v8750
        %v8753 = vshrl.u32 %v8735, %v8751
        %v8754 = vor.u32 %v8752, %v8753
        %v8755 = vsub.s32 4294967266, %v8750
        %v8756 = vadd.s32 %v8755, 127
        %v8757 = vshll.u32 %v8756, 23
        %v8758 = vor.u32 4788187, %v8757
        %v8759 = vand.u32 2147483647, %v8758
        %v8761 = vcvt.s32.f32 %v8754
        %v8762 = vmul.f32 %v8761, %v8759
        %v8763 = vxor.u32 %v8762, 2147483648
        %v8764 = vsel %vm8643, %v8763, %v8762
        %v8765 = vsub.s32 4, %v8741
        %v8766 = vsel %vm8643, %v8765, %v8741
        %v8767 = vsel %vm8642, %v387, %v8764
        %v8768 = vsel %vm8642, 0, %v8766
        %v8769 = vmul.f32 %v8767, %v8767
        %v8770 = vmul.f32 %v8769, -0.001358992
        %v8771 = vadd.f32 %v8770, 0.041655596
        %v8772 = vmul.f32 %v8769, %v8771
        %v8773 = vadd.f32 %v8772, -0.4999988
        %v8774 = vmul.f32 %v8769, %v8773
        %v8775 = vadd.f32 1.0, %v8774
        %v8776 = vmul.f32 %v8767, %v8767
        %v8777 = vmul.f32 %v8776, -0.00019511016
        %v8778 = vadd.f32 %v8777, 0.008332121
        %v8779 = vmul.f32 %v8776, %v8778
        %v8780 = vadd.f32 %v8779, -0.16666654
        %v8781 = vmul.f32 %v8776, %v8780
        %v8782 = vadd.f32 %v8781, 1.0
        %v8783 = vmul.f32 %v8782, %v8767
        %vm8784 = vweird.f32 %v387
        %v8785 = vadd.s32 %v8768, 3
        %v8786 = vand.u32 %v8785, 3
        %vm8787 = vcmp.lt.s32.totalorder %v8786, 2
        %vm8788 = vcmp.eq.s32.totalorder %v8786, 0
        %v8789 = vxor.u32 %v8783, 2147483648
        %v8790 = vsel %vm8788, %v8775, %v8789
        %vm8791 = vcmp.eq.s32.totalorder %v8786, 2
        %v8792 = vxor.u32 %v8775, 2147483648
        %v8793 = vsel %vm8791, %v8792, %v8783
        %v8794 = vsel %vm8787, %v8790, %v8793
        %v8795 = vsel %vm8784, nan, %v8794
        %v8796 = vand.u32 2147483647, %v388
        %vm8797 = vcmp.le.f32.partialorder %v8796, 0.7853982
        %vm8798 = vcmp.lt.s32.totalorder %v388, 0
        %v8799 = vand.u32 %v388, 2139095040
        %v8800 = vshrl.u32 %v8799, 23
        %v8801 = vsub.s32 %v8800, 127
        %v8802 = vand.u32 2147483647, %v388
        %v8803 = vand.u32 %v8802, 8388607
        %v8804 = vor.u32 %v8803, 8388608
        %v8805 = vsub.s32 0, %v8804
        %v8806 = vadd.s32 %v8801, 1
        %vm8807 = vcmp.gt.s32.totalorder %v8806, 0
        %v8808 = vsel %vm8807, %v8806, 0
        %v8809 = vshrl.u32 %v8808, 5
        %v8810 = vand.u32 %v8808, 31
        %v8811 = vsub.s32 32, %v8810
        %v8812 = vshrl.u32 683565275, %v8811
        %v8813 = vshll.u32 683565275, %v8810
        %v8814 = vshrl.u32 2475754826, %v8811
        %v8815 = vor.u32 %v8813, %v8814
        %v8816 = vshll.u32 2475754826, %v8810
        %v8817 = vshrl.u32 2131351028, %v8811
        %v8818 = vor.u32 %v8816, %v8817
        %v8819 = vshll.u32 2131351028, %v8810
        %v8820 = vshrl.u32 2102212464, %v8811
        %v8821 = vor.u32 %v8819, %v8820
        %v8822 = vshll.u32 2102212464, %v8810
        %v8823 = vshrl.u32 920167782, %v8811
        %v8824 = vor.u32 %v8822, %v8823
        %v8825 = vshll.u32 920167782, %v8810
        %v8826 = vshrl.u32 1326507024, %v8811
        %v8827 = vor.u32 %v8825, %v8826
        %vm8828 = vcmp.lt.s32.totalorder %v8809, 1
        %vm8829 = vcmp.lt.s32.totalorder %v8809, 2
        %vm8830 = vcmp.lt.s32.totalorder %v8809, 3
        %vm8831 = vcmp.lt.s32.totalorder %v8809, 4
        %v8832 = vsel %vm8828, %v8812, %v8815
        %v8833 = vsel %vm8831, %v8821, 2102212464
        %v8834 = vsel %vm8830, %v8818, %v8833
        %v8835 = vsel %vm8829, %v8832, %v8834
        %v8836 = vsel %vm8828, %v8815, %v8818
        %v8837 = vsel %vm8831, %v8824, 920167782
        %v8838 = vsel %vm8830, %v8821, %v8837
        %v8839 = vsel %vm8829, %v8836, %v8838
        %v8840 = vsel %vm8828, %v8818, %v8821
        %v8841 = vsel %vm8831, %v8827, 1326507024
        %v8842 = vsel %vm8830, %v8824, %v8841
        %v8843 = vsel %vm8829, %v8840, %v8842
        %v8844 = vshll.u32 %v8804, 8
        %v8845 = vand.u32 %v8844, 65535
        %v8846 = vshrl.u32 %v8844, 16
        %v8847 = vand.u32 %v8843, 65535
        %v8848 = vshrl.u32 %v8843, 16
        %v8849 = vmul.u32 %v8845, %v8847
        %v8850 = vmul.u32 %v8845, %v8848
        %v8851 = vmul.u32 %v8846, %v8847
        %v8852 = vmul.u32 %v8846, %v8848
        %v8853 = vshll.u32 %v8850, 16
        %v8854 = vshrl.u32 %v8850, 16
        %v8855 = vshll.u32 %v8851, 16
        %v8856 = vshrl.u32 %v8851, 16
        %vm8857 = vc.u32 %v8849, %v8853
        %v8858 = vsel %vm8857, 1, 0
        %v8859 = vadd.s32 %v8849, %v8853
        %v8860 = vadd.s32 %v8852, %v8858
        %vm8861 = vc.u32 %v8859, %v8855
        %v8862 = vsel %vm8861, 1, 0
        %v8863 = vadd.s32 %v8859, %v8855
        %v8864 = vadd.s32 %v8860, %v8862
        %v8865 = vadd.s32 %v8864, %v8854
        %v8866 = vadd.s32 %v8865, %v8856
        %v8867 = vand.u32 %v8844, 65535
        %v8868 = vshrl.u32 %v8844, 16
        %v8869 = vand.u32 %v8839, 65535
        %v8870 = vshrl.u32 %v8839, 16
        %v8871 = vmul.u32 %v8867, %v8869
        %v8872 = vmul.u32 %v8867, %v8870
        %v8873 = vmul.u32 %v8868, %v8869
        %v8874 = vmul.u32 %v8868, %v8870
        %v8875 = vshll.u32 %v8872, 16
        %v8876 = vshrl.u32 %v8872, 16
        %v8877 = vshll.u32 %v8873, 16
        %v8878 = vshrl.u32 %v8873, 16
        %vm8879 = vc.u32 %v8871, %v8875
        %v8880 = vsel %vm8879, 1, 0
        %v8881 = vadd.s32 %v8871, %v8875
        %v8882 = vadd.s32 %v8874, %v8880
        %vm8883 = vc.u32 %v8881, %v8877
        %v8884 = vsel %vm8883, 1, 0
        %v8885 = vadd.s32 %v8881, %v8877
        %v8886 = vadd.s32 %v8882, %v8884
        %v8887 = vadd.s32 %v8886, %v8876
        %v8888 = vadd.s32 %v8887, %v8878
        %v8889 = vmul.u32 %v8844, %v8835
        %v8890 = vadd.s32 %v8866, %v8885
        %vm8891 = vc.u32 %v8866, %v8885
        %v8892 = vadd.s32 %v8888, 1
        %v8893 = vsel %vm8891, %v8892, %v8888
        %v8894 = vadd.s32 %v8889, %v8893
        %v8895 = vadd.s32 %v8894, 536870912
        %v8896 = vshrl.u32 %v8895, 30
        %v8897 = vshll.u32 %v8896, 30
        %v8898 = vsub.s32 %v8894, %v8897
        %vm8899 = vcmp.lt.s32.totalorder %v8898, 0
        %v8900 = vsub.s32 0, %v8898
        %v8901 = vsel %vm8899, %v8900, %v8898
        %v8902 = vclz %v8901
        %v8903 = vsub.s32 %v8902, 2
        %vm8904 = vcmp.gt.s32.totalorder 0, %v8903
        %v8905 = vsel %vm8904, 0, %v8903
        %v8906 = vsub.s32 32, %v8905
        %v8907 = vshll.u32 %v8898, %v8905
        %v8908 = vshrl.u32 %v8890, %v8906
        %v8909 = vor.u32 %v8907, %v8908
        %v8910 = vsub.s32 4294967266, %v8905
        %v8911 = vadd.s32 %v8910, 127
        %v8912 = vshll.u32 %v8911, 23
        %v8913 = vor.u32 4788187, %v8912
        %v8914 = vand.u32 2147483647, %v8913
        %v8916 = vcvt.s32.f32 %v8909
        %v8917 = vmul.f32 %v8916, %v8914
        %v8918 = vxor.u32 %v8917, 2147483648
        %v8919 = vsel %vm8798, %v8918, %v8917
        %v8920 = vsub.s32 4, %v8896
        %v8921 = vsel %vm8798, %v8920, %v8896
        %v8922 = vsel %vm8797, %v388, %v8919
        %v8923 = vsel %vm8797, 0, %v8921
        %v8924 = vmul.f32 %v8922, %v8922
        %v8925 = vmul.f32 %v8924, -0.001358992
        %v8926 = vadd.f32 %v8925, 0.041655596
        %v8927 = vmul.f32 %v8924, %v8926
        %v8928 = vadd.f32 %v8927, -0.4999988
        %v8929 = vmul.f32 %v8924, %v8928
        %v8930 = vadd.f32 1.0, %v8929
        %v8931 = vmul.f32 %v8922, %v8922
        %v8932 = vmul.f32 %v8931, -0.00019511016
        %v8933 = vadd.f32 %v8932, 0.008332121
        %v8934 = vmul.f32 %v8931, %v8933
        %v8935 = vadd.f32 %v8934, -0.16666654
        %v8936 = vmul.f32 %v8931, %v8935
        %v8937 = vadd.f32 %v8936, 1.0
        %v8938 = vmul.f32 %v8937, %v8922
        %vm8939 = vweird.f32 %v388
        %v8940 = vadd.s32 %v8923, 3
        %v8941 = vand.u32 %v8940, 3
        %vm8942 = vcmp.lt.s32.totalorder %v8941, 2
        %vm8943 = vcmp.eq.s32.totalorder %v8941, 0
        %v8944 = vxor.u32 %v8938, 2147483648
        %v8945 = vsel %vm8943, %v8930, %v8944
        %vm8946 = vcmp.eq.s32.totalorder %v8941, 2
        %v8947 = vxor.u32 %v8930, 2147483648
        %v8948 = vsel %vm8946, %v8947, %v8938
        %v8949 = vsel %vm8942, %v8945, %v8948
        %v8950 = vsel %vm8939, nan, %v8949
        %v8951 = vand.u32 2147483647, %v389
        %vm8952 = vcmp.le.f32.partialorder %v8951, 0.7853982
        %vm8953 = vcmp.lt.s32.totalorder %v389, 0
        %v8954 = vand.u32 %v389, 2139095040
        %v8955 = vshrl.u32 %v8954, 23
        %v8956 = vsub.s32 %v8955, 127
        %v8957 = vand.u32 2147483647, %v389
        %v8958 = vand.u32 %v8957, 8388607
        %v8959 = vor.u32 %v8958, 8388608
        %v8960 = vsub.s32 0, %v8959
        %v8961 = vadd.s32 %v8956, 1
        %vm8962 = vcmp.gt.s32.totalorder %v8961, 0
        %v8963 = vsel %vm8962, %v8961, 0
        %v8964 = vshrl.u32 %v8963, 5
        %v8965 = vand.u32 %v8963, 31
        %v8966 = vsub.s32 32, %v8965
        %v8967 = vshrl.u32 683565275, %v8966
        %v8968 = vshll.u32 683565275, %v8965
        %v8969 = vshrl.u32 2475754826, %v8966
        %v8970 = vor.u32 %v8968, %v8969
        %v8971 = vshll.u32 2475754826, %v8965
        %v8972 = vshrl.u32 2131351028, %v8966
        %v8973 = vor.u32 %v8971, %v8972
        %v8974 = vshll.u32 2131351028, %v8965
        %v8975 = vshrl.u32 2102212464, %v8966
        %v8976 = vor.u32 %v8974, %v8975
        %v8977 = vshll.u32 2102212464, %v8965
        %v8978 = vshrl.u32 920167782, %v8966
        %v8979 = vor.u32 %v8977, %v8978
        %v8980 = vshll.u32 920167782, %v8965
        %v8981 = vshrl.u32 1326507024, %v8966
        %v8982 = vor.u32 %v8980, %v8981
        %vm8983 = vcmp.lt.s32.totalorder %v8964, 1
        %vm8984 = vcmp.lt.s32.totalorder %v8964, 2
        %vm8985 = vcmp.lt.s32.totalorder %v8964, 3
        %vm8986 = vcmp.lt.s32.totalorder %v8964, 4
        %v8987 = vsel %vm8983, %v8967, %v8970
        %v8988 = vsel %vm8986, %v8976, 2102212464
        %v8989 = vsel %vm8985, %v8973, %v8988
        %v8990 = vsel %vm8984, %v8987, %v8989
        %v8991 = vsel %vm8983, %v8970, %v8973
        %v8992 = vsel %vm8986, %v8979, 920167782
        %v8993 = vsel %vm8985, %v8976, %v8992
        %v8994 = vsel %vm8984, %v8991, %v8993
        %v8995 = vsel %vm8983, %v8973, %v8976
        %v8996 = vsel %vm8986, %v8982, 1326507024
        %v8997 = vsel %vm8985, %v8979, %v8996
        %v8998 = vsel %vm8984, %v8995, %v8997
        %v8999 = vshll.u32 %v8959, 8
        %v9000 = vand.u32 %v8999, 65535
        %v9001 = vshrl.u32 %v8999, 16
        %v9002 = vand.u32 %v8998, 65535
        %v9003 = vshrl.u32 %v8998, 16
        %v9004 = vmul.u32 %v9000, %v9002
        %v9005 = vmul.u32 %v9000, %v9003
        %v9006 = vmul.u32 %v9001, %v9002
        %v9007 = vmul.u32 %v9001, %v9003
        %v9008 = vshll.u32 %v9005, 16
        %v9009 = vshrl.u32 %v9005, 16
        %v9010 = vshll.u32 %v9006, 16
        %v9011 = vshrl.u32 %v9006, 16
        %vm9012 = vc.u32 %v9004, %v9008
        %v9013 = vsel %vm9012, 1, 0
        %v9014 = vadd.s32 %v9004, %v9008
        %v9015 = vadd.s32 %v9007, %v9013
        %vm9016 = vc.u32 %v9014, %v9010
        %v9017 = vsel %vm9016, 1, 0
        %v9018 = vadd.s32 %v9014, %v9010
        %v9019 = vadd.s32 %v9015, %v9017
        %v9020 = vadd.s32 %v9019, %v9009
        %v9021 = vadd.s32 %v9020, %v9011
        %v9022 = vand.u32 %v8999, 65535
        %v9023 = vshrl.u32 %v8999, 16
        %v9024 = vand.u32 %v8994, 65535
        %v9025 = vshrl.u32 %v8994, 16
        %v9026 = vmul.u32 %v9022, %v9024
        %v9027 = vmul.u32 %v9022, %v9025
        %v9028 = vmul.u32 %v9023, %v9024
        %v9029 = vmul.u32 %v9023, %v9025
        %v9030 = vshll.u32 %v9027, 16
        %v9031 = vshrl.u32 %v9027, 16
        %v9032 = vshll.u32 %v9028, 16
        %v9033 = vshrl.u32 %v9028, 16
        %vm9034 = vc.u32 %v9026, %v9030
        %v9035 = vsel %vm9034, 1, 0
        %v9036 = vadd.s32 %v9026, %v9030
        %v9037 = vadd.s32 %v9029, %v9035
        %vm9038 = vc.u32 %v9036, %v9032
        %v9039 = vsel %vm9038, 1, 0
        %v9040 = vadd.s32 %v9036, %v9032
        %v9041 = vadd.s32 %v9037, %v9039
        %v9042 = vadd.s32 %v9041, %v9031
        %v9043 = vadd.s32 %v9042, %v9033
        %v9044 = vmul.u32 %v8999, %v8990
        %v9045 = vadd.s32 %v9021, %v9040
        %vm9046 = vc.u32 %v9021, %v9040
        %v9047 = vadd.s32 %v9043, 1
        %v9048 = vsel %vm9046, %v9047, %v9043
        %v9049 = vadd.s32 %v9044, %v9048
        %v9050 = vadd.s32 %v9049, 536870912
        %v9051 = vshrl.u32 %v9050, 30
        %v9052 = vshll.u32 %v9051, 30
        %v9053 = vsub.s32 %v9049, %v9052
        %vm9054 = vcmp.lt.s32.totalorder %v9053, 0
        %v9055 = vsub.s32 0, %v9053
        %v9056 = vsel %vm9054, %v9055, %v9053
        %v9057 = vclz %v9056
        %v9058 = vsub.s32 %v9057, 2
        %vm9059 = vcmp.gt.s32.totalorder 0, %v9058
        %v9060 = vsel %vm9059, 0, %v9058
        %v9061 = vsub.s32 32, %v9060
        %v9062 = vshll.u32 %v9053, %v9060
        %v9063 = vshrl.u32 %v9045, %v9061
        %v9064 = vor.u32 %v9062, %v9063
        %v9065 = vsub.s32 4294967266, %v9060
        %v9066 = vadd.s32 %v9065, 127
        %v9067 = vshll.u32 %v9066, 23
        %v9068 = vor.u32 4788187, %v9067
        %v9069 = vand.u32 2147483647, %v9068
        %v9071 = vcvt.s32.f32 %v9064
        %v9072 = vmul.f32 %v9071, %v9069
        %v9073 = vxor.u32 %v9072, 2147483648
        %v9074 = vsel %vm8953, %v9073, %v9072
        %v9075 = vsub.s32 4, %v9051
        %v9076 = vsel %vm8953, %v9075, %v9051
        %v9077 = vsel %vm8952, %v389, %v9074
        %v9078 = vsel %vm8952, 0, %v9076
        %v9079 = vmul.f32 %v9077, %v9077
        %v9080 = vmul.f32 %v9079, -0.001358992
        %v9081 = vadd.f32 %v9080, 0.041655596
        %v9082 = vmul.f32 %v9079, %v9081
        %v9083 = vadd.f32 %v9082, -0.4999988
        %v9084 = vmul.f32 %v9079, %v9083
        %v9085 = vadd.f32 1.0, %v9084
        %v9086 = vmul.f32 %v9077, %v9077
        %v9087 = vmul.f32 %v9086, -0.00019511016
        %v9088 = vadd.f32 %v9087, 0.008332121
        %v9089 = vmul.f32 %v9086, %v9088
        %v9090 = vadd.f32 %v9089, -0.16666654
        %v9091 = vmul.f32 %v9086, %v9090
        %v9092 = vadd.f32 %v9091, 1.0
        %v9093 = vmul.f32 %v9092, %v9077
        %vm9094 = vweird.f32 %v389
        %v9095 = vadd.s32 %v9078, 3
        %v9096 = vand.u32 %v9095, 3
        %vm9097 = vcmp.lt.s32.totalorder %v9096, 2
        %vm9098 = vcmp.eq.s32.totalorder %v9096, 0
        %v9099 = vxor.u32 %v9093, 2147483648
        %v9100 = vsel %vm9098, %v9085, %v9099
        %vm9101 = vcmp.eq.s32.totalorder %v9096, 2
        %v9102 = vxor.u32 %v9085, 2147483648
        %v9103 = vsel %vm9101, %v9102, %v9093
        %v9104 = vsel %vm9097, %v9100, %v9103
        %v9105 = vsel %vm9094, nan, %v9104
        %v9106 = vand.u32 2147483647, %v390
        %vm9107 = vcmp.le.f32.partialorder %v9106, 0.7853982
        %vm9108 = vcmp.lt.s32.totalorder %v390, 0
        %v9109 = vand.u32 %v390, 2139095040
        %v9110 = vshrl.u32 %v9109, 23
        %v9111 = vsub.s32 %v9110, 127
        %v9112 = vand.u32 2147483647, %v390
        %v9113 = vand.u32 %v9112, 8388607
        %v9114 = vor.u32 %v9113, 8388608
        %v9115 = vsub.s32 0, %v9114
        %v9116 = vadd.s32 %v9111, 1
        %vm9117 = vcmp.gt.s32.totalorder %v9116, 0
        %v9118 = vsel %vm9117, %v9116, 0
        %v9119 = vshrl.u32 %v9118, 5
        %v9120 = vand.u32 %v9118, 31
        %v9121 = vsub.s32 32, %v9120
        %v9122 = vshrl.u32 683565275, %v9121
        %v9123 = vshll.u32 683565275, %v9120
        %v9124 = vshrl.u32 2475754826, %v9121
        %v9125 = vor.u32 %v9123, %v9124
        %v9126 = vshll.u32 2475754826, %v9120
        %v9127 = vshrl.u32 2131351028, %v9121
        %v9128 = vor.u32 %v9126, %v9127
        %v9129 = vshll.u32 2131351028, %v9120
        %v9130 = vshrl.u32 2102212464, %v9121
        %v9131 = vor.u32 %v9129, %v9130
        %v9132 = vshll.u32 2102212464, %v9120
        %v9133 = vshrl.u32 920167782, %v9121
        %v9134 = vor.u32 %v9132, %v9133
        %v9135 = vshll.u32 920167782, %v9120
        %v9136 = vshrl.u32 1326507024, %v9121
        %v9137 = vor.u32 %v9135, %v9136
        %vm9138 = vcmp.lt.s32.totalorder %v9119, 1
        %vm9139 = vcmp.lt.s32.totalorder %v9119, 2
        %vm9140 = vcmp.lt.s32.totalorder %v9119, 3
        %vm9141 = vcmp.lt.s32.totalorder %v9119, 4
        %v9142 = vsel %vm9138, %v9122, %v9125
        %v9143 = vsel %vm9141, %v9131, 2102212464
        %v9144 = vsel %vm9140, %v9128, %v9143
        %v9145 = vsel %vm9139, %v9142, %v9144
        %v9146 = vsel %vm9138, %v9125, %v9128
        %v9147 = vsel %vm9141, %v9134, 920167782
        %v9148 = vsel %vm9140, %v9131, %v9147
        %v9149 = vsel %vm9139, %v9146, %v9148
        %v9150 = vsel %vm9138, %v9128, %v9131
        %v9151 = vsel %vm9141, %v9137, 1326507024
        %v9152 = vsel %vm9140, %v9134, %v9151
        %v9153 = vsel %vm9139, %v9150, %v9152
        %v9154 = vshll.u32 %v9114, 8
        %v9155 = vand.u32 %v9154, 65535
        %v9156 = vshrl.u32 %v9154, 16
        %v9157 = vand.u32 %v9153, 65535
        %v9158 = vshrl.u32 %v9153, 16
        %v9159 = vmul.u32 %v9155, %v9157
        %v9160 = vmul.u32 %v9155, %v9158
        %v9161 = vmul.u32 %v9156, %v9157
        %v9162 = vmul.u32 %v9156, %v9158
        %v9163 = vshll.u32 %v9160, 16
        %v9164 = vshrl.u32 %v9160, 16
        %v9165 = vshll.u32 %v9161, 16
        %v9166 = vshrl.u32 %v9161, 16
        %vm9167 = vc.u32 %v9159, %v9163
        %v9168 = vsel %vm9167, 1, 0
        %v9169 = vadd.s32 %v9159, %v9163
        %v9170 = vadd.s32 %v9162, %v9168
        %vm9171 = vc.u32 %v9169, %v9165
        %v9172 = vsel %vm9171, 1, 0
        %v9173 = vadd.s32 %v9169, %v9165
        %v9174 = vadd.s32 %v9170, %v9172
        %v9175 = vadd.s32 %v9174, %v9164
        %v9176 = vadd.s32 %v9175, %v9166
        %v9177 = vand.u32 %v9154, 65535
        %v9178 = vshrl.u32 %v9154, 16
        %v9179 = vand.u32 %v9149, 65535
        %v9180 = vshrl.u32 %v9149, 16
        %v9181 = vmul.u32 %v9177, %v9179
        %v9182 = vmul.u32 %v9177, %v9180
        %v9183 = vmul.u32 %v9178, %v9179
        %v9184 = vmul.u32 %v9178, %v9180
        %v9185 = vshll.u32 %v9182, 16
        %v9186 = vshrl.u32 %v9182, 16
        %v9187 = vshll.u32 %v9183, 16
        %v9188 = vshrl.u32 %v9183, 16
        %vm9189 = vc.u32 %v9181, %v9185
        %v9190 = vsel %vm9189, 1, 0
        %v9191 = vadd.s32 %v9181, %v9185
        %v9192 = vadd.s32 %v9184, %v9190
        %vm9193 = vc.u32 %v9191, %v9187
        %v9194 = vsel %vm9193, 1, 0
        %v9195 = vadd.s32 %v9191, %v9187
        %v9196 = vadd.s32 %v9192, %v9194
        %v9197 = vadd.s32 %v9196, %v9186
        %v9198 = vadd.s32 %v9197, %v9188
        %v9199 = vmul.u32 %v9154, %v9145
        %v9200 = vadd.s32 %v9176, %v9195
        %vm9201 = vc.u32 %v9176, %v9195
        %v9202 = vadd.s32 %v9198, 1
        %v9203 = vsel %vm9201, %v9202, %v9198
        %v9204 = vadd.s32 %v9199, %v9203
        %v9205 = vadd.s32 %v9204, 536870912
        %v9206 = vshrl.u32 %v9205, 30
        %v9207 = vshll.u32 %v9206, 30
        %v9208 = vsub.s32 %v9204, %v9207
        %vm9209 = vcmp.lt.s32.totalorder %v9208, 0
        %v9210 = vsub.s32 0, %v9208
        %v9211 = vsel %vm9209, %v9210, %v9208
        %v9212 = vclz %v9211
        %v9213 = vsub.s32 %v9212, 2
        %vm9214 = vcmp.gt.s32.totalorder 0, %v9213
        %v9215 = vsel %vm9214, 0, %v9213
        %v9216 = vsub.s32 32, %v9215
        %v9217 = vshll.u32 %v9208, %v9215
        %v9218 = vshrl.u32 %v9200, %v9216
        %v9219 = vor.u32 %v9217, %v9218
        %v9220 = vsub.s32 4294967266, %v9215
        %v9221 = vadd.s32 %v9220, 127
        %v9222 = vshll.u32 %v9221, 23
        %v9223 = vor.u32 4788187, %v9222
        %v9224 = vand.u32 2147483647, %v9223
        %v9226 = vcvt.s32.f32 %v9219
        %v9227 = vmul.f32 %v9226, %v9224
        %v9228 = vxor.u32 %v9227, 2147483648
        %v9229 = vsel %vm9108, %v9228, %v9227
        %v9230 = vsub.s32 4, %v9206
        %v9231 = vsel %vm9108, %v9230, %v9206
        %v9232 = vsel %vm9107, %v390, %v9229
        %v9233 = vsel %vm9107, 0, %v9231
        %v9234 = vmul.f32 %v9232, %v9232
        %v9235 = vmul.f32 %v9234, -0.001358992
        %v9236 = vadd.f32 %v9235, 0.041655596
        %v9237 = vmul.f32 %v9234, %v9236
        %v9238 = vadd.f32 %v9237, -0.4999988
        %v9239 = vmul.f32 %v9234, %v9238
        %v9240 = vadd.f32 1.0, %v9239
        %v9241 = vmul.f32 %v9232, %v9232
        %v9242 = vmul.f32 %v9241, -0.00019511016
        %v9243 = vadd.f32 %v9242, 0.008332121
        %v9244 = vmul.f32 %v9241, %v9243
        %v9245 = vadd.f32 %v9244, -0.16666654
        %v9246 = vmul.f32 %v9241, %v9245
        %v9247 = vadd.f32 %v9246, 1.0
        %v9248 = vmul.f32 %v9247, %v9232
        %vm9249 = vweird.f32 %v390
        %v9250 = vadd.s32 %v9233, 3
        %v9251 = vand.u32 %v9250, 3
        %vm9252 = vcmp.lt.s32.totalorder %v9251, 2
        %vm9253 = vcmp.eq.s32.totalorder %v9251, 0
        %v9254 = vxor.u32 %v9248, 2147483648
        %v9255 = vsel %vm9253, %v9240, %v9254
        %vm9256 = vcmp.eq.s32.totalorder %v9251, 2
        %v9257 = vxor.u32 %v9240, 2147483648
        %v9258 = vsel %vm9256, %v9257, %v9248
        %v9259 = vsel %vm9252, %v9255, %v9258
        %v9260 = vsel %vm9249, nan, %v9259
        %v9261 = vand.u32 2147483647, %v391
        %vm9262 = vcmp.le.f32.partialorder %v9261, 0.7853982
        %vm9263 = vcmp.lt.s32.totalorder %v391, 0
        %v9264 = vand.u32 %v391, 2139095040
        %v9265 = vshrl.u32 %v9264, 23
        %v9266 = vsub.s32 %v9265, 127
        %v9267 = vand.u32 2147483647, %v391
        %v9268 = vand.u32 %v9267, 8388607
        %v9269 = vor.u32 %v9268, 8388608
        %v9270 = vsub.s32 0, %v9269
        %v9271 = vadd.s32 %v9266, 1
        %vm9272 = vcmp.gt.s32.totalorder %v9271, 0
        %v9273 = vsel %vm9272, %v9271, 0
        %v9274 = vshrl.u32 %v9273, 5
        %v9275 = vand.u32 %v9273, 31
        %v9276 = vsub.s32 32, %v9275
        %v9277 = vshrl.u32 683565275, %v9276
        %v9278 = vshll.u32 683565275, %v9275
        %v9279 = vshrl.u32 2475754826, %v9276
        %v9280 = vor.u32 %v9278, %v9279
        %v9281 = vshll.u32 2475754826, %v9275
        %v9282 = vshrl.u32 2131351028, %v9276
        %v9283 = vor.u32 %v9281, %v9282
        %v9284 = vshll.u32 2131351028, %v9275
        %v9285 = vshrl.u32 2102212464, %v9276
        %v9286 = vor.u32 %v9284, %v9285
        %v9287 = vshll.u32 2102212464, %v9275
        %v9288 = vshrl.u32 920167782, %v9276
        %v9289 = vor.u32 %v9287, %v9288
        %v9290 = vshll.u32 920167782, %v9275
        %v9291 = vshrl.u32 1326507024, %v9276
        %v9292 = vor.u32 %v9290, %v9291
        %vm9293 = vcmp.lt.s32.totalorder %v9274, 1
        %vm9294 = vcmp.lt.s32.totalorder %v9274, 2
        %vm9295 = vcmp.lt.s32.totalorder %v9274, 3
        %vm9296 = vcmp.lt.s32.totalorder %v9274, 4
        %v9297 = vsel %vm9293, %v9277, %v9280
        %v9298 = vsel %vm9296, %v9286, 2102212464
        %v9299 = vsel %vm9295, %v9283, %v9298
        %v9300 = vsel %vm9294, %v9297, %v9299
        %v9301 = vsel %vm9293, %v9280, %v9283
        %v9302 = vsel %vm9296, %v9289, 920167782
        %v9303 = vsel %vm9295, %v9286, %v9302
        %v9304 = vsel %vm9294, %v9301, %v9303
        %v9305 = vsel %vm9293, %v9283, %v9286
        %v9306 = vsel %vm9296, %v9292, 1326507024
        %v9307 = vsel %vm9295, %v9289, %v9306
        %v9308 = vsel %vm9294, %v9305, %v9307
        %v9309 = vshll.u32 %v9269, 8
        %v9310 = vand.u32 %v9309, 65535
        %v9311 = vshrl.u32 %v9309, 16
        %v9312 = vand.u32 %v9308, 65535
        %v9313 = vshrl.u32 %v9308, 16
        %v9314 = vmul.u32 %v9310, %v9312
        %v9315 = vmul.u32 %v9310, %v9313
        %v9316 = vmul.u32 %v9311, %v9312
        %v9317 = vmul.u32 %v9311, %v9313
        %v9318 = vshll.u32 %v9315, 16
        %v9319 = vshrl.u32 %v9315, 16
        %v9320 = vshll.u32 %v9316, 16
        %v9321 = vshrl.u32 %v9316, 16
        %vm9322 = vc.u32 %v9314, %v9318
        %v9323 = vsel %vm9322, 1, 0
        %v9324 = vadd.s32 %v9314, %v9318
        %v9325 = vadd.s32 %v9317, %v9323
        %vm9326 = vc.u32 %v9324, %v9320
        %v9327 = vsel %vm9326, 1, 0
        %v9328 = vadd.s32 %v9324, %v9320
        %v9329 = vadd.s32 %v9325, %v9327
        %v9330 = vadd.s32 %v9329, %v9319
        %v9331 = vadd.s32 %v9330, %v9321
        %v9332 = vand.u32 %v9309, 65535
        %v9333 = vshrl.u32 %v9309, 16
        %v9334 = vand.u32 %v9304, 65535
        %v9335 = vshrl.u32 %v9304, 16
        %v9336 = vmul.u32 %v9332, %v9334
        %v9337 = vmul.u32 %v9332, %v9335
        %v9338 = vmul.u32 %v9333, %v9334
        %v9339 = vmul.u32 %v9333, %v9335
        %v9340 = vshll.u32 %v9337, 16
        %v9341 = vshrl.u32 %v9337, 16
        %v9342 = vshll.u32 %v9338, 16
        %v9343 = vshrl.u32 %v9338, 16
        %vm9344 = vc.u32 %v9336, %v9340
        %v9345 = vsel %vm9344, 1, 0
        %v9346 = vadd.s32 %v9336, %v9340
        %v9347 = vadd.s32 %v9339, %v9345
        %vm9348 = vc.u32 %v9346, %v9342
        %v9349 = vsel %vm9348, 1, 0
        %v9350 = vadd.s32 %v9346, %v9342
        %v9351 = vadd.s32 %v9347, %v9349
        %v9352 = vadd.s32 %v9351, %v9341
        %v9353 = vadd.s32 %v9352, %v9343
        %v9354 = vmul.u32 %v9309, %v9300
        %v9355 = vadd.s32 %v9331, %v9350
        %vm9356 = vc.u32 %v9331, %v9350
        %v9357 = vadd.s32 %v9353, 1
        %v9358 = vsel %vm9356, %v9357, %v9353
        %v9359 = vadd.s32 %v9354, %v9358
        %v9360 = vadd.s32 %v9359, 536870912
        %v9361 = vshrl.u32 %v9360, 30
        %v9362 = vshll.u32 %v9361, 30
        %v9363 = vsub.s32 %v9359, %v9362
        %vm9364 = vcmp.lt.s32.totalorder %v9363, 0
        %v9365 = vsub.s32 0, %v9363
        %v9366 = vsel %vm9364, %v9365, %v9363
        %v9367 = vclz %v9366
        %v9368 = vsub.s32 %v9367, 2
        %vm9369 = vcmp.gt.s32.totalorder 0, %v9368
        %v9370 = vsel %vm9369, 0, %v9368
        %v9371 = vsub.s32 32, %v9370
        %v9372 = vshll.u32 %v9363, %v9370
        %v9373 = vshrl.u32 %v9355, %v9371
        %v9374 = vor.u32 %v9372, %v9373
        %v9375 = vsub.s32 4294967266, %v9370
        %v9376 = vadd.s32 %v9375, 127
        %v9377 = vshll.u32 %v9376, 23
        %v9378 = vor.u32 4788187, %v9377
        %v9379 = vand.u32 2147483647, %v9378
        %v9381 = vcvt.s32.f32 %v9374
        %v9382 = vmul.f32 %v9381, %v9379
        %v9383 = vxor.u32 %v9382, 2147483648
        %v9384 = vsel %vm9263, %v9383, %v9382
        %v9385 = vsub.s32 4, %v9361
        %v9386 = vsel %vm9263, %v9385, %v9361
        %v9387 = vsel %vm9262, %v391, %v9384
        %v9388 = vsel %vm9262, 0, %v9386
        %v9389 = vmul.f32 %v9387, %v9387
        %v9390 = vmul.f32 %v9389, -0.001358992
        %v9391 = vadd.f32 %v9390, 0.041655596
        %v9392 = vmul.f32 %v9389, %v9391
        %v9393 = vadd.f32 %v9392, -0.4999988
        %v9394 = vmul.f32 %v9389, %v9393
        %v9395 = vadd.f32 1.0, %v9394
        %v9396 = vmul.f32 %v9387, %v9387
        %v9397 = vmul.f32 %v9396, -0.00019511016
        %v9398 = vadd.f32 %v9397, 0.008332121
        %v9399 = vmul.f32 %v9396, %v9398
        %v9400 = vadd.f32 %v9399, -0.16666654
        %v9401 = vmul.f32 %v9396, %v9400
        %v9402 = vadd.f32 %v9401, 1.0
        %v9403 = vmul.f32 %v9402, %v9387
        %vm9404 = vweird.f32 %v391
        %v9405 = vadd.s32 %v9388, 3
        %v9406 = vand.u32 %v9405, 3
        %vm9407 = vcmp.lt.s32.totalorder %v9406, 2
        %vm9408 = vcmp.eq.s32.totalorder %v9406, 0
        %v9409 = vxor.u32 %v9403, 2147483648
        %v9410 = vsel %vm9408, %v9395, %v9409
        %vm9411 = vcmp.eq.s32.totalorder %v9406, 2
        %v9412 = vxor.u32 %v9395, 2147483648
        %v9413 = vsel %vm9411, %v9412, %v9403
        %v9414 = vsel %vm9407, %v9410, %v9413
        %v9415 = vsel %vm9404, nan, %v9414
        %v9416 = vand.u32 2147483647, %v392
        %vm9417 = vcmp.le.f32.partialorder %v9416, 0.7853982
        %vm9418 = vcmp.lt.s32.totalorder %v392, 0
        %v9419 = vand.u32 %v392, 2139095040
        %v9420 = vshrl.u32 %v9419, 23
        %v9421 = vsub.s32 %v9420, 127
        %v9422 = vand.u32 2147483647, %v392
        %v9423 = vand.u32 %v9422, 8388607
        %v9424 = vor.u32 %v9423, 8388608
        %v9425 = vsub.s32 0, %v9424
        %v9426 = vadd.s32 %v9421, 1
        %vm9427 = vcmp.gt.s32.totalorder %v9426, 0
        %v9428 = vsel %vm9427, %v9426, 0
        %v9429 = vshrl.u32 %v9428, 5
        %v9430 = vand.u32 %v9428, 31
        %v9431 = vsub.s32 32, %v9430
        %v9432 = vshrl.u32 683565275, %v9431
        %v9433 = vshll.u32 683565275, %v9430
        %v9434 = vshrl.u32 2475754826, %v9431
        %v9435 = vor.u32 %v9433, %v9434
        %v9436 = vshll.u32 2475754826, %v9430
        %v9437 = vshrl.u32 2131351028, %v9431
        %v9438 = vor.u32 %v9436, %v9437
        %v9439 = vshll.u32 2131351028, %v9430
        %v9440 = vshrl.u32 2102212464, %v9431
        %v9441 = vor.u32 %v9439, %v9440
        %v9442 = vshll.u32 2102212464, %v9430
        %v9443 = vshrl.u32 920167782, %v9431
        %v9444 = vor.u32 %v9442, %v9443
        %v9445 = vshll.u32 920167782, %v9430
        %v9446 = vshrl.u32 1326507024, %v9431
        %v9447 = vor.u32 %v9445, %v9446
        %vm9448 = vcmp.lt.s32.totalorder %v9429, 1
        %vm9449 = vcmp.lt.s32.totalorder %v9429, 2
        %vm9450 = vcmp.lt.s32.totalorder %v9429, 3
        %vm9451 = vcmp.lt.s32.totalorder %v9429, 4
        %v9452 = vsel %vm9448, %v9432, %v9435
        %v9453 = vsel %vm9451, %v9441, 2102212464
        %v9454 = vsel %vm9450, %v9438, %v9453
        %v9455 = vsel %vm9449, %v9452, %v9454
        %v9456 = vsel %vm9448, %v9435, %v9438
        %v9457 = vsel %vm9451, %v9444, 920167782
        %v9458 = vsel %vm9450, %v9441, %v9457
        %v9459 = vsel %vm9449, %v9456, %v9458
        %v9460 = vsel %vm9448, %v9438, %v9441
        %v9461 = vsel %vm9451, %v9447, 1326507024
        %v9462 = vsel %vm9450, %v9444, %v9461
        %v9463 = vsel %vm9449, %v9460, %v9462
        %v9464 = vshll.u32 %v9424, 8
        %v9465 = vand.u32 %v9464, 65535
        %v9466 = vshrl.u32 %v9464, 16
        %v9467 = vand.u32 %v9463, 65535
        %v9468 = vshrl.u32 %v9463, 16
        %v9469 = vmul.u32 %v9465, %v9467
        %v9470 = vmul.u32 %v9465, %v9468
        %v9471 = vmul.u32 %v9466, %v9467
        %v9472 = vmul.u32 %v9466, %v9468
        %v9473 = vshll.u32 %v9470, 16
        %v9474 = vshrl.u32 %v9470, 16
        %v9475 = vshll.u32 %v9471, 16
        %v9476 = vshrl.u32 %v9471, 16
        %vm9477 = vc.u32 %v9469, %v9473
        %v9478 = vsel %vm9477, 1, 0
        %v9479 = vadd.s32 %v9469, %v9473
        %v9480 = vadd.s32 %v9472, %v9478
        %vm9481 = vc.u32 %v9479, %v9475
        %v9482 = vsel %vm9481, 1, 0
        %v9483 = vadd.s32 %v9479, %v9475
        %v9484 = vadd.s32 %v9480, %v9482
        %v9485 = vadd.s32 %v9484, %v9474
        %v9486 = vadd.s32 %v9485, %v9476
        %v9487 = vand.u32 %v9464, 65535
        %v9488 = vshrl.u32 %v9464, 16
        %v9489 = vand.u32 %v9459, 65535
        %v9490 = vshrl.u32 %v9459, 16
        %v9491 = vmul.u32 %v9487, %v9489
        %v9492 = vmul.u32 %v9487, %v9490
        %v9493 = vmul.u32 %v9488, %v9489
        %v9494 = vmul.u32 %v9488, %v9490
        %v9495 = vshll.u32 %v9492, 16
        %v9496 = vshrl.u32 %v9492, 16
        %v9497 = vshll.u32 %v9493, 16
        %v9498 = vshrl.u32 %v9493, 16
        %vm9499 = vc.u32 %v9491, %v9495
        %v9500 = vsel %vm9499, 1, 0
        %v9501 = vadd.s32 %v9491, %v9495
        %v9502 = vadd.s32 %v9494, %v9500
        %vm9503 = vc.u32 %v9501, %v9497
        %v9504 = vsel %vm9503, 1, 0
        %v9505 = vadd.s32 %v9501, %v9497
        %v9506 = vadd.s32 %v9502, %v9504
        %v9507 = vadd.s32 %v9506, %v9496
        %v9508 = vadd.s32 %v9507, %v9498
        %v9509 = vmul.u32 %v9464, %v9455
        %v9510 = vadd.s32 %v9486, %v9505
        %vm9511 = vc.u32 %v9486, %v9505
        %v9512 = vadd.s32 %v9508, 1
        %v9513 = vsel %vm9511, %v9512, %v9508
        %v9514 = vadd.s32 %v9509, %v9513
        %v9515 = vadd.s32 %v9514, 536870912
        %v9516 = vshrl.u32 %v9515, 30
        %v9517 = vshll.u32 %v9516, 30
        %v9518 = vsub.s32 %v9514, %v9517
        %vm9519 = vcmp.lt.s32.totalorder %v9518, 0
        %v9520 = vsub.s32 0, %v9518
        %v9521 = vsel %vm9519, %v9520, %v9518
        %v9522 = vclz %v9521
        %v9523 = vsub.s32 %v9522, 2
        %vm9524 = vcmp.gt.s32.totalorder 0, %v9523
        %v9525 = vsel %vm9524, 0, %v9523
        %v9526 = vsub.s32 32, %v9525
        %v9527 = vshll.u32 %v9518, %v9525
        %v9528 = vshrl.u32 %v9510, %v9526
        %v9529 = vor.u32 %v9527, %v9528
        %v9530 = vsub.s32 4294967266, %v9525
        %v9531 = vadd.s32 %v9530, 127
        %v9532 = vshll.u32 %v9531, 23
        %v9533 = vor.u32 4788187, %v9532
        %v9534 = vand.u32 2147483647, %v9533
        %v9536 = vcvt.s32.f32 %v9529
        %v9537 = vmul.f32 %v9536, %v9534
        %v9538 = vxor.u32 %v9537, 2147483648
        %v9539 = vsel %vm9418, %v9538, %v9537
        %v9540 = vsub.s32 4, %v9516
        %v9541 = vsel %vm9418, %v9540, %v9516
        %v9542 = vsel %vm9417, %v392, %v9539
        %v9543 = vsel %vm9417, 0, %v9541
        %v9544 = vmul.f32 %v9542, %v9542
        %v9545 = vmul.f32 %v9544, -0.001358992
        %v9546 = vadd.f32 %v9545, 0.041655596
        %v9547 = vmul.f32 %v9544, %v9546
        %v9548 = vadd.f32 %v9547, -0.4999988
        %v9549 = vmul.f32 %v9544, %v9548
        %v9550 = vadd.f32 1.0, %v9549
        %v9551 = vmul.f32 %v9542, %v9542
        %v9552 = vmul.f32 %v9551, -0.00019511016
        %v9553 = vadd.f32 %v9552, 0.008332121
        %v9554 = vmul.f32 %v9551, %v9553
        %v9555 = vadd.f32 %v9554, -0.16666654
        %v9556 = vmul.f32 %v9551, %v9555
        %v9557 = vadd.f32 %v9556, 1.0
        %v9558 = vmul.f32 %v9557, %v9542
        %vm9559 = vweird.f32 %v392
        %v9560 = vadd.s32 %v9543, 3
        %v9561 = vand.u32 %v9560, 3
        %vm9562 = vcmp.lt.s32.totalorder %v9561, 2
        %vm9563 = vcmp.eq.s32.totalorder %v9561, 0
        %v9564 = vxor.u32 %v9558, 2147483648
        %v9565 = vsel %vm9563, %v9550, %v9564
        %vm9566 = vcmp.eq.s32.totalorder %v9561, 2
        %v9567 = vxor.u32 %v9550, 2147483648
        %v9568 = vsel %vm9566, %v9567, %v9558
        %v9569 = vsel %vm9562, %v9565, %v9568
        %v9570 = vsel %vm9559, nan, %v9569
        %v9571 = vand.u32 2147483647, %v393
        %vm9572 = vcmp.le.f32.partialorder %v9571, 0.7853982
        %vm9573 = vcmp.lt.s32.totalorder %v393, 0
        %v9574 = vand.u32 %v393, 2139095040
        %v9575 = vshrl.u32 %v9574, 23
        %v9576 = vsub.s32 %v9575, 127
        %v9577 = vand.u32 2147483647, %v393
        %v9578 = vand.u32 %v9577, 8388607
        %v9579 = vor.u32 %v9578, 8388608
        %v9580 = vsub.s32 0, %v9579
        %v9581 = vadd.s32 %v9576, 1
        %vm9582 = vcmp.gt.s32.totalorder %v9581, 0
        %v9583 = vsel %vm9582, %v9581, 0
        %v9584 = vshrl.u32 %v9583, 5
        %v9585 = vand.u32 %v9583, 31
        %v9586 = vsub.s32 32, %v9585
        %v9587 = vshrl.u32 683565275, %v9586
        %v9588 = vshll.u32 683565275, %v9585
        %v9589 = vshrl.u32 2475754826, %v9586
        %v9590 = vor.u32 %v9588, %v9589
        %v9591 = vshll.u32 2475754826, %v9585
        %v9592 = vshrl.u32 2131351028, %v9586
        %v9593 = vor.u32 %v9591, %v9592
        %v9594 = vshll.u32 2131351028, %v9585
        %v9595 = vshrl.u32 2102212464, %v9586
        %v9596 = vor.u32 %v9594, %v9595
        %v9597 = vshll.u32 2102212464, %v9585
        %v9598 = vshrl.u32 920167782, %v9586
        %v9599 = vor.u32 %v9597, %v9598
        %v9600 = vshll.u32 920167782, %v9585
        %v9601 = vshrl.u32 1326507024, %v9586
        %v9602 = vor.u32 %v9600, %v9601
        %vm9603 = vcmp.lt.s32.totalorder %v9584, 1
        %vm9604 = vcmp.lt.s32.totalorder %v9584, 2
        %vm9605 = vcmp.lt.s32.totalorder %v9584, 3
        %vm9606 = vcmp.lt.s32.totalorder %v9584, 4
        %v9607 = vsel %vm9603, %v9587, %v9590
        %v9608 = vsel %vm9606, %v9596, 2102212464
        %v9609 = vsel %vm9605, %v9593, %v9608
        %v9610 = vsel %vm9604, %v9607, %v9609
        %v9611 = vsel %vm9603, %v9590, %v9593
        %v9612 = vsel %vm9606, %v9599, 920167782
        %v9613 = vsel %vm9605, %v9596, %v9612
        %v9614 = vsel %vm9604, %v9611, %v9613
        %v9615 = vsel %vm9603, %v9593, %v9596
        %v9616 = vsel %vm9606, %v9602, 1326507024
        %v9617 = vsel %vm9605, %v9599, %v9616
        %v9618 = vsel %vm9604, %v9615, %v9617
        %v9619 = vshll.u32 %v9579, 8
        %v9620 = vand.u32 %v9619, 65535
        %v9621 = vshrl.u32 %v9619, 16
        %v9622 = vand.u32 %v9618, 65535
        %v9623 = vshrl.u32 %v9618, 16
        %v9624 = vmul.u32 %v9620, %v9622
        %v9625 = vmul.u32 %v9620, %v9623
        %v9626 = vmul.u32 %v9621, %v9622
        %v9627 = vmul.u32 %v9621, %v9623
        %v9628 = vshll.u32 %v9625, 16
        %v9629 = vshrl.u32 %v9625, 16
        %v9630 = vshll.u32 %v9626, 16
        %v9631 = vshrl.u32 %v9626, 16
        %vm9632 = vc.u32 %v9624, %v9628
        %v9633 = vsel %vm9632, 1, 0
        %v9634 = vadd.s32 %v9624, %v9628
        %v9635 = vadd.s32 %v9627, %v9633
        %vm9636 = vc.u32 %v9634, %v9630
        %v9637 = vsel %vm9636, 1, 0
        %v9638 = vadd.s32 %v9634, %v9630
        %v9639 = vadd.s32 %v9635, %v9637
        %v9640 = vadd.s32 %v9639, %v9629
        %v9641 = vadd.s32 %v9640, %v9631
        %v9642 = vand.u32 %v9619, 65535
        %v9643 = vshrl.u32 %v9619, 16
        %v9644 = vand.u32 %v9614, 65535
        %v9645 = vshrl.u32 %v9614, 16
        %v9646 = vmul.u32 %v9642, %v9644
        %v9647 = vmul.u32 %v9642, %v9645
        %v9648 = vmul.u32 %v9643, %v9644
        %v9649 = vmul.u32 %v9643, %v9645
        %v9650 = vshll.u32 %v9647, 16
        %v9651 = vshrl.u32 %v9647, 16
        %v9652 = vshll.u32 %v9648, 16
        %v9653 = vshrl.u32 %v9648, 16
        %vm9654 = vc.u32 %v9646, %v9650
        %v9655 = vsel %vm9654, 1, 0
        %v9656 = vadd.s32 %v9646, %v9650
        %v9657 = vadd.s32 %v9649, %v9655
        %vm9658 = vc.u32 %v9656, %v9652
        %v9659 = vsel %vm9658, 1, 0
        %v9660 = vadd.s32 %v9656, %v9652
        %v9661 = vadd.s32 %v9657, %v9659
        %v9662 = vadd.s32 %v9661, %v9651
        %v9663 = vadd.s32 %v9662, %v9653
        %v9664 = vmul.u32 %v9619, %v9610
        %v9665 = vadd.s32 %v9641, %v9660
        %vm9666 = vc.u32 %v9641, %v9660
        %v9667 = vadd.s32 %v9663, 1
        %v9668 = vsel %vm9666, %v9667, %v9663
        %v9669 = vadd.s32 %v9664, %v9668
        %v9670 = vadd.s32 %v9669, 536870912
        %v9671 = vshrl.u32 %v9670, 30
        %v9672 = vshll.u32 %v9671, 30
        %v9673 = vsub.s32 %v9669, %v9672
        %vm9674 = vcmp.lt.s32.totalorder %v9673, 0
        %v9675 = vsub.s32 0, %v9673
        %v9676 = vsel %vm9674, %v9675, %v9673
        %v9677 = vclz %v9676
        %v9678 = vsub.s32 %v9677, 2
        %vm9679 = vcmp.gt.s32.totalorder 0, %v9678
        %v9680 = vsel %vm9679, 0, %v9678
        %v9681 = vsub.s32 32, %v9680
        %v9682 = vshll.u32 %v9673, %v9680
        %v9683 = vshrl.u32 %v9665, %v9681
        %v9684 = vor.u32 %v9682, %v9683
        %v9685 = vsub.s32 4294967266, %v9680
        %v9686 = vadd.s32 %v9685, 127
        %v9687 = vshll.u32 %v9686, 23
        %v9688 = vor.u32 4788187, %v9687
        %v9689 = vand.u32 2147483647, %v9688
        %v9691 = vcvt.s32.f32 %v9684
        %v9692 = vmul.f32 %v9691, %v9689
        %v9693 = vxor.u32 %v9692, 2147483648
        %v9694 = vsel %vm9573, %v9693, %v9692
        %v9695 = vsub.s32 4, %v9671
        %v9696 = vsel %vm9573, %v9695, %v9671
        %v9697 = vsel %vm9572, %v393, %v9694
        %v9698 = vsel %vm9572, 0, %v9696
        %v9699 = vmul.f32 %v9697, %v9697
        %v9700 = vmul.f32 %v9699, -0.001358992
        %v9701 = vadd.f32 %v9700, 0.041655596
        %v9702 = vmul.f32 %v9699, %v9701
        %v9703 = vadd.f32 %v9702, -0.4999988
        %v9704 = vmul.f32 %v9699, %v9703
        %v9705 = vadd.f32 1.0, %v9704
        %v9706 = vmul.f32 %v9697, %v9697
        %v9707 = vmul.f32 %v9706, -0.00019511016
        %v9708 = vadd.f32 %v9707, 0.008332121
        %v9709 = vmul.f32 %v9706, %v9708
        %v9710 = vadd.f32 %v9709, -0.16666654
        %v9711 = vmul.f32 %v9706, %v9710
        %v9712 = vadd.f32 %v9711, 1.0
        %v9713 = vmul.f32 %v9712, %v9697
        %vm9714 = vweird.f32 %v393
        %v9715 = vadd.s32 %v9698, 3
        %v9716 = vand.u32 %v9715, 3
        %vm9717 = vcmp.lt.s32.totalorder %v9716, 2
        %vm9718 = vcmp.eq.s32.totalorder %v9716, 0
        %v9719 = vxor.u32 %v9713, 2147483648
        %v9720 = vsel %vm9718, %v9705, %v9719
        %vm9721 = vcmp.eq.s32.totalorder %v9716, 2
        %v9722 = vxor.u32 %v9705, 2147483648
        %v9723 = vsel %vm9721, %v9722, %v9713
        %v9724 = vsel %vm9717, %v9720, %v9723
        %v9725 = vsel %vm9714, nan, %v9724
        %v9726 = vand.u32 2147483647, %v394
        %vm9727 = vcmp.le.f32.partialorder %v9726, 0.7853982
        %vm9728 = vcmp.lt.s32.totalorder %v394, 0
        %v9729 = vand.u32 %v394, 2139095040
        %v9730 = vshrl.u32 %v9729, 23
        %v9731 = vsub.s32 %v9730, 127
        %v9732 = vand.u32 2147483647, %v394
        %v9733 = vand.u32 %v9732, 8388607
        %v9734 = vor.u32 %v9733, 8388608
        %v9735 = vsub.s32 0, %v9734
        %v9736 = vadd.s32 %v9731, 1
        %vm9737 = vcmp.gt.s32.totalorder %v9736, 0
        %v9738 = vsel %vm9737, %v9736, 0
        %v9739 = vshrl.u32 %v9738, 5
        %v9740 = vand.u32 %v9738, 31
        %v9741 = vsub.s32 32, %v9740
        %v9742 = vshrl.u32 683565275, %v9741
        %v9743 = vshll.u32 683565275, %v9740
        %v9744 = vshrl.u32 2475754826, %v9741
        %v9745 = vor.u32 %v9743, %v9744
        %v9746 = vshll.u32 2475754826, %v9740
        %v9747 = vshrl.u32 2131351028, %v9741
        %v9748 = vor.u32 %v9746, %v9747
        %v9749 = vshll.u32 2131351028, %v9740
        %v9750 = vshrl.u32 2102212464, %v9741
        %v9751 = vor.u32 %v9749, %v9750
        %v9752 = vshll.u32 2102212464, %v9740
        %v9753 = vshrl.u32 920167782, %v9741
        %v9754 = vor.u32 %v9752, %v9753
        %v9755 = vshll.u32 920167782, %v9740
        %v9756 = vshrl.u32 1326507024, %v9741
        %v9757 = vor.u32 %v9755, %v9756
        %vm9758 = vcmp.lt.s32.totalorder %v9739, 1
        %vm9759 = vcmp.lt.s32.totalorder %v9739, 2
        %vm9760 = vcmp.lt.s32.totalorder %v9739, 3
        %vm9761 = vcmp.lt.s32.totalorder %v9739, 4
        %v9762 = vsel %vm9758, %v9742, %v9745
        %v9763 = vsel %vm9761, %v9751, 2102212464
        %v9764 = vsel %vm9760, %v9748, %v9763
        %v9765 = vsel %vm9759, %v9762, %v9764
        %v9766 = vsel %vm9758, %v9745, %v9748
        %v9767 = vsel %vm9761, %v9754, 920167782
        %v9768 = vsel %vm9760, %v9751, %v9767
        %v9769 = vsel %vm9759, %v9766, %v9768
        %v9770 = vsel %vm9758, %v9748, %v9751
        %v9771 = vsel %vm9761, %v9757, 1326507024
        %v9772 = vsel %vm9760, %v9754, %v9771
        %v9773 = vsel %vm9759, %v9770, %v9772
        %v9774 = vshll.u32 %v9734, 8
        %v9775 = vand.u32 %v9774, 65535
        %v9776 = vshrl.u32 %v9774, 16
        %v9777 = vand.u32 %v9773, 65535
        %v9778 = vshrl.u32 %v9773, 16
        %v9779 = vmul.u32 %v9775, %v9777
        %v9780 = vmul.u32 %v9775, %v9778
        %v9781 = vmul.u32 %v9776, %v9777
        %v9782 = vmul.u32 %v9776, %v9778
        %v9783 = vshll.u32 %v9780, 16
        %v9784 = vshrl.u32 %v9780, 16
        %v9785 = vshll.u32 %v9781, 16
        %v9786 = vshrl.u32 %v9781, 16
        %vm9787 = vc.u32 %v9779, %v9783
        %v9788 = vsel %vm9787, 1, 0
        %v9789 = vadd.s32 %v9779, %v9783
        %v9790 = vadd.s32 %v9782, %v9788
        %vm9791 = vc.u32 %v9789, %v9785
        %v9792 = vsel %vm9791, 1, 0
        %v9793 = vadd.s32 %v9789, %v9785
        %v9794 = vadd.s32 %v9790, %v9792
        %v9795 = vadd.s32 %v9794, %v9784
        %v9796 = vadd.s32 %v9795, %v9786
        %v9797 = vand.u32 %v9774, 65535
        %v9798 = vshrl.u32 %v9774, 16
        %v9799 = vand.u32 %v9769, 65535
        %v9800 = vshrl.u32 %v9769, 16
        %v9801 = vmul.u32 %v9797, %v9799
        %v9802 = vmul.u32 %v9797, %v9800
        %v9803 = vmul.u32 %v9798, %v9799
        %v9804 = vmul.u32 %v9798, %v9800
        %v9805 = vshll.u32 %v9802, 16
        %v9806 = vshrl.u32 %v9802, 16
        %v9807 = vshll.u32 %v9803, 16
        %v9808 = vshrl.u32 %v9803, 16
        %vm9809 = vc.u32 %v9801, %v9805
        %v9810 = vsel %vm9809, 1, 0
        %v9811 = vadd.s32 %v9801, %v9805
        %v9812 = vadd.s32 %v9804, %v9810
        %vm9813 = vc.u32 %v9811, %v9807
        %v9814 = vsel %vm9813, 1, 0
        %v9815 = vadd.s32 %v9811, %v9807
        %v9816 = vadd.s32 %v9812, %v9814
        %v9817 = vadd.s32 %v9816, %v9806
        %v9818 = vadd.s32 %v9817, %v9808
        %v9819 = vmul.u32 %v9774, %v9765
        %v9820 = vadd.s32 %v9796, %v9815
        %vm9821 = vc.u32 %v9796, %v9815
        %v9822 = vadd.s32 %v9818, 1
        %v9823 = vsel %vm9821, %v9822, %v9818
        %v9824 = vadd.s32 %v9819, %v9823
        %v9825 = vadd.s32 %v9824, 536870912
        %v9826 = vshrl.u32 %v9825, 30
        %v9827 = vshll.u32 %v9826, 30
        %v9828 = vsub.s32 %v9824, %v9827
        %vm9829 = vcmp.lt.s32.totalorder %v9828, 0
        %v9830 = vsub.s32 0, %v9828
        %v9831 = vsel %vm9829, %v9830, %v9828
        %v9832 = vclz %v9831
        %v9833 = vsub.s32 %v9832, 2
        %vm9834 = vcmp.gt.s32.totalorder 0, %v9833
        %v9835 = vsel %vm9834, 0, %v9833
        %v9836 = vsub.s32 32, %v9835
        %v9837 = vshll.u32 %v9828, %v9835
        %v9838 = vshrl.u32 %v9820, %v9836
        %v9839 = vor.u32 %v9837, %v9838
        %v9840 = vsub.s32 4294967266, %v9835
        %v9841 = vadd.s32 %v9840, 127
        %v9842 = vshll.u32 %v9841, 23
        %v9843 = vor.u32 4788187, %v9842
        %v9844 = vand.u32 2147483647, %v9843
        %v9846 = vcvt.s32.f32 %v9839
        %v9847 = vmul.f32 %v9846, %v9844
        %v9848 = vxor.u32 %v9847, 2147483648
        %v9849 = vsel %vm9728, %v9848, %v9847
        %v9850 = vsub.s32 4, %v9826
        %v9851 = vsel %vm9728, %v9850, %v9826
        %v9852 = vsel %vm9727, %v394, %v9849
        %v9853 = vsel %vm9727, 0, %v9851
        %v9854 = vmul.f32 %v9852, %v9852
        %v9855 = vmul.f32 %v9854, -0.001358992
        %v9856 = vadd.f32 %v9855, 0.041655596
        %v9857 = vmul.f32 %v9854, %v9856
        %v9858 = vadd.f32 %v9857, -0.4999988
        %v9859 = vmul.f32 %v9854, %v9858
        %v9860 = vadd.f32 1.0, %v9859
        %v9861 = vmul.f32 %v9852, %v9852
        %v9862 = vmul.f32 %v9861, -0.00019511016
        %v9863 = vadd.f32 %v9862, 0.008332121
        %v9864 = vmul.f32 %v9861, %v9863
        %v9865 = vadd.f32 %v9864, -0.16666654
        %v9866 = vmul.f32 %v9861, %v9865
        %v9867 = vadd.f32 %v9866, 1.0
        %v9868 = vmul.f32 %v9867, %v9852
        %vm9869 = vweird.f32 %v394
        %v9870 = vadd.s32 %v9853, 3
        %v9871 = vand.u32 %v9870, 3
        %vm9872 = vcmp.lt.s32.totalorder %v9871, 2
        %vm9873 = vcmp.eq.s32.totalorder %v9871, 0
        %v9874 = vxor.u32 %v9868, 2147483648
        %v9875 = vsel %vm9873, %v9860, %v9874
        %vm9876 = vcmp.eq.s32.totalorder %v9871, 2
        %v9877 = vxor.u32 %v9860, 2147483648
        %v9878 = vsel %vm9876, %v9877, %v9868
        %v9879 = vsel %vm9872, %v9875, %v9878
        %v9880 = vsel %vm9869, nan, %v9879
        %v9881 = vand.u32 2147483647, %v395
        %vm9882 = vcmp.le.f32.partialorder %v9881, 0.7853982
        %vm9883 = vcmp.lt.s32.totalorder %v395, 0
        %v9884 = vand.u32 %v395, 2139095040
        %v9885 = vshrl.u32 %v9884, 23
        %v9886 = vsub.s32 %v9885, 127
        %v9887 = vand.u32 2147483647, %v395
        %v9888 = vand.u32 %v9887, 8388607
        %v9889 = vor.u32 %v9888, 8388608
        %v9890 = vsub.s32 0, %v9889
        %v9891 = vadd.s32 %v9886, 1
        %vm9892 = vcmp.gt.s32.totalorder %v9891, 0
        %v9893 = vsel %vm9892, %v9891, 0
        %v9894 = vshrl.u32 %v9893, 5
        %v9895 = vand.u32 %v9893, 31
        %v9896 = vsub.s32 32, %v9895
        %v9897 = vshrl.u32 683565275, %v9896
        %v9898 = vshll.u32 683565275, %v9895
        %v9899 = vshrl.u32 2475754826, %v9896
        %v9900 = vor.u32 %v9898, %v9899
        %v9901 = vshll.u32 2475754826, %v9895
        %v9902 = vshrl.u32 2131351028, %v9896
        %v9903 = vor.u32 %v9901, %v9902
        %v9904 = vshll.u32 2131351028, %v9895
        %v9905 = vshrl.u32 2102212464, %v9896
        %v9906 = vor.u32 %v9904, %v9905
        %v9907 = vshll.u32 2102212464, %v9895
        %v9908 = vshrl.u32 920167782, %v9896
        %v9909 = vor.u32 %v9907, %v9908
        %v9910 = vshll.u32 920167782, %v9895
        %v9911 = vshrl.u32 1326507024, %v9896
        %v9912 = vor.u32 %v9910, %v9911
        %vm9913 = vcmp.lt.s32.totalorder %v9894, 1
        %vm9914 = vcmp.lt.s32.totalorder %v9894, 2
        %vm9915 = vcmp.lt.s32.totalorder %v9894, 3
        %vm9916 = vcmp.lt.s32.totalorder %v9894, 4
        %v9917 = vsel %vm9913, %v9897, %v9900
        %v9918 = vsel %vm9916, %v9906, 2102212464
        %v9919 = vsel %vm9915, %v9903, %v9918
        %v9920 = vsel %vm9914, %v9917, %v9919
        %v9921 = vsel %vm9913, %v9900, %v9903
        %v9922 = vsel %vm9916, %v9909, 920167782
        %v9923 = vsel %vm9915, %v9906, %v9922
        %v9924 = vsel %vm9914, %v9921, %v9923
        %v9925 = vsel %vm9913, %v9903, %v9906
        %v9926 = vsel %vm9916, %v9912, 1326507024
        %v9927 = vsel %vm9915, %v9909, %v9926
        %v9928 = vsel %vm9914, %v9925, %v9927
        %v9929 = vshll.u32 %v9889, 8
        %v9930 = vand.u32 %v9929, 65535
        %v9931 = vshrl.u32 %v9929, 16
        %v9932 = vand.u32 %v9928, 65535
        %v9933 = vshrl.u32 %v9928, 16
        %v9934 = vmul.u32 %v9930, %v9932
        %v9935 = vmul.u32 %v9930, %v9933
        %v9936 = vmul.u32 %v9931, %v9932
        %v9937 = vmul.u32 %v9931, %v9933
        %v9938 = vshll.u32 %v9935, 16
        %v9939 = vshrl.u32 %v9935, 16
        %v9940 = vshll.u32 %v9936, 16
        %v9941 = vshrl.u32 %v9936, 16
        %vm9942 = vc.u32 %v9934, %v9938
        %v9943 = vsel %vm9942, 1, 0
        %v9944 = vadd.s32 %v9934, %v9938
        %v9945 = vadd.s32 %v9937, %v9943
        %vm9946 = vc.u32 %v9944, %v9940
        %v9947 = vsel %vm9946, 1, 0
        %v9948 = vadd.s32 %v9944, %v9940
        %v9949 = vadd.s32 %v9945, %v9947
        %v9950 = vadd.s32 %v9949, %v9939
        %v9951 = vadd.s32 %v9950, %v9941
        %v9952 = vand.u32 %v9929, 65535
        %v9953 = vshrl.u32 %v9929, 16
        %v9954 = vand.u32 %v9924, 65535
        %v9955 = vshrl.u32 %v9924, 16
        %v9956 = vmul.u32 %v9952, %v9954
        %v9957 = vmul.u32 %v9952, %v9955
        %v9958 = vmul.u32 %v9953, %v9954
        %v9959 = vmul.u32 %v9953, %v9955
        %v9960 = vshll.u32 %v9957, 16
        %v9961 = vshrl.u32 %v9957, 16
        %v9962 = vshll.u32 %v9958, 16
        %v9963 = vshrl.u32 %v9958, 16
        %vm9964 = vc.u32 %v9956, %v9960
        %v9965 = vsel %vm9964, 1, 0
        %v9966 = vadd.s32 %v9956, %v9960
        %v9967 = vadd.s32 %v9959, %v9965
        %vm9968 = vc.u32 %v9966, %v9962
        %v9969 = vsel %vm9968, 1, 0
        %v9970 = vadd.s32 %v9966, %v9962
        %v9971 = vadd.s32 %v9967, %v9969
        %v9972 = vadd.s32 %v9971, %v9961
        %v9973 = vadd.s32 %v9972, %v9963
        %v9974 = vmul.u32 %v9929, %v9920
        %v9975 = vadd.s32 %v9951, %v9970
        %vm9976 = vc.u32 %v9951, %v9970
        %v9977 = vadd.s32 %v9973, 1
        %v9978 = vsel %vm9976, %v9977, %v9973
        %v9979 = vadd.s32 %v9974, %v9978
        %v9980 = vadd.s32 %v9979, 536870912
        %v9981 = vshrl.u32 %v9980, 30
        %v9982 = vshll.u32 %v9981, 30
        %v9983 = vsub.s32 %v9979, %v9982
        %vm9984 = vcmp.lt.s32.totalorder %v9983, 0
        %v9985 = vsub.s32 0, %v9983
        %v9986 = vsel %vm9984, %v9985, %v9983
        %v9987 = vclz %v9986
        %v9988 = vsub.s32 %v9987, 2
        %vm9989 = vcmp.gt.s32.totalorder 0, %v9988
        %v9990 = vsel %vm9989, 0, %v9988
        %v9991 = vsub.s32 32, %v9990
        %v9992 = vshll.u32 %v9983, %v9990
        %v9993 = vshrl.u32 %v9975, %v9991
        %v9994 = vor.u32 %v9992, %v9993
        %v9995 = vsub.s32 4294967266, %v9990
        %v9996 = vadd.s32 %v9995, 127
        %v9997 = vshll.u32 %v9996, 23
        %v9998 = vor.u32 4788187, %v9997
        %v9999 = vand.u32 2147483647, %v9998
        %v10001 = vcvt.s32.f32 %v9994
        %v10002 = vmul.f32 %v10001, %v9999
        %v10003 = vxor.u32 %v10002, 2147483648
        %v10004 = vsel %vm9883, %v10003, %v10002
        %v10005 = vsub.s32 4, %v9981
        %v10006 = vsel %vm9883, %v10005, %v9981
        %v10007 = vsel %vm9882, %v395, %v10004
        %v10008 = vsel %vm9882, 0, %v10006
        %v10009 = vmul.f32 %v10007, %v10007
        %v10010 = vmul.f32 %v10009, -0.001358992
        %v10011 = vadd.f32 %v10010, 0.041655596
        %v10012 = vmul.f32 %v10009, %v10011
        %v10013 = vadd.f32 %v10012, -0.4999988
        %v10014 = vmul.f32 %v10009, %v10013
        %v10015 = vadd.f32 1.0, %v10014
        %v10016 = vmul.f32 %v10007, %v10007
        %v10017 = vmul.f32 %v10016, -0.00019511016
        %v10018 = vadd.f32 %v10017, 0.008332121
        %v10019 = vmul.f32 %v10016, %v10018
        %v10020 = vadd.f32 %v10019, -0.16666654
        %v10021 = vmul.f32 %v10016, %v10020
        %v10022 = vadd.f32 %v10021, 1.0
        %v10023 = vmul.f32 %v10022, %v10007
        %vm10024 = vweird.f32 %v395
        %v10025 = vadd.s32 %v10008, 3
        %v10026 = vand.u32 %v10025, 3
        %vm10027 = vcmp.lt.s32.totalorder %v10026, 2
        %vm10028 = vcmp.eq.s32.totalorder %v10026, 0
        %v10029 = vxor.u32 %v10023, 2147483648
        %v10030 = vsel %vm10028, %v10015, %v10029
        %vm10031 = vcmp.eq.s32.totalorder %v10026, 2
        %v10032 = vxor.u32 %v10015, 2147483648
        %v10033 = vsel %vm10031, %v10032, %v10023
        %v10034 = vsel %vm10027, %v10030, %v10033
        %v10035 = vsel %vm10024, nan, %v10034
        %v10036 = vand.u32 2147483647, %v396
        %vm10037 = vcmp.le.f32.partialorder %v10036, 0.7853982
        %vm10038 = vcmp.lt.s32.totalorder %v396, 0
        %v10039 = vand.u32 %v396, 2139095040
        %v10040 = vshrl.u32 %v10039, 23
        %v10041 = vsub.s32 %v10040, 127
        %v10042 = vand.u32 2147483647, %v396
        %v10043 = vand.u32 %v10042, 8388607
        %v10044 = vor.u32 %v10043, 8388608
        %v10045 = vsub.s32 0, %v10044
        %v10046 = vadd.s32 %v10041, 1
        %vm10047 = vcmp.gt.s32.totalorder %v10046, 0
        %v10048 = vsel %vm10047, %v10046, 0
        %v10049 = vshrl.u32 %v10048, 5
        %v10050 = vand.u32 %v10048, 31
        %v10051 = vsub.s32 32, %v10050
        %v10052 = vshrl.u32 683565275, %v10051
        %v10053 = vshll.u32 683565275, %v10050
        %v10054 = vshrl.u32 2475754826, %v10051
        %v10055 = vor.u32 %v10053, %v10054
        %v10056 = vshll.u32 2475754826, %v10050
        %v10057 = vshrl.u32 2131351028, %v10051
        %v10058 = vor.u32 %v10056, %v10057
        %v10059 = vshll.u32 2131351028, %v10050
        %v10060 = vshrl.u32 2102212464, %v10051
        %v10061 = vor.u32 %v10059, %v10060
        %v10062 = vshll.u32 2102212464, %v10050
        %v10063 = vshrl.u32 920167782, %v10051
        %v10064 = vor.u32 %v10062, %v10063
        %v10065 = vshll.u32 920167782, %v10050
        %v10066 = vshrl.u32 1326507024, %v10051
        %v10067 = vor.u32 %v10065, %v10066
        %vm10068 = vcmp.lt.s32.totalorder %v10049, 1
        %vm10069 = vcmp.lt.s32.totalorder %v10049, 2
        %vm10070 = vcmp.lt.s32.totalorder %v10049, 3
        %vm10071 = vcmp.lt.s32.totalorder %v10049, 4
        %v10072 = vsel %vm10068, %v10052, %v10055
        %v10073 = vsel %vm10071, %v10061, 2102212464
        %v10074 = vsel %vm10070, %v10058, %v10073
        %v10075 = vsel %vm10069, %v10072, %v10074
        %v10076 = vsel %vm10068, %v10055, %v10058
        %v10077 = vsel %vm10071, %v10064, 920167782
        %v10078 = vsel %vm10070, %v10061, %v10077
        %v10079 = vsel %vm10069, %v10076, %v10078
        %v10080 = vsel %vm10068, %v10058, %v10061
        %v10081 = vsel %vm10071, %v10067, 1326507024
        %v10082 = vsel %vm10070, %v10064, %v10081
        %v10083 = vsel %vm10069, %v10080, %v10082
        %v10084 = vshll.u32 %v10044, 8
        %v10085 = vand.u32 %v10084, 65535
        %v10086 = vshrl.u32 %v10084, 16
        %v10087 = vand.u32 %v10083, 65535
        %v10088 = vshrl.u32 %v10083, 16
        %v10089 = vmul.u32 %v10085, %v10087
        %v10090 = vmul.u32 %v10085, %v10088
        %v10091 = vmul.u32 %v10086, %v10087
        %v10092 = vmul.u32 %v10086, %v10088
        %v10093 = vshll.u32 %v10090, 16
        %v10094 = vshrl.u32 %v10090, 16
        %v10095 = vshll.u32 %v10091, 16
        %v10096 = vshrl.u32 %v10091, 16
        %vm10097 = vc.u32 %v10089, %v10093
        %v10098 = vsel %vm10097, 1, 0
        %v10099 = vadd.s32 %v10089, %v10093
        %v10100 = vadd.s32 %v10092, %v10098
        %vm10101 = vc.u32 %v10099, %v10095
        %v10102 = vsel %vm10101, 1, 0
        %v10103 = vadd.s32 %v10099, %v10095
        %v10104 = vadd.s32 %v10100, %v10102
        %v10105 = vadd.s32 %v10104, %v10094
        %v10106 = vadd.s32 %v10105, %v10096
        %v10107 = vand.u32 %v10084, 65535
        %v10108 = vshrl.u32 %v10084, 16
        %v10109 = vand.u32 %v10079, 65535
        %v10110 = vshrl.u32 %v10079, 16
        %v10111 = vmul.u32 %v10107, %v10109
        %v10112 = vmul.u32 %v10107, %v10110
        %v10113 = vmul.u32 %v10108, %v10109
        %v10114 = vmul.u32 %v10108, %v10110
        %v10115 = vshll.u32 %v10112, 16
        %v10116 = vshrl.u32 %v10112, 16
        %v10117 = vshll.u32 %v10113, 16
        %v10118 = vshrl.u32 %v10113, 16
        %vm10119 = vc.u32 %v10111, %v10115
        %v10120 = vsel %vm10119, 1, 0
        %v10121 = vadd.s32 %v10111, %v10115
        %v10122 = vadd.s32 %v10114, %v10120
        %vm10123 = vc.u32 %v10121, %v10117
        %v10124 = vsel %vm10123, 1, 0
        %v10125 = vadd.s32 %v10121, %v10117
        %v10126 = vadd.s32 %v10122, %v10124
        %v10127 = vadd.s32 %v10126, %v10116
        %v10128 = vadd.s32 %v10127, %v10118
        %v10129 = vmul.u32 %v10084, %v10075
        %v10130 = vadd.s32 %v10106, %v10125
        %vm10131 = vc.u32 %v10106, %v10125
        %v10132 = vadd.s32 %v10128, 1
        %v10133 = vsel %vm10131, %v10132, %v10128
        %v10134 = vadd.s32 %v10129, %v10133
        %v10135 = vadd.s32 %v10134, 536870912
        %v10136 = vshrl.u32 %v10135, 30
        %v10137 = vshll.u32 %v10136, 30
        %v10138 = vsub.s32 %v10134, %v10137
        %vm10139 = vcmp.lt.s32.totalorder %v10138, 0
        %v10140 = vsub.s32 0, %v10138
        %v10141 = vsel %vm10139, %v10140, %v10138
        %v10142 = vclz %v10141
        %v10143 = vsub.s32 %v10142, 2
        %vm10144 = vcmp.gt.s32.totalorder 0, %v10143
        %v10145 = vsel %vm10144, 0, %v10143
        %v10146 = vsub.s32 32, %v10145
        %v10147 = vshll.u32 %v10138, %v10145
        %v10148 = vshrl.u32 %v10130, %v10146
        %v10149 = vor.u32 %v10147, %v10148
        %v10150 = vsub.s32 4294967266, %v10145
        %v10151 = vadd.s32 %v10150, 127
        %v10152 = vshll.u32 %v10151, 23
        %v10153 = vor.u32 4788187, %v10152
        %v10154 = vand.u32 2147483647, %v10153
        %v10156 = vcvt.s32.f32 %v10149
        %v10157 = vmul.f32 %v10156, %v10154
        %v10158 = vxor.u32 %v10157, 2147483648
        %v10159 = vsel %vm10038, %v10158, %v10157
        %v10160 = vsub.s32 4, %v10136
        %v10161 = vsel %vm10038, %v10160, %v10136
        %v10162 = vsel %vm10037, %v396, %v10159
        %v10163 = vsel %vm10037, 0, %v10161
        %v10164 = vmul.f32 %v10162, %v10162
        %v10165 = vmul.f32 %v10164, -0.001358992
        %v10166 = vadd.f32 %v10165, 0.041655596
        %v10167 = vmul.f32 %v10164, %v10166
        %v10168 = vadd.f32 %v10167, -0.4999988
        %v10169 = vmul.f32 %v10164, %v10168
        %v10170 = vadd.f32 1.0, %v10169
        %v10171 = vmul.f32 %v10162, %v10162
        %v10172 = vmul.f32 %v10171, -0.00019511016
        %v10173 = vadd.f32 %v10172, 0.008332121
        %v10174 = vmul.f32 %v10171, %v10173
        %v10175 = vadd.f32 %v10174, -0.16666654
        %v10176 = vmul.f32 %v10171, %v10175
        %v10177 = vadd.f32 %v10176, 1.0
        %v10178 = vmul.f32 %v10177, %v10162
        %vm10179 = vweird.f32 %v396
        %v10180 = vadd.s32 %v10163, 3
        %v10181 = vand.u32 %v10180, 3
        %vm10182 = vcmp.lt.s32.totalorder %v10181, 2
        %vm10183 = vcmp.eq.s32.totalorder %v10181, 0
        %v10184 = vxor.u32 %v10178, 2147483648
        %v10185 = vsel %vm10183, %v10170, %v10184
        %vm10186 = vcmp.eq.s32.totalorder %v10181, 2
        %v10187 = vxor.u32 %v10170, 2147483648
        %v10188 = vsel %vm10186, %v10187, %v10178
        %v10189 = vsel %vm10182, %v10185, %v10188
        %v10190 = vsel %vm10179, nan, %v10189
        %v10191 = vand.u32 2147483647, %v397
        %vm10192 = vcmp.le.f32.partialorder %v10191, 0.7853982
        %vm10193 = vcmp.lt.s32.totalorder %v397, 0
        %v10194 = vand.u32 %v397, 2139095040
        %v10195 = vshrl.u32 %v10194, 23
        %v10196 = vsub.s32 %v10195, 127
        %v10197 = vand.u32 2147483647, %v397
        %v10198 = vand.u32 %v10197, 8388607
        %v10199 = vor.u32 %v10198, 8388608
        %v10200 = vsub.s32 0, %v10199
        %v10201 = vadd.s32 %v10196, 1
        %vm10202 = vcmp.gt.s32.totalorder %v10201, 0
        %v10203 = vsel %vm10202, %v10201, 0
        %v10204 = vshrl.u32 %v10203, 5
        %v10205 = vand.u32 %v10203, 31
        %v10206 = vsub.s32 32, %v10205
        %v10207 = vshrl.u32 683565275, %v10206
        %v10208 = vshll.u32 683565275, %v10205
        %v10209 = vshrl.u32 2475754826, %v10206
        %v10210 = vor.u32 %v10208, %v10209
        %v10211 = vshll.u32 2475754826, %v10205
        %v10212 = vshrl.u32 2131351028, %v10206
        %v10213 = vor.u32 %v10211, %v10212
        %v10214 = vshll.u32 2131351028, %v10205
        %v10215 = vshrl.u32 2102212464, %v10206
        %v10216 = vor.u32 %v10214, %v10215
        %v10217 = vshll.u32 2102212464, %v10205
        %v10218 = vshrl.u32 920167782, %v10206
        %v10219 = vor.u32 %v10217, %v10218
        %v10220 = vshll.u32 920167782, %v10205
        %v10221 = vshrl.u32 1326507024, %v10206
        %v10222 = vor.u32 %v10220, %v10221
        %vm10223 = vcmp.lt.s32.totalorder %v10204, 1
        %vm10224 = vcmp.lt.s32.totalorder %v10204, 2
        %vm10225 = vcmp.lt.s32.totalorder %v10204, 3
        %vm10226 = vcmp.lt.s32.totalorder %v10204, 4
        %v10227 = vsel %vm10223, %v10207, %v10210
        %v10228 = vsel %vm10226, %v10216, 2102212464
        %v10229 = vsel %vm10225, %v10213, %v10228
        %v10230 = vsel %vm10224, %v10227, %v10229
        %v10231 = vsel %vm10223, %v10210, %v10213
        %v10232 = vsel %vm10226, %v10219, 920167782
        %v10233 = vsel %vm10225, %v10216, %v10232
        %v10234 = vsel %vm10224, %v10231, %v10233
        %v10235 = vsel %vm10223, %v10213, %v10216
        %v10236 = vsel %vm10226, %v10222, 1326507024
        %v10237 = vsel %vm10225, %v10219, %v10236
        %v10238 = vsel %vm10224, %v10235, %v10237
        %v10239 = vshll.u32 %v10199, 8
        %v10240 = vand.u32 %v10239, 65535
        %v10241 = vshrl.u32 %v10239, 16
        %v10242 = vand.u32 %v10238, 65535
        %v10243 = vshrl.u32 %v10238, 16
        %v10244 = vmul.u32 %v10240, %v10242
        %v10245 = vmul.u32 %v10240, %v10243
        %v10246 = vmul.u32 %v10241, %v10242
        %v10247 = vmul.u32 %v10241, %v10243
        %v10248 = vshll.u32 %v10245, 16
        %v10249 = vshrl.u32 %v10245, 16
        %v10250 = vshll.u32 %v10246, 16
        %v10251 = vshrl.u32 %v10246, 16
        %vm10252 = vc.u32 %v10244, %v10248
        %v10253 = vsel %vm10252, 1, 0
        %v10254 = vadd.s32 %v10244, %v10248
        %v10255 = vadd.s32 %v10247, %v10253
        %vm10256 = vc.u32 %v10254, %v10250
        %v10257 = vsel %vm10256, 1, 0
        %v10258 = vadd.s32 %v10254, %v10250
        %v10259 = vadd.s32 %v10255, %v10257
        %v10260 = vadd.s32 %v10259, %v10249
        %v10261 = vadd.s32 %v10260, %v10251
        %v10262 = vand.u32 %v10239, 65535
        %v10263 = vshrl.u32 %v10239, 16
        %v10264 = vand.u32 %v10234, 65535
        %v10265 = vshrl.u32 %v10234, 16
        %v10266 = vmul.u32 %v10262, %v10264
        %v10267 = vmul.u32 %v10262, %v10265
        %v10268 = vmul.u32 %v10263, %v10264
        %v10269 = vmul.u32 %v10263, %v10265
        %v10270 = vshll.u32 %v10267, 16
        %v10271 = vshrl.u32 %v10267, 16
        %v10272 = vshll.u32 %v10268, 16
        %v10273 = vshrl.u32 %v10268, 16
        %vm10274 = vc.u32 %v10266, %v10270
        %v10275 = vsel %vm10274, 1, 0
        %v10276 = vadd.s32 %v10266, %v10270
        %v10277 = vadd.s32 %v10269, %v10275
        %vm10278 = vc.u32 %v10276, %v10272
        %v10279 = vsel %vm10278, 1, 0
        %v10280 = vadd.s32 %v10276, %v10272
        %v10281 = vadd.s32 %v10277, %v10279
        %v10282 = vadd.s32 %v10281, %v10271
        %v10283 = vadd.s32 %v10282, %v10273
        %v10284 = vmul.u32 %v10239, %v10230
        %v10285 = vadd.s32 %v10261, %v10280
        %vm10286 = vc.u32 %v10261, %v10280
        %v10287 = vadd.s32 %v10283, 1
        %v10288 = vsel %vm10286, %v10287, %v10283
        %v10289 = vadd.s32 %v10284, %v10288
        %v10290 = vadd.s32 %v10289, 536870912
        %v10291 = vshrl.u32 %v10290, 30
        %v10292 = vshll.u32 %v10291, 30
        %v10293 = vsub.s32 %v10289, %v10292
        %vm10294 = vcmp.lt.s32.totalorder %v10293, 0
        %v10295 = vsub.s32 0, %v10293
        %v10296 = vsel %vm10294, %v10295, %v10293
        %v10297 = vclz %v10296
        %v10298 = vsub.s32 %v10297, 2
        %vm10299 = vcmp.gt.s32.totalorder 0, %v10298
        %v10300 = vsel %vm10299, 0, %v10298
        %v10301 = vsub.s32 32, %v10300
        %v10302 = vshll.u32 %v10293, %v10300
        %v10303 = vshrl.u32 %v10285, %v10301
        %v10304 = vor.u32 %v10302, %v10303
        %v10305 = vsub.s32 4294967266, %v10300
        %v10306 = vadd.s32 %v10305, 127
        %v10307 = vshll.u32 %v10306, 23
        %v10308 = vor.u32 4788187, %v10307
        %v10309 = vand.u32 2147483647, %v10308
        %v10311 = vcvt.s32.f32 %v10304
        %v10312 = vmul.f32 %v10311, %v10309
        %v10313 = vxor.u32 %v10312, 2147483648
        %v10314 = vsel %vm10193, %v10313, %v10312
        %v10315 = vsub.s32 4, %v10291
        %v10316 = vsel %vm10193, %v10315, %v10291
        %v10317 = vsel %vm10192, %v397, %v10314
        %v10318 = vsel %vm10192, 0, %v10316
        %v10319 = vmul.f32 %v10317, %v10317
        %v10320 = vmul.f32 %v10319, -0.001358992
        %v10321 = vadd.f32 %v10320, 0.041655596
        %v10322 = vmul.f32 %v10319, %v10321
        %v10323 = vadd.f32 %v10322, -0.4999988
        %v10324 = vmul.f32 %v10319, %v10323
        %v10325 = vadd.f32 1.0, %v10324
        %v10326 = vmul.f32 %v10317, %v10317
        %v10327 = vmul.f32 %v10326, -0.00019511016
        %v10328 = vadd.f32 %v10327, 0.008332121
        %v10329 = vmul.f32 %v10326, %v10328
        %v10330 = vadd.f32 %v10329, -0.16666654
        %v10331 = vmul.f32 %v10326, %v10330
        %v10332 = vadd.f32 %v10331, 1.0
        %v10333 = vmul.f32 %v10332, %v10317
        %vm10334 = vweird.f32 %v397
        %v10335 = vadd.s32 %v10318, 3
        %v10336 = vand.u32 %v10335, 3
        %vm10337 = vcmp.lt.s32.totalorder %v10336, 2
        %vm10338 = vcmp.eq.s32.totalorder %v10336, 0
        %v10339 = vxor.u32 %v10333, 2147483648
        %v10340 = vsel %vm10338, %v10325, %v10339
        %vm10341 = vcmp.eq.s32.totalorder %v10336, 2
        %v10342 = vxor.u32 %v10325, 2147483648
        %v10343 = vsel %vm10341, %v10342, %v10333
        %v10344 = vsel %vm10337, %v10340, %v10343
        %v10345 = vsel %vm10334, nan, %v10344
        %10347 = vset.pattern.permute.xlu0 0
        %10348 = vperm.xlu0 %10347, %v406
        %v10349 = vpop.permute.xlu0 %10348
        %10352 = vset.pattern.permute.xlu0 0
        %10353 = vperm.xlu0 %10352, %v407
        %v10354 = vpop.permute.xlu0 %10353
        %v10356 = vmul.f32 %v10349, %v580
        %v10357 = vmul.f32 %v10349, %v735
        %v10358 = vmul.f32 %v10349, %v890
        %v10359 = vmul.f32 %v10349, %v1045
        %v10360 = vmul.f32 %v10349, %v1200
        %v10361 = vmul.f32 %v10349, %v1355
        %v10362 = vmul.f32 %v10349, %v1510
        %v10363 = vmul.f32 %v10349, %v1665
        %v10364 = vmul.f32 %v10349, %v1820
        %v10365 = vmul.f32 %v10349, %v1975
        %v10366 = vmul.f32 %v10349, %v2130
        %v10367 = vmul.f32 %v10349, %v2285
        %v10368 = vmul.f32 %v10349, %v2440
        %v10369 = vmul.f32 %v10349, %v2595
        %v10370 = vmul.f32 %v10349, %v2750
        %v10371 = vmul.f32 %v10349, %v2905
        %v10372 = vmul.f32 %v10349, %v3060
        %v10373 = vmul.f32 %v10349, %v3215
        %v10374 = vmul.f32 %v10349, %v3370
        %v10375 = vmul.f32 %v10349, %v3525
        %v10376 = vmul.f32 %v10349, %v3680
        %v10377 = vmul.f32 %v10349, %v3835
        %v10378 = vmul.f32 %v10349, %v3990
        %v10379 = vmul.f32 %v10349, %v4145
        %v10380 = vmul.f32 %v10349, %v4300
        %v10381 = vmul.f32 %v10349, %v4455
        %v10382 = vmul.f32 %v10349, %v4610
        %v10383 = vmul.f32 %v10349, %v4765
        %v10384 = vmul.f32 %v10349, %v4920
        %v10385 = vmul.f32 %v10349, %v5075
        %v10386 = vmul.f32 %v10349, %v5230
        %v10387 = vmul.f32 %v10349, %v5385
        %v10388 = vmul.f32 %v10354, %v5540
        %v10389 = vmul.f32 %v10354, %v5695
        %v10390 = vmul.f32 %v10354, %v5850
        %v10391 = vmul.f32 %v10354, %v6005
        %v10392 = vmul.f32 %v10354, %v6160
        %v10393 = vmul.f32 %v10354, %v6315
        %v10394 = vmul.f32 %v10354, %v6470
        %v10395 = vmul.f32 %v10354, %v6625
        %v10396 = vmul.f32 %v10354, %v6780
        %v10397 = vmul.f32 %v10354, %v6935
        %v10398 = vmul.f32 %v10354, %v7090
        %v10399 = vmul.f32 %v10354, %v7245
        %v10400 = vmul.f32 %v10354, %v7400
        %v10401 = vmul.f32 %v10354, %v7555
        %v10402 = vmul.f32 %v10354, %v7710
        %v10403 = vmul.f32 %v10354, %v7865
        %v10404 = vmul.f32 %v10354, %v8020
        %v10405 = vmul.f32 %v10354, %v8175
        %v10406 = vmul.f32 %v10354, %v8330
        %v10407 = vmul.f32 %v10354, %v8485
        %v10408 = vmul.f32 %v10354, %v8640
        %v10409 = vmul.f32 %v10354, %v8795
        %v10410 = vmul.f32 %v10354, %v8950
        %v10411 = vmul.f32 %v10354, %v9105
        %v10412 = vmul.f32 %v10354, %v9260
        %v10413 = vmul.f32 %v10354, %v9415
        %v10414 = vmul.f32 %v10354, %v9570
        %v10415 = vmul.f32 %v10354, %v9725
        %v10416 = vmul.f32 %v10354, %v9880
        %v10417 = vmul.f32 %v10354, %v10035
        %v10418 = vmul.f32 %v10354, %v10190
        %v10419 = vmul.f32 %v10354, %v10345
        %vm10420 = vcmask 1040384
        %v10421 = vsel %vm10420, %v10388, 0.0
        %v10422 = vadd.f32 %v10356, %v10421
        %v10423 = vrot.slane %v10422, 4
        %v10424 = vadd.f32 %v10422, %v10423
        %v10425 = vrot.slane %v10424, 2
        %v10426 = vadd.f32 %v10424, %v10425
        %v10427 = vrot.slane %v10426, 1
        %v10428 = vadd.f32 %v10426, %v10427
        %v10429 = vsel %vm10420, %v10389, 0.0
        %v10430 = vadd.f32 %v10357, %v10429
        %v10431 = vrot.slane %v10430, 4
        %v10432 = vadd.f32 %v10430, %v10431
        %v10433 = vrot.slane %v10432, 2
        %v10434 = vadd.f32 %v10432, %v10433
        %v10435 = vrot.slane %v10434, 1
        %v10436 = vadd.f32 %v10434, %v10435
        %v10437 = vsel %vm10420, %v10390, 0.0
        %v10438 = vadd.f32 %v10358, %v10437
        %v10439 = vrot.slane %v10438, 4
        %v10440 = vadd.f32 %v10438, %v10439
        %v10441 = vrot.slane %v10440, 2
        %v10442 = vadd.f32 %v10440, %v10441
        %v10443 = vrot.slane %v10442, 1
        %v10444 = vadd.f32 %v10442, %v10443
        %v10445 = vsel %vm10420, %v10391, 0.0
        %v10446 = vadd.f32 %v10359, %v10445
        %v10447 = vrot.slane %v10446, 4
        %v10448 = vadd.f32 %v10446, %v10447
        %v10449 = vrot.slane %v10448, 2
        %v10450 = vadd.f32 %v10448, %v10449
        %v10451 = vrot.slane %v10450, 1
        %v10452 = vadd.f32 %v10450, %v10451
        %v10453 = vsel %vm10420, %v10392, 0.0
        %v10454 = vadd.f32 %v10360, %v10453
        %v10455 = vrot.slane %v10454, 4
        %v10456 = vadd.f32 %v10454, %v10455
        %v10457 = vrot.slane %v10456, 2
        %v10458 = vadd.f32 %v10456, %v10457
        %v10459 = vrot.slane %v10458, 1
        %v10460 = vadd.f32 %v10458, %v10459
        %v10461 = vsel %vm10420, %v10393, 0.0
        %v10462 = vadd.f32 %v10361, %v10461
        %v10463 = vrot.slane %v10462, 4
        %v10464 = vadd.f32 %v10462, %v10463
        %v10465 = vrot.slane %v10464, 2
        %v10466 = vadd.f32 %v10464, %v10465
        %v10467 = vrot.slane %v10466, 1
        %v10468 = vadd.f32 %v10466, %v10467
        %v10469 = vsel %vm10420, %v10394, 0.0
        %v10470 = vadd.f32 %v10362, %v10469
        %v10471 = vrot.slane %v10470, 4
        %v10472 = vadd.f32 %v10470, %v10471
        %v10473 = vrot.slane %v10472, 2
        %v10474 = vadd.f32 %v10472, %v10473
        %v10475 = vrot.slane %v10474, 1
        %v10476 = vadd.f32 %v10474, %v10475
        %v10477 = vsel %vm10420, %v10395, 0.0
        %v10478 = vadd.f32 %v10363, %v10477
        %v10479 = vrot.slane %v10478, 4
        %v10480 = vadd.f32 %v10478, %v10479
        %v10481 = vrot.slane %v10480, 2
        %v10482 = vadd.f32 %v10480, %v10481
        %v10483 = vrot.slane %v10482, 1
        %v10484 = vadd.f32 %v10482, %v10483
        %v10485 = vsel %vm10420, %v10396, 0.0
        %v10486 = vadd.f32 %v10364, %v10485
        %v10487 = vrot.slane %v10486, 4
        %v10488 = vadd.f32 %v10486, %v10487
        %v10489 = vrot.slane %v10488, 2
        %v10490 = vadd.f32 %v10488, %v10489
        %v10491 = vrot.slane %v10490, 1
        %v10492 = vadd.f32 %v10490, %v10491
        %v10493 = vsel %vm10420, %v10397, 0.0
        %v10494 = vadd.f32 %v10365, %v10493
        %v10495 = vrot.slane %v10494, 4
        %v10496 = vadd.f32 %v10494, %v10495
        %v10497 = vrot.slane %v10496, 2
        %v10498 = vadd.f32 %v10496, %v10497
        %v10499 = vrot.slane %v10498, 1
        %v10500 = vadd.f32 %v10498, %v10499
        %v10501 = vsel %vm10420, %v10398, 0.0
        %v10502 = vadd.f32 %v10366, %v10501
        %v10503 = vrot.slane %v10502, 4
        %v10504 = vadd.f32 %v10502, %v10503
        %v10505 = vrot.slane %v10504, 2
        %v10506 = vadd.f32 %v10504, %v10505
        %v10507 = vrot.slane %v10506, 1
        %v10508 = vadd.f32 %v10506, %v10507
        %v10509 = vsel %vm10420, %v10399, 0.0
        %v10510 = vadd.f32 %v10367, %v10509
        %v10511 = vrot.slane %v10510, 4
        %v10512 = vadd.f32 %v10510, %v10511
        %v10513 = vrot.slane %v10512, 2
        %v10514 = vadd.f32 %v10512, %v10513
        %v10515 = vrot.slane %v10514, 1
        %v10516 = vadd.f32 %v10514, %v10515
        %v10517 = vsel %vm10420, %v10400, 0.0
        %v10518 = vadd.f32 %v10368, %v10517
        %v10519 = vrot.slane %v10518, 4
        %v10520 = vadd.f32 %v10518, %v10519
        %v10521 = vrot.slane %v10520, 2
        %v10522 = vadd.f32 %v10520, %v10521
        %v10523 = vrot.slane %v10522, 1
        %v10524 = vadd.f32 %v10522, %v10523
        %v10525 = vsel %vm10420, %v10401, 0.0
        %v10526 = vadd.f32 %v10369, %v10525
        %v10527 = vrot.slane %v10526, 4
        %v10528 = vadd.f32 %v10526, %v10527
        %v10529 = vrot.slane %v10528, 2
        %v10530 = vadd.f32 %v10528, %v10529
        %v10531 = vrot.slane %v10530, 1
        %v10532 = vadd.f32 %v10530, %v10531
        %v10533 = vsel %vm10420, %v10402, 0.0
        %v10534 = vadd.f32 %v10370, %v10533
        %v10535 = vrot.slane %v10534, 4
        %v10536 = vadd.f32 %v10534, %v10535
        %v10537 = vrot.slane %v10536, 2
        %v10538 = vadd.f32 %v10536, %v10537
        %v10539 = vrot.slane %v10538, 1
        %v10540 = vadd.f32 %v10538, %v10539
        %v10541 = vsel %vm10420, %v10403, 0.0
        %v10542 = vadd.f32 %v10371, %v10541
        %v10543 = vrot.slane %v10542, 4
        %v10544 = vadd.f32 %v10542, %v10543
        %v10545 = vrot.slane %v10544, 2
        %v10546 = vadd.f32 %v10544, %v10545
        %v10547 = vrot.slane %v10546, 1
        %v10548 = vadd.f32 %v10546, %v10547
        %v10549 = vsel %vm10420, %v10404, 0.0
        %v10550 = vadd.f32 %v10372, %v10549
        %v10551 = vrot.slane %v10550, 4
        %v10552 = vadd.f32 %v10550, %v10551
        %v10553 = vrot.slane %v10552, 2
        %v10554 = vadd.f32 %v10552, %v10553
        %v10555 = vrot.slane %v10554, 1
        %v10556 = vadd.f32 %v10554, %v10555
        %v10557 = vsel %vm10420, %v10405, 0.0
        %v10558 = vadd.f32 %v10373, %v10557
        %v10559 = vrot.slane %v10558, 4
        %v10560 = vadd.f32 %v10558, %v10559
        %v10561 = vrot.slane %v10560, 2
        %v10562 = vadd.f32 %v10560, %v10561
        %v10563 = vrot.slane %v10562, 1
        %v10564 = vadd.f32 %v10562, %v10563
        %v10565 = vsel %vm10420, %v10406, 0.0
        %v10566 = vadd.f32 %v10374, %v10565
        %v10567 = vrot.slane %v10566, 4
        %v10568 = vadd.f32 %v10566, %v10567
        %v10569 = vrot.slane %v10568, 2
        %v10570 = vadd.f32 %v10568, %v10569
        %v10571 = vrot.slane %v10570, 1
        %v10572 = vadd.f32 %v10570, %v10571
        %v10573 = vsel %vm10420, %v10407, 0.0
        %v10574 = vadd.f32 %v10375, %v10573
        %v10575 = vrot.slane %v10574, 4
        %v10576 = vadd.f32 %v10574, %v10575
        %v10577 = vrot.slane %v10576, 2
        %v10578 = vadd.f32 %v10576, %v10577
        %v10579 = vrot.slane %v10578, 1
        %v10580 = vadd.f32 %v10578, %v10579
        %v10581 = vsel %vm10420, %v10408, 0.0
        %v10582 = vadd.f32 %v10376, %v10581
        %v10583 = vrot.slane %v10582, 4
        %v10584 = vadd.f32 %v10582, %v10583
        %v10585 = vrot.slane %v10584, 2
        %v10586 = vadd.f32 %v10584, %v10585
        %v10587 = vrot.slane %v10586, 1
        %v10588 = vadd.f32 %v10586, %v10587
        %v10589 = vsel %vm10420, %v10409, 0.0
        %v10590 = vadd.f32 %v10377, %v10589
        %v10591 = vrot.slane %v10590, 4
        %v10592 = vadd.f32 %v10590, %v10591
        %v10593 = vrot.slane %v10592, 2
        %v10594 = vadd.f32 %v10592, %v10593
        %v10595 = vrot.slane %v10594, 1
        %v10596 = vadd.f32 %v10594, %v10595
        %v10597 = vsel %vm10420, %v10410, 0.0
        %v10598 = vadd.f32 %v10378, %v10597
        %v10599 = vrot.slane %v10598, 4
        %v10600 = vadd.f32 %v10598, %v10599
        %v10601 = vrot.slane %v10600, 2
        %v10602 = vadd.f32 %v10600, %v10601
        %v10603 = vrot.slane %v10602, 1
        %v10604 = vadd.f32 %v10602, %v10603
        %v10605 = vsel %vm10420, %v10411, 0.0
        %v10606 = vadd.f32 %v10379, %v10605
        %v10607 = vrot.slane %v10606, 4
        %v10608 = vadd.f32 %v10606, %v10607
        %v10609 = vrot.slane %v10608, 2
        %v10610 = vadd.f32 %v10608, %v10609
        %v10611 = vrot.slane %v10610, 1
        %v10612 = vadd.f32 %v10610, %v10611
        %v10613 = vsel %vm10420, %v10412, 0.0
        %v10614 = vadd.f32 %v10380, %v10613
        %v10615 = vrot.slane %v10614, 4
        %v10616 = vadd.f32 %v10614, %v10615
        %v10617 = vrot.slane %v10616, 2
        %v10618 = vadd.f32 %v10616, %v10617
        %v10619 = vrot.slane %v10618, 1
        %v10620 = vadd.f32 %v10618, %v10619
        %v10621 = vsel %vm10420, %v10413, 0.0
        %v10622 = vadd.f32 %v10381, %v10621
        %v10623 = vrot.slane %v10622, 4
        %v10624 = vadd.f32 %v10622, %v10623
        %v10625 = vrot.slane %v10624, 2
        %v10626 = vadd.f32 %v10624, %v10625
        %v10627 = vrot.slane %v10626, 1
        %v10628 = vadd.f32 %v10626, %v10627
        %v10629 = vsel %vm10420, %v10414, 0.0
        %v10630 = vadd.f32 %v10382, %v10629
        %v10631 = vrot.slane %v10630, 4
        %v10632 = vadd.f32 %v10630, %v10631
        %v10633 = vrot.slane %v10632, 2
        %v10634 = vadd.f32 %v10632, %v10633
        %v10635 = vrot.slane %v10634, 1
        %v10636 = vadd.f32 %v10634, %v10635
        %v10637 = vsel %vm10420, %v10415, 0.0
        %v10638 = vadd.f32 %v10383, %v10637
        %v10639 = vrot.slane %v10638, 4
        %v10640 = vadd.f32 %v10638, %v10639
        %v10641 = vrot.slane %v10640, 2
        %v10642 = vadd.f32 %v10640, %v10641
        %v10643 = vrot.slane %v10642, 1
        %v10644 = vadd.f32 %v10642, %v10643
        %v10645 = vsel %vm10420, %v10416, 0.0
        %v10646 = vadd.f32 %v10384, %v10645
        %v10647 = vrot.slane %v10646, 4
        %v10648 = vadd.f32 %v10646, %v10647
        %v10649 = vrot.slane %v10648, 2
        %v10650 = vadd.f32 %v10648, %v10649
        %v10651 = vrot.slane %v10650, 1
        %v10652 = vadd.f32 %v10650, %v10651
        %v10653 = vsel %vm10420, %v10417, 0.0
        %v10654 = vadd.f32 %v10385, %v10653
        %v10655 = vrot.slane %v10654, 4
        %v10656 = vadd.f32 %v10654, %v10655
        %v10657 = vrot.slane %v10656, 2
        %v10658 = vadd.f32 %v10656, %v10657
        %v10659 = vrot.slane %v10658, 1
        %v10660 = vadd.f32 %v10658, %v10659
        %v10661 = vsel %vm10420, %v10418, 0.0
        %v10662 = vadd.f32 %v10386, %v10661
        %v10663 = vrot.slane %v10662, 4
        %v10664 = vadd.f32 %v10662, %v10663
        %v10665 = vrot.slane %v10664, 2
        %v10666 = vadd.f32 %v10664, %v10665
        %v10667 = vrot.slane %v10666, 1
        %v10668 = vadd.f32 %v10666, %v10667
        %v10669 = vsel %vm10420, %v10419, 0.0
        %v10670 = vadd.f32 %v10387, %v10669
        %v10671 = vrot.slane %v10670, 4
        %v10672 = vadd.f32 %v10670, %v10671
        %v10673 = vrot.slane %v10672, 2
        %v10674 = vadd.f32 %v10672, %v10673
        %v10675 = vrot.slane %v10674, 1
        %v10676 = vadd.f32 %v10674, %v10675
        %v10677 = vmul.f32 %v418, 0.1
        %v10678 = vmul.f32 %v419, 0.1
        %v10679 = vmul.f32 %v420, 0.1
        %v10680 = vmul.f32 %v421, 0.1
        %v10713 = vrot.slane %v10436, 7
        %v10714 = vrot.slane %v10444, 6
        %v10715 = vrot.slane %v10452, 5
        %v10716 = vrot.slane %v10460, 4
        %v10717 = vrot.slane %v10468, 3
        %v10718 = vrot.slane %v10476, 2
        %v10719 = vrot.slane %v10484, 1
        %v10720 = vrot.slane %v10500, 7
        %v10721 = vrot.slane %v10508, 6
        %v10722 = vrot.slane %v10516, 5
        %v10723 = vrot.slane %v10524, 4
        %v10724 = vrot.slane %v10532, 3
        %v10725 = vrot.slane %v10540, 2
        %v10726 = vrot.slane %v10548, 1
        %v10727 = vrot.slane %v10564, 7
        %v10728 = vrot.slane %v10572, 6
        %v10729 = vrot.slane %v10580, 5
        %v10730 = vrot.slane %v10588, 4
        %v10731 = vrot.slane %v10596, 3
        %v10732 = vrot.slane %v10604, 2
        %v10733 = vrot.slane %v10612, 1
        %v10734 = vrot.slane %v10628, 7
        %v10735 = vrot.slane %v10636, 6
        %v10736 = vrot.slane %v10644, 5
        %v10737 = vrot.slane %v10652, 4
        %v10738 = vrot.slane %v10660, 3
        %v10739 = vrot.slane %v10668, 2
        %v10740 = vrot.slane %v10676, 1
        %v10741 = vsel %vm10420, %v10428, %v10713
        %vm10742 = vcmask 1042434
        %v10743 = vsel %vm10742, %v10714, %v10715
        %vm10744 = vcmask 1041408
        %v10745 = vsel %vm10744, %v10741, %v10743
        %vm10746 = vcmask 1044484
        %v10747 = vsel %vm10746, %v10716, %v10717
        %vm10748 = vcmask 1046534
        %v10749 = vsel %vm10748, %v10718, %v10719
        %vm10750 = vcmask 1045508
        %v10751 = vsel %vm10750, %v10747, %v10749
        %vm10752 = vcmask 1043456
        %v10753 = vsel %vm10752, %v10745, %v10751
        %v10754 = vsel %vm10420, %v10492, %v10720
        %v10755 = vsel %vm10742, %v10721, %v10722
        %v10756 = vsel %vm10744, %v10754, %v10755
        %v10757 = vsel %vm10746, %v10723, %v10724
        %v10758 = vsel %vm10748, %v10725, %v10726
        %v10759 = vsel %vm10750, %v10757, %v10758
        %v10760 = vsel %vm10752, %v10756, %v10759
        %v10761 = vsel %vm10420, %v10556, %v10727
        %v10762 = vsel %vm10742, %v10728, %v10729
        %v10763 = vsel %vm10744, %v10761, %v10762
        %v10764 = vsel %vm10746, %v10730, %v10731
        %v10765 = vsel %vm10748, %v10732, %v10733
        %v10766 = vsel %vm10750, %v10764, %v10765
        %v10767 = vsel %vm10752, %v10763, %v10766
        %v10768 = vsel %vm10420, %v10620, %v10734
        %v10769 = vsel %vm10742, %v10735, %v10736
        %v10770 = vsel %vm10744, %v10768, %v10769
        %v10771 = vsel %vm10746, %v10737, %v10738
        %v10772 = vsel %vm10748, %v10739, %v10740
        %v10773 = vsel %vm10750, %v10771, %v10772
        %v10774 = vsel %vm10752, %v10770, %v10773
        %v10779 = vmul.f32 %v10677, %v10753
        %v10780 = vmul.f32 %v10678, %v10760
        %v10781 = vmul.f32 %v10679, %v10767
        %v10782 = vmul.f32 %v10680, %v10774
        %v10783 = vstv %s409
        %v10784 = vmul.f32 %v422, %v10783
        %v10785 = vmul.f32 %v423, %v10783
        %v10786 = vmul.f32 %v424, %v10783
        %v10787 = vmul.f32 %v425, %v10783
        %v10788 = vmul.f32 %v10784, %v402
        %v10789 = vmul.f32 %v10785, %v403
        %v10790 = vmul.f32 %v10786, %v404
        %v10791 = vmul.f32 %v10787, %v405
        %v10792 = vadd.f32 %v10779, %v10788
        %v10793 = vadd.f32 %v10780, %v10789
        %v10794 = vadd.f32 %v10781, %v10790
        %v10795 = vadd.f32 %v10782, %v10791
        %v10796 = vstv %s408
        %v10797 = vadd.f32 %v10792, %v10796
        %v10798 = vadd.f32 %v10793, %v10796
        %v10799 = vadd.f32 %v10794, %v10796
        %v10800 = vadd.f32 %v10795, %v10796
        %v10801 = vtanh.pop %v10797
        %v10802 = vtanh.pop %v10798
        %v10803 = vtanh.pop %v10799
        %v10804 = vtanh.pop %v10800
        %10805 = vst [vmem:[%s304] sm:$0xff] %v10801
        %10806 = vst [vmem:[%s304 + $0x8] sm:$0xff] %v10802
        %10807 = vst [vmem:[%s304 + $0x10] sm:$0xff] %v10803
        %10808 = vst [vmem:[%s304 + $0x18] sm:$0xff] %v10804
        %s10809 = sand.u32 %s168, 1
        %s10810 = scalar_lea.sflag [#allocation3], %s10809
        %s10811 = sand.u32 %s168, 1
        %s10812 = smul.addr %s10811, 32
        %s10813 = scalar_lea.vmem [#allocation5], %s10812
        // Predicated region
        $region45: #{source_module_hn_nsf.3} parent=39 // pred_check
          %p10814 = pneg %p178
        $region46: #{source_module_hn_nsf.3} parent=39 // pred_check_branch
          %10816 = sbr.rel (%p10814) target = $region48
        $region47: #{source_module_hn_nsf.3} parent=39 // pred_region
          %s10817 = smul.u32 32, %s25
          %10819 = vsyncadd %s10810, 0
          %s10820 = smul.addr %s24, 32
          %s10821 = sadd.s32 %s10817, %s10820
          %s10822 = scalar_lea.hbm %s5, %s10821
          %s10824 = sshll.u32 %s10813, 4
          %s10825 = int_to_ptr.vmem [resolvable:$true] %s10824
          %s10826 = sshll.u32 %s10822, 4
          %s10827 = int_to_ptr.hbm [resolvable:$true] %s10826
          %10829 = dma.vmem_to_hbm [thread:$0]  %s10825, 512, %s10827, %s10810
        $region48: #{source_module_hn_nsf.3} parent=39 // pred_fallthru
          _
      $region40: #{source_module_hn_nsf.3} parent=5 // pred_fallthru
        _
      %p10830 = scmp.le.s32.totalorder 2, %s15
      // Predicated region
      $region49: #{source_module_hn_nsf.3} parent=5 // pred_check
        %p10831 = pneg %p10830
      $region50: #{source_module_hn_nsf.3} parent=5 // pred_check_branch
        %10833 = sbr.rel (%p10831) target = $region52
      $region51: #{source_module_hn_nsf.3} parent=5 // pred_region
        %s10834 = ssub.s32 %s15, 2
        // Predicated region
        $region53: #{source_module_hn_nsf.3} parent=51 // pred_check
          %p10835 = pneg %p184
        $region54: #{source_module_hn_nsf.3} parent=51 // pred_check_branch
          %10837 = sbr.rel (%p10835) target = $region56
        $region55: #{source_module_hn_nsf.3} parent=51 // pred_region
          %s10838 = sand.u32 %s169, 1
          %s10839 = scalar_lea.sflag [#allocation3], %s10838
          %s10840 = sand.u32 %s169, 1
          %s10841 = smul.addr %s10840, 32
          %s10842 = scalar_lea.vmem [#allocation5], %s10841
          %10844 = dma.done %s10839, 512
        $region56: #{source_module_hn_nsf.3} parent=51 // pred_fallthru
          _
      $region52: #{source_module_hn_nsf.3} parent=5 // pred_fallthru
        _
    $region6: #{source_module_hn_nsf.3} parent=1 // loop_footer
      %s19 = sadd.s32 1, %s15
    $region7: #{source_module_hn_nsf.3} parent=1 // loop_footer_branch
      %14 = sbr.rel target = $region3
    $region8: #{source_module_hn_nsf.3} parent=1 // loop_exit
      _
    %10845 = vsyncpa [#allocation3], 1
    %s10846 = scalar_lea.sflag [#allocation3], 1
    %10847 = vsyncpa %s10846, 1
    %10848 = vsyncpa [#allocation4], 1
    %s10849 = scalar_lea.sflag [#allocation4], 1
    %10850 = vsyncpa %s10849, 1

</llo_original>
